<compile_context>
chip_gen: v7x
topology: tpu7x:2x2x1
jax: 0.10.0
libtpu: 0.0.40
codegen_flags: <defaults>
</compile_context>

<pallas_src>
import jax
import jax.numpy as jnp
import numpy as np
from jax import lax
from jax.experimental import pallas as pl
from jax.experimental.pallas import tpu as pltpu


# ----------------------------- Pallas kernel -------------------------------- #
def lstm_encoder_kernel(gamma_ref,      # SMEM (2,)       [gamma1, gamma2]
                        emb_ref,        # VMEM (T, B, E)  time-major embeddings
                        wih_ref,        # VMEM (E, 8H)    [fwd i,f,g,o | bwd i,f,g,o]
                        bih_ref,        # VMEM (1, 8H)    fused b_ih + b_hh, same order
                        whh_ref,        # VMEM (8, H, H)  gate-major recurrent weights
                        wmean_ref,      # VMEM (2, H, Z)  [fwd half, bwd half]
                        bmean_ref,      # VMEM (1, Z)
                        wlogvar_ref,    # VMEM (2, H, Z)
                        blogvar_ref,    # VMEM (1, Z)
                        out_ref,        # VMEM (2, B, Z)  [mean ; var]
                        xproj_ref):     # VMEM scratch (T, 8, B, H)
    T, B, _E = emb_ref.shape
    H = whh_ref.shape[1]

    # ---- Phase 1: hoisted input projection (bias folded), gate-major scratch ----
    # Independent per-timestep MXU dots; they pipeline and are completely off the
    # recurrent critical path.
    wih = wih_ref[...]            # (E, 8H)
    bih = bih_ref[...]            # (1, 8H)
    for t in range(T):
        xp = jnp.dot(emb_ref[t], wih, preferred_element_type=jnp.float32) + bih  # (B, 8H)
        for k in range(8):        # split into per-(direction, gate) (B, H) tiles once
            xproj_ref[t, k] = xp[:, k * H:(k + 1) * H]

    # ---- Phase 2: fused, unrolled bidirectional recurrence (h @ Whh only) ----
    whh = [whh_ref[k] for k in range(8)]          # eight (H, H) gate weights, loaded once
    zeros = jnp.zeros((B, H), jnp.float32)

    def step(t, carry):
        h_f, c_f, h_b, c_b = carry
        tb = T - 1 - t            # backward direction = reverse scan

        def rdot(h, k):
            return jnp.dot(h, whh[k], preferred_element_type=jnp.float32)

        # forward direction gate pre-activations (PyTorch gate order i, f, g, o)
        pi = xproj_ref[t, 0] + rdot(h_f, 0)
        pf = xproj_ref[t, 1] + rdot(h_f, 1)
        pg = xproj_ref[t, 2] + rdot(h_f, 2)
        po = xproj_ref[t, 3] + rdot(h_f, 3)
        # backward direction
        qi = xproj_ref[tb, 4] + rdot(h_b, 4)
        qf = xproj_ref[tb, 5] + rdot(h_b, 5)
        qg = xproj_ref[tb, 6] + rdot(h_b, 6)
        qo = xproj_ref[tb, 7] + rdot(h_b, 7)

        c_f_new = jax.nn.sigmoid(pf) * c_f + jax.nn.sigmoid(pi) * jnp.tanh(pg)
        h_f_new = jax.nn.sigmoid(po) * jnp.tanh(c_f_new)
        c_b_new = jax.nn.sigmoid(qf) * c_b + jax.nn.sigmoid(qi) * jnp.tanh(qg)
        h_b_new = jax.nn.sigmoid(qo) * jnp.tanh(c_b_new)
        return h_f_new, c_f_new, h_b_new, c_b_new

    h_f, _cf, h_b, _cb = lax.fori_loop(0, T, step, (zeros, zeros, zeros, zeros),
                                       unroll=True)

    # ---- Phase 3: output linears (split-matmul concat), BN-VAE, exp ----
    mean = (jnp.dot(h_f, wmean_ref[0], preferred_element_type=jnp.float32)
            + jnp.dot(h_b, wmean_ref[1], preferred_element_type=jnp.float32)
            + bmean_ref[...])
    logvar = (jnp.dot(h_f, wlogvar_ref[0], preferred_element_type=jnp.float32)
              + jnp.dot(h_b, wlogvar_ref[1], preferred_element_type=jnp.float32)
              + blogvar_ref[...])

    eps = 1e-5

    def batchnorm(x):   # BatchNorm1d, training-mode batch stats, weight=1, bias=0
        mu = jnp.mean(x, axis=0, keepdims=True)
        var = jnp.mean((x - mu) ** 2, axis=0, keepdims=True)
        return (x - mu) * lax.rsqrt(var + eps)

    out_ref[0] = gamma_ref[0] * batchnorm(mean)
    out_ref[1] = jnp.exp(gamma_ref[1] * batchnorm(logvar))


# ------------------------------- wrapper ------------------------------------ #
def gaussian_lstm_encoder1(x_tokens, params):
    # Embedding lookup (gather) stays in plain JAX glue.
    emb = params['embed'][x_tokens].astype(jnp.float32)   # (B, T, E)
    emb = jnp.transpose(emb, (1, 0, 2))                   # (T, B, E) time-major

    B = x_tokens.shape[0]
    T = x_tokens.shape[1]
    H = params['whh_f'].shape[0]
    Z = params['wmean'].shape[1]

    # Weight repacking (cheap, done once per call in XLA glue):
    #  - input weights + biases concatenated over both directions (bias folded later)
    #  - recurrent weights split gate-major so the kernel never lane-slices in-loop
    #  - output linears split into forward/backward halves
    wih_cat = jnp.concatenate([params['wih_f'], params['wih_b']], axis=1)   # (E, 8H)
    bih_cat = jnp.concatenate([params['b_f'], params['b_b']], axis=1)       # (1, 8H)
    whh_gates = jnp.concatenate(
        [params['whh_f'].reshape(H, 4, H).transpose(1, 0, 2),
         params['whh_b'].reshape(H, 4, H).transpose(1, 0, 2)], axis=0)      # (8, H, H)
    wmean_g = params['wmean'].reshape(2, H, Z)
    wlogvar_g = params['wlogvar'].reshape(2, H, Z)

    vmem = pl.BlockSpec(memory_space=pltpu.MemorySpace.VMEM)
    smem = pl.BlockSpec(memory_space=pltpu.MemorySpace.SMEM)

    out = pl.pallas_call(
        lstm_encoder_kernel,
        out_shape=jax.ShapeDtypeStruct((2, B, Z), jnp.float32),
        in_specs=[smem] + [vmem] * 8,
        out_specs=vmem,
        scratch_shapes=[pltpu.VMEM((T, 8, B, H), jnp.float32)],
        compiler_params=pltpu.CompilerParams(vmem_limit_bytes=32 * 1024 * 1024),
    )(params['gamma'], emb, wih_cat, bih_cat, whh_gates,
      wmean_g, params['bmean'], wlogvar_g, params['blogvar'])
    return out[0], out[1]


# ------------------------- deterministic parameters -------------------------- #
def init_params(key, vocab_size, embed_dim, hid_size, dim_z, tau):
    ks = jax.random.split(key, 13)
    s_lstm = 1.0 / np.sqrt(hid_size)
    s_lin = 1.0 / np.sqrt(2 * hid_size)

    def u(k, shape, s):
        return jax.random.uniform(k, shape, jnp.float32, -s, s)

    theta = 0.5
    gamma1 = np.sqrt(tau + (1.0 - tau) * (1.0 / (1.0 + np.exp(-theta))))
    gamma2 = np.sqrt((1.0 - tau) * (1.0 / (1.0 + np.exp(theta))))

    return {
        'embed':   jax.random.normal(ks[0], (vocab_size, embed_dim), jnp.float32),
        # PyTorch weight_ih (4H, E) / weight_hh (4H, H) stored pre-transposed.
        'wih_f':   u(ks[1], (embed_dim, 4 * hid_size), s_lstm),
        'whh_f':   u(ks[2], (hid_size, 4 * hid_size), s_lstm),
        'b_f':     u(ks[3], (1, 4 * hid_size), s_lstm) + u(ks[4], (1, 4 * hid_size), s_lstm),
        'wih_b':   u(ks[5], (embed_dim, 4 * hid_size), s_lstm),
        'whh_b':   u(ks[6], (hid_size, 4 * hid_size), s_lstm),
        'b_b':     u(ks[7], (1, 4 * hid_size), s_lstm) + u(ks[8], (1, 4 * hid_size), s_lstm),
        'wmean':   u(ks[9], (2 * hid_size, dim_z), s_lin),
        'bmean':   u(ks[10], (1, dim_z), s_lin),
        'wlogvar': u(ks[11], (2 * hid_size, dim_z), s_lin),
        'blogvar': u(ks[12], (1, dim_z), s_lin),
        'gamma':   jnp.array([gamma1, gamma2], jnp.float32),
    }


# ---------------------------- pure-JAX reference ------------------------------ #
def reference(x_tokens, params):
    emb = params['embed'][x_tokens]              # (B, T, E)
    seq = jnp.transpose(emb, (1, 0, 2))          # (T, B, E)
    T, B, _ = seq.shape
    H = params['whh_f'].shape[0]

    def run_dir(s, wih, whh, b):
        h = jnp.zeros((B, H), jnp.float32)
        c = jnp.zeros((B, H), jnp.float32)
        for t in range(T):
            gates = s[t] @ wih + h @ whh + b
            i = jax.nn.sigmoid(gates[:, :H])
            f = jax.nn.sigmoid(gates[:, H:2 * H])
            g = jnp.tanh(gates[:, 2 * H:3 * H])
            o = jax.nn.sigmoid(gates[:, 3 * H:])
            c = f * c + i * g
            h = o * jnp.tanh(c)
        return h

    h_f = run_dir(seq, params['wih_f'], params['whh_f'], params['b_f'])
    h_b = run_dir(seq[::-1], params['wih_b'], params['whh_b'], params['b_b'])
    bid = jnp.concatenate([h_f, h_b], axis=-1)
    mean = bid @ params['wmean'] + params['bmean']
    logvar = bid @ params['wlogvar'] + params['blogvar']

    def bn(x):
        mu = x.mean(0, keepdims=True)
        v = ((x - mu) ** 2).mean(0, keepdims=True)
        return (x - mu) / jnp.sqrt(v + 1e-5)

    g1, g2 = params['gamma'][0], params['gamma'][1]
    return g1 * bn(mean), jnp.exp(g2 * bn(logvar))


if __name__ == "__main__":
    vocab_size, embed_dim, hid_size, dim_z, tau = 50, 16, 32, 8, 0.5
    B, T = 4, 8

    key = jax.random.PRNGKey(0)
    k_param, k_x = jax.random.split(key)
    params = init_params(k_param, vocab_size, embed_dim, hid_size, dim_z, tau)
    x = jax.random.randint(k_x, (B, T), 0, vocab_size, dtype=jnp.int32)

    mean, var = gaussian_lstm_encoder1(x, params)
    jax.block_until_ready((mean, var))

    ref_mean, ref_var = reference(x, params)
    assert mean.shape == (B, dim_z) and var.shape == (B, dim_z)
    assert np.allclose(np.asarray(mean), np.asarray(ref_mean), atol=2e-3, rtol=2e-3)
    assert np.allclose(np.asarray(var), np.asarray(ref_var), atol=2e-3, rtol=2e-3)

    print("KERNEL_OK")
</pallas_src>

<mosaic_0001>
module attributes {stable_mosaic.version = 11 : i64} {
  func.func @lstm_encoder_kernel(%arg0: memref<2xf32, #tpu.memory_space<smem>>, %arg1: memref<8x4x16xf32, #tpu.memory_space<vmem>>, %arg2: memref<16x256xf32, #tpu.memory_space<vmem>>, %arg3: memref<1x256xf32, #tpu.memory_space<vmem>>, %arg4: memref<8x32x32xf32, #tpu.memory_space<vmem>>, %arg5: memref<2x32x8xf32, #tpu.memory_space<vmem>>, %arg6: memref<1x8xf32, #tpu.memory_space<vmem>>, %arg7: memref<2x32x8xf32, #tpu.memory_space<vmem>>, %arg8: memref<1x8xf32, #tpu.memory_space<vmem>>, %arg9: memref<2x4x8xf32, #tpu.memory_space<vmem>>, %arg10: memref<8x8x4x32xf32, #tpu.memory_space<vmem>>) attributes {dimension_semantics = [], scalar_prefetch = 0 : i64, scratch_operands = 1 : i64, tpu.core_type = #tpu.core_type<tc>} {
    %c0 = arith.constant 0 : index
    %c0_0 = arith.constant 0 : index
    %0 = vector.load %arg2[%c0, %c0_0] : memref<16x256xf32, #tpu.memory_space<vmem>>, vector<16x256xf32>
    %c0_1 = arith.constant 0 : index
    %c0_2 = arith.constant 0 : index
    %1 = vector.load %arg3[%c0_1, %c0_2] : memref<1x256xf32, #tpu.memory_space<vmem>>, vector<1x256xf32>
    %c0_3 = arith.constant 0 : index
    %c0_4 = arith.constant 0 : index
    %c0_5 = arith.constant 0 : index
    %2 = vector.load %arg1[%c0_3, %c0_4, %c0_5] : memref<8x4x16xf32, #tpu.memory_space<vmem>>, vector<1x4x16xf32>
    %3 = vector.shape_cast %2 : vector<1x4x16xf32> to vector<4x16xf32>
    %cst = arith.constant dense<0.000000e+00> : vector<4x256xf32>
    %4 = tpu.matmul %3, %0, %cst {dimension_numbers = #tpu.dot_dimension_numbers<[1], [0], [0], [1], [0, 0, 1, 1], [], []>} : vector<4x16xf32>, vector<16x256xf32>, vector<4x256xf32> -> vector<4x256xf32>
    %5 = vector.broadcast %1 : vector<1x256xf32> to vector<4x256xf32>
    %6 = arith.addf %4, %5 : vector<4x256xf32>
    %7 = vector.extract_strided_slice %6 {offsets = [0, 0], sizes = [4, 32], strides = [1, 1]} : vector<4x256xf32> to vector<4x32xf32>
    %c0_6 = arith.constant 0 : index
    %c0_7 = arith.constant 0 : index
    %c0_8 = arith.constant 0 : index
    %c0_9 = arith.constant 0 : index
    %8 = vector.load %arg10[%c0_6, %c0_7, %c0_8, %c0_9] : memref<8x8x4x32xf32, #tpu.memory_space<vmem>>, vector<1x1x4x32xf32>
    %9 = vector.shape_cast %8 : vector<1x1x4x32xf32> to vector<4x32xf32>
    %10 = vector.shape_cast %7 : vector<4x32xf32> to vector<1x1x4x32xf32>
    tpu.vector_store %arg10[%c0_6, %c0_7, %c0_8, %c0_9], %10 {strides = array<i32>} : memref<8x8x4x32xf32, #tpu.memory_space<vmem>>, vector<1x1x4x32xf32>,
    %11 = vector.extract_strided_slice %6 {offsets = [0, 32], sizes = [4, 32], strides = [1, 1]} : vector<4x256xf32> to vector<4x32xf32>
    %c0_10 = arith.constant 0 : index
    %c1 = arith.constant 1 : index
    %c0_11 = arith.constant 0 : index
    %c0_12 = arith.constant 0 : index
    %12 = vector.load %arg10[%c0_10, %c1, %c0_11, %c0_12] : memref<8x8x4x32xf32, #tpu.memory_space<vmem>>, vector<1x1x4x32xf32>
    %13 = vector.shape_cast %12 : vector<1x1x4x32xf32> to vector<4x32xf32>
    %14 = vector.shape_cast %11 : vector<4x32xf32> to vector<1x1x4x32xf32>
    tpu.vector_store %arg10[%c0_10, %c1, %c0_11, %c0_12], %14 {strides = array<i32>} : memref<8x8x4x32xf32, #tpu.memory_space<vmem>>, vector<1x1x4x32xf32>,
    %15 = vector.extract_strided_slice %6 {offsets = [0, 64], sizes = [4, 32], strides = [1, 1]} : vector<4x256xf32> to vector<4x32xf32>
    %c0_13 = arith.constant 0 : index
    %c2 = arith.constant 2 : index
    %c0_14 = arith.constant 0 : index
    %c0_15 = arith.constant 0 : index
    %16 = vector.load %arg10[%c0_13, %c2, %c0_14, %c0_15] : memref<8x8x4x32xf32, #tpu.memory_space<vmem>>, vector<1x1x4x32xf32>
    %17 = vector.shape_cast %16 : vector<1x1x4x32xf32> to vector<4x32xf32>
    %18 = vector.shape_cast %15 : vector<4x32xf32> to vector<1x1x4x32xf32>
    tpu.vector_store %arg10[%c0_13, %c2, %c0_14, %c0_15], %18 {strides = array<i32>} : memref<8x8x4x32xf32, #tpu.memory_space<vmem>>, vector<1x1x4x32xf32>,
    %19 = vector.extract_strided_slice %6 {offsets = [0, 96], sizes = [4, 32], strides = [1, 1]} : vector<4x256xf32> to vector<4x32xf32>
    %c0_16 = arith.constant 0 : index
    %c3 = arith.constant 3 : index
    %c0_17 = arith.constant 0 : index
    %c0_18 = arith.constant 0 : index
    %20 = vector.load %arg10[%c0_16, %c3, %c0_17, %c0_18] : memref<8x8x4x32xf32, #tpu.memory_space<vmem>>, vector<1x1x4x32xf32>
    %21 = vector.shape_cast %20 : vector<1x1x4x32xf32> to vector<4x32xf32>
    %22 = vector.shape_cast %19 : vector<4x32xf32> to vector<1x1x4x32xf32>
    tpu.vector_store %arg10[%c0_16, %c3, %c0_17, %c0_18], %22 {strides = array<i32>} : memref<8x8x4x32xf32, #tpu.memory_space<vmem>>, vector<1x1x4x32xf32>,
    %23 = vector.extract_strided_slice %6 {offsets = [0, 128], sizes = [4, 32], strides = [1, 1]} : vector<4x256xf32> to vector<4x32xf32>
    %c0_19 = arith.constant 0 : index
    %c4 = arith.constant 4 : index
    %c0_20 = arith.constant 0 : index
    %c0_21 = arith.constant 0 : index
    %24 = vector.load %arg10[%c0_19, %c4, %c0_20, %c0_21] : memref<8x8x4x32xf32, #tpu.memory_space<vmem>>, vector<1x1x4x32xf32>
    %25 = vector.shape_cast %24 : vector<1x1x4x32xf32> to vector<4x32xf32>
    %26 = vector.shape_cast %23 : vector<4x32xf32> to vector<1x1x4x32xf32>
    tpu.vector_store %arg10[%c0_19, %c4, %c0_20, %c0_21], %26 {strides = array<i32>} : memref<8x8x4x32xf32, #tpu.memory_space<vmem>>, vector<1x1x4x32xf32>,
    %27 = vector.extract_strided_slice %6 {offsets = [0, 160], sizes = [4, 32], strides = [1, 1]} : vector<4x256xf32> to vector<4x32xf32>
    %c0_22 = arith.constant 0 : index
    %c5 = arith.constant 5 : index
    %c0_23 = arith.constant 0 : index
    %c0_24 = arith.constant 0 : index
    %28 = vector.load %arg10[%c0_22, %c5, %c0_23, %c0_24] : memref<8x8x4x32xf32, #tpu.memory_space<vmem>>, vector<1x1x4x32xf32>
    %29 = vector.shape_cast %28 : vector<1x1x4x32xf32> to vector<4x32xf32>
    %30 = vector.shape_cast %27 : vector<4x32xf32> to vector<1x1x4x32xf32>
    tpu.vector_store %arg10[%c0_22, %c5, %c0_23, %c0_24], %30 {strides = array<i32>} : memref<8x8x4x32xf32, #tpu.memory_space<vmem>>, vector<1x1x4x32xf32>,
    %31 = vector.extract_strided_slice %6 {offsets = [0, 192], sizes = [4, 32], strides = [1, 1]} : vector<4x256xf32> to vector<4x32xf32>
    %c0_25 = arith.constant 0 : index
    %c6 = arith.constant 6 : index
    %c0_26 = arith.constant 0 : index
    %c0_27 = arith.constant 0 : index
    %32 = vector.load %arg10[%c0_25, %c6, %c0_26, %c0_27] : memref<8x8x4x32xf32, #tpu.memory_space<vmem>>, vector<1x1x4x32xf32>
    %33 = vector.shape_cast %32 : vector<1x1x4x32xf32> to vector<4x32xf32>
    %34 = vector.shape_cast %31 : vector<4x32xf32> to vector<1x1x4x32xf32>
    tpu.vector_store %arg10[%c0_25, %c6, %c0_26, %c0_27], %34 {strides = array<i32>} : memref<8x8x4x32xf32, #tpu.memory_space<vmem>>, vector<1x1x4x32xf32>,
    %35 = vector.extract_strided_slice %6 {offsets = [0, 224], sizes = [4, 32], strides = [1, 1]} : vector<4x256xf32> to vector<4x32xf32>
    %c0_28 = arith.constant 0 : index
    %c7 = arith.constant 7 : index
    %c0_29 = arith.constant 0 : index
    %c0_30 = arith.constant 0 : index
    %36 = vector.load %arg10[%c0_28, %c7, %c0_29, %c0_30] : memref<8x8x4x32xf32, #tpu.memory_space<vmem>>, vector<1x1x4x32xf32>
    %37 = vector.shape_cast %36 : vector<1x1x4x32xf32> to vector<4x32xf32>
    %38 = vector.shape_cast %35 : vector<4x32xf32> to vector<1x1x4x32xf32>
    tpu.vector_store %arg10[%c0_28, %c7, %c0_29, %c0_30], %38 {strides = array<i32>} : memref<8x8x4x32xf32, #tpu.memory_space<vmem>>, vector<1x1x4x32xf32>,
    %c1_31 = arith.constant 1 : index
    %c0_32 = arith.constant 0 : index
    %c0_33 = arith.constant 0 : index
    %39 = vector.load %arg1[%c1_31, %c0_32, %c0_33] : memref<8x4x16xf32, #tpu.memory_space<vmem>>, vector<1x4x16xf32>
    %40 = vector.shape_cast %39 : vector<1x4x16xf32> to vector<4x16xf32>
    %cst_34 = arith.constant dense<0.000000e+00> : vector<4x256xf32>
    %41 = tpu.matmul %40, %0, %cst_34 {dimension_numbers = #tpu.dot_dimension_numbers<[1], [0], [0], [1], [0, 0, 1, 1], [], []>} : vector<4x16xf32>, vector<16x256xf32>, vector<4x256xf32> -> vector<4x256xf32>
    %42 = vector.broadcast %1 : vector<1x256xf32> to vector<4x256xf32>
    %43 = arith.addf %41, %42 : vector<4x256xf32>
    %44 = vector.extract_strided_slice %43 {offsets = [0, 0], sizes = [4, 32], strides = [1, 1]} : vector<4x256xf32> to vector<4x32xf32>
    %c1_35 = arith.constant 1 : index
    %c0_36 = arith.constant 0 : index
    %c0_37 = arith.constant 0 : index
    %c0_38 = arith.constant 0 : index
    %45 = vector.load %arg10[%c1_35, %c0_36, %c0_37, %c0_38] : memref<8x8x4x32xf32, #tpu.memory_space<vmem>>, vector<1x1x4x32xf32>
    %46 = vector.shape_cast %45 : vector<1x1x4x32xf32> to vector<4x32xf32>
    %47 = vector.shape_cast %44 : vector<4x32xf32> to vector<1x1x4x32xf32>
    tpu.vector_store %arg10[%c1_35, %c0_36, %c0_37, %c0_38], %47 {strides = array<i32>} : memref<8x8x4x32xf32, #tpu.memory_space<vmem>>, vector<1x1x4x32xf32>,
    %48 = vector.extract_strided_slice %43 {offsets = [0, 32], sizes = [4, 32], strides = [1, 1]} : vector<4x256xf32> to vector<4x32xf32>
    %c1_39 = arith.constant 1 : index
    %c1_40 = arith.constant 1 : index
    %c0_41 = arith.constant 0 : index
    %c0_42 = arith.constant 0 : index
    %49 = vector.load %arg10[%c1_39, %c1_40, %c0_41, %c0_42] : memref<8x8x4x32xf32, #tpu.memory_space<vmem>>, vector<1x1x4x32xf32>
    %50 = vector.shape_cast %49 : vector<1x1x4x32xf32> to vector<4x32xf32>
    %51 = vector.shape_cast %48 : vector<4x32xf32> to vector<1x1x4x32xf32>
    tpu.vector_store %arg10[%c1_39, %c1_40, %c0_41, %c0_42], %51 {strides = array<i32>} : memref<8x8x4x32xf32, #tpu.memory_space<vmem>>, vector<1x1x4x32xf32>,
    %52 = vector.extract_strided_slice %43 {offsets = [0, 64], sizes = [4, 32], strides = [1, 1]} : vector<4x256xf32> to vector<4x32xf32>
    %c1_43 = arith.constant 1 : index
    %c2_44 = arith.constant 2 : index
    %c0_45 = arith.constant 0 : index
    %c0_46 = arith.constant 0 : index
    %53 = vector.load %arg10[%c1_43, %c2_44, %c0_45, %c0_46] : memref<8x8x4x32xf32, #tpu.memory_space<vmem>>, vector<1x1x4x32xf32>
    %54 = vector.shape_cast %53 : vector<1x1x4x32xf32> to vector<4x32xf32>
    %55 = vector.shape_cast %52 : vector<4x32xf32> to vector<1x1x4x32xf32>
    tpu.vector_store %arg10[%c1_43, %c2_44, %c0_45, %c0_46], %55 {strides = array<i32>} : memref<8x8x4x32xf32, #tpu.memory_space<vmem>>, vector<1x1x4x32xf32>,
    %56 = vector.extract_strided_slice %43 {offsets = [0, 96], sizes = [4, 32], strides = [1, 1]} : vector<4x256xf32> to vector<4x32xf32>
    %c1_47 = arith.constant 1 : index
    %c3_48 = arith.constant 3 : index
    %c0_49 = arith.constant 0 : index
    %c0_50 = arith.constant 0 : index
    %57 = vector.load %arg10[%c1_47, %c3_48, %c0_49, %c0_50] : memref<8x8x4x32xf32, #tpu.memory_space<vmem>>, vector<1x1x4x32xf32>
    %58 = vector.shape_cast %57 : vector<1x1x4x32xf32> to vector<4x32xf32>
    %59 = vector.shape_cast %56 : vector<4x32xf32> to vector<1x1x4x32xf32>
    tpu.vector_store %arg10[%c1_47, %c3_48, %c0_49, %c0_50], %59 {strides = array<i32>} : memref<8x8x4x32xf32, #tpu.memory_space<vmem>>, vector<1x1x4x32xf32>,
    %60 = vector.extract_strided_slice %43 {offsets = [0, 128], sizes = [4, 32], strides = [1, 1]} : vector<4x256xf32> to vector<4x32xf32>
    %c1_51 = arith.constant 1 : index
    %c4_52 = arith.constant 4 : index
    %c0_53 = arith.constant 0 : index
    %c0_54 = arith.constant 0 : index
    %61 = vector.load %arg10[%c1_51, %c4_52, %c0_53, %c0_54] : memref<8x8x4x32xf32, #tpu.memory_space<vmem>>, vector<1x1x4x32xf32>
    %62 = vector.shape_cast %61 : vector<1x1x4x32xf32> to vector<4x32xf32>
    %63 = vector.shape_cast %60 : vector<4x32xf32> to vector<1x1x4x32xf32>
    tpu.vector_store %arg10[%c1_51, %c4_52, %c0_53, %c0_54], %63 {strides = array<i32>} : memref<8x8x4x32xf32, #tpu.memory_space<vmem>>, vector<1x1x4x32xf32>,
    %64 = vector.extract_strided_slice %43 {offsets = [0, 160], sizes = [4, 32], strides = [1, 1]} : vector<4x256xf32> to vector<4x32xf32>
    %c1_55 = arith.constant 1 : index
    %c5_56 = arith.constant 5 : index
    %c0_57 = arith.constant 0 : index
    %c0_58 = arith.constant 0 : index
    %65 = vector.load %arg10[%c1_55, %c5_56, %c0_57, %c0_58] : memref<8x8x4x32xf32, #tpu.memory_space<vmem>>, vector<1x1x4x32xf32>
    %66 = vector.shape_cast %65 : vector<1x1x4x32xf32> to vector<4x32xf32>
    %67 = vector.shape_cast %64 : vector<4x32xf32> to vector<1x1x4x32xf32>
    tpu.vector_store %arg10[%c1_55, %c5_56, %c0_57, %c0_58], %67 {strides = array<i32>} : memref<8x8x4x32xf32, #tpu.memory_space<vmem>>, vector<1x1x4x32xf32>,
    %68 = vector.extract_strided_slice %43 {offsets = [0, 192], sizes = [4, 32], strides = [1, 1]} : vector<4x256xf32> to vector<4x32xf32>
    %c1_59 = arith.constant 1 : index
    %c6_60 = arith.constant 6 : index
    %c0_61 = arith.constant 0 : index
    %c0_62 = arith.constant 0 : index
    %69 = vector.load %arg10[%c1_59, %c6_60, %c0_61, %c0_62] : memref<8x8x4x32xf32, #tpu.memory_space<vmem>>, vector<1x1x4x32xf32>
    %70 = vector.shape_cast %69 : vector<1x1x4x32xf32> to vector<4x32xf32>
    %71 = vector.shape_cast %68 : vector<4x32xf32> to vector<1x1x4x32xf32>
    tpu.vector_store %arg10[%c1_59, %c6_60, %c0_61, %c0_62], %71 {strides = array<i32>} : memref<8x8x4x32xf32, #tpu.memory_space<vmem>>, vector<1x1x4x32xf32>,
    %72 = vector.extract_strided_slice %43 {offsets = [0, 224], sizes = [4, 32], strides = [1, 1]} : vector<4x256xf32> to vector<4x32xf32>
    %c1_63 = arith.constant 1 : index
    %c7_64 = arith.constant 7 : index
    %c0_65 = arith.constant 0 : index
    %c0_66 = arith.constant 0 : index
    %73 = vector.load %arg10[%c1_63, %c7_64, %c0_65, %c0_66] : memref<8x8x4x32xf32, #tpu.memory_space<vmem>>, vector<1x1x4x32xf32>
    %74 = vector.shape_cast %73 : vector<1x1x4x32xf32> to vector<4x32xf32>
    %75 = vector.shape_cast %72 : vector<4x32xf32> to vector<1x1x4x32xf32>
    tpu.vector_store %arg10[%c1_63, %c7_64, %c0_65, %c0_66], %75 {strides = array<i32>} : memref<8x8x4x32xf32, #tpu.memory_space<vmem>>, vector<1x1x4x32xf32>,
    %c2_67 = arith.constant 2 : index
    %c0_68 = arith.constant 0 : index
    %c0_69 = arith.constant 0 : index
    %76 = vector.load %arg1[%c2_67, %c0_68, %c0_69] : memref<8x4x16xf32, #tpu.memory_space<vmem>>, vector<1x4x16xf32>
    %77 = vector.shape_cast %76 : vector<1x4x16xf32> to vector<4x16xf32>
    %cst_70 = arith.constant dense<0.000000e+00> : vector<4x256xf32>
    %78 = tpu.matmul %77, %0, %cst_70 {dimension_numbers = #tpu.dot_dimension_numbers<[1], [0], [0], [1], [0, 0, 1, 1], [], []>} : vector<4x16xf32>, vector<16x256xf32>, vector<4x256xf32> -> vector<4x256xf32>
    %79 = vector.broadcast %1 : vector<1x256xf32> to vector<4x256xf32>
    %80 = arith.addf %78, %79 : vector<4x256xf32>
    %81 = vector.extract_strided_slice %80 {offsets = [0, 0], sizes = [4, 32], strides = [1, 1]} : vector<4x256xf32> to vector<4x32xf32>
    %c2_71 = arith.constant 2 : index
    %c0_72 = arith.constant 0 : index
    %c0_73 = arith.constant 0 : index
    %c0_74 = arith.constant 0 : index
    %82 = vector.load %arg10[%c2_71, %c0_72, %c0_73, %c0_74] : memref<8x8x4x32xf32, #tpu.memory_space<vmem>>, vector<1x1x4x32xf32>
    %83 = vector.shape_cast %82 : vector<1x1x4x32xf32> to vector<4x32xf32>
    %84 = vector.shape_cast %81 : vector<4x32xf32> to vector<1x1x4x32xf32>
    tpu.vector_store %arg10[%c2_71, %c0_72, %c0_73, %c0_74], %84 {strides = array<i32>} : memref<8x8x4x32xf32, #tpu.memory_space<vmem>>, vector<1x1x4x32xf32>,
    %85 = vector.extract_strided_slice %80 {offsets = [0, 32], sizes = [4, 32], strides = [1, 1]} : vector<4x256xf32> to vector<4x32xf32>
    %c2_75 = arith.constant 2 : index
    %c1_76 = arith.constant 1 : index
    %c0_77 = arith.constant 0 : index
    %c0_78 = arith.constant 0 : index
    %86 = vector.load %arg10[%c2_75, %c1_76, %c0_77, %c0_78] : memref<8x8x4x32xf32, #tpu.memory_space<vmem>>, vector<1x1x4x32xf32>
    %87 = vector.shape_cast %86 : vector<1x1x4x32xf32> to vector<4x32xf32>
    %88 = vector.shape_cast %85 : vector<4x32xf32> to vector<1x1x4x32xf32>
    tpu.vector_store %arg10[%c2_75, %c1_76, %c0_77, %c0_78], %88 {strides = array<i32>} : memref<8x8x4x32xf32, #tpu.memory_space<vmem>>, vector<1x1x4x32xf32>,
    %89 = vector.extract_strided_slice %80 {offsets = [0, 64], sizes = [4, 32], strides = [1, 1]} : vector<4x256xf32> to vector<4x32xf32>
    %c2_79 = arith.constant 2 : index
    %c2_80 = arith.constant 2 : index
    %c0_81 = arith.constant 0 : index
    %c0_82 = arith.constant 0 : index
    %90 = vector.load %arg10[%c2_79, %c2_80, %c0_81, %c0_82] : memref<8x8x4x32xf32, #tpu.memory_space<vmem>>, vector<1x1x4x32xf32>
    %91 = vector.shape_cast %90 : vector<1x1x4x32xf32> to vector<4x32xf32>
    %92 = vector.shape_cast %89 : vector<4x32xf32> to vector<1x1x4x32xf32>
    tpu.vector_store %arg10[%c2_79, %c2_80, %c0_81, %c0_82], %92 {strides = array<i32>} : memref<8x8x4x32xf32, #tpu.memory_space<vmem>>, vector<1x1x4x32xf32>,
    %93 = vector.extract_strided_slice %80 {offsets = [0, 96], sizes = [4, 32], strides = [1, 1]} : vector<4x256xf32> to vector<4x32xf32>
    %c2_83 = arith.constant 2 : index
    %c3_84 = arith.constant 3 : index
    %c0_85 = arith.constant 0 : index
    %c0_86 = arith.constant 0 : index
    %94 = vector.load %arg10[%c2_83, %c3_84, %c0_85, %c0_86] : memref<8x8x4x32xf32, #tpu.memory_space<vmem>>, vector<1x1x4x32xf32>
    %95 = vector.shape_cast %94 : vector<1x1x4x32xf32> to vector<4x32xf32>
    %96 = vector.shape_cast %93 : vector<4x32xf32> to vector<1x1x4x32xf32>
    tpu.vector_store %arg10[%c2_83, %c3_84, %c0_85, %c0_86], %96 {strides = array<i32>} : memref<8x8x4x32xf32, #tpu.memory_space<vmem>>, vector<1x1x4x32xf32>,
    %97 = vector.extract_strided_slice %80 {offsets = [0, 128], sizes = [4, 32], strides = [1, 1]} : vector<4x256xf32> to vector<4x32xf32>
    %c2_87 = arith.constant 2 : index
    %c4_88 = arith.constant 4 : index
    %c0_89 = arith.constant 0 : index
    %c0_90 = arith.constant 0 : index
    %98 = vector.load %arg10[%c2_87, %c4_88, %c0_89, %c0_90] : memref<8x8x4x32xf32, #tpu.memory_space<vmem>>, vector<1x1x4x32xf32>
    %99 = vector.shape_cast %98 : vector<1x1x4x32xf32> to vector<4x32xf32>
    %100 = vector.shape_cast %97 : vector<4x32xf32> to vector<1x1x4x32xf32>
    tpu.vector_store %arg10[%c2_87, %c4_88, %c0_89, %c0_90], %100 {strides = array<i32>} : memref<8x8x4x32xf32, #tpu.memory_space<vmem>>, vector<1x1x4x32xf32>,
    %101 = vector.extract_strided_slice %80 {offsets = [0, 160], sizes = [4, 32], strides = [1, 1]} : vector<4x256xf32> to vector<4x32xf32>
    %c2_91 = arith.constant 2 : index
    %c5_92 = arith.constant 5 : index
    %c0_93 = arith.constant 0 : index
    %c0_94 = arith.constant 0 : index
    %102 = vector.load %arg10[%c2_91, %c5_92, %c0_93, %c0_94] : memref<8x8x4x32xf32, #tpu.memory_space<vmem>>, vector<1x1x4x32xf32>
    %103 = vector.shape_cast %102 : vector<1x1x4x32xf32> to vector<4x32xf32>
    %104 = vector.shape_cast %101 : vector<4x32xf32> to vector<1x1x4x32xf32>
    tpu.vector_store %arg10[%c2_91, %c5_92, %c0_93, %c0_94], %104 {strides = array<i32>} : memref<8x8x4x32xf32, #tpu.memory_space<vmem>>, vector<1x1x4x32xf32>,
    %105 = vector.extract_strided_slice %80 {offsets = [0, 192], sizes = [4, 32], strides = [1, 1]} : vector<4x256xf32> to vector<4x32xf32>
    %c2_95 = arith.constant 2 : index
    %c6_96 = arith.constant 6 : index
    %c0_97 = arith.constant 0 : index
    %c0_98 = arith.constant 0 : index
    %106 = vector.load %arg10[%c2_95, %c6_96, %c0_97, %c0_98] : memref<8x8x4x32xf32, #tpu.memory_space<vmem>>, vector<1x1x4x32xf32>
    %107 = vector.shape_cast %106 : vector<1x1x4x32xf32> to vector<4x32xf32>
    %108 = vector.shape_cast %105 : vector<4x32xf32> to vector<1x1x4x32xf32>
    tpu.vector_store %arg10[%c2_95, %c6_96, %c0_97, %c0_98], %108 {strides = array<i32>} : memref<8x8x4x32xf32, #tpu.memory_space<vmem>>, vector<1x1x4x32xf32>,
    %109 = vector.extract_strided_slice %80 {offsets = [0, 224], sizes = [4, 32], strides = [1, 1]} : vector<4x256xf32> to vector<4x32xf32>
    %c2_99 = arith.constant 2 : index
    %c7_100 = arith.constant 7 : index
    %c0_101 = arith.constant 0 : index
    %c0_102 = arith.constant 0 : index
    %110 = vector.load %arg10[%c2_99, %c7_100, %c0_101, %c0_102] : memref<8x8x4x32xf32, #tpu.memory_space<vmem>>, vector<1x1x4x32xf32>
    %111 = vector.shape_cast %110 : vector<1x1x4x32xf32> to vector<4x32xf32>
    %112 = vector.shape_cast %109 : vector<4x32xf32> to vector<1x1x4x32xf32>
    tpu.vector_store %arg10[%c2_99, %c7_100, %c0_101, %c0_102], %112 {strides = array<i32>} : memref<8x8x4x32xf32, #tpu.memory_space<vmem>>, vector<1x1x4x32xf32>,
    %c3_103 = arith.constant 3 : index
    %c0_104 = arith.constant 0 : index
    %c0_105 = arith.constant 0 : index
    %113 = vector.load %arg1[%c3_103, %c0_104, %c0_105] : memref<8x4x16xf32, #tpu.memory_space<vmem>>, vector<1x4x16xf32>
    %114 = vector.shape_cast %113 : vector<1x4x16xf32> to vector<4x16xf32>
    %cst_106 = arith.constant dense<0.000000e+00> : vector<4x256xf32>
    %115 = tpu.matmul %114, %0, %cst_106 {dimension_numbers = #tpu.dot_dimension_numbers<[1], [0], [0], [1], [0, 0, 1, 1], [], []>} : vector<4x16xf32>, vector<16x256xf32>, vector<4x256xf32> -> vector<4x256xf32>
    %116 = vector.broadcast %1 : vector<1x256xf32> to vector<4x256xf32>
    %117 = arith.addf %115, %116 : vector<4x256xf32>
    %118 = vector.extract_strided_slice %117 {offsets = [0, 0], sizes = [4, 32], strides = [1, 1]} : vector<4x256xf32> to vector<4x32xf32>
    %c3_107 = arith.constant 3 : index
    %c0_108 = arith.constant 0 : index
    %c0_109 = arith.constant 0 : index
    %c0_110 = arith.constant 0 : index
    %119 = vector.load %arg10[%c3_107, %c0_108, %c0_109, %c0_110] : memref<8x8x4x32xf32, #tpu.memory_space<vmem>>, vector<1x1x4x32xf32>
    %120 = vector.shape_cast %119 : vector<1x1x4x32xf32> to vector<4x32xf32>
    %121 = vector.shape_cast %118 : vector<4x32xf32> to vector<1x1x4x32xf32>
    tpu.vector_store %arg10[%c3_107, %c0_108, %c0_109, %c0_110], %121 {strides = array<i32>} : memref<8x8x4x32xf32, #tpu.memory_space<vmem>>, vector<1x1x4x32xf32>,
    %122 = vector.extract_strided_slice %117 {offsets = [0, 32], sizes = [4, 32], strides = [1, 1]} : vector<4x256xf32> to vector<4x32xf32>
    %c3_111 = arith.constant 3 : index
    %c1_112 = arith.constant 1 : index
    %c0_113 = arith.constant 0 : index
    %c0_114 = arith.constant 0 : index
    %123 = vector.load %arg10[%c3_111, %c1_112, %c0_113, %c0_114] : memref<8x8x4x32xf32, #tpu.memory_space<vmem>>, vector<1x1x4x32xf32>
    %124 = vector.shape_cast %123 : vector<1x1x4x32xf32> to vector<4x32xf32>
    %125 = vector.shape_cast %122 : vector<4x32xf32> to vector<1x1x4x32xf32>
    tpu.vector_store %arg10[%c3_111, %c1_112, %c0_113, %c0_114], %125 {strides = array<i32>} : memref<8x8x4x32xf32, #tpu.memory_space<vmem>>, vector<1x1x4x32xf32>,
    %126 = vector.extract_strided_slice %117 {offsets = [0, 64], sizes = [4, 32], strides = [1, 1]} : vector<4x256xf32> to vector<4x32xf32>
    %c3_115 = arith.constant 3 : index
    %c2_116 = arith.constant 2 : index
    %c0_117 = arith.constant 0 : index
    %c0_118 = arith.constant 0 : index
    %127 = vector.load %arg10[%c3_115, %c2_116, %c0_117, %c0_118] : memref<8x8x4x32xf32, #tpu.memory_space<vmem>>, vector<1x1x4x32xf32>
    %128 = vector.shape_cast %127 : vector<1x1x4x32xf32> to vector<4x32xf32>
    %129 = vector.shape_cast %126 : vector<4x32xf32> to vector<1x1x4x32xf32>
    tpu.vector_store %arg10[%c3_115, %c2_116, %c0_117, %c0_118], %129 {strides = array<i32>} : memref<8x8x4x32xf32, #tpu.memory_space<vmem>>, vector<1x1x4x32xf32>,
    %130 = vector.extract_strided_slice %117 {offsets = [0, 96], sizes = [4, 32], strides = [1, 1]} : vector<4x256xf32> to vector<4x32xf32>
    %c3_119 = arith.constant 3 : index
    %c3_120 = arith.constant 3 : index
    %c0_121 = arith.constant 0 : index
    %c0_122 = arith.constant 0 : index
    %131 = vector.load %arg10[%c3_119, %c3_120, %c0_121, %c0_122] : memref<8x8x4x32xf32, #tpu.memory_space<vmem>>, vector<1x1x4x32xf32>
    %132 = vector.shape_cast %131 : vector<1x1x4x32xf32> to vector<4x32xf32>
    %133 = vector.shape_cast %130 : vector<4x32xf32> to vector<1x1x4x32xf32>
    tpu.vector_store %arg10[%c3_119, %c3_120, %c0_121, %c0_122], %133 {strides = array<i32>} : memref<8x8x4x32xf32, #tpu.memory_space<vmem>>, vector<1x1x4x32xf32>,
    %134 = vector.extract_strided_slice %117 {offsets = [0, 128], sizes = [4, 32], strides = [1, 1]} : vector<4x256xf32> to vector<4x32xf32>
    %c3_123 = arith.constant 3 : index
    %c4_124 = arith.constant 4 : index
    %c0_125 = arith.constant 0 : index
    %c0_126 = arith.constant 0 : index
    %135 = vector.load %arg10[%c3_123, %c4_124, %c0_125, %c0_126] : memref<8x8x4x32xf32, #tpu.memory_space<vmem>>, vector<1x1x4x32xf32>
    %136 = vector.shape_cast %135 : vector<1x1x4x32xf32> to vector<4x32xf32>
    %137 = vector.shape_cast %134 : vector<4x32xf32> to vector<1x1x4x32xf32>
    tpu.vector_store %arg10[%c3_123, %c4_124, %c0_125, %c0_126], %137 {strides = array<i32>} : memref<8x8x4x32xf32, #tpu.memory_space<vmem>>, vector<1x1x4x32xf32>,
    %138 = vector.extract_strided_slice %117 {offsets = [0, 160], sizes = [4, 32], strides = [1, 1]} : vector<4x256xf32> to vector<4x32xf32>
    %c3_127 = arith.constant 3 : index
    %c5_128 = arith.constant 5 : index
    %c0_129 = arith.constant 0 : index
    %c0_130 = arith.constant 0 : index
    %139 = vector.load %arg10[%c3_127, %c5_128, %c0_129, %c0_130] : memref<8x8x4x32xf32, #tpu.memory_space<vmem>>, vector<1x1x4x32xf32>
    %140 = vector.shape_cast %139 : vector<1x1x4x32xf32> to vector<4x32xf32>
    %141 = vector.shape_cast %138 : vector<4x32xf32> to vector<1x1x4x32xf32>
    tpu.vector_store %arg10[%c3_127, %c5_128, %c0_129, %c0_130], %141 {strides = array<i32>} : memref<8x8x4x32xf32, #tpu.memory_space<vmem>>, vector<1x1x4x32xf32>,
    %142 = vector.extract_strided_slice %117 {offsets = [0, 192], sizes = [4, 32], strides = [1, 1]} : vector<4x256xf32> to vector<4x32xf32>
    %c3_131 = arith.constant 3 : index
    %c6_132 = arith.constant 6 : index
    %c0_133 = arith.constant 0 : index
    %c0_134 = arith.constant 0 : index
    %143 = vector.load %arg10[%c3_131, %c6_132, %c0_133, %c0_134] : memref<8x8x4x32xf32, #tpu.memory_space<vmem>>, vector<1x1x4x32xf32>
    %144 = vector.shape_cast %143 : vector<1x1x4x32xf32> to vector<4x32xf32>
    %145 = vector.shape_cast %142 : vector<4x32xf32> to vector<1x1x4x32xf32>
    tpu.vector_store %arg10[%c3_131, %c6_132, %c0_133, %c0_134], %145 {strides = array<i32>} : memref<8x8x4x32xf32, #tpu.memory_space<vmem>>, vector<1x1x4x32xf32>,
    %146 = vector.extract_strided_slice %117 {offsets = [0, 224], sizes = [4, 32], strides = [1, 1]} : vector<4x256xf32> to vector<4x32xf32>
    %c3_135 = arith.constant 3 : index
    %c7_136 = arith.constant 7 : index
    %c0_137 = arith.constant 0 : index
    %c0_138 = arith.constant 0 : index
    %147 = vector.load %arg10[%c3_135, %c7_136, %c0_137, %c0_138] : memref<8x8x4x32xf32, #tpu.memory_space<vmem>>, vector<1x1x4x32xf32>
    %148 = vector.shape_cast %147 : vector<1x1x4x32xf32> to vector<4x32xf32>
    %149 = vector.shape_cast %146 : vector<4x32xf32> to vector<1x1x4x32xf32>
    tpu.vector_store %arg10[%c3_135, %c7_136, %c0_137, %c0_138], %149 {strides = array<i32>} : memref<8x8x4x32xf32, #tpu.memory_space<vmem>>, vector<1x1x4x32xf32>,
    %c4_139 = arith.constant 4 : index
    %c0_140 = arith.constant 0 : index
    %c0_141 = arith.constant 0 : index
    %150 = vector.load %arg1[%c4_139, %c0_140, %c0_141] : memref<8x4x16xf32, #tpu.memory_space<vmem>>, vector<1x4x16xf32>
    %151 = vector.shape_cast %150 : vector<1x4x16xf32> to vector<4x16xf32>
    %cst_142 = arith.constant dense<0.000000e+00> : vector<4x256xf32>
    %152 = tpu.matmul %151, %0, %cst_142 {dimension_numbers = #tpu.dot_dimension_numbers<[1], [0], [0], [1], [0, 0, 1, 1], [], []>} : vector<4x16xf32>, vector<16x256xf32>, vector<4x256xf32> -> vector<4x256xf32>
    %153 = vector.broadcast %1 : vector<1x256xf32> to vector<4x256xf32>
    %154 = arith.addf %152, %153 : vector<4x256xf32>
    %155 = vector.extract_strided_slice %154 {offsets = [0, 0], sizes = [4, 32], strides = [1, 1]} : vector<4x256xf32> to vector<4x32xf32>
    %c4_143 = arith.constant 4 : index
    %c0_144 = arith.constant 0 : index
    %c0_145 = arith.constant 0 : index
    %c0_146 = arith.constant 0 : index
    %156 = vector.load %arg10[%c4_143, %c0_144, %c0_145, %c0_146] : memref<8x8x4x32xf32, #tpu.memory_space<vmem>>, vector<1x1x4x32xf32>
    %157 = vector.shape_cast %156 : vector<1x1x4x32xf32> to vector<4x32xf32>
    %158 = vector.shape_cast %155 : vector<4x32xf32> to vector<1x1x4x32xf32>
    tpu.vector_store %arg10[%c4_143, %c0_144, %c0_145, %c0_146], %158 {strides = array<i32>} : memref<8x8x4x32xf32, #tpu.memory_space<vmem>>, vector<1x1x4x32xf32>,
    %159 = vector.extract_strided_slice %154 {offsets = [0, 32], sizes = [4, 32], strides = [1, 1]} : vector<4x256xf32> to vector<4x32xf32>
    %c4_147 = arith.constant 4 : index
    %c1_148 = arith.constant 1 : index
    %c0_149 = arith.constant 0 : index
    %c0_150 = arith.constant 0 : index
    %160 = vector.load %arg10[%c4_147, %c1_148, %c0_149, %c0_150] : memref<8x8x4x32xf32, #tpu.memory_space<vmem>>, vector<1x1x4x32xf32>
    %161 = vector.shape_cast %160 : vector<1x1x4x32xf32> to vector<4x32xf32>
    %162 = vector.shape_cast %159 : vector<4x32xf32> to vector<1x1x4x32xf32>
    tpu.vector_store %arg10[%c4_147, %c1_148, %c0_149, %c0_150], %162 {strides = array<i32>} : memref<8x8x4x32xf32, #tpu.memory_space<vmem>>, vector<1x1x4x32xf32>,
    %163 = vector.extract_strided_slice %154 {offsets = [0, 64], sizes = [4, 32], strides = [1, 1]} : vector<4x256xf32> to vector<4x32xf32>
    %c4_151 = arith.constant 4 : index
    %c2_152 = arith.constant 2 : index
    %c0_153 = arith.constant 0 : index
    %c0_154 = arith.constant 0 : index
    %164 = vector.load %arg10[%c4_151, %c2_152, %c0_153, %c0_154] : memref<8x8x4x32xf32, #tpu.memory_space<vmem>>, vector<1x1x4x32xf32>
    %165 = vector.shape_cast %164 : vector<1x1x4x32xf32> to vector<4x32xf32>
    %166 = vector.shape_cast %163 : vector<4x32xf32> to vector<1x1x4x32xf32>
    tpu.vector_store %arg10[%c4_151, %c2_152, %c0_153, %c0_154], %166 {strides = array<i32>} : memref<8x8x4x32xf32, #tpu.memory_space<vmem>>, vector<1x1x4x32xf32>,
    %167 = vector.extract_strided_slice %154 {offsets = [0, 96], sizes = [4, 32], strides = [1, 1]} : vector<4x256xf32> to vector<4x32xf32>
    %c4_155 = arith.constant 4 : index
    %c3_156 = arith.constant 3 : index
    %c0_157 = arith.constant 0 : index
    %c0_158 = arith.constant 0 : index
    %168 = vector.load %arg10[%c4_155, %c3_156, %c0_157, %c0_158] : memref<8x8x4x32xf32, #tpu.memory_space<vmem>>, vector<1x1x4x32xf32>
    %169 = vector.shape_cast %168 : vector<1x1x4x32xf32> to vector<4x32xf32>
    %170 = vector.shape_cast %167 : vector<4x32xf32> to vector<1x1x4x32xf32>
    tpu.vector_store %arg10[%c4_155, %c3_156, %c0_157, %c0_158], %170 {strides = array<i32>} : memref<8x8x4x32xf32, #tpu.memory_space<vmem>>, vector<1x1x4x32xf32>,
    %171 = vector.extract_strided_slice %154 {offsets = [0, 128], sizes = [4, 32], strides = [1, 1]} : vector<4x256xf32> to vector<4x32xf32>
    %c4_159 = arith.constant 4 : index
    %c4_160 = arith.constant 4 : index
    %c0_161 = arith.constant 0 : index
    %c0_162 = arith.constant 0 : index
    %172 = vector.load %arg10[%c4_159, %c4_160, %c0_161, %c0_162] : memref<8x8x4x32xf32, #tpu.memory_space<vmem>>, vector<1x1x4x32xf32>
    %173 = vector.shape_cast %172 : vector<1x1x4x32xf32> to vector<4x32xf32>
    %174 = vector.shape_cast %171 : vector<4x32xf32> to vector<1x1x4x32xf32>
    tpu.vector_store %arg10[%c4_159, %c4_160, %c0_161, %c0_162], %174 {strides = array<i32>} : memref<8x8x4x32xf32, #tpu.memory_space<vmem>>, vector<1x1x4x32xf32>,
    %175 = vector.extract_strided_slice %154 {offsets = [0, 160], sizes = [4, 32], strides = [1, 1]} : vector<4x256xf32> to vector<4x32xf32>
    %c4_163 = arith.constant 4 : index
    %c5_164 = arith.constant 5 : index
    %c0_165 = arith.constant 0 : index
    %c0_166 = arith.constant 0 : index
    %176 = vector.load %arg10[%c4_163, %c5_164, %c0_165, %c0_166] : memref<8x8x4x32xf32, #tpu.memory_space<vmem>>, vector<1x1x4x32xf32>
    %177 = vector.shape_cast %176 : vector<1x1x4x32xf32> to vector<4x32xf32>
    %178 = vector.shape_cast %175 : vector<4x32xf32> to vector<1x1x4x32xf32>
    tpu.vector_store %arg10[%c4_163, %c5_164, %c0_165, %c0_166], %178 {strides = array<i32>} : memref<8x8x4x32xf32, #tpu.memory_space<vmem>>, vector<1x1x4x32xf32>,
    %179 = vector.extract_strided_slice %154 {offsets = [0, 192], sizes = [4, 32], strides = [1, 1]} : vector<4x256xf32> to vector<4x32xf32>
    %c4_167 = arith.constant 4 : index
    %c6_168 = arith.constant 6 : index
    %c0_169 = arith.constant 0 : index
    %c0_170 = arith.constant 0 : index
    %180 = vector.load %arg10[%c4_167, %c6_168, %c0_169, %c0_170] : memref<8x8x4x32xf32, #tpu.memory_space<vmem>>, vector<1x1x4x32xf32>
    %181 = vector.shape_cast %180 : vector<1x1x4x32xf32> to vector<4x32xf32>
    %182 = vector.shape_cast %179 : vector<4x32xf32> to vector<1x1x4x32xf32>
    tpu.vector_store %arg10[%c4_167, %c6_168, %c0_169, %c0_170], %182 {strides = array<i32>} : memref<8x8x4x32xf32, #tpu.memory_space<vmem>>, vector<1x1x4x32xf32>,
    %183 = vector.extract_strided_slice %154 {offsets = [0, 224], sizes = [4, 32], strides = [1, 1]} : vector<4x256xf32> to vector<4x32xf32>
    %c4_171 = arith.constant 4 : index
    %c7_172 = arith.constant 7 : index
    %c0_173 = arith.constant 0 : index
    %c0_174 = arith.constant 0 : index
    %184 = vector.load %arg10[%c4_171, %c7_172, %c0_173, %c0_174] : memref<8x8x4x32xf32, #tpu.memory_space<vmem>>, vector<1x1x4x32xf32>
    %185 = vector.shape_cast %184 : vector<1x1x4x32xf32> to vector<4x32xf32>
    %186 = vector.shape_cast %183 : vector<4x32xf32> to vector<1x1x4x32xf32>
    tpu.vector_store %arg10[%c4_171, %c7_172, %c0_173, %c0_174], %186 {strides = array<i32>} : memref<8x8x4x32xf32, #tpu.memory_space<vmem>>, vector<1x1x4x32xf32>,
    %c5_175 = arith.constant 5 : index
    %c0_176 = arith.constant 0 : index
    %c0_177 = arith.constant 0 : index
    %187 = vector.load %arg1[%c5_175, %c0_176, %c0_177] : memref<8x4x16xf32, #tpu.memory_space<vmem>>, vector<1x4x16xf32>
    %188 = vector.shape_cast %187 : vector<1x4x16xf32> to vector<4x16xf32>
    %cst_178 = arith.constant dense<0.000000e+00> : vector<4x256xf32>
    %189 = tpu.matmul %188, %0, %cst_178 {dimension_numbers = #tpu.dot_dimension_numbers<[1], [0], [0], [1], [0, 0, 1, 1], [], []>} : vector<4x16xf32>, vector<16x256xf32>, vector<4x256xf32> -> vector<4x256xf32>
    %190 = vector.broadcast %1 : vector<1x256xf32> to vector<4x256xf32>
    %191 = arith.addf %189, %190 : vector<4x256xf32>
    %192 = vector.extract_strided_slice %191 {offsets = [0, 0], sizes = [4, 32], strides = [1, 1]} : vector<4x256xf32> to vector<4x32xf32>
    %c5_179 = arith.constant 5 : index
    %c0_180 = arith.constant 0 : index
    %c0_181 = arith.constant 0 : index
    %c0_182 = arith.constant 0 : index
    %193 = vector.load %arg10[%c5_179, %c0_180, %c0_181, %c0_182] : memref<8x8x4x32xf32, #tpu.memory_space<vmem>>, vector<1x1x4x32xf32>
    %194 = vector.shape_cast %193 : vector<1x1x4x32xf32> to vector<4x32xf32>
    %195 = vector.shape_cast %192 : vector<4x32xf32> to vector<1x1x4x32xf32>
    tpu.vector_store %arg10[%c5_179, %c0_180, %c0_181, %c0_182], %195 {strides = array<i32>} : memref<8x8x4x32xf32, #tpu.memory_space<vmem>>, vector<1x1x4x32xf32>,
    %196 = vector.extract_strided_slice %191 {offsets = [0, 32], sizes = [4, 32], strides = [1, 1]} : vector<4x256xf32> to vector<4x32xf32>
    %c5_183 = arith.constant 5 : index
    %c1_184 = arith.constant 1 : index
    %c0_185 = arith.constant 0 : index
    %c0_186 = arith.constant 0 : index
    %197 = vector.load %arg10[%c5_183, %c1_184, %c0_185, %c0_186] : memref<8x8x4x32xf32, #tpu.memory_space<vmem>>, vector<1x1x4x32xf32>
    %198 = vector.shape_cast %197 : vector<1x1x4x32xf32> to vector<4x32xf32>
    %199 = vector.shape_cast %196 : vector<4x32xf32> to vector<1x1x4x32xf32>
    tpu.vector_store %arg10[%c5_183, %c1_184, %c0_185, %c0_186], %199 {strides = array<i32>} : memref<8x8x4x32xf32, #tpu.memory_space<vmem>>, vector<1x1x4x32xf32>,
    %200 = vector.extract_strided_slice %191 {offsets = [0, 64], sizes = [4, 32], strides = [1, 1]} : vector<4x256xf32> to vector<4x32xf32>
    %c5_187 = arith.constant 5 : index
    %c2_188 = arith.constant 2 : index
    %c0_189 = arith.constant 0 : index
    %c0_190 = arith.constant 0 : index
    %201 = vector.load %arg10[%c5_187, %c2_188, %c0_189, %c0_190] : memref<8x8x4x32xf32, #tpu.memory_space<vmem>>, vector<1x1x4x32xf32>
    %202 = vector.shape_cast %201 : vector<1x1x4x32xf32> to vector<4x32xf32>
    %203 = vector.shape_cast %200 : vector<4x32xf32> to vector<1x1x4x32xf32>
    tpu.vector_store %arg10[%c5_187, %c2_188, %c0_189, %c0_190], %203 {strides = array<i32>} : memref<8x8x4x32xf32, #tpu.memory_space<vmem>>, vector<1x1x4x32xf32>,
    %204 = vector.extract_strided_slice %191 {offsets = [0, 96], sizes = [4, 32], strides = [1, 1]} : vector<4x256xf32> to vector<4x32xf32>
    %c5_191 = arith.constant 5 : index
    %c3_192 = arith.constant 3 : index
    %c0_193 = arith.constant 0 : index
    %c0_194 = arith.constant 0 : index
    %205 = vector.load %arg10[%c5_191, %c3_192, %c0_193, %c0_194] : memref<8x8x4x32xf32, #tpu.memory_space<vmem>>, vector<1x1x4x32xf32>
    %206 = vector.shape_cast %205 : vector<1x1x4x32xf32> to vector<4x32xf32>
    %207 = vector.shape_cast %204 : vector<4x32xf32> to vector<1x1x4x32xf32>
    tpu.vector_store %arg10[%c5_191, %c3_192, %c0_193, %c0_194], %207 {strides = array<i32>} : memref<8x8x4x32xf32, #tpu.memory_space<vmem>>, vector<1x1x4x32xf32>,
    %208 = vector.extract_strided_slice %191 {offsets = [0, 128], sizes = [4, 32], strides = [1, 1]} : vector<4x256xf32> to vector<4x32xf32>
    %c5_195 = arith.constant 5 : index
    %c4_196 = arith.constant 4 : index
    %c0_197 = arith.constant 0 : index
    %c0_198 = arith.constant 0 : index
    %209 = vector.load %arg10[%c5_195, %c4_196, %c0_197, %c0_198] : memref<8x8x4x32xf32, #tpu.memory_space<vmem>>, vector<1x1x4x32xf32>
    %210 = vector.shape_cast %209 : vector<1x1x4x32xf32> to vector<4x32xf32>
    %211 = vector.shape_cast %208 : vector<4x32xf32> to vector<1x1x4x32xf32>
    tpu.vector_store %arg10[%c5_195, %c4_196, %c0_197, %c0_198], %211 {strides = array<i32>} : memref<8x8x4x32xf32, #tpu.memory_space<vmem>>, vector<1x1x4x32xf32>,
    %212 = vector.extract_strided_slice %191 {offsets = [0, 160], sizes = [4, 32], strides = [1, 1]} : vector<4x256xf32> to vector<4x32xf32>
    %c5_199 = arith.constant 5 : index
    %c5_200 = arith.constant 5 : index
    %c0_201 = arith.constant 0 : index
    %c0_202 = arith.constant 0 : index
    %213 = vector.load %arg10[%c5_199, %c5_200, %c0_201, %c0_202] : memref<8x8x4x32xf32, #tpu.memory_space<vmem>>, vector<1x1x4x32xf32>
    %214 = vector.shape_cast %213 : vector<1x1x4x32xf32> to vector<4x32xf32>
    %215 = vector.shape_cast %212 : vector<4x32xf32> to vector<1x1x4x32xf32>
    tpu.vector_store %arg10[%c5_199, %c5_200, %c0_201, %c0_202], %215 {strides = array<i32>} : memref<8x8x4x32xf32, #tpu.memory_space<vmem>>, vector<1x1x4x32xf32>,
    %216 = vector.extract_strided_slice %191 {offsets = [0, 192], sizes = [4, 32], strides = [1, 1]} : vector<4x256xf32> to vector<4x32xf32>
    %c5_203 = arith.constant 5 : index
    %c6_204 = arith.constant 6 : index
    %c0_205 = arith.constant 0 : index
    %c0_206 = arith.constant 0 : index
    %217 = vector.load %arg10[%c5_203, %c6_204, %c0_205, %c0_206] : memref<8x8x4x32xf32, #tpu.memory_space<vmem>>, vector<1x1x4x32xf32>
    %218 = vector.shape_cast %217 : vector<1x1x4x32xf32> to vector<4x32xf32>
    %219 = vector.shape_cast %216 : vector<4x32xf32> to vector<1x1x4x32xf32>
    tpu.vector_store %arg10[%c5_203, %c6_204, %c0_205, %c0_206], %219 {strides = array<i32>} : memref<8x8x4x32xf32, #tpu.memory_space<vmem>>, vector<1x1x4x32xf32>,
    %220 = vector.extract_strided_slice %191 {offsets = [0, 224], sizes = [4, 32], strides = [1, 1]} : vector<4x256xf32> to vector<4x32xf32>
    %c5_207 = arith.constant 5 : index
    %c7_208 = arith.constant 7 : index
    %c0_209 = arith.constant 0 : index
    %c0_210 = arith.constant 0 : index
    %221 = vector.load %arg10[%c5_207, %c7_208, %c0_209, %c0_210] : memref<8x8x4x32xf32, #tpu.memory_space<vmem>>, vector<1x1x4x32xf32>
    %222 = vector.shape_cast %221 : vector<1x1x4x32xf32> to vector<4x32xf32>
    %223 = vector.shape_cast %220 : vector<4x32xf32> to vector<1x1x4x32xf32>
    tpu.vector_store %arg10[%c5_207, %c7_208, %c0_209, %c0_210], %223 {strides = array<i32>} : memref<8x8x4x32xf32, #tpu.memory_space<vmem>>, vector<1x1x4x32xf32>,
    %c6_211 = arith.constant 6 : index
    %c0_212 = arith.constant 0 : index
    %c0_213 = arith.constant 0 : index
    %224 = vector.load %arg1[%c6_211, %c0_212, %c0_213] : memref<8x4x16xf32, #tpu.memory_space<vmem>>, vector<1x4x16xf32>
    %225 = vector.shape_cast %224 : vector<1x4x16xf32> to vector<4x16xf32>
    %cst_214 = arith.constant dense<0.000000e+00> : vector<4x256xf32>
    %226 = tpu.matmul %225, %0, %cst_214 {dimension_numbers = #tpu.dot_dimension_numbers<[1], [0], [0], [1], [0, 0, 1, 1], [], []>} : vector<4x16xf32>, vector<16x256xf32>, vector<4x256xf32> -> vector<4x256xf32>
    %227 = vector.broadcast %1 : vector<1x256xf32> to vector<4x256xf32>
    %228 = arith.addf %226, %227 : vector<4x256xf32>
    %229 = vector.extract_strided_slice %228 {offsets = [0, 0], sizes = [4, 32], strides = [1, 1]} : vector<4x256xf32> to vector<4x32xf32>
    %c6_215 = arith.constant 6 : index
    %c0_216 = arith.constant 0 : index
    %c0_217 = arith.constant 0 : index
    %c0_218 = arith.constant 0 : index
    %230 = vector.load %arg10[%c6_215, %c0_216, %c0_217, %c0_218] : memref<8x8x4x32xf32, #tpu.memory_space<vmem>>, vector<1x1x4x32xf32>
    %231 = vector.shape_cast %230 : vector<1x1x4x32xf32> to vector<4x32xf32>
    %232 = vector.shape_cast %229 : vector<4x32xf32> to vector<1x1x4x32xf32>
    tpu.vector_store %arg10[%c6_215, %c0_216, %c0_217, %c0_218], %232 {strides = array<i32>} : memref<8x8x4x32xf32, #tpu.memory_space<vmem>>, vector<1x1x4x32xf32>,
    %233 = vector.extract_strided_slice %228 {offsets = [0, 32], sizes = [4, 32], strides = [1, 1]} : vector<4x256xf32> to vector<4x32xf32>
    %c6_219 = arith.constant 6 : index
    %c1_220 = arith.constant 1 : index
    %c0_221 = arith.constant 0 : index
    %c0_222 = arith.constant 0 : index
    %234 = vector.load %arg10[%c6_219, %c1_220, %c0_221, %c0_222] : memref<8x8x4x32xf32, #tpu.memory_space<vmem>>, vector<1x1x4x32xf32>
    %235 = vector.shape_cast %234 : vector<1x1x4x32xf32> to vector<4x32xf32>
    %236 = vector.shape_cast %233 : vector<4x32xf32> to vector<1x1x4x32xf32>
    tpu.vector_store %arg10[%c6_219, %c1_220, %c0_221, %c0_222], %236 {strides = array<i32>} : memref<8x8x4x32xf32, #tpu.memory_space<vmem>>, vector<1x1x4x32xf32>,
    %237 = vector.extract_strided_slice %228 {offsets = [0, 64], sizes = [4, 32], strides = [1, 1]} : vector<4x256xf32> to vector<4x32xf32>
    %c6_223 = arith.constant 6 : index
    %c2_224 = arith.constant 2 : index
    %c0_225 = arith.constant 0 : index
    %c0_226 = arith.constant 0 : index
    %238 = vector.load %arg10[%c6_223, %c2_224, %c0_225, %c0_226] : memref<8x8x4x32xf32, #tpu.memory_space<vmem>>, vector<1x1x4x32xf32>
    %239 = vector.shape_cast %238 : vector<1x1x4x32xf32> to vector<4x32xf32>
    %240 = vector.shape_cast %237 : vector<4x32xf32> to vector<1x1x4x32xf32>
    tpu.vector_store %arg10[%c6_223, %c2_224, %c0_225, %c0_226], %240 {strides = array<i32>} : memref<8x8x4x32xf32, #tpu.memory_space<vmem>>, vector<1x1x4x32xf32>,
    %241 = vector.extract_strided_slice %228 {offsets = [0, 96], sizes = [4, 32], strides = [1, 1]} : vector<4x256xf32> to vector<4x32xf32>
    %c6_227 = arith.constant 6 : index
    %c3_228 = arith.constant 3 : index
    %c0_229 = arith.constant 0 : index
    %c0_230 = arith.constant 0 : index
    %242 = vector.load %arg10[%c6_227, %c3_228, %c0_229, %c0_230] : memref<8x8x4x32xf32, #tpu.memory_space<vmem>>, vector<1x1x4x32xf32>
    %243 = vector.shape_cast %242 : vector<1x1x4x32xf32> to vector<4x32xf32>
    %244 = vector.shape_cast %241 : vector<4x32xf32> to vector<1x1x4x32xf32>
    tpu.vector_store %arg10[%c6_227, %c3_228, %c0_229, %c0_230], %244 {strides = array<i32>} : memref<8x8x4x32xf32, #tpu.memory_space<vmem>>, vector<1x1x4x32xf32>,
    %245 = vector.extract_strided_slice %228 {offsets = [0, 128], sizes = [4, 32], strides = [1, 1]} : vector<4x256xf32> to vector<4x32xf32>
    %c6_231 = arith.constant 6 : index
    %c4_232 = arith.constant 4 : index
    %c0_233 = arith.constant 0 : index
    %c0_234 = arith.constant 0 : index
    %246 = vector.load %arg10[%c6_231, %c4_232, %c0_233, %c0_234] : memref<8x8x4x32xf32, #tpu.memory_space<vmem>>, vector<1x1x4x32xf32>
    %247 = vector.shape_cast %246 : vector<1x1x4x32xf32> to vector<4x32xf32>
    %248 = vector.shape_cast %245 : vector<4x32xf32> to vector<1x1x4x32xf32>
    tpu.vector_store %arg10[%c6_231, %c4_232, %c0_233, %c0_234], %248 {strides = array<i32>} : memref<8x8x4x32xf32, #tpu.memory_space<vmem>>, vector<1x1x4x32xf32>,
    %249 = vector.extract_strided_slice %228 {offsets = [0, 160], sizes = [4, 32], strides = [1, 1]} : vector<4x256xf32> to vector<4x32xf32>
    %c6_235 = arith.constant 6 : index
    %c5_236 = arith.constant 5 : index
    %c0_237 = arith.constant 0 : index
    %c0_238 = arith.constant 0 : index
    %250 = vector.load %arg10[%c6_235, %c5_236, %c0_237, %c0_238] : memref<8x8x4x32xf32, #tpu.memory_space<vmem>>, vector<1x1x4x32xf32>
    %251 = vector.shape_cast %250 : vector<1x1x4x32xf32> to vector<4x32xf32>
    %252 = vector.shape_cast %249 : vector<4x32xf32> to vector<1x1x4x32xf32>
    tpu.vector_store %arg10[%c6_235, %c5_236, %c0_237, %c0_238], %252 {strides = array<i32>} : memref<8x8x4x32xf32, #tpu.memory_space<vmem>>, vector<1x1x4x32xf32>,
    %253 = vector.extract_strided_slice %228 {offsets = [0, 192], sizes = [4, 32], strides = [1, 1]} : vector<4x256xf32> to vector<4x32xf32>
    %c6_239 = arith.constant 6 : index
    %c6_240 = arith.constant 6 : index
    %c0_241 = arith.constant 0 : index
    %c0_242 = arith.constant 0 : index
    %254 = vector.load %arg10[%c6_239, %c6_240, %c0_241, %c0_242] : memref<8x8x4x32xf32, #tpu.memory_space<vmem>>, vector<1x1x4x32xf32>
    %255 = vector.shape_cast %254 : vector<1x1x4x32xf32> to vector<4x32xf32>
    %256 = vector.shape_cast %253 : vector<4x32xf32> to vector<1x1x4x32xf32>
    tpu.vector_store %arg10[%c6_239, %c6_240, %c0_241, %c0_242], %256 {strides = array<i32>} : memref<8x8x4x32xf32, #tpu.memory_space<vmem>>, vector<1x1x4x32xf32>,
    %257 = vector.extract_strided_slice %228 {offsets = [0, 224], sizes = [4, 32], strides = [1, 1]} : vector<4x256xf32> to vector<4x32xf32>
    %c6_243 = arith.constant 6 : index
    %c7_244 = arith.constant 7 : index
    %c0_245 = arith.constant 0 : index
    %c0_246 = arith.constant 0 : index
    %258 = vector.load %arg10[%c6_243, %c7_244, %c0_245, %c0_246] : memref<8x8x4x32xf32, #tpu.memory_space<vmem>>, vector<1x1x4x32xf32>
    %259 = vector.shape_cast %258 : vector<1x1x4x32xf32> to vector<4x32xf32>
    %260 = vector.shape_cast %257 : vector<4x32xf32> to vector<1x1x4x32xf32>
    tpu.vector_store %arg10[%c6_243, %c7_244, %c0_245, %c0_246], %260 {strides = array<i32>} : memref<8x8x4x32xf32, #tpu.memory_space<vmem>>, vector<1x1x4x32xf32>,
    %c7_247 = arith.constant 7 : index
    %c0_248 = arith.constant 0 : index
    %c0_249 = arith.constant 0 : index
    %261 = vector.load %arg1[%c7_247, %c0_248, %c0_249] : memref<8x4x16xf32, #tpu.memory_space<vmem>>, vector<1x4x16xf32>
    %262 = vector.shape_cast %261 : vector<1x4x16xf32> to vector<4x16xf32>
    %cst_250 = arith.constant dense<0.000000e+00> : vector<4x256xf32>
    %263 = tpu.matmul %262, %0, %cst_250 {dimension_numbers = #tpu.dot_dimension_numbers<[1], [0], [0], [1], [0, 0, 1, 1], [], []>} : vector<4x16xf32>, vector<16x256xf32>, vector<4x256xf32> -> vector<4x256xf32>
    %264 = vector.broadcast %1 : vector<1x256xf32> to vector<4x256xf32>
    %265 = arith.addf %263, %264 : vector<4x256xf32>
    %266 = vector.extract_strided_slice %265 {offsets = [0, 0], sizes = [4, 32], strides = [1, 1]} : vector<4x256xf32> to vector<4x32xf32>
    %c7_251 = arith.constant 7 : index
    %c0_252 = arith.constant 0 : index
    %c0_253 = arith.constant 0 : index
    %c0_254 = arith.constant 0 : index
    %267 = vector.load %arg10[%c7_251, %c0_252, %c0_253, %c0_254] : memref<8x8x4x32xf32, #tpu.memory_space<vmem>>, vector<1x1x4x32xf32>
    %268 = vector.shape_cast %267 : vector<1x1x4x32xf32> to vector<4x32xf32>
    %269 = vector.shape_cast %266 : vector<4x32xf32> to vector<1x1x4x32xf32>
    tpu.vector_store %arg10[%c7_251, %c0_252, %c0_253, %c0_254], %269 {strides = array<i32>} : memref<8x8x4x32xf32, #tpu.memory_space<vmem>>, vector<1x1x4x32xf32>,
    %270 = vector.extract_strided_slice %265 {offsets = [0, 32], sizes = [4, 32], strides = [1, 1]} : vector<4x256xf32> to vector<4x32xf32>
    %c7_255 = arith.constant 7 : index
    %c1_256 = arith.constant 1 : index
    %c0_257 = arith.constant 0 : index
    %c0_258 = arith.constant 0 : index
    %271 = vector.load %arg10[%c7_255, %c1_256, %c0_257, %c0_258] : memref<8x8x4x32xf32, #tpu.memory_space<vmem>>, vector<1x1x4x32xf32>
    %272 = vector.shape_cast %271 : vector<1x1x4x32xf32> to vector<4x32xf32>
    %273 = vector.shape_cast %270 : vector<4x32xf32> to vector<1x1x4x32xf32>
    tpu.vector_store %arg10[%c7_255, %c1_256, %c0_257, %c0_258], %273 {strides = array<i32>} : memref<8x8x4x32xf32, #tpu.memory_space<vmem>>, vector<1x1x4x32xf32>,
    %274 = vector.extract_strided_slice %265 {offsets = [0, 64], sizes = [4, 32], strides = [1, 1]} : vector<4x256xf32> to vector<4x32xf32>
    %c7_259 = arith.constant 7 : index
    %c2_260 = arith.constant 2 : index
    %c0_261 = arith.constant 0 : index
    %c0_262 = arith.constant 0 : index
    %275 = vector.load %arg10[%c7_259, %c2_260, %c0_261, %c0_262] : memref<8x8x4x32xf32, #tpu.memory_space<vmem>>, vector<1x1x4x32xf32>
    %276 = vector.shape_cast %275 : vector<1x1x4x32xf32> to vector<4x32xf32>
    %277 = vector.shape_cast %274 : vector<4x32xf32> to vector<1x1x4x32xf32>
    tpu.vector_store %arg10[%c7_259, %c2_260, %c0_261, %c0_262], %277 {strides = array<i32>} : memref<8x8x4x32xf32, #tpu.memory_space<vmem>>, vector<1x1x4x32xf32>,
    %278 = vector.extract_strided_slice %265 {offsets = [0, 96], sizes = [4, 32], strides = [1, 1]} : vector<4x256xf32> to vector<4x32xf32>
    %c7_263 = arith.constant 7 : index
    %c3_264 = arith.constant 3 : index
    %c0_265 = arith.constant 0 : index
    %c0_266 = arith.constant 0 : index
    %279 = vector.load %arg10[%c7_263, %c3_264, %c0_265, %c0_266] : memref<8x8x4x32xf32, #tpu.memory_space<vmem>>, vector<1x1x4x32xf32>
    %280 = vector.shape_cast %279 : vector<1x1x4x32xf32> to vector<4x32xf32>
    %281 = vector.shape_cast %278 : vector<4x32xf32> to vector<1x1x4x32xf32>
    tpu.vector_store %arg10[%c7_263, %c3_264, %c0_265, %c0_266], %281 {strides = array<i32>} : memref<8x8x4x32xf32, #tpu.memory_space<vmem>>, vector<1x1x4x32xf32>,
    %282 = vector.extract_strided_slice %265 {offsets = [0, 128], sizes = [4, 32], strides = [1, 1]} : vector<4x256xf32> to vector<4x32xf32>
    %c7_267 = arith.constant 7 : index
    %c4_268 = arith.constant 4 : index
    %c0_269 = arith.constant 0 : index
    %c0_270 = arith.constant 0 : index
    %283 = vector.load %arg10[%c7_267, %c4_268, %c0_269, %c0_270] : memref<8x8x4x32xf32, #tpu.memory_space<vmem>>, vector<1x1x4x32xf32>
    %284 = vector.shape_cast %283 : vector<1x1x4x32xf32> to vector<4x32xf32>
    %285 = vector.shape_cast %282 : vector<4x32xf32> to vector<1x1x4x32xf32>
    tpu.vector_store %arg10[%c7_267, %c4_268, %c0_269, %c0_270], %285 {strides = array<i32>} : memref<8x8x4x32xf32, #tpu.memory_space<vmem>>, vector<1x1x4x32xf32>,
    %286 = vector.extract_strided_slice %265 {offsets = [0, 160], sizes = [4, 32], strides = [1, 1]} : vector<4x256xf32> to vector<4x32xf32>
    %c7_271 = arith.constant 7 : index
    %c5_272 = arith.constant 5 : index
    %c0_273 = arith.constant 0 : index
    %c0_274 = arith.constant 0 : index
    %287 = vector.load %arg10[%c7_271, %c5_272, %c0_273, %c0_274] : memref<8x8x4x32xf32, #tpu.memory_space<vmem>>, vector<1x1x4x32xf32>
    %288 = vector.shape_cast %287 : vector<1x1x4x32xf32> to vector<4x32xf32>
    %289 = vector.shape_cast %286 : vector<4x32xf32> to vector<1x1x4x32xf32>
    tpu.vector_store %arg10[%c7_271, %c5_272, %c0_273, %c0_274], %289 {strides = array<i32>} : memref<8x8x4x32xf32, #tpu.memory_space<vmem>>, vector<1x1x4x32xf32>,
    %290 = vector.extract_strided_slice %265 {offsets = [0, 192], sizes = [4, 32], strides = [1, 1]} : vector<4x256xf32> to vector<4x32xf32>
    %c7_275 = arith.constant 7 : index
    %c6_276 = arith.constant 6 : index
    %c0_277 = arith.constant 0 : index
    %c0_278 = arith.constant 0 : index
    %291 = vector.load %arg10[%c7_275, %c6_276, %c0_277, %c0_278] : memref<8x8x4x32xf32, #tpu.memory_space<vmem>>, vector<1x1x4x32xf32>
    %292 = vector.shape_cast %291 : vector<1x1x4x32xf32> to vector<4x32xf32>
    %293 = vector.shape_cast %290 : vector<4x32xf32> to vector<1x1x4x32xf32>
    tpu.vector_store %arg10[%c7_275, %c6_276, %c0_277, %c0_278], %293 {strides = array<i32>} : memref<8x8x4x32xf32, #tpu.memory_space<vmem>>, vector<1x1x4x32xf32>,
    %294 = vector.extract_strided_slice %265 {offsets = [0, 224], sizes = [4, 32], strides = [1, 1]} : vector<4x256xf32> to vector<4x32xf32>
    %c7_279 = arith.constant 7 : index
    %c7_280 = arith.constant 7 : index
    %c0_281 = arith.constant 0 : index
    %c0_282 = arith.constant 0 : index
    %295 = vector.load %arg10[%c7_279, %c7_280, %c0_281, %c0_282] : memref<8x8x4x32xf32, #tpu.memory_space<vmem>>, vector<1x1x4x32xf32>
    %296 = vector.shape_cast %295 : vector<1x1x4x32xf32> to vector<4x32xf32>
    %297 = vector.shape_cast %294 : vector<4x32xf32> to vector<1x1x4x32xf32>
    tpu.vector_store %arg10[%c7_279, %c7_280, %c0_281, %c0_282], %297 {strides = array<i32>} : memref<8x8x4x32xf32, #tpu.memory_space<vmem>>, vector<1x1x4x32xf32>,
    %c0_283 = arith.constant 0 : index
    %c0_284 = arith.constant 0 : index
    %c0_285 = arith.constant 0 : index
    %298 = vector.load %arg4[%c0_283, %c0_284, %c0_285] : memref<8x32x32xf32, #tpu.memory_space<vmem>>, vector<1x32x32xf32>
    %299 = vector.shape_cast %298 : vector<1x32x32xf32> to vector<32x32xf32>
    %c1_286 = arith.constant 1 : index
    %c0_287 = arith.constant 0 : index
    %c0_288 = arith.constant 0 : index
    %300 = vector.load %arg4[%c1_286, %c0_287, %c0_288] : memref<8x32x32xf32, #tpu.memory_space<vmem>>, vector<1x32x32xf32>
    %301 = vector.shape_cast %300 : vector<1x32x32xf32> to vector<32x32xf32>
    %c2_289 = arith.constant 2 : index
    %c0_290 = arith.constant 0 : index
    %c0_291 = arith.constant 0 : index
    %302 = vector.load %arg4[%c2_289, %c0_290, %c0_291] : memref<8x32x32xf32, #tpu.memory_space<vmem>>, vector<1x32x32xf32>
    %303 = vector.shape_cast %302 : vector<1x32x32xf32> to vector<32x32xf32>
    %c3_292 = arith.constant 3 : index
    %c0_293 = arith.constant 0 : index
    %c0_294 = arith.constant 0 : index
    %304 = vector.load %arg4[%c3_292, %c0_293, %c0_294] : memref<8x32x32xf32, #tpu.memory_space<vmem>>, vector<1x32x32xf32>
    %305 = vector.shape_cast %304 : vector<1x32x32xf32> to vector<32x32xf32>
    %c4_295 = arith.constant 4 : index
    %c0_296 = arith.constant 0 : index
    %c0_297 = arith.constant 0 : index
    %306 = vector.load %arg4[%c4_295, %c0_296, %c0_297] : memref<8x32x32xf32, #tpu.memory_space<vmem>>, vector<1x32x32xf32>
    %307 = vector.shape_cast %306 : vector<1x32x32xf32> to vector<32x32xf32>
    %c5_298 = arith.constant 5 : index
    %c0_299 = arith.constant 0 : index
    %c0_300 = arith.constant 0 : index
    %308 = vector.load %arg4[%c5_298, %c0_299, %c0_300] : memref<8x32x32xf32, #tpu.memory_space<vmem>>, vector<1x32x32xf32>
    %309 = vector.shape_cast %308 : vector<1x32x32xf32> to vector<32x32xf32>
    %c6_301 = arith.constant 6 : index
    %c0_302 = arith.constant 0 : index
    %c0_303 = arith.constant 0 : index
    %310 = vector.load %arg4[%c6_301, %c0_302, %c0_303] : memref<8x32x32xf32, #tpu.memory_space<vmem>>, vector<1x32x32xf32>
    %311 = vector.shape_cast %310 : vector<1x32x32xf32> to vector<32x32xf32>
    %c7_304 = arith.constant 7 : index
    %c0_305 = arith.constant 0 : index
    %c0_306 = arith.constant 0 : index
    %312 = vector.load %arg4[%c7_304, %c0_305, %c0_306] : memref<8x32x32xf32, #tpu.memory_space<vmem>>, vector<1x32x32xf32>
    %313 = vector.shape_cast %312 : vector<1x32x32xf32> to vector<32x32xf32>
    %cst_307 = arith.constant 0.000000e+00 : f32
    %314 = vector.broadcast %cst_307 : f32 to vector<4x32xf32>
    %c0_i32 = arith.constant 0 : i32
    %c7_i32 = arith.constant 7 : i32
    %315 = arith.subi %c7_i32, %c0_i32 : i32
    %316 = arith.index_cast %c0_i32 : i32 to index
    %c0_308 = arith.constant 0 : index
    %c0_309 = arith.constant 0 : index
    %c0_310 = arith.constant 0 : index
    %317 = vector.load %arg10[%316, %c0_308, %c0_309, %c0_310] : memref<8x8x4x32xf32, #tpu.memory_space<vmem>>, vector<1x1x4x32xf32>
    %318 = vector.shape_cast %317 : vector<1x1x4x32xf32> to vector<4x32xf32>
    %cst_311 = arith.constant dense<0.000000e+00> : vector<4x32xf32>
    %319 = tpu.matmul %314, %299, %cst_311 {dimension_numbers = #tpu.dot_dimension_numbers<[1], [0], [0], [1], [0, 0, 1, 1], [], []>} : vector<4x32xf32>, vector<32x32xf32>, vector<4x32xf32> -> vector<4x32xf32>
    %320 = arith.addf %318, %319 : vector<4x32xf32>
    %321 = arith.index_cast %c0_i32 : i32 to index
    %c1_312 = arith.constant 1 : index
    %c0_313 = arith.constant 0 : index
    %c0_314 = arith.constant 0 : index
    %322 = vector.load %arg10[%321, %c1_312, %c0_313, %c0_314] : memref<8x8x4x32xf32, #tpu.memory_space<vmem>>, vector<1x1x4x32xf32>
    %323 = vector.shape_cast %322 : vector<1x1x4x32xf32> to vector<4x32xf32>
    %cst_315 = arith.constant dense<0.000000e+00> : vector<4x32xf32>
    %324 = tpu.matmul %314, %301, %cst_315 {dimension_numbers = #tpu.dot_dimension_numbers<[1], [0], [0], [1], [0, 0, 1, 1], [], []>} : vector<4x32xf32>, vector<32x32xf32>, vector<4x32xf32> -> vector<4x32xf32>
    %325 = arith.addf %323, %324 : vector<4x32xf32>
    %326 = arith.index_cast %c0_i32 : i32 to index
    %c2_316 = arith.constant 2 : index
    %c0_317 = arith.constant 0 : index
    %c0_318 = arith.constant 0 : index
    %327 = vector.load %arg10[%326, %c2_316, %c0_317, %c0_318] : memref<8x8x4x32xf32, #tpu.memory_space<vmem>>, vector<1x1x4x32xf32>
    %328 = vector.shape_cast %327 : vector<1x1x4x32xf32> to vector<4x32xf32>
    %cst_319 = arith.constant dense<0.000000e+00> : vector<4x32xf32>
    %329 = tpu.matmul %314, %303, %cst_319 {dimension_numbers = #tpu.dot_dimension_numbers<[1], [0], [0], [1], [0, 0, 1, 1], [], []>} : vector<4x32xf32>, vector<32x32xf32>, vector<4x32xf32> -> vector<4x32xf32>
    %330 = arith.addf %328, %329 : vector<4x32xf32>
    %331 = arith.index_cast %c0_i32 : i32 to index
    %c3_320 = arith.constant 3 : index
    %c0_321 = arith.constant 0 : index
    %c0_322 = arith.constant 0 : index
    %332 = vector.load %arg10[%331, %c3_320, %c0_321, %c0_322] : memref<8x8x4x32xf32, #tpu.memory_space<vmem>>, vector<1x1x4x32xf32>
    %333 = vector.shape_cast %332 : vector<1x1x4x32xf32> to vector<4x32xf32>
    %cst_323 = arith.constant dense<0.000000e+00> : vector<4x32xf32>
    %334 = tpu.matmul %314, %305, %cst_323 {dimension_numbers = #tpu.dot_dimension_numbers<[1], [0], [0], [1], [0, 0, 1, 1], [], []>} : vector<4x32xf32>, vector<32x32xf32>, vector<4x32xf32> -> vector<4x32xf32>
    %335 = arith.addf %333, %334 : vector<4x32xf32>
    %336 = arith.index_cast %315 : i32 to index
    %c4_324 = arith.constant 4 : index
    %c0_325 = arith.constant 0 : index
    %c0_326 = arith.constant 0 : index
    %337 = vector.load %arg10[%336, %c4_324, %c0_325, %c0_326] : memref<8x8x4x32xf32, #tpu.memory_space<vmem>>, vector<1x1x4x32xf32>
    %338 = vector.shape_cast %337 : vector<1x1x4x32xf32> to vector<4x32xf32>
    %cst_327 = arith.constant dense<0.000000e+00> : vector<4x32xf32>
    %339 = tpu.matmul %314, %307, %cst_327 {dimension_numbers = #tpu.dot_dimension_numbers<[1], [0], [0], [1], [0, 0, 1, 1], [], []>} : vector<4x32xf32>, vector<32x32xf32>, vector<4x32xf32> -> vector<4x32xf32>
    %340 = arith.addf %338, %339 : vector<4x32xf32>
    %341 = arith.index_cast %315 : i32 to index
    %c5_328 = arith.constant 5 : index
    %c0_329 = arith.constant 0 : index
    %c0_330 = arith.constant 0 : index
    %342 = vector.load %arg10[%341, %c5_328, %c0_329, %c0_330] : memref<8x8x4x32xf32, #tpu.memory_space<vmem>>, vector<1x1x4x32xf32>
    %343 = vector.shape_cast %342 : vector<1x1x4x32xf32> to vector<4x32xf32>
    %cst_331 = arith.constant dense<0.000000e+00> : vector<4x32xf32>
    %344 = tpu.matmul %314, %309, %cst_331 {dimension_numbers = #tpu.dot_dimension_numbers<[1], [0], [0], [1], [0, 0, 1, 1], [], []>} : vector<4x32xf32>, vector<32x32xf32>, vector<4x32xf32> -> vector<4x32xf32>
    %345 = arith.addf %343, %344 : vector<4x32xf32>
    %346 = arith.index_cast %315 : i32 to index
    %c6_332 = arith.constant 6 : index
    %c0_333 = arith.constant 0 : index
    %c0_334 = arith.constant 0 : index
    %347 = vector.load %arg10[%346, %c6_332, %c0_333, %c0_334] : memref<8x8x4x32xf32, #tpu.memory_space<vmem>>, vector<1x1x4x32xf32>
    %348 = vector.shape_cast %347 : vector<1x1x4x32xf32> to vector<4x32xf32>
    %cst_335 = arith.constant dense<0.000000e+00> : vector<4x32xf32>
    %349 = tpu.matmul %314, %311, %cst_335 {dimension_numbers = #tpu.dot_dimension_numbers<[1], [0], [0], [1], [0, 0, 1, 1], [], []>} : vector<4x32xf32>, vector<32x32xf32>, vector<4x32xf32> -> vector<4x32xf32>
    %350 = arith.addf %348, %349 : vector<4x32xf32>
    %351 = arith.index_cast %315 : i32 to index
    %c7_336 = arith.constant 7 : index
    %c0_337 = arith.constant 0 : index
    %c0_338 = arith.constant 0 : index
    %352 = vector.load %arg10[%351, %c7_336, %c0_337, %c0_338] : memref<8x8x4x32xf32, #tpu.memory_space<vmem>>, vector<1x1x4x32xf32>
    %353 = vector.shape_cast %352 : vector<1x1x4x32xf32> to vector<4x32xf32>
    %cst_339 = arith.constant dense<0.000000e+00> : vector<4x32xf32>
    %354 = tpu.matmul %314, %313, %cst_339 {dimension_numbers = #tpu.dot_dimension_numbers<[1], [0], [0], [1], [0, 0, 1, 1], [], []>} : vector<4x32xf32>, vector<32x32xf32>, vector<4x32xf32> -> vector<4x32xf32>
    %355 = arith.addf %353, %354 : vector<4x32xf32>
    %356 = arith.negf %325 : vector<4x32xf32>
    %357 = math.exp %356 : vector<4x32xf32>
    %cst_340 = arith.constant 1.000000e+00 : f32
    %358 = vector.broadcast %cst_340 : f32 to vector<4x32xf32>
    %359 = arith.addf %358, %357 : vector<4x32xf32>
    %360 = arith.divf %358, %359 : vector<4x32xf32>
    %361 = arith.mulf %360, %314 : vector<4x32xf32>
    %362 = arith.negf %320 : vector<4x32xf32>
    %363 = math.exp %362 : vector<4x32xf32>
    %cst_341 = arith.constant 1.000000e+00 : f32
    %364 = vector.broadcast %cst_341 : f32 to vector<4x32xf32>
    %365 = arith.addf %364, %363 : vector<4x32xf32>
    %366 = arith.divf %364, %365 : vector<4x32xf32>
    %367 = math.tanh %330 : vector<4x32xf32>
    %368 = arith.mulf %366, %367 : vector<4x32xf32>
    %369 = arith.addf %361, %368 : vector<4x32xf32>
    %370 = arith.negf %335 : vector<4x32xf32>
    %371 = math.exp %370 : vector<4x32xf32>
    %cst_342 = arith.constant 1.000000e+00 : f32
    %372 = vector.broadcast %cst_342 : f32 to vector<4x32xf32>
    %373 = arith.addf %372, %371 : vector<4x32xf32>
    %374 = arith.divf %372, %373 : vector<4x32xf32>
    %375 = math.tanh %369 : vector<4x32xf32>
    %376 = arith.mulf %374, %375 : vector<4x32xf32>
    %377 = arith.negf %345 : vector<4x32xf32>
    %378 = math.exp %377 : vector<4x32xf32>
    %cst_343 = arith.constant 1.000000e+00 : f32
    %379 = vector.broadcast %cst_343 : f32 to vector<4x32xf32>
    %380 = arith.addf %379, %378 : vector<4x32xf32>
    %381 = arith.divf %379, %380 : vector<4x32xf32>
    %382 = arith.mulf %381, %314 : vector<4x32xf32>
    %383 = arith.negf %340 : vector<4x32xf32>
    %384 = math.exp %383 : vector<4x32xf32>
    %cst_344 = arith.constant 1.000000e+00 : f32
    %385 = vector.broadcast %cst_344 : f32 to vector<4x32xf32>
    %386 = arith.addf %385, %384 : vector<4x32xf32>
    %387 = arith.divf %385, %386 : vector<4x32xf32>
    %388 = math.tanh %350 : vector<4x32xf32>
    %389 = arith.mulf %387, %388 : vector<4x32xf32>
    %390 = arith.addf %382, %389 : vector<4x32xf32>
    %391 = arith.negf %355 : vector<4x32xf32>
    %392 = math.exp %391 : vector<4x32xf32>
    %cst_345 = arith.constant 1.000000e+00 : f32
    %393 = vector.broadcast %cst_345 : f32 to vector<4x32xf32>
    %394 = arith.addf %393, %392 : vector<4x32xf32>
    %395 = arith.divf %393, %394 : vector<4x32xf32>
    %396 = math.tanh %390 : vector<4x32xf32>
    %397 = arith.mulf %395, %396 : vector<4x32xf32>
    %c1_i32 = arith.constant 1 : i32
    %c7_i32_346 = arith.constant 7 : i32
    %398 = arith.subi %c7_i32_346, %c1_i32 : i32
    %399 = arith.index_cast %c1_i32 : i32 to index
    %c0_347 = arith.constant 0 : index
    %c0_348 = arith.constant 0 : index
    %c0_349 = arith.constant 0 : index
    %400 = vector.load %arg10[%399, %c0_347, %c0_348, %c0_349] : memref<8x8x4x32xf32, #tpu.memory_space<vmem>>, vector<1x1x4x32xf32>
    %401 = vector.shape_cast %400 : vector<1x1x4x32xf32> to vector<4x32xf32>
    %cst_350 = arith.constant dense<0.000000e+00> : vector<4x32xf32>
    %402 = tpu.matmul %376, %299, %cst_350 {dimension_numbers = #tpu.dot_dimension_numbers<[1], [0], [0], [1], [0, 0, 1, 1], [], []>} : vector<4x32xf32>, vector<32x32xf32>, vector<4x32xf32> -> vector<4x32xf32>
    %403 = arith.addf %401, %402 : vector<4x32xf32>
    %404 = arith.index_cast %c1_i32 : i32 to index
    %c1_351 = arith.constant 1 : index
    %c0_352 = arith.constant 0 : index
    %c0_353 = arith.constant 0 : index
    %405 = vector.load %arg10[%404, %c1_351, %c0_352, %c0_353] : memref<8x8x4x32xf32, #tpu.memory_space<vmem>>, vector<1x1x4x32xf32>
    %406 = vector.shape_cast %405 : vector<1x1x4x32xf32> to vector<4x32xf32>
    %cst_354 = arith.constant dense<0.000000e+00> : vector<4x32xf32>
    %407 = tpu.matmul %376, %301, %cst_354 {dimension_numbers = #tpu.dot_dimension_numbers<[1], [0], [0], [1], [0, 0, 1, 1], [], []>} : vector<4x32xf32>, vector<32x32xf32>, vector<4x32xf32> -> vector<4x32xf32>
    %408 = arith.addf %406, %407 : vector<4x32xf32>
    %409 = arith.index_cast %c1_i32 : i32 to index
    %c2_355 = arith.constant 2 : index
    %c0_356 = arith.constant 0 : index
    %c0_357 = arith.constant 0 : index
    %410 = vector.load %arg10[%409, %c2_355, %c0_356, %c0_357] : memref<8x8x4x32xf32, #tpu.memory_space<vmem>>, vector<1x1x4x32xf32>
    %411 = vector.shape_cast %410 : vector<1x1x4x32xf32> to vector<4x32xf32>
    %cst_358 = arith.constant dense<0.000000e+00> : vector<4x32xf32>
    %412 = tpu.matmul %376, %303, %cst_358 {dimension_numbers = #tpu.dot_dimension_numbers<[1], [0], [0], [1], [0, 0, 1, 1], [], []>} : vector<4x32xf32>, vector<32x32xf32>, vector<4x32xf32> -> vector<4x32xf32>
    %413 = arith.addf %411, %412 : vector<4x32xf32>
    %414 = arith.index_cast %c1_i32 : i32 to index
    %c3_359 = arith.constant 3 : index
    %c0_360 = arith.constant 0 : index
    %c0_361 = arith.constant 0 : index
    %415 = vector.load %arg10[%414, %c3_359, %c0_360, %c0_361] : memref<8x8x4x32xf32, #tpu.memory_space<vmem>>, vector<1x1x4x32xf32>
    %416 = vector.shape_cast %415 : vector<1x1x4x32xf32> to vector<4x32xf32>
    %cst_362 = arith.constant dense<0.000000e+00> : vector<4x32xf32>
    %417 = tpu.matmul %376, %305, %cst_362 {dimension_numbers = #tpu.dot_dimension_numbers<[1], [0], [0], [1], [0, 0, 1, 1], [], []>} : vector<4x32xf32>, vector<32x32xf32>, vector<4x32xf32> -> vector<4x32xf32>
    %418 = arith.addf %416, %417 : vector<4x32xf32>
    %419 = arith.index_cast %398 : i32 to index
    %c4_363 = arith.constant 4 : index
    %c0_364 = arith.constant 0 : index
    %c0_365 = arith.constant 0 : index
    %420 = vector.load %arg10[%419, %c4_363, %c0_364, %c0_365] : memref<8x8x4x32xf32, #tpu.memory_space<vmem>>, vector<1x1x4x32xf32>
    %421 = vector.shape_cast %420 : vector<1x1x4x32xf32> to vector<4x32xf32>
    %cst_366 = arith.constant dense<0.000000e+00> : vector<4x32xf32>
    %422 = tpu.matmul %397, %307, %cst_366 {dimension_numbers = #tpu.dot_dimension_numbers<[1], [0], [0], [1], [0, 0, 1, 1], [], []>} : vector<4x32xf32>, vector<32x32xf32>, vector<4x32xf32> -> vector<4x32xf32>
    %423 = arith.addf %421, %422 : vector<4x32xf32>
    %424 = arith.index_cast %398 : i32 to index
    %c5_367 = arith.constant 5 : index
    %c0_368 = arith.constant 0 : index
    %c0_369 = arith.constant 0 : index
    %425 = vector.load %arg10[%424, %c5_367, %c0_368, %c0_369] : memref<8x8x4x32xf32, #tpu.memory_space<vmem>>, vector<1x1x4x32xf32>
    %426 = vector.shape_cast %425 : vector<1x1x4x32xf32> to vector<4x32xf32>
    %cst_370 = arith.constant dense<0.000000e+00> : vector<4x32xf32>
    %427 = tpu.matmul %397, %309, %cst_370 {dimension_numbers = #tpu.dot_dimension_numbers<[1], [0], [0], [1], [0, 0, 1, 1], [], []>} : vector<4x32xf32>, vector<32x32xf32>, vector<4x32xf32> -> vector<4x32xf32>
    %428 = arith.addf %426, %427 : vector<4x32xf32>
    %429 = arith.index_cast %398 : i32 to index
    %c6_371 = arith.constant 6 : index
    %c0_372 = arith.constant 0 : index
    %c0_373 = arith.constant 0 : index
    %430 = vector.load %arg10[%429, %c6_371, %c0_372, %c0_373] : memref<8x8x4x32xf32, #tpu.memory_space<vmem>>, vector<1x1x4x32xf32>
    %431 = vector.shape_cast %430 : vector<1x1x4x32xf32> to vector<4x32xf32>
    %cst_374 = arith.constant dense<0.000000e+00> : vector<4x32xf32>
    %432 = tpu.matmul %397, %311, %cst_374 {dimension_numbers = #tpu.dot_dimension_numbers<[1], [0], [0], [1], [0, 0, 1, 1], [], []>} : vector<4x32xf32>, vector<32x32xf32>, vector<4x32xf32> -> vector<4x32xf32>
    %433 = arith.addf %431, %432 : vector<4x32xf32>
    %434 = arith.index_cast %398 : i32 to index
    %c7_375 = arith.constant 7 : index
    %c0_376 = arith.constant 0 : index
    %c0_377 = arith.constant 0 : index
    %435 = vector.load %arg10[%434, %c7_375, %c0_376, %c0_377] : memref<8x8x4x32xf32, #tpu.memory_space<vmem>>, vector<1x1x4x32xf32>
    %436 = vector.shape_cast %435 : vector<1x1x4x32xf32> to vector<4x32xf32>
    %cst_378 = arith.constant dense<0.000000e+00> : vector<4x32xf32>
    %437 = tpu.matmul %397, %313, %cst_378 {dimension_numbers = #tpu.dot_dimension_numbers<[1], [0], [0], [1], [0, 0, 1, 1], [], []>} : vector<4x32xf32>, vector<32x32xf32>, vector<4x32xf32> -> vector<4x32xf32>
    %438 = arith.addf %436, %437 : vector<4x32xf32>
    %439 = arith.negf %408 : vector<4x32xf32>
    %440 = math.exp %439 : vector<4x32xf32>
    %cst_379 = arith.constant 1.000000e+00 : f32
    %441 = vector.broadcast %cst_379 : f32 to vector<4x32xf32>
    %442 = arith.addf %441, %440 : vector<4x32xf32>
    %443 = arith.divf %441, %442 : vector<4x32xf32>
    %444 = arith.mulf %443, %369 : vector<4x32xf32>
    %445 = arith.negf %403 : vector<4x32xf32>
    %446 = math.exp %445 : vector<4x32xf32>
    %cst_380 = arith.constant 1.000000e+00 : f32
    %447 = vector.broadcast %cst_380 : f32 to vector<4x32xf32>
    %448 = arith.addf %447, %446 : vector<4x32xf32>
    %449 = arith.divf %447, %448 : vector<4x32xf32>
    %450 = math.tanh %413 : vector<4x32xf32>
    %451 = arith.mulf %449, %450 : vector<4x32xf32>
    %452 = arith.addf %444, %451 : vector<4x32xf32>
    %453 = arith.negf %418 : vector<4x32xf32>
    %454 = math.exp %453 : vector<4x32xf32>
    %cst_381 = arith.constant 1.000000e+00 : f32
    %455 = vector.broadcast %cst_381 : f32 to vector<4x32xf32>
    %456 = arith.addf %455, %454 : vector<4x32xf32>
    %457 = arith.divf %455, %456 : vector<4x32xf32>
    %458 = math.tanh %452 : vector<4x32xf32>
    %459 = arith.mulf %457, %458 : vector<4x32xf32>
    %460 = arith.negf %428 : vector<4x32xf32>
    %461 = math.exp %460 : vector<4x32xf32>
    %cst_382 = arith.constant 1.000000e+00 : f32
    %462 = vector.broadcast %cst_382 : f32 to vector<4x32xf32>
    %463 = arith.addf %462, %461 : vector<4x32xf32>
    %464 = arith.divf %462, %463 : vector<4x32xf32>
    %465 = arith.mulf %464, %390 : vector<4x32xf32>
    %466 = arith.negf %423 : vector<4x32xf32>
    %467 = math.exp %466 : vector<4x32xf32>
    %cst_383 = arith.constant 1.000000e+00 : f32
    %468 = vector.broadcast %cst_383 : f32 to vector<4x32xf32>
    %469 = arith.addf %468, %467 : vector<4x32xf32>
    %470 = arith.divf %468, %469 : vector<4x32xf32>
    %471 = math.tanh %433 : vector<4x32xf32>
    %472 = arith.mulf %470, %471 : vector<4x32xf32>
    %473 = arith.addf %465, %472 : vector<4x32xf32>
    %474 = arith.negf %438 : vector<4x32xf32>
    %475 = math.exp %474 : vector<4x32xf32>
    %cst_384 = arith.constant 1.000000e+00 : f32
    %476 = vector.broadcast %cst_384 : f32 to vector<4x32xf32>
    %477 = arith.addf %476, %475 : vector<4x32xf32>
    %478 = arith.divf %476, %477 : vector<4x32xf32>
    %479 = math.tanh %473 : vector<4x32xf32>
    %480 = arith.mulf %478, %479 : vector<4x32xf32>
    %c2_i32 = arith.constant 2 : i32
    %c7_i32_385 = arith.constant 7 : i32
    %481 = arith.subi %c7_i32_385, %c2_i32 : i32
    %482 = arith.index_cast %c2_i32 : i32 to index
    %c0_386 = arith.constant 0 : index
    %c0_387 = arith.constant 0 : index
    %c0_388 = arith.constant 0 : index
    %483 = vector.load %arg10[%482, %c0_386, %c0_387, %c0_388] : memref<8x8x4x32xf32, #tpu.memory_space<vmem>>, vector<1x1x4x32xf32>
    %484 = vector.shape_cast %483 : vector<1x1x4x32xf32> to vector<4x32xf32>
    %cst_389 = arith.constant dense<0.000000e+00> : vector<4x32xf32>
    %485 = tpu.matmul %459, %299, %cst_389 {dimension_numbers = #tpu.dot_dimension_numbers<[1], [0], [0], [1], [0, 0, 1, 1], [], []>} : vector<4x32xf32>, vector<32x32xf32>, vector<4x32xf32> -> vector<4x32xf32>
    %486 = arith.addf %484, %485 : vector<4x32xf32>
    %487 = arith.index_cast %c2_i32 : i32 to index
    %c1_390 = arith.constant 1 : index
    %c0_391 = arith.constant 0 : index
    %c0_392 = arith.constant 0 : index
    %488 = vector.load %arg10[%487, %c1_390, %c0_391, %c0_392] : memref<8x8x4x32xf32, #tpu.memory_space<vmem>>, vector<1x1x4x32xf32>
    %489 = vector.shape_cast %488 : vector<1x1x4x32xf32> to vector<4x32xf32>
    %cst_393 = arith.constant dense<0.000000e+00> : vector<4x32xf32>
    %490 = tpu.matmul %459, %301, %cst_393 {dimension_numbers = #tpu.dot_dimension_numbers<[1], [0], [0], [1], [0, 0, 1, 1], [], []>} : vector<4x32xf32>, vector<32x32xf32>, vector<4x32xf32> -> vector<4x32xf32>
    %491 = arith.addf %489, %490 : vector<4x32xf32>
    %492 = arith.index_cast %c2_i32 : i32 to index
    %c2_394 = arith.constant 2 : index
    %c0_395 = arith.constant 0 : index
    %c0_396 = arith.constant 0 : index
    %493 = vector.load %arg10[%492, %c2_394, %c0_395, %c0_396] : memref<8x8x4x32xf32, #tpu.memory_space<vmem>>, vector<1x1x4x32xf32>
    %494 = vector.shape_cast %493 : vector<1x1x4x32xf32> to vector<4x32xf32>
    %cst_397 = arith.constant dense<0.000000e+00> : vector<4x32xf32>
    %495 = tpu.matmul %459, %303, %cst_397 {dimension_numbers = #tpu.dot_dimension_numbers<[1], [0], [0], [1], [0, 0, 1, 1], [], []>} : vector<4x32xf32>, vector<32x32xf32>, vector<4x32xf32> -> vector<4x32xf32>
    %496 = arith.addf %494, %495 : vector<4x32xf32>
    %497 = arith.index_cast %c2_i32 : i32 to index
    %c3_398 = arith.constant 3 : index
    %c0_399 = arith.constant 0 : index
    %c0_400 = arith.constant 0 : index
    %498 = vector.load %arg10[%497, %c3_398, %c0_399, %c0_400] : memref<8x8x4x32xf32, #tpu.memory_space<vmem>>, vector<1x1x4x32xf32>
    %499 = vector.shape_cast %498 : vector<1x1x4x32xf32> to vector<4x32xf32>
    %cst_401 = arith.constant dense<0.000000e+00> : vector<4x32xf32>
    %500 = tpu.matmul %459, %305, %cst_401 {dimension_numbers = #tpu.dot_dimension_numbers<[1], [0], [0], [1], [0, 0, 1, 1], [], []>} : vector<4x32xf32>, vector<32x32xf32>, vector<4x32xf32> -> vector<4x32xf32>
    %501 = arith.addf %499, %500 : vector<4x32xf32>
    %502 = arith.index_cast %481 : i32 to index
    %c4_402 = arith.constant 4 : index
    %c0_403 = arith.constant 0 : index
    %c0_404 = arith.constant 0 : index
    %503 = vector.load %arg10[%502, %c4_402, %c0_403, %c0_404] : memref<8x8x4x32xf32, #tpu.memory_space<vmem>>, vector<1x1x4x32xf32>
    %504 = vector.shape_cast %503 : vector<1x1x4x32xf32> to vector<4x32xf32>
    %cst_405 = arith.constant dense<0.000000e+00> : vector<4x32xf32>
    %505 = tpu.matmul %480, %307, %cst_405 {dimension_numbers = #tpu.dot_dimension_numbers<[1], [0], [0], [1], [0, 0, 1, 1], [], []>} : vector<4x32xf32>, vector<32x32xf32>, vector<4x32xf32> -> vector<4x32xf32>
    %506 = arith.addf %504, %505 : vector<4x32xf32>
    %507 = arith.index_cast %481 : i32 to index
    %c5_406 = arith.constant 5 : index
    %c0_407 = arith.constant 0 : index
    %c0_408 = arith.constant 0 : index
    %508 = vector.load %arg10[%507, %c5_406, %c0_407, %c0_408] : memref<8x8x4x32xf32, #tpu.memory_space<vmem>>, vector<1x1x4x32xf32>
    %509 = vector.shape_cast %508 : vector<1x1x4x32xf32> to vector<4x32xf32>
    %cst_409 = arith.constant dense<0.000000e+00> : vector<4x32xf32>
    %510 = tpu.matmul %480, %309, %cst_409 {dimension_numbers = #tpu.dot_dimension_numbers<[1], [0], [0], [1], [0, 0, 1, 1], [], []>} : vector<4x32xf32>, vector<32x32xf32>, vector<4x32xf32> -> vector<4x32xf32>
    %511 = arith.addf %509, %510 : vector<4x32xf32>
    %512 = arith.index_cast %481 : i32 to index
    %c6_410 = arith.constant 6 : index
    %c0_411 = arith.constant 0 : index
    %c0_412 = arith.constant 0 : index
    %513 = vector.load %arg10[%512, %c6_410, %c0_411, %c0_412] : memref<8x8x4x32xf32, #tpu.memory_space<vmem>>, vector<1x1x4x32xf32>
    %514 = vector.shape_cast %513 : vector<1x1x4x32xf32> to vector<4x32xf32>
    %cst_413 = arith.constant dense<0.000000e+00> : vector<4x32xf32>
    %515 = tpu.matmul %480, %311, %cst_413 {dimension_numbers = #tpu.dot_dimension_numbers<[1], [0], [0], [1], [0, 0, 1, 1], [], []>} : vector<4x32xf32>, vector<32x32xf32>, vector<4x32xf32> -> vector<4x32xf32>
    %516 = arith.addf %514, %515 : vector<4x32xf32>
    %517 = arith.index_cast %481 : i32 to index
    %c7_414 = arith.constant 7 : index
    %c0_415 = arith.constant 0 : index
    %c0_416 = arith.constant 0 : index
    %518 = vector.load %arg10[%517, %c7_414, %c0_415, %c0_416] : memref<8x8x4x32xf32, #tpu.memory_space<vmem>>, vector<1x1x4x32xf32>
    %519 = vector.shape_cast %518 : vector<1x1x4x32xf32> to vector<4x32xf32>
    %cst_417 = arith.constant dense<0.000000e+00> : vector<4x32xf32>
    %520 = tpu.matmul %480, %313, %cst_417 {dimension_numbers = #tpu.dot_dimension_numbers<[1], [0], [0], [1], [0, 0, 1, 1], [], []>} : vector<4x32xf32>, vector<32x32xf32>, vector<4x32xf32> -> vector<4x32xf32>
    %521 = arith.addf %519, %520 : vector<4x32xf32>
    %522 = arith.negf %491 : vector<4x32xf32>
    %523 = math.exp %522 : vector<4x32xf32>
    %cst_418 = arith.constant 1.000000e+00 : f32
    %524 = vector.broadcast %cst_418 : f32 to vector<4x32xf32>
    %525 = arith.addf %524, %523 : vector<4x32xf32>
    %526 = arith.divf %524, %525 : vector<4x32xf32>
    %527 = arith.mulf %526, %452 : vector<4x32xf32>
    %528 = arith.negf %486 : vector<4x32xf32>
    %529 = math.exp %528 : vector<4x32xf32>
    %cst_419 = arith.constant 1.000000e+00 : f32
    %530 = vector.broadcast %cst_419 : f32 to vector<4x32xf32>
    %531 = arith.addf %530, %529 : vector<4x32xf32>
    %532 = arith.divf %530, %531 : vector<4x32xf32>
    %533 = math.tanh %496 : vector<4x32xf32>
    %534 = arith.mulf %532, %533 : vector<4x32xf32>
    %535 = arith.addf %527, %534 : vector<4x32xf32>
    %536 = arith.negf %501 : vector<4x32xf32>
    %537 = math.exp %536 : vector<4x32xf32>
    %cst_420 = arith.constant 1.000000e+00 : f32
    %538 = vector.broadcast %cst_420 : f32 to vector<4x32xf32>
    %539 = arith.addf %538, %537 : vector<4x32xf32>
    %540 = arith.divf %538, %539 : vector<4x32xf32>
    %541 = math.tanh %535 : vector<4x32xf32>
    %542 = arith.mulf %540, %541 : vector<4x32xf32>
    %543 = arith.negf %511 : vector<4x32xf32>
    %544 = math.exp %543 : vector<4x32xf32>
    %cst_421 = arith.constant 1.000000e+00 : f32
    %545 = vector.broadcast %cst_421 : f32 to vector<4x32xf32>
    %546 = arith.addf %545, %544 : vector<4x32xf32>
    %547 = arith.divf %545, %546 : vector<4x32xf32>
    %548 = arith.mulf %547, %473 : vector<4x32xf32>
    %549 = arith.negf %506 : vector<4x32xf32>
    %550 = math.exp %549 : vector<4x32xf32>
    %cst_422 = arith.constant 1.000000e+00 : f32
    %551 = vector.broadcast %cst_422 : f32 to vector<4x32xf32>
    %552 = arith.addf %551, %550 : vector<4x32xf32>
    %553 = arith.divf %551, %552 : vector<4x32xf32>
    %554 = math.tanh %516 : vector<4x32xf32>
    %555 = arith.mulf %553, %554 : vector<4x32xf32>
    %556 = arith.addf %548, %555 : vector<4x32xf32>
    %557 = arith.negf %521 : vector<4x32xf32>
    %558 = math.exp %557 : vector<4x32xf32>
    %cst_423 = arith.constant 1.000000e+00 : f32
    %559 = vector.broadcast %cst_423 : f32 to vector<4x32xf32>
    %560 = arith.addf %559, %558 : vector<4x32xf32>
    %561 = arith.divf %559, %560 : vector<4x32xf32>
    %562 = math.tanh %556 : vector<4x32xf32>
    %563 = arith.mulf %561, %562 : vector<4x32xf32>
    %c3_i32 = arith.constant 3 : i32
    %c7_i32_424 = arith.constant 7 : i32
    %564 = arith.subi %c7_i32_424, %c3_i32 : i32
    %565 = arith.index_cast %c3_i32 : i32 to index
    %c0_425 = arith.constant 0 : index
    %c0_426 = arith.constant 0 : index
    %c0_427 = arith.constant 0 : index
    %566 = vector.load %arg10[%565, %c0_425, %c0_426, %c0_427] : memref<8x8x4x32xf32, #tpu.memory_space<vmem>>, vector<1x1x4x32xf32>
    %567 = vector.shape_cast %566 : vector<1x1x4x32xf32> to vector<4x32xf32>
    %cst_428 = arith.constant dense<0.000000e+00> : vector<4x32xf32>
    %568 = tpu.matmul %542, %299, %cst_428 {dimension_numbers = #tpu.dot_dimension_numbers<[1], [0], [0], [1], [0, 0, 1, 1], [], []>} : vector<4x32xf32>, vector<32x32xf32>, vector<4x32xf32> -> vector<4x32xf32>
    %569 = arith.addf %567, %568 : vector<4x32xf32>
    %570 = arith.index_cast %c3_i32 : i32 to index
    %c1_429 = arith.constant 1 : index
    %c0_430 = arith.constant 0 : index
    %c0_431 = arith.constant 0 : index
    %571 = vector.load %arg10[%570, %c1_429, %c0_430, %c0_431] : memref<8x8x4x32xf32, #tpu.memory_space<vmem>>, vector<1x1x4x32xf32>
    %572 = vector.shape_cast %571 : vector<1x1x4x32xf32> to vector<4x32xf32>
    %cst_432 = arith.constant dense<0.000000e+00> : vector<4x32xf32>
    %573 = tpu.matmul %542, %301, %cst_432 {dimension_numbers = #tpu.dot_dimension_numbers<[1], [0], [0], [1], [0, 0, 1, 1], [], []>} : vector<4x32xf32>, vector<32x32xf32>, vector<4x32xf32> -> vector<4x32xf32>
    %574 = arith.addf %572, %573 : vector<4x32xf32>
    %575 = arith.index_cast %c3_i32 : i32 to index
    %c2_433 = arith.constant 2 : index
    %c0_434 = arith.constant 0 : index
    %c0_435 = arith.constant 0 : index
    %576 = vector.load %arg10[%575, %c2_433, %c0_434, %c0_435] : memref<8x8x4x32xf32, #tpu.memory_space<vmem>>, vector<1x1x4x32xf32>
    %577 = vector.shape_cast %576 : vector<1x1x4x32xf32> to vector<4x32xf32>
    %cst_436 = arith.constant dense<0.000000e+00> : vector<4x32xf32>
    %578 = tpu.matmul %542, %303, %cst_436 {dimension_numbers = #tpu.dot_dimension_numbers<[1], [0], [0], [1], [0, 0, 1, 1], [], []>} : vector<4x32xf32>, vector<32x32xf32>, vector<4x32xf32> -> vector<4x32xf32>
    %579 = arith.addf %577, %578 : vector<4x32xf32>
    %580 = arith.index_cast %c3_i32 : i32 to index
    %c3_437 = arith.constant 3 : index
    %c0_438 = arith.constant 0 : index
    %c0_439 = arith.constant 0 : index
    %581 = vector.load %arg10[%580, %c3_437, %c0_438, %c0_439] : memref<8x8x4x32xf32, #tpu.memory_space<vmem>>, vector<1x1x4x32xf32>
    %582 = vector.shape_cast %581 : vector<1x1x4x32xf32> to vector<4x32xf32>
    %cst_440 = arith.constant dense<0.000000e+00> : vector<4x32xf32>
    %583 = tpu.matmul %542, %305, %cst_440 {dimension_numbers = #tpu.dot_dimension_numbers<[1], [0], [0], [1], [0, 0, 1, 1], [], []>} : vector<4x32xf32>, vector<32x32xf32>, vector<4x32xf32> -> vector<4x32xf32>
    %584 = arith.addf %582, %583 : vector<4x32xf32>
    %585 = arith.index_cast %564 : i32 to index
    %c4_441 = arith.constant 4 : index
    %c0_442 = arith.constant 0 : index
    %c0_443 = arith.constant 0 : index
    %586 = vector.load %arg10[%585, %c4_441, %c0_442, %c0_443] : memref<8x8x4x32xf32, #tpu.memory_space<vmem>>, vector<1x1x4x32xf32>
    %587 = vector.shape_cast %586 : vector<1x1x4x32xf32> to vector<4x32xf32>
    %cst_444 = arith.constant dense<0.000000e+00> : vector<4x32xf32>
    %588 = tpu.matmul %563, %307, %cst_444 {dimension_numbers = #tpu.dot_dimension_numbers<[1], [0], [0], [1], [0, 0, 1, 1], [], []>} : vector<4x32xf32>, vector<32x32xf32>, vector<4x32xf32> -> vector<4x32xf32>
    %589 = arith.addf %587, %588 : vector<4x32xf32>
    %590 = arith.index_cast %564 : i32 to index
    %c5_445 = arith.constant 5 : index
    %c0_446 = arith.constant 0 : index
    %c0_447 = arith.constant 0 : index
    %591 = vector.load %arg10[%590, %c5_445, %c0_446, %c0_447] : memref<8x8x4x32xf32, #tpu.memory_space<vmem>>, vector<1x1x4x32xf32>
    %592 = vector.shape_cast %591 : vector<1x1x4x32xf32> to vector<4x32xf32>
    %cst_448 = arith.constant dense<0.000000e+00> : vector<4x32xf32>
    %593 = tpu.matmul %563, %309, %cst_448 {dimension_numbers = #tpu.dot_dimension_numbers<[1], [0], [0], [1], [0, 0, 1, 1], [], []>} : vector<4x32xf32>, vector<32x32xf32>, vector<4x32xf32> -> vector<4x32xf32>
    %594 = arith.addf %592, %593 : vector<4x32xf32>
    %595 = arith.index_cast %564 : i32 to index
    %c6_449 = arith.constant 6 : index
    %c0_450 = arith.constant 0 : index
    %c0_451 = arith.constant 0 : index
    %596 = vector.load %arg10[%595, %c6_449, %c0_450, %c0_451] : memref<8x8x4x32xf32, #tpu.memory_space<vmem>>, vector<1x1x4x32xf32>
    %597 = vector.shape_cast %596 : vector<1x1x4x32xf32> to vector<4x32xf32>
    %cst_452 = arith.constant dense<0.000000e+00> : vector<4x32xf32>
    %598 = tpu.matmul %563, %311, %cst_452 {dimension_numbers = #tpu.dot_dimension_numbers<[1], [0], [0], [1], [0, 0, 1, 1], [], []>} : vector<4x32xf32>, vector<32x32xf32>, vector<4x32xf32> -> vector<4x32xf32>
    %599 = arith.addf %597, %598 : vector<4x32xf32>
    %600 = arith.index_cast %564 : i32 to index
    %c7_453 = arith.constant 7 : index
    %c0_454 = arith.constant 0 : index
    %c0_455 = arith.constant 0 : index
    %601 = vector.load %arg10[%600, %c7_453, %c0_454, %c0_455] : memref<8x8x4x32xf32, #tpu.memory_space<vmem>>, vector<1x1x4x32xf32>
    %602 = vector.shape_cast %601 : vector<1x1x4x32xf32> to vector<4x32xf32>
    %cst_456 = arith.constant dense<0.000000e+00> : vector<4x32xf32>
    %603 = tpu.matmul %563, %313, %cst_456 {dimension_numbers = #tpu.dot_dimension_numbers<[1], [0], [0], [1], [0, 0, 1, 1], [], []>} : vector<4x32xf32>, vector<32x32xf32>, vector<4x32xf32> -> vector<4x32xf32>
    %604 = arith.addf %602, %603 : vector<4x32xf32>
    %605 = arith.negf %574 : vector<4x32xf32>
    %606 = math.exp %605 : vector<4x32xf32>
    %cst_457 = arith.constant 1.000000e+00 : f32
    %607 = vector.broadcast %cst_457 : f32 to vector<4x32xf32>
    %608 = arith.addf %607, %606 : vector<4x32xf32>
    %609 = arith.divf %607, %608 : vector<4x32xf32>
    %610 = arith.mulf %609, %535 : vector<4x32xf32>
    %611 = arith.negf %569 : vector<4x32xf32>
    %612 = math.exp %611 : vector<4x32xf32>
    %cst_458 = arith.constant 1.000000e+00 : f32
    %613 = vector.broadcast %cst_458 : f32 to vector<4x32xf32>
    %614 = arith.addf %613, %612 : vector<4x32xf32>
    %615 = arith.divf %613, %614 : vector<4x32xf32>
    %616 = math.tanh %579 : vector<4x32xf32>
    %617 = arith.mulf %615, %616 : vector<4x32xf32>
    %618 = arith.addf %610, %617 : vector<4x32xf32>
    %619 = arith.negf %584 : vector<4x32xf32>
    %620 = math.exp %619 : vector<4x32xf32>
    %cst_459 = arith.constant 1.000000e+00 : f32
    %621 = vector.broadcast %cst_459 : f32 to vector<4x32xf32>
    %622 = arith.addf %621, %620 : vector<4x32xf32>
    %623 = arith.divf %621, %622 : vector<4x32xf32>
    %624 = math.tanh %618 : vector<4x32xf32>
    %625 = arith.mulf %623, %624 : vector<4x32xf32>
    %626 = arith.negf %594 : vector<4x32xf32>
    %627 = math.exp %626 : vector<4x32xf32>
    %cst_460 = arith.constant 1.000000e+00 : f32
    %628 = vector.broadcast %cst_460 : f32 to vector<4x32xf32>
    %629 = arith.addf %628, %627 : vector<4x32xf32>
    %630 = arith.divf %628, %629 : vector<4x32xf32>
    %631 = arith.mulf %630, %556 : vector<4x32xf32>
    %632 = arith.negf %589 : vector<4x32xf32>
    %633 = math.exp %632 : vector<4x32xf32>
    %cst_461 = arith.constant 1.000000e+00 : f32
    %634 = vector.broadcast %cst_461 : f32 to vector<4x32xf32>
    %635 = arith.addf %634, %633 : vector<4x32xf32>
    %636 = arith.divf %634, %635 : vector<4x32xf32>
    %637 = math.tanh %599 : vector<4x32xf32>
    %638 = arith.mulf %636, %637 : vector<4x32xf32>
    %639 = arith.addf %631, %638 : vector<4x32xf32>
    %640 = arith.negf %604 : vector<4x32xf32>
    %641 = math.exp %640 : vector<4x32xf32>
    %cst_462 = arith.constant 1.000000e+00 : f32
    %642 = vector.broadcast %cst_462 : f32 to vector<4x32xf32>
    %643 = arith.addf %642, %641 : vector<4x32xf32>
    %644 = arith.divf %642, %643 : vector<4x32xf32>
    %645 = math.tanh %639 : vector<4x32xf32>
    %646 = arith.mulf %644, %645 : vector<4x32xf32>
    %c4_i32 = arith.constant 4 : i32
    %c7_i32_463 = arith.constant 7 : i32
    %647 = arith.subi %c7_i32_463, %c4_i32 : i32
    %648 = arith.index_cast %c4_i32 : i32 to index
    %c0_464 = arith.constant 0 : index
    %c0_465 = arith.constant 0 : index
    %c0_466 = arith.constant 0 : index
    %649 = vector.load %arg10[%648, %c0_464, %c0_465, %c0_466] : memref<8x8x4x32xf32, #tpu.memory_space<vmem>>, vector<1x1x4x32xf32>
    %650 = vector.shape_cast %649 : vector<1x1x4x32xf32> to vector<4x32xf32>
    %cst_467 = arith.constant dense<0.000000e+00> : vector<4x32xf32>
    %651 = tpu.matmul %625, %299, %cst_467 {dimension_numbers = #tpu.dot_dimension_numbers<[1], [0], [0], [1], [0, 0, 1, 1], [], []>} : vector<4x32xf32>, vector<32x32xf32>, vector<4x32xf32> -> vector<4x32xf32>
    %652 = arith.addf %650, %651 : vector<4x32xf32>
    %653 = arith.index_cast %c4_i32 : i32 to index
    %c1_468 = arith.constant 1 : index
    %c0_469 = arith.constant 0 : index
    %c0_470 = arith.constant 0 : index
    %654 = vector.load %arg10[%653, %c1_468, %c0_469, %c0_470] : memref<8x8x4x32xf32, #tpu.memory_space<vmem>>, vector<1x1x4x32xf32>
    %655 = vector.shape_cast %654 : vector<1x1x4x32xf32> to vector<4x32xf32>
    %cst_471 = arith.constant dense<0.000000e+00> : vector<4x32xf32>
    %656 = tpu.matmul %625, %301, %cst_471 {dimension_numbers = #tpu.dot_dimension_numbers<[1], [0], [0], [1], [0, 0, 1, 1], [], []>} : vector<4x32xf32>, vector<32x32xf32>, vector<4x32xf32> -> vector<4x32xf32>
    %657 = arith.addf %655, %656 : vector<4x32xf32>
    %658 = arith.index_cast %c4_i32 : i32 to index
    %c2_472 = arith.constant 2 : index
    %c0_473 = arith.constant 0 : index
    %c0_474 = arith.constant 0 : index
    %659 = vector.load %arg10[%658, %c2_472, %c0_473, %c0_474] : memref<8x8x4x32xf32, #tpu.memory_space<vmem>>, vector<1x1x4x32xf32>
    %660 = vector.shape_cast %659 : vector<1x1x4x32xf32> to vector<4x32xf32>
    %cst_475 = arith.constant dense<0.000000e+00> : vector<4x32xf32>
    %661 = tpu.matmul %625, %303, %cst_475 {dimension_numbers = #tpu.dot_dimension_numbers<[1], [0], [0], [1], [0, 0, 1, 1], [], []>} : vector<4x32xf32>, vector<32x32xf32>, vector<4x32xf32> -> vector<4x32xf32>
    %662 = arith.addf %660, %661 : vector<4x32xf32>
    %663 = arith.index_cast %c4_i32 : i32 to index
    %c3_476 = arith.constant 3 : index
    %c0_477 = arith.constant 0 : index
    %c0_478 = arith.constant 0 : index
    %664 = vector.load %arg10[%663, %c3_476, %c0_477, %c0_478] : memref<8x8x4x32xf32, #tpu.memory_space<vmem>>, vector<1x1x4x32xf32>
    %665 = vector.shape_cast %664 : vector<1x1x4x32xf32> to vector<4x32xf32>
    %cst_479 = arith.constant dense<0.000000e+00> : vector<4x32xf32>
    %666 = tpu.matmul %625, %305, %cst_479 {dimension_numbers = #tpu.dot_dimension_numbers<[1], [0], [0], [1], [0, 0, 1, 1], [], []>} : vector<4x32xf32>, vector<32x32xf32>, vector<4x32xf32> -> vector<4x32xf32>
    %667 = arith.addf %665, %666 : vector<4x32xf32>
    %668 = arith.index_cast %647 : i32 to index
    %c4_480 = arith.constant 4 : index
    %c0_481 = arith.constant 0 : index
    %c0_482 = arith.constant 0 : index
    %669 = vector.load %arg10[%668, %c4_480, %c0_481, %c0_482] : memref<8x8x4x32xf32, #tpu.memory_space<vmem>>, vector<1x1x4x32xf32>
    %670 = vector.shape_cast %669 : vector<1x1x4x32xf32> to vector<4x32xf32>
    %cst_483 = arith.constant dense<0.000000e+00> : vector<4x32xf32>
    %671 = tpu.matmul %646, %307, %cst_483 {dimension_numbers = #tpu.dot_dimension_numbers<[1], [0], [0], [1], [0, 0, 1, 1], [], []>} : vector<4x32xf32>, vector<32x32xf32>, vector<4x32xf32> -> vector<4x32xf32>
    %672 = arith.addf %670, %671 : vector<4x32xf32>
    %673 = arith.index_cast %647 : i32 to index
    %c5_484 = arith.constant 5 : index
    %c0_485 = arith.constant 0 : index
    %c0_486 = arith.constant 0 : index
    %674 = vector.load %arg10[%673, %c5_484, %c0_485, %c0_486] : memref<8x8x4x32xf32, #tpu.memory_space<vmem>>, vector<1x1x4x32xf32>
    %675 = vector.shape_cast %674 : vector<1x1x4x32xf32> to vector<4x32xf32>
    %cst_487 = arith.constant dense<0.000000e+00> : vector<4x32xf32>
    %676 = tpu.matmul %646, %309, %cst_487 {dimension_numbers = #tpu.dot_dimension_numbers<[1], [0], [0], [1], [0, 0, 1, 1], [], []>} : vector<4x32xf32>, vector<32x32xf32>, vector<4x32xf32> -> vector<4x32xf32>
    %677 = arith.addf %675, %676 : vector<4x32xf32>
    %678 = arith.index_cast %647 : i32 to index
    %c6_488 = arith.constant 6 : index
    %c0_489 = arith.constant 0 : index
    %c0_490 = arith.constant 0 : index
    %679 = vector.load %arg10[%678, %c6_488, %c0_489, %c0_490] : memref<8x8x4x32xf32, #tpu.memory_space<vmem>>, vector<1x1x4x32xf32>
    %680 = vector.shape_cast %679 : vector<1x1x4x32xf32> to vector<4x32xf32>
    %cst_491 = arith.constant dense<0.000000e+00> : vector<4x32xf32>
    %681 = tpu.matmul %646, %311, %cst_491 {dimension_numbers = #tpu.dot_dimension_numbers<[1], [0], [0], [1], [0, 0, 1, 1], [], []>} : vector<4x32xf32>, vector<32x32xf32>, vector<4x32xf32> -> vector<4x32xf32>
    %682 = arith.addf %680, %681 : vector<4x32xf32>
    %683 = arith.index_cast %647 : i32 to index
    %c7_492 = arith.constant 7 : index
    %c0_493 = arith.constant 0 : index
    %c0_494 = arith.constant 0 : index
    %684 = vector.load %arg10[%683, %c7_492, %c0_493, %c0_494] : memref<8x8x4x32xf32, #tpu.memory_space<vmem>>, vector<1x1x4x32xf32>
    %685 = vector.shape_cast %684 : vector<1x1x4x32xf32> to vector<4x32xf32>
    %cst_495 = arith.constant dense<0.000000e+00> : vector<4x32xf32>
    %686 = tpu.matmul %646, %313, %cst_495 {dimension_numbers = #tpu.dot_dimension_numbers<[1], [0], [0], [1], [0, 0, 1, 1], [], []>} : vector<4x32xf32>, vector<32x32xf32>, vector<4x32xf32> -> vector<4x32xf32>
    %687 = arith.addf %685, %686 : vector<4x32xf32>
    %688 = arith.negf %657 : vector<4x32xf32>
    %689 = math.exp %688 : vector<4x32xf32>
    %cst_496 = arith.constant 1.000000e+00 : f32
    %690 = vector.broadcast %cst_496 : f32 to vector<4x32xf32>
    %691 = arith.addf %690, %689 : vector<4x32xf32>
    %692 = arith.divf %690, %691 : vector<4x32xf32>
    %693 = arith.mulf %692, %618 : vector<4x32xf32>
    %694 = arith.negf %652 : vector<4x32xf32>
    %695 = math.exp %694 : vector<4x32xf32>
    %cst_497 = arith.constant 1.000000e+00 : f32
    %696 = vector.broadcast %cst_497 : f32 to vector<4x32xf32>
    %697 = arith.addf %696, %695 : vector<4x32xf32>
    %698 = arith.divf %696, %697 : vector<4x32xf32>
    %699 = math.tanh %662 : vector<4x32xf32>
    %700 = arith.mulf %698, %699 : vector<4x32xf32>
    %701 = arith.addf %693, %700 : vector<4x32xf32>
    %702 = arith.negf %667 : vector<4x32xf32>
    %703 = math.exp %702 : vector<4x32xf32>
    %cst_498 = arith.constant 1.000000e+00 : f32
    %704 = vector.broadcast %cst_498 : f32 to vector<4x32xf32>
    %705 = arith.addf %704, %703 : vector<4x32xf32>
    %706 = arith.divf %704, %705 : vector<4x32xf32>
    %707 = math.tanh %701 : vector<4x32xf32>
    %708 = arith.mulf %706, %707 : vector<4x32xf32>
    %709 = arith.negf %677 : vector<4x32xf32>
    %710 = math.exp %709 : vector<4x32xf32>
    %cst_499 = arith.constant 1.000000e+00 : f32
    %711 = vector.broadcast %cst_499 : f32 to vector<4x32xf32>
    %712 = arith.addf %711, %710 : vector<4x32xf32>
    %713 = arith.divf %711, %712 : vector<4x32xf32>
    %714 = arith.mulf %713, %639 : vector<4x32xf32>
    %715 = arith.negf %672 : vector<4x32xf32>
    %716 = math.exp %715 : vector<4x32xf32>
    %cst_500 = arith.constant 1.000000e+00 : f32
    %717 = vector.broadcast %cst_500 : f32 to vector<4x32xf32>
    %718 = arith.addf %717, %716 : vector<4x32xf32>
    %719 = arith.divf %717, %718 : vector<4x32xf32>
    %720 = math.tanh %682 : vector<4x32xf32>
    %721 = arith.mulf %719, %720 : vector<4x32xf32>
    %722 = arith.addf %714, %721 : vector<4x32xf32>
    %723 = arith.negf %687 : vector<4x32xf32>
    %724 = math.exp %723 : vector<4x32xf32>
    %cst_501 = arith.constant 1.000000e+00 : f32
    %725 = vector.broadcast %cst_501 : f32 to vector<4x32xf32>
    %726 = arith.addf %725, %724 : vector<4x32xf32>
    %727 = arith.divf %725, %726 : vector<4x32xf32>
    %728 = math.tanh %722 : vector<4x32xf32>
    %729 = arith.mulf %727, %728 : vector<4x32xf32>
    %c5_i32 = arith.constant 5 : i32
    %c7_i32_502 = arith.constant 7 : i32
    %730 = arith.subi %c7_i32_502, %c5_i32 : i32
    %731 = arith.index_cast %c5_i32 : i32 to index
    %c0_503 = arith.constant 0 : index
    %c0_504 = arith.constant 0 : index
    %c0_505 = arith.constant 0 : index
    %732 = vector.load %arg10[%731, %c0_503, %c0_504, %c0_505] : memref<8x8x4x32xf32, #tpu.memory_space<vmem>>, vector<1x1x4x32xf32>
    %733 = vector.shape_cast %732 : vector<1x1x4x32xf32> to vector<4x32xf32>
    %cst_506 = arith.constant dense<0.000000e+00> : vector<4x32xf32>
    %734 = tpu.matmul %708, %299, %cst_506 {dimension_numbers = #tpu.dot_dimension_numbers<[1], [0], [0], [1], [0, 0, 1, 1], [], []>} : vector<4x32xf32>, vector<32x32xf32>, vector<4x32xf32> -> vector<4x32xf32>
    %735 = arith.addf %733, %734 : vector<4x32xf32>
    %736 = arith.index_cast %c5_i32 : i32 to index
    %c1_507 = arith.constant 1 : index
    %c0_508 = arith.constant 0 : index
    %c0_509 = arith.constant 0 : index
    %737 = vector.load %arg10[%736, %c1_507, %c0_508, %c0_509] : memref<8x8x4x32xf32, #tpu.memory_space<vmem>>, vector<1x1x4x32xf32>
    %738 = vector.shape_cast %737 : vector<1x1x4x32xf32> to vector<4x32xf32>
    %cst_510 = arith.constant dense<0.000000e+00> : vector<4x32xf32>
    %739 = tpu.matmul %708, %301, %cst_510 {dimension_numbers = #tpu.dot_dimension_numbers<[1], [0], [0], [1], [0, 0, 1, 1], [], []>} : vector<4x32xf32>, vector<32x32xf32>, vector<4x32xf32> -> vector<4x32xf32>
    %740 = arith.addf %738, %739 : vector<4x32xf32>
    %741 = arith.index_cast %c5_i32 : i32 to index
    %c2_511 = arith.constant 2 : index
    %c0_512 = arith.constant 0 : index
    %c0_513 = arith.constant 0 : index
    %742 = vector.load %arg10[%741, %c2_511, %c0_512, %c0_513] : memref<8x8x4x32xf32, #tpu.memory_space<vmem>>, vector<1x1x4x32xf32>
    %743 = vector.shape_cast %742 : vector<1x1x4x32xf32> to vector<4x32xf32>
    %cst_514 = arith.constant dense<0.000000e+00> : vector<4x32xf32>
    %744 = tpu.matmul %708, %303, %cst_514 {dimension_numbers = #tpu.dot_dimension_numbers<[1], [0], [0], [1], [0, 0, 1, 1], [], []>} : vector<4x32xf32>, vector<32x32xf32>, vector<4x32xf32> -> vector<4x32xf32>
    %745 = arith.addf %743, %744 : vector<4x32xf32>
    %746 = arith.index_cast %c5_i32 : i32 to index
    %c3_515 = arith.constant 3 : index
    %c0_516 = arith.constant 0 : index
    %c0_517 = arith.constant 0 : index
    %747 = vector.load %arg10[%746, %c3_515, %c0_516, %c0_517] : memref<8x8x4x32xf32, #tpu.memory_space<vmem>>, vector<1x1x4x32xf32>
    %748 = vector.shape_cast %747 : vector<1x1x4x32xf32> to vector<4x32xf32>
    %cst_518 = arith.constant dense<0.000000e+00> : vector<4x32xf32>
    %749 = tpu.matmul %708, %305, %cst_518 {dimension_numbers = #tpu.dot_dimension_numbers<[1], [0], [0], [1], [0, 0, 1, 1], [], []>} : vector<4x32xf32>, vector<32x32xf32>, vector<4x32xf32> -> vector<4x32xf32>
    %750 = arith.addf %748, %749 : vector<4x32xf32>
    %751 = arith.index_cast %730 : i32 to index
    %c4_519 = arith.constant 4 : index
    %c0_520 = arith.constant 0 : index
    %c0_521 = arith.constant 0 : index
    %752 = vector.load %arg10[%751, %c4_519, %c0_520, %c0_521] : memref<8x8x4x32xf32, #tpu.memory_space<vmem>>, vector<1x1x4x32xf32>
    %753 = vector.shape_cast %752 : vector<1x1x4x32xf32> to vector<4x32xf32>
    %cst_522 = arith.constant dense<0.000000e+00> : vector<4x32xf32>
    %754 = tpu.matmul %729, %307, %cst_522 {dimension_numbers = #tpu.dot_dimension_numbers<[1], [0], [0], [1], [0, 0, 1, 1], [], []>} : vector<4x32xf32>, vector<32x32xf32>, vector<4x32xf32> -> vector<4x32xf32>
    %755 = arith.addf %753, %754 : vector<4x32xf32>
    %756 = arith.index_cast %730 : i32 to index
    %c5_523 = arith.constant 5 : index
    %c0_524 = arith.constant 0 : index
    %c0_525 = arith.constant 0 : index
    %757 = vector.load %arg10[%756, %c5_523, %c0_524, %c0_525] : memref<8x8x4x32xf32, #tpu.memory_space<vmem>>, vector<1x1x4x32xf32>
    %758 = vector.shape_cast %757 : vector<1x1x4x32xf32> to vector<4x32xf32>
    %cst_526 = arith.constant dense<0.000000e+00> : vector<4x32xf32>
    %759 = tpu.matmul %729, %309, %cst_526 {dimension_numbers = #tpu.dot_dimension_numbers<[1], [0], [0], [1], [0, 0, 1, 1], [], []>} : vector<4x32xf32>, vector<32x32xf32>, vector<4x32xf32> -> vector<4x32xf32>
    %760 = arith.addf %758, %759 : vector<4x32xf32>
    %761 = arith.index_cast %730 : i32 to index
    %c6_527 = arith.constant 6 : index
    %c0_528 = arith.constant 0 : index
    %c0_529 = arith.constant 0 : index
    %762 = vector.load %arg10[%761, %c6_527, %c0_528, %c0_529] : memref<8x8x4x32xf32, #tpu.memory_space<vmem>>, vector<1x1x4x32xf32>
    %763 = vector.shape_cast %762 : vector<1x1x4x32xf32> to vector<4x32xf32>
    %cst_530 = arith.constant dense<0.000000e+00> : vector<4x32xf32>
    %764 = tpu.matmul %729, %311, %cst_530 {dimension_numbers = #tpu.dot_dimension_numbers<[1], [0], [0], [1], [0, 0, 1, 1], [], []>} : vector<4x32xf32>, vector<32x32xf32>, vector<4x32xf32> -> vector<4x32xf32>
    %765 = arith.addf %763, %764 : vector<4x32xf32>
    %766 = arith.index_cast %730 : i32 to index
    %c7_531 = arith.constant 7 : index
    %c0_532 = arith.constant 0 : index
    %c0_533 = arith.constant 0 : index
    %767 = vector.load %arg10[%766, %c7_531, %c0_532, %c0_533] : memref<8x8x4x32xf32, #tpu.memory_space<vmem>>, vector<1x1x4x32xf32>
    %768 = vector.shape_cast %767 : vector<1x1x4x32xf32> to vector<4x32xf32>
    %cst_534 = arith.constant dense<0.000000e+00> : vector<4x32xf32>
    %769 = tpu.matmul %729, %313, %cst_534 {dimension_numbers = #tpu.dot_dimension_numbers<[1], [0], [0], [1], [0, 0, 1, 1], [], []>} : vector<4x32xf32>, vector<32x32xf32>, vector<4x32xf32> -> vector<4x32xf32>
    %770 = arith.addf %768, %769 : vector<4x32xf32>
    %771 = arith.negf %740 : vector<4x32xf32>
    %772 = math.exp %771 : vector<4x32xf32>
    %cst_535 = arith.constant 1.000000e+00 : f32
    %773 = vector.broadcast %cst_535 : f32 to vector<4x32xf32>
    %774 = arith.addf %773, %772 : vector<4x32xf32>
    %775 = arith.divf %773, %774 : vector<4x32xf32>
    %776 = arith.mulf %775, %701 : vector<4x32xf32>
    %777 = arith.negf %735 : vector<4x32xf32>
    %778 = math.exp %777 : vector<4x32xf32>
    %cst_536 = arith.constant 1.000000e+00 : f32
    %779 = vector.broadcast %cst_536 : f32 to vector<4x32xf32>
    %780 = arith.addf %779, %778 : vector<4x32xf32>
    %781 = arith.divf %779, %780 : vector<4x32xf32>
    %782 = math.tanh %745 : vector<4x32xf32>
    %783 = arith.mulf %781, %782 : vector<4x32xf32>
    %784 = arith.addf %776, %783 : vector<4x32xf32>
    %785 = arith.negf %750 : vector<4x32xf32>
    %786 = math.exp %785 : vector<4x32xf32>
    %cst_537 = arith.constant 1.000000e+00 : f32
    %787 = vector.broadcast %cst_537 : f32 to vector<4x32xf32>
    %788 = arith.addf %787, %786 : vector<4x32xf32>
    %789 = arith.divf %787, %788 : vector<4x32xf32>
    %790 = math.tanh %784 : vector<4x32xf32>
    %791 = arith.mulf %789, %790 : vector<4x32xf32>
    %792 = arith.negf %760 : vector<4x32xf32>
    %793 = math.exp %792 : vector<4x32xf32>
    %cst_538 = arith.constant 1.000000e+00 : f32
    %794 = vector.broadcast %cst_538 : f32 to vector<4x32xf32>
    %795 = arith.addf %794, %793 : vector<4x32xf32>
    %796 = arith.divf %794, %795 : vector<4x32xf32>
    %797 = arith.mulf %796, %722 : vector<4x32xf32>
    %798 = arith.negf %755 : vector<4x32xf32>
    %799 = math.exp %798 : vector<4x32xf32>
    %cst_539 = arith.constant 1.000000e+00 : f32
    %800 = vector.broadcast %cst_539 : f32 to vector<4x32xf32>
    %801 = arith.addf %800, %799 : vector<4x32xf32>
    %802 = arith.divf %800, %801 : vector<4x32xf32>
    %803 = math.tanh %765 : vector<4x32xf32>
    %804 = arith.mulf %802, %803 : vector<4x32xf32>
    %805 = arith.addf %797, %804 : vector<4x32xf32>
    %806 = arith.negf %770 : vector<4x32xf32>
    %807 = math.exp %806 : vector<4x32xf32>
    %cst_540 = arith.constant 1.000000e+00 : f32
    %808 = vector.broadcast %cst_540 : f32 to vector<4x32xf32>
    %809 = arith.addf %808, %807 : vector<4x32xf32>
    %810 = arith.divf %808, %809 : vector<4x32xf32>
    %811 = math.tanh %805 : vector<4x32xf32>
    %812 = arith.mulf %810, %811 : vector<4x32xf32>
    %c6_i32 = arith.constant 6 : i32
    %c7_i32_541 = arith.constant 7 : i32
    %813 = arith.subi %c7_i32_541, %c6_i32 : i32
    %814 = arith.index_cast %c6_i32 : i32 to index
    %c0_542 = arith.constant 0 : index
    %c0_543 = arith.constant 0 : index
    %c0_544 = arith.constant 0 : index
    %815 = vector.load %arg10[%814, %c0_542, %c0_543, %c0_544] : memref<8x8x4x32xf32, #tpu.memory_space<vmem>>, vector<1x1x4x32xf32>
    %816 = vector.shape_cast %815 : vector<1x1x4x32xf32> to vector<4x32xf32>
    %cst_545 = arith.constant dense<0.000000e+00> : vector<4x32xf32>
    %817 = tpu.matmul %791, %299, %cst_545 {dimension_numbers = #tpu.dot_dimension_numbers<[1], [0], [0], [1], [0, 0, 1, 1], [], []>} : vector<4x32xf32>, vector<32x32xf32>, vector<4x32xf32> -> vector<4x32xf32>
    %818 = arith.addf %816, %817 : vector<4x32xf32>
    %819 = arith.index_cast %c6_i32 : i32 to index
    %c1_546 = arith.constant 1 : index
    %c0_547 = arith.constant 0 : index
    %c0_548 = arith.constant 0 : index
    %820 = vector.load %arg10[%819, %c1_546, %c0_547, %c0_548] : memref<8x8x4x32xf32, #tpu.memory_space<vmem>>, vector<1x1x4x32xf32>
    %821 = vector.shape_cast %820 : vector<1x1x4x32xf32> to vector<4x32xf32>
    %cst_549 = arith.constant dense<0.000000e+00> : vector<4x32xf32>
    %822 = tpu.matmul %791, %301, %cst_549 {dimension_numbers = #tpu.dot_dimension_numbers<[1], [0], [0], [1], [0, 0, 1, 1], [], []>} : vector<4x32xf32>, vector<32x32xf32>, vector<4x32xf32> -> vector<4x32xf32>
    %823 = arith.addf %821, %822 : vector<4x32xf32>
    %824 = arith.index_cast %c6_i32 : i32 to index
    %c2_550 = arith.constant 2 : index
    %c0_551 = arith.constant 0 : index
    %c0_552 = arith.constant 0 : index
    %825 = vector.load %arg10[%824, %c2_550, %c0_551, %c0_552] : memref<8x8x4x32xf32, #tpu.memory_space<vmem>>, vector<1x1x4x32xf32>
    %826 = vector.shape_cast %825 : vector<1x1x4x32xf32> to vector<4x32xf32>
    %cst_553 = arith.constant dense<0.000000e+00> : vector<4x32xf32>
    %827 = tpu.matmul %791, %303, %cst_553 {dimension_numbers = #tpu.dot_dimension_numbers<[1], [0], [0], [1], [0, 0, 1, 1], [], []>} : vector<4x32xf32>, vector<32x32xf32>, vector<4x32xf32> -> vector<4x32xf32>
    %828 = arith.addf %826, %827 : vector<4x32xf32>
    %829 = arith.index_cast %c6_i32 : i32 to index
    %c3_554 = arith.constant 3 : index
    %c0_555 = arith.constant 0 : index
    %c0_556 = arith.constant 0 : index
    %830 = vector.load %arg10[%829, %c3_554, %c0_555, %c0_556] : memref<8x8x4x32xf32, #tpu.memory_space<vmem>>, vector<1x1x4x32xf32>
    %831 = vector.shape_cast %830 : vector<1x1x4x32xf32> to vector<4x32xf32>
    %cst_557 = arith.constant dense<0.000000e+00> : vector<4x32xf32>
    %832 = tpu.matmul %791, %305, %cst_557 {dimension_numbers = #tpu.dot_dimension_numbers<[1], [0], [0], [1], [0, 0, 1, 1], [], []>} : vector<4x32xf32>, vector<32x32xf32>, vector<4x32xf32> -> vector<4x32xf32>
    %833 = arith.addf %831, %832 : vector<4x32xf32>
    %834 = arith.index_cast %813 : i32 to index
    %c4_558 = arith.constant 4 : index
    %c0_559 = arith.constant 0 : index
    %c0_560 = arith.constant 0 : index
    %835 = vector.load %arg10[%834, %c4_558, %c0_559, %c0_560] : memref<8x8x4x32xf32, #tpu.memory_space<vmem>>, vector<1x1x4x32xf32>
    %836 = vector.shape_cast %835 : vector<1x1x4x32xf32> to vector<4x32xf32>
    %cst_561 = arith.constant dense<0.000000e+00> : vector<4x32xf32>
    %837 = tpu.matmul %812, %307, %cst_561 {dimension_numbers = #tpu.dot_dimension_numbers<[1], [0], [0], [1], [0, 0, 1, 1], [], []>} : vector<4x32xf32>, vector<32x32xf32>, vector<4x32xf32> -> vector<4x32xf32>
    %838 = arith.addf %836, %837 : vector<4x32xf32>
    %839 = arith.index_cast %813 : i32 to index
    %c5_562 = arith.constant 5 : index
    %c0_563 = arith.constant 0 : index
    %c0_564 = arith.constant 0 : index
    %840 = vector.load %arg10[%839, %c5_562, %c0_563, %c0_564] : memref<8x8x4x32xf32, #tpu.memory_space<vmem>>, vector<1x1x4x32xf32>
    %841 = vector.shape_cast %840 : vector<1x1x4x32xf32> to vector<4x32xf32>
    %cst_565 = arith.constant dense<0.000000e+00> : vector<4x32xf32>
    %842 = tpu.matmul %812, %309, %cst_565 {dimension_numbers = #tpu.dot_dimension_numbers<[1], [0], [0], [1], [0, 0, 1, 1], [], []>} : vector<4x32xf32>, vector<32x32xf32>, vector<4x32xf32> -> vector<4x32xf32>
    %843 = arith.addf %841, %842 : vector<4x32xf32>
    %844 = arith.index_cast %813 : i32 to index
    %c6_566 = arith.constant 6 : index
    %c0_567 = arith.constant 0 : index
    %c0_568 = arith.constant 0 : index
    %845 = vector.load %arg10[%844, %c6_566, %c0_567, %c0_568] : memref<8x8x4x32xf32, #tpu.memory_space<vmem>>, vector<1x1x4x32xf32>
    %846 = vector.shape_cast %845 : vector<1x1x4x32xf32> to vector<4x32xf32>
    %cst_569 = arith.constant dense<0.000000e+00> : vector<4x32xf32>
    %847 = tpu.matmul %812, %311, %cst_569 {dimension_numbers = #tpu.dot_dimension_numbers<[1], [0], [0], [1], [0, 0, 1, 1], [], []>} : vector<4x32xf32>, vector<32x32xf32>, vector<4x32xf32> -> vector<4x32xf32>
    %848 = arith.addf %846, %847 : vector<4x32xf32>
    %849 = arith.index_cast %813 : i32 to index
    %c7_570 = arith.constant 7 : index
    %c0_571 = arith.constant 0 : index
    %c0_572 = arith.constant 0 : index
    %850 = vector.load %arg10[%849, %c7_570, %c0_571, %c0_572] : memref<8x8x4x32xf32, #tpu.memory_space<vmem>>, vector<1x1x4x32xf32>
    %851 = vector.shape_cast %850 : vector<1x1x4x32xf32> to vector<4x32xf32>
    %cst_573 = arith.constant dense<0.000000e+00> : vector<4x32xf32>
    %852 = tpu.matmul %812, %313, %cst_573 {dimension_numbers = #tpu.dot_dimension_numbers<[1], [0], [0], [1], [0, 0, 1, 1], [], []>} : vector<4x32xf32>, vector<32x32xf32>, vector<4x32xf32> -> vector<4x32xf32>
    %853 = arith.addf %851, %852 : vector<4x32xf32>
    %854 = arith.negf %823 : vector<4x32xf32>
    %855 = math.exp %854 : vector<4x32xf32>
    %cst_574 = arith.constant 1.000000e+00 : f32
    %856 = vector.broadcast %cst_574 : f32 to vector<4x32xf32>
    %857 = arith.addf %856, %855 : vector<4x32xf32>
    %858 = arith.divf %856, %857 : vector<4x32xf32>
    %859 = arith.mulf %858, %784 : vector<4x32xf32>
    %860 = arith.negf %818 : vector<4x32xf32>
    %861 = math.exp %860 : vector<4x32xf32>
    %cst_575 = arith.constant 1.000000e+00 : f32
    %862 = vector.broadcast %cst_575 : f32 to vector<4x32xf32>
    %863 = arith.addf %862, %861 : vector<4x32xf32>
    %864 = arith.divf %862, %863 : vector<4x32xf32>
    %865 = math.tanh %828 : vector<4x32xf32>
    %866 = arith.mulf %864, %865 : vector<4x32xf32>
    %867 = arith.addf %859, %866 : vector<4x32xf32>
    %868 = arith.negf %833 : vector<4x32xf32>
    %869 = math.exp %868 : vector<4x32xf32>
    %cst_576 = arith.constant 1.000000e+00 : f32
    %870 = vector.broadcast %cst_576 : f32 to vector<4x32xf32>
    %871 = arith.addf %870, %869 : vector<4x32xf32>
    %872 = arith.divf %870, %871 : vector<4x32xf32>
    %873 = math.tanh %867 : vector<4x32xf32>
    %874 = arith.mulf %872, %873 : vector<4x32xf32>
    %875 = arith.negf %843 : vector<4x32xf32>
    %876 = math.exp %875 : vector<4x32xf32>
    %cst_577 = arith.constant 1.000000e+00 : f32
    %877 = vector.broadcast %cst_577 : f32 to vector<4x32xf32>
    %878 = arith.addf %877, %876 : vector<4x32xf32>
    %879 = arith.divf %877, %878 : vector<4x32xf32>
    %880 = arith.mulf %879, %805 : vector<4x32xf32>
    %881 = arith.negf %838 : vector<4x32xf32>
    %882 = math.exp %881 : vector<4x32xf32>
    %cst_578 = arith.constant 1.000000e+00 : f32
    %883 = vector.broadcast %cst_578 : f32 to vector<4x32xf32>
    %884 = arith.addf %883, %882 : vector<4x32xf32>
    %885 = arith.divf %883, %884 : vector<4x32xf32>
    %886 = math.tanh %848 : vector<4x32xf32>
    %887 = arith.mulf %885, %886 : vector<4x32xf32>
    %888 = arith.addf %880, %887 : vector<4x32xf32>
    %889 = arith.negf %853 : vector<4x32xf32>
    %890 = math.exp %889 : vector<4x32xf32>
    %cst_579 = arith.constant 1.000000e+00 : f32
    %891 = vector.broadcast %cst_579 : f32 to vector<4x32xf32>
    %892 = arith.addf %891, %890 : vector<4x32xf32>
    %893 = arith.divf %891, %892 : vector<4x32xf32>
    %894 = math.tanh %888 : vector<4x32xf32>
    %895 = arith.mulf %893, %894 : vector<4x32xf32>
    %c7_i32_580 = arith.constant 7 : i32
    %c7_i32_581 = arith.constant 7 : i32
    %896 = arith.subi %c7_i32_581, %c7_i32_580 : i32
    %897 = arith.index_cast %c7_i32_580 : i32 to index
    %c0_582 = arith.constant 0 : index
    %c0_583 = arith.constant 0 : index
    %c0_584 = arith.constant 0 : index
    %898 = vector.load %arg10[%897, %c0_582, %c0_583, %c0_584] : memref<8x8x4x32xf32, #tpu.memory_space<vmem>>, vector<1x1x4x32xf32>
    %899 = vector.shape_cast %898 : vector<1x1x4x32xf32> to vector<4x32xf32>
    %cst_585 = arith.constant dense<0.000000e+00> : vector<4x32xf32>
    %900 = tpu.matmul %874, %299, %cst_585 {dimension_numbers = #tpu.dot_dimension_numbers<[1], [0], [0], [1], [0, 0, 1, 1], [], []>} : vector<4x32xf32>, vector<32x32xf32>, vector<4x32xf32> -> vector<4x32xf32>
    %901 = arith.addf %899, %900 : vector<4x32xf32>
    %902 = arith.index_cast %c7_i32_580 : i32 to index
    %c1_586 = arith.constant 1 : index
    %c0_587 = arith.constant 0 : index
    %c0_588 = arith.constant 0 : index
    %903 = vector.load %arg10[%902, %c1_586, %c0_587, %c0_588] : memref<8x8x4x32xf32, #tpu.memory_space<vmem>>, vector<1x1x4x32xf32>
    %904 = vector.shape_cast %903 : vector<1x1x4x32xf32> to vector<4x32xf32>
    %cst_589 = arith.constant dense<0.000000e+00> : vector<4x32xf32>
    %905 = tpu.matmul %874, %301, %cst_589 {dimension_numbers = #tpu.dot_dimension_numbers<[1], [0], [0], [1], [0, 0, 1, 1], [], []>} : vector<4x32xf32>, vector<32x32xf32>, vector<4x32xf32> -> vector<4x32xf32>
    %906 = arith.addf %904, %905 : vector<4x32xf32>
    %907 = arith.index_cast %c7_i32_580 : i32 to index
    %c2_590 = arith.constant 2 : index
    %c0_591 = arith.constant 0 : index
    %c0_592 = arith.constant 0 : index
    %908 = vector.load %arg10[%907, %c2_590, %c0_591, %c0_592] : memref<8x8x4x32xf32, #tpu.memory_space<vmem>>, vector<1x1x4x32xf32>
    %909 = vector.shape_cast %908 : vector<1x1x4x32xf32> to vector<4x32xf32>
    %cst_593 = arith.constant dense<0.000000e+00> : vector<4x32xf32>
    %910 = tpu.matmul %874, %303, %cst_593 {dimension_numbers = #tpu.dot_dimension_numbers<[1], [0], [0], [1], [0, 0, 1, 1], [], []>} : vector<4x32xf32>, vector<32x32xf32>, vector<4x32xf32> -> vector<4x32xf32>
    %911 = arith.addf %909, %910 : vector<4x32xf32>
    %912 = arith.index_cast %c7_i32_580 : i32 to index
    %c3_594 = arith.constant 3 : index
    %c0_595 = arith.constant 0 : index
    %c0_596 = arith.constant 0 : index
    %913 = vector.load %arg10[%912, %c3_594, %c0_595, %c0_596] : memref<8x8x4x32xf32, #tpu.memory_space<vmem>>, vector<1x1x4x32xf32>
    %914 = vector.shape_cast %913 : vector<1x1x4x32xf32> to vector<4x32xf32>
    %cst_597 = arith.constant dense<0.000000e+00> : vector<4x32xf32>
    %915 = tpu.matmul %874, %305, %cst_597 {dimension_numbers = #tpu.dot_dimension_numbers<[1], [0], [0], [1], [0, 0, 1, 1], [], []>} : vector<4x32xf32>, vector<32x32xf32>, vector<4x32xf32> -> vector<4x32xf32>
    %916 = arith.addf %914, %915 : vector<4x32xf32>
    %917 = arith.index_cast %896 : i32 to index
    %c4_598 = arith.constant 4 : index
    %c0_599 = arith.constant 0 : index
    %c0_600 = arith.constant 0 : index
    %918 = vector.load %arg10[%917, %c4_598, %c0_599, %c0_600] : memref<8x8x4x32xf32, #tpu.memory_space<vmem>>, vector<1x1x4x32xf32>
    %919 = vector.shape_cast %918 : vector<1x1x4x32xf32> to vector<4x32xf32>
    %cst_601 = arith.constant dense<0.000000e+00> : vector<4x32xf32>
    %920 = tpu.matmul %895, %307, %cst_601 {dimension_numbers = #tpu.dot_dimension_numbers<[1], [0], [0], [1], [0, 0, 1, 1], [], []>} : vector<4x32xf32>, vector<32x32xf32>, vector<4x32xf32> -> vector<4x32xf32>
    %921 = arith.addf %919, %920 : vector<4x32xf32>
    %922 = arith.index_cast %896 : i32 to index
    %c5_602 = arith.constant 5 : index
    %c0_603 = arith.constant 0 : index
    %c0_604 = arith.constant 0 : index
    %923 = vector.load %arg10[%922, %c5_602, %c0_603, %c0_604] : memref<8x8x4x32xf32, #tpu.memory_space<vmem>>, vector<1x1x4x32xf32>
    %924 = vector.shape_cast %923 : vector<1x1x4x32xf32> to vector<4x32xf32>
    %cst_605 = arith.constant dense<0.000000e+00> : vector<4x32xf32>
    %925 = tpu.matmul %895, %309, %cst_605 {dimension_numbers = #tpu.dot_dimension_numbers<[1], [0], [0], [1], [0, 0, 1, 1], [], []>} : vector<4x32xf32>, vector<32x32xf32>, vector<4x32xf32> -> vector<4x32xf32>
    %926 = arith.addf %924, %925 : vector<4x32xf32>
    %927 = arith.index_cast %896 : i32 to index
    %c6_606 = arith.constant 6 : index
    %c0_607 = arith.constant 0 : index
    %c0_608 = arith.constant 0 : index
    %928 = vector.load %arg10[%927, %c6_606, %c0_607, %c0_608] : memref<8x8x4x32xf32, #tpu.memory_space<vmem>>, vector<1x1x4x32xf32>
    %929 = vector.shape_cast %928 : vector<1x1x4x32xf32> to vector<4x32xf32>
    %cst_609 = arith.constant dense<0.000000e+00> : vector<4x32xf32>
    %930 = tpu.matmul %895, %311, %cst_609 {dimension_numbers = #tpu.dot_dimension_numbers<[1], [0], [0], [1], [0, 0, 1, 1], [], []>} : vector<4x32xf32>, vector<32x32xf32>, vector<4x32xf32> -> vector<4x32xf32>
    %931 = arith.addf %929, %930 : vector<4x32xf32>
    %932 = arith.index_cast %896 : i32 to index
    %c7_610 = arith.constant 7 : index
    %c0_611 = arith.constant 0 : index
    %c0_612 = arith.constant 0 : index
    %933 = vector.load %arg10[%932, %c7_610, %c0_611, %c0_612] : memref<8x8x4x32xf32, #tpu.memory_space<vmem>>, vector<1x1x4x32xf32>
    %934 = vector.shape_cast %933 : vector<1x1x4x32xf32> to vector<4x32xf32>
    %cst_613 = arith.constant dense<0.000000e+00> : vector<4x32xf32>
    %935 = tpu.matmul %895, %313, %cst_613 {dimension_numbers = #tpu.dot_dimension_numbers<[1], [0], [0], [1], [0, 0, 1, 1], [], []>} : vector<4x32xf32>, vector<32x32xf32>, vector<4x32xf32> -> vector<4x32xf32>
    %936 = arith.addf %934, %935 : vector<4x32xf32>
    %937 = arith.negf %906 : vector<4x32xf32>
    %938 = math.exp %937 : vector<4x32xf32>
    %cst_614 = arith.constant 1.000000e+00 : f32
    %939 = vector.broadcast %cst_614 : f32 to vector<4x32xf32>
    %940 = arith.addf %939, %938 : vector<4x32xf32>
    %941 = arith.divf %939, %940 : vector<4x32xf32>
    %942 = arith.mulf %941, %867 : vector<4x32xf32>
    %943 = arith.negf %901 : vector<4x32xf32>
    %944 = math.exp %943 : vector<4x32xf32>
    %cst_615 = arith.constant 1.000000e+00 : f32
    %945 = vector.broadcast %cst_615 : f32 to vector<4x32xf32>
    %946 = arith.addf %945, %944 : vector<4x32xf32>
    %947 = arith.divf %945, %946 : vector<4x32xf32>
    %948 = math.tanh %911 : vector<4x32xf32>
    %949 = arith.mulf %947, %948 : vector<4x32xf32>
    %950 = arith.addf %942, %949 : vector<4x32xf32>
    %951 = arith.negf %916 : vector<4x32xf32>
    %952 = math.exp %951 : vector<4x32xf32>
    %cst_616 = arith.constant 1.000000e+00 : f32
    %953 = vector.broadcast %cst_616 : f32 to vector<4x32xf32>
    %954 = arith.addf %953, %952 : vector<4x32xf32>
    %955 = arith.divf %953, %954 : vector<4x32xf32>
    %956 = math.tanh %950 : vector<4x32xf32>
    %957 = arith.mulf %955, %956 : vector<4x32xf32>
    %958 = arith.negf %926 : vector<4x32xf32>
    %959 = math.exp %958 : vector<4x32xf32>
    %cst_617 = arith.constant 1.000000e+00 : f32
    %960 = vector.broadcast %cst_617 : f32 to vector<4x32xf32>
    %961 = arith.addf %960, %959 : vector<4x32xf32>
    %962 = arith.divf %960, %961 : vector<4x32xf32>
    %963 = arith.mulf %962, %888 : vector<4x32xf32>
    %964 = arith.negf %921 : vector<4x32xf32>
    %965 = math.exp %964 : vector<4x32xf32>
    %cst_618 = arith.constant 1.000000e+00 : f32
    %966 = vector.broadcast %cst_618 : f32 to vector<4x32xf32>
    %967 = arith.addf %966, %965 : vector<4x32xf32>
    %968 = arith.divf %966, %967 : vector<4x32xf32>
    %969 = math.tanh %931 : vector<4x32xf32>
    %970 = arith.mulf %968, %969 : vector<4x32xf32>
    %971 = arith.addf %963, %970 : vector<4x32xf32>
    %972 = arith.negf %936 : vector<4x32xf32>
    %973 = math.exp %972 : vector<4x32xf32>
    %cst_619 = arith.constant 1.000000e+00 : f32
    %974 = vector.broadcast %cst_619 : f32 to vector<4x32xf32>
    %975 = arith.addf %974, %973 : vector<4x32xf32>
    %976 = arith.divf %974, %975 : vector<4x32xf32>
    %977 = math.tanh %971 : vector<4x32xf32>
    %978 = arith.mulf %976, %977 : vector<4x32xf32>
    %c8_i32 = arith.constant 8 : i32
    %c0_620 = arith.constant 0 : index
    %c0_621 = arith.constant 0 : index
    %c0_622 = arith.constant 0 : index
    %979 = vector.load %arg5[%c0_620, %c0_621, %c0_622] : memref<2x32x8xf32, #tpu.memory_space<vmem>>, vector<1x32x8xf32>
    %980 = vector.shape_cast %979 : vector<1x32x8xf32> to vector<32x8xf32>
    %cst_623 = arith.constant dense<0.000000e+00> : vector<4x8xf32>
    %981 = tpu.matmul %957, %980, %cst_623 {dimension_numbers = #tpu.dot_dimension_numbers<[1], [0], [0], [1], [0, 0, 1, 1], [], []>} : vector<4x32xf32>, vector<32x8xf32>, vector<4x8xf32> -> vector<4x8xf32>
    %c1_624 = arith.constant 1 : index
    %c0_625 = arith.constant 0 : index
    %c0_626 = arith.constant 0 : index
    %982 = vector.load %arg5[%c1_624, %c0_625, %c0_626] : memref<2x32x8xf32, #tpu.memory_space<vmem>>, vector<1x32x8xf32>
    %983 = vector.shape_cast %982 : vector<1x32x8xf32> to vector<32x8xf32>
    %cst_627 = arith.constant dense<0.000000e+00> : vector<4x8xf32>
    %984 = tpu.matmul %978, %983, %cst_627 {dimension_numbers = #tpu.dot_dimension_numbers<[1], [0], [0], [1], [0, 0, 1, 1], [], []>} : vector<4x32xf32>, vector<32x8xf32>, vector<4x8xf32> -> vector<4x8xf32>
    %985 = arith.addf %981, %984 : vector<4x8xf32>
    %c0_628 = arith.constant 0 : index
    %c0_629 = arith.constant 0 : index
    %986 = vector.load %arg6[%c0_628, %c0_629] : memref<1x8xf32, #tpu.memory_space<vmem>>, vector<1x8xf32>
    %987 = vector.broadcast %986 : vector<1x8xf32> to vector<4x8xf32>
    %988 = arith.addf %985, %987 : vector<4x8xf32>
    %c0_630 = arith.constant 0 : index
    %c0_631 = arith.constant 0 : index
    %c0_632 = arith.constant 0 : index
    %989 = vector.load %arg7[%c0_630, %c0_631, %c0_632] : memref<2x32x8xf32, #tpu.memory_space<vmem>>, vector<1x32x8xf32>
    %990 = vector.shape_cast %989 : vector<1x32x8xf32> to vector<32x8xf32>
    %cst_633 = arith.constant dense<0.000000e+00> : vector<4x8xf32>
    %991 = tpu.matmul %957, %990, %cst_633 {dimension_numbers = #tpu.dot_dimension_numbers<[1], [0], [0], [1], [0, 0, 1, 1], [], []>} : vector<4x32xf32>, vector<32x8xf32>, vector<4x8xf32> -> vector<4x8xf32>
    %c1_634 = arith.constant 1 : index
    %c0_635 = arith.constant 0 : index
    %c0_636 = arith.constant 0 : index
    %992 = vector.load %arg7[%c1_634, %c0_635, %c0_636] : memref<2x32x8xf32, #tpu.memory_space<vmem>>, vector<1x32x8xf32>
    %993 = vector.shape_cast %992 : vector<1x32x8xf32> to vector<32x8xf32>
    %cst_637 = arith.constant dense<0.000000e+00> : vector<4x8xf32>
    %994 = tpu.matmul %978, %993, %cst_637 {dimension_numbers = #tpu.dot_dimension_numbers<[1], [0], [0], [1], [0, 0, 1, 1], [], []>} : vector<4x32xf32>, vector<32x8xf32>, vector<4x8xf32> -> vector<4x8xf32>
    %995 = arith.addf %991, %994 : vector<4x8xf32>
    %c0_638 = arith.constant 0 : index
    %c0_639 = arith.constant 0 : index
    %996 = vector.load %arg8[%c0_638, %c0_639] : memref<1x8xf32, #tpu.memory_space<vmem>>, vector<1x8xf32>
    %997 = vector.broadcast %996 : vector<1x8xf32> to vector<4x8xf32>
    %998 = arith.addf %995, %997 : vector<4x8xf32>
    %c0_640 = arith.constant 0 : index
    %999 = memref.load %arg0[%c0_640] : memref<2xf32, #tpu.memory_space<smem>>
    %cst_641 = arith.constant dense<0.000000e+00> : vector<8xf32>
    %1000 = vector.multi_reduction <add>, %988, %cst_641 [0] : vector<4x8xf32> to vector<8xf32>
    %1001 = vector.shape_cast %1000 : vector<8xf32> to vector<1x8xf32>
    %cst_642 = arith.constant 4.000000e+00 : f32
    %1002 = vector.broadcast %cst_642 : f32 to vector<1x8xf32>
    %1003 = arith.divf %1001, %1002 : vector<1x8xf32>
    %1004 = vector.broadcast %1003 : vector<1x8xf32> to vector<4x8xf32>
    %1005 = arith.subf %988, %1004 : vector<4x8xf32>
    %1006 = arith.mulf %1005, %1005 : vector<4x8xf32>
    %cst_643 = arith.constant dense<0.000000e+00> : vector<8xf32>
    %1007 = vector.multi_reduction <add>, %1006, %cst_643 [0] : vector<4x8xf32> to vector<8xf32>
    %1008 = vector.shape_cast %1007 : vector<8xf32> to vector<1x8xf32>
    %cst_644 = arith.constant 4.000000e+00 : f32
    %1009 = vector.broadcast %cst_644 : f32 to vector<1x8xf32>
    %1010 = arith.divf %1008, %1009 : vector<1x8xf32>
    %1011 = vector.broadcast %1003 : vector<1x8xf32> to vector<4x8xf32>
    %1012 = arith.subf %988, %1011 : vector<4x8xf32>
    %cst_645 = arith.constant 9.99999974E-6 : f32
    %1013 = vector.broadcast %cst_645 : f32 to vector<1x8xf32>
    %1014 = arith.addf %1010, %1013 : vector<1x8xf32>
    %1015 = math.rsqrt %1014 : vector<1x8xf32>
    %1016 = vector.broadcast %1015 : vector<1x8xf32> to vector<4x8xf32>
    %1017 = arith.mulf %1012, %1016 : vector<4x8xf32>
    %1018 = vector.broadcast %999 : f32 to vector<4x8xf32>
    %1019 = arith.mulf %1018, %1017 : vector<4x8xf32>
    %c0_646 = arith.constant 0 : index
    %c0_647 = arith.constant 0 : index
    %c0_648 = arith.constant 0 : index
    %1020 = vector.load %arg9[%c0_646, %c0_647, %c0_648] : memref<2x4x8xf32, #tpu.memory_space<vmem>>, vector<1x4x8xf32>
    %1021 = vector.shape_cast %1020 : vector<1x4x8xf32> to vector<4x8xf32>
    %1022 = vector.shape_cast %1019 : vector<4x8xf32> to vector<1x4x8xf32>
    tpu.vector_store %arg9[%c0_646, %c0_647, %c0_648], %1022 {strides = array<i32>} : memref<2x4x8xf32, #tpu.memory_space<vmem>>, vector<1x4x8xf32>,
    %c1_649 = arith.constant 1 : index
    %1023 = memref.load %arg0[%c1_649] : memref<2xf32, #tpu.memory_space<smem>>
    %cst_650 = arith.constant dense<0.000000e+00> : vector<8xf32>
    %1024 = vector.multi_reduction <add>, %998, %cst_650 [0] : vector<4x8xf32> to vector<8xf32>
    %1025 = vector.shape_cast %1024 : vector<8xf32> to vector<1x8xf32>
    %cst_651 = arith.constant 4.000000e+00 : f32
    %1026 = vector.broadcast %cst_651 : f32 to vector<1x8xf32>
    %1027 = arith.divf %1025, %1026 : vector<1x8xf32>
    %1028 = vector.broadcast %1027 : vector<1x8xf32> to vector<4x8xf32>
    %1029 = arith.subf %998, %1028 : vector<4x8xf32>
    %1030 = arith.mulf %1029, %1029 : vector<4x8xf32>
    %cst_652 = arith.constant dense<0.000000e+00> : vector<8xf32>
    %1031 = vector.multi_reduction <add>, %1030, %cst_652 [0] : vector<4x8xf32> to vector<8xf32>
    %1032 = vector.shape_cast %1031 : vector<8xf32> to vector<1x8xf32>
    %cst_653 = arith.constant 4.000000e+00 : f32
    %1033 = vector.broadcast %cst_653 : f32 to vector<1x8xf32>
    %1034 = arith.divf %1032, %1033 : vector<1x8xf32>
    %1035 = vector.broadcast %1027 : vector<1x8xf32> to vector<4x8xf32>
    %1036 = arith.subf %998, %1035 : vector<4x8xf32>
    %cst_654 = arith.constant 9.99999974E-6 : f32
    %1037 = vector.broadcast %cst_654 : f32 to vector<1x8xf32>
    %1038 = arith.addf %1034, %1037 : vector<1x8xf32>
    %1039 = math.rsqrt %1038 : vector<1x8xf32>
    %1040 = vector.broadcast %1039 : vector<1x8xf32> to vector<4x8xf32>
    %1041 = arith.mulf %1036, %1040 : vector<4x8xf32>
    %1042 = vector.broadcast %1023 : f32 to vector<4x8xf32>
    %1043 = arith.mulf %1042, %1041 : vector<4x8xf32>
    %1044 = math.exp %1043 : vector<4x8xf32>
    %c1_655 = arith.constant 1 : index
    %c0_656 = arith.constant 0 : index
    %c0_657 = arith.constant 0 : index
    %1045 = vector.load %arg9[%c1_655, %c0_656, %c0_657] : memref<2x4x8xf32, #tpu.memory_space<vmem>>, vector<1x4x8xf32>
    %1046 = vector.shape_cast %1045 : vector<1x4x8xf32> to vector<4x8xf32>
    %1047 = vector.shape_cast %1044 : vector<4x8xf32> to vector<1x4x8xf32>
    tpu.vector_store %arg9[%c1_655, %c0_656, %c0_657], %1047 {strides = array<i32>} : memref<2x4x8xf32, #tpu.memory_space<vmem>>, vector<1x4x8xf32>,
    return
  }
}

</mosaic_0001>

<llo_original>
// kernel: tpu_custom_call.1
$region0: #{tpu_custom_call.1}
  #allocation0 [shape = 'u32[]', space=smem, size = 0x4, offset = 0x4, fixed_abs, tag = 'smem constant byte address 0x4 - core index']
  #allocation1 [shape = 'u32[144,128]{1,0:T(1,128)}', space=vmem, size = 0x12000, scoped, tag = 'internal scratch']
  #allocation2 [shape = 'f32[8,8,4,32]{3,2,1,0:T(4,128)}', space=vmem, size = 0x20000, scoped, tag = 'scratch operand']
  %s0 = inlined_call_operand.vmem [shape: f32[2], index: 0, kind: input, shape index: {}]
  %s1 = inlined_call_operand.vmem [shape: f32[8,4,16], index: 1, kind: input, shape index: {}]
  %s2 = inlined_call_operand.vmem [shape: f32[16,256], index: 2, kind: input, shape index: {}]
  %s3 = inlined_call_operand.vmem [shape: f32[1,256], index: 3, kind: input, shape index: {}]
  %s4 = inlined_call_operand.hbm [shape: f32[8,32,32], index: 4, kind: input, shape index: {}]
  %s5 = inlined_call_operand.vmem [shape: f32[2,32,8], index: 5, kind: input, shape index: {}]
  %s6 = inlined_call_operand.vmem [shape: f32[1,8], index: 6, kind: input, shape index: {}]
  %s7 = inlined_call_operand.vmem [shape: f32[2,32,8], index: 7, kind: input, shape index: {}]
  %s8 = inlined_call_operand.vmem [shape: f32[1,8], index: 8, kind: input, shape index: {}]
  %s9 = inlined_call_operand.hbm [shape: f32[2,4,8], index: 9, kind: output, shape index: {}]
  %s10 = sld [smem:[#allocation0]]
  $region54: #{tpu_custom_call.1} parent=0
    _
  %s12 = ssub.s32 1, %s10
  %s13 = scalar_select 0, %s12, %s10
  $region1: #{tpu_custom_call.1} parent=0
    #allocation3 [shape = 'u8[512]{0}', space=smem, size = 0x200, scoped, tag = 'input window, operand 0, single buffered']
    #allocation4 [shape = 's32[1]{0}', space=sflag, size = 0x4, scoped, tag = 'scoped memory for tpu_custom_call.1']
    #allocation5 [shape = 's32[1]{0}', space=sflag, size = 0x4, scoped, tag = 'scoped memory for tpu_custom_call.1']
    #allocation6 [shape = 's32[1]{0}', space=sflag, size = 0x4, scoped, tag = 'scoped memory for tpu_custom_call.1']
    #allocation7 [shape = 'u8[131072]{0}', space=vmem, size = 0x20000, scoped, tag = 'input window, operand 4, single buffered']
    #allocation8 [shape = 'u8[4096]{0}', space=vmem, size = 0x1000, scoped, tag = 'output window, operand 0, single buffered']
    %14 = vsyncpa [#allocation6], 0
    %15 = vsyncpa [#allocation4], 0
    %16 = vsyncpa [#allocation5], 0
    // Predicated region
    $region2: #{tpu_custom_call.1} parent=1 // pred_check
      _
    $region3: #{tpu_custom_call.1} parent=1 // pred_check_branch
      %18 = sbr.rel (0) target = $region5
    $region4: #{tpu_custom_call.1} parent=1 // pred_region
      %s20 = ssub.s32 16, 16
      %21 = vsyncadd [#allocation6], %s20
      %s23 = sshll.u32 %s0, 4
      %s24 = int_to_ptr.vmem [resolvable:$true] %s23
      %26 = dma.vmem_to_smem %s24, 16, [#allocation3], [#allocation6]
    $region5: #{tpu_custom_call.1} parent=1 // pred_fallthru
      _
    // Predicated region
    $region6: #{tpu_custom_call.1} parent=1 // pred_check
      _
    $region7: #{tpu_custom_call.1} parent=1 // pred_check_branch
      %28 = sbr.rel (0) target = $region9
    $region8: #{tpu_custom_call.1} parent=1 // pred_region
      _
    $region9: #{tpu_custom_call.1} parent=1 // pred_fallthru
      _
    // Predicated region
    $region10: #{tpu_custom_call.1} parent=1 // pred_check
      _
    $region11: #{tpu_custom_call.1} parent=1 // pred_check_branch
      %30 = sbr.rel (0) target = $region13
    $region12: #{tpu_custom_call.1} parent=1 // pred_region
      _
    $region13: #{tpu_custom_call.1} parent=1 // pred_fallthru
      _
    // Predicated region
    $region14: #{tpu_custom_call.1} parent=1 // pred_check
      _
    $region15: #{tpu_custom_call.1} parent=1 // pred_check_branch
      %32 = sbr.rel (0) target = $region17
    $region16: #{tpu_custom_call.1} parent=1 // pred_region
      _
    $region17: #{tpu_custom_call.1} parent=1 // pred_fallthru
      _
    // Predicated region
    $region18: #{tpu_custom_call.1} parent=1 // pred_check
      _
    $region19: #{tpu_custom_call.1} parent=1 // pred_check_branch
      %34 = sbr.rel (0) target = $region21
    $region20: #{tpu_custom_call.1} parent=1 // pred_region
      %s36 = ssub.s32 4096, 4096
      %37 = vsyncadd [#allocation4], %s36
      %s38 = sshll.u32 [#allocation7], 4
      %s39 = int_to_ptr.vmem [resolvable:$true] %s38
      %44 = dma.hbm_to_vmem [thread:$0]  %s4, 4096, %s39, [#allocation4], 128, 128, 8
    $region21: #{tpu_custom_call.1} parent=1 // pred_fallthru
      _
    // Predicated region
    $region22: #{tpu_custom_call.1} parent=1 // pred_check
      _
    $region23: #{tpu_custom_call.1} parent=1 // pred_check_branch
      %46 = sbr.rel (0) target = $region25
    $region24: #{tpu_custom_call.1} parent=1 // pred_region
      _
    $region25: #{tpu_custom_call.1} parent=1 // pred_fallthru
      _
    // Predicated region
    $region26: #{tpu_custom_call.1} parent=1 // pred_check
      _
    $region27: #{tpu_custom_call.1} parent=1 // pred_check_branch
      %48 = sbr.rel (0) target = $region29
    $region28: #{tpu_custom_call.1} parent=1 // pred_region
      _
    $region29: #{tpu_custom_call.1} parent=1 // pred_fallthru
      _
    // Predicated region
    $region30: #{tpu_custom_call.1} parent=1 // pred_check
      _
    $region31: #{tpu_custom_call.1} parent=1 // pred_check_branch
      %50 = sbr.rel (0) target = $region33
    $region32: #{tpu_custom_call.1} parent=1 // pred_region
      _
    $region33: #{tpu_custom_call.1} parent=1 // pred_fallthru
      _
    // Predicated region
    $region34: #{tpu_custom_call.1} parent=1 // pred_check
      _
    $region35: #{tpu_custom_call.1} parent=1 // pred_check_branch
      %52 = sbr.rel (0) target = $region37
    $region36: #{tpu_custom_call.1} parent=1 // pred_region
      _
    $region37: #{tpu_custom_call.1} parent=1 // pred_fallthru
      _
    // Predicated region
    $region38: #{tpu_custom_call.1} parent=1 // pred_check
      _
    $region39: #{tpu_custom_call.1} parent=1 // pred_check_branch
      %54 = sbr.rel (0) target = $region41
    $region40: #{tpu_custom_call.1} parent=1 // pred_region
      %55 = dma.done [#allocation6], 16
    $region41: #{tpu_custom_call.1} parent=1 // pred_fallthru
      _
    // Predicated region
    $region42: #{tpu_custom_call.1} parent=1 // pred_check
      _
    $region43: #{tpu_custom_call.1} parent=1 // pred_check_branch
      %57 = sbr.rel (0) target = $region45
    $region44: #{tpu_custom_call.1} parent=1 // pred_region
      %58 = dma.done [#allocation4], 4096
    $region45: #{tpu_custom_call.1} parent=1 // pred_fallthru
      _
    %59 = sfence
    %v60 = vld [vmem:[%s2] sm:$0xff]
    %v61 = vld [vmem:[%s2 + $0x8] sm:$0xff]
    %v62 = vld [vmem:[%s2 + $0x10] sm:$0xff]
    %v63 = vld [vmem:[%s2 + $0x18] sm:$0xff]
    %v64 = vld [vmem:[%s3] sm:$0x3]
    %v65 = vld [vmem:[%s1] sm:$0xf]
    %v67 = vlaneseq
    %v68 = vshrl.u32 %v67, 7
    %v69 = vsub.s32 0, %v68
    %v70 = vrot.slane %v64, %v69
    %v71 = vlaneseq
    %v72 = vshrl.u32 %v71, 7
    %v73 = vsub.s32 1, %v72
    %v74 = vrot.slane %v64, %v73
    %vm77 = vcmask 130048
    %v79 = vsel %vm77, %v65, 0
    %81 = vmatprep.subr.mxu0 %v61
    %82 = vmatpush1.msra.mxu0 %v60
    %83 = vmatprep.subr.mxu0 %v63
    %84 = vmatpush1.msra.mxu0 %v62
    %85 = vmatprep.subr.mxu0 0.0
    %86 = vmatpush1.msra.mxu0 0.0
    %87 = vmatprep.subr.mxu0 0.0
    %88 = vmatpush1.msra.mxu0 0.0
    %89 = vmatprep.subr.mxu0 0.0
    %90 = vmatpush1.msra.mxu0 0.0
    %91 = vmatprep.subr.mxu0 0.0
    %92 = vmatpush1.msra.mxu0 0.0
    %93 = vmatprep.subr.mxu0 0.0
    %94 = vmatpush1.msra.mxu0 0.0
    %95 = vmatprep.subr.mxu0 0.0
    %96 = vmatpush1.msra.mxu0 0.0
    %97 = vmatprep.subr.mxu0 0.0
    %98 = vmatpush1.msra.mxu0 0.0
    %99 = vmatprep.subr.mxu0 0.0
    %100 = vmatpush1.msra.mxu0 0.0
    %101 = vmatprep.subr.mxu0 0.0
    %102 = vmatpush1.msra.mxu0 0.0
    %103 = vmatprep.subr.mxu0 0.0
    %104 = vmatpush1.msra.mxu0 0.0
    %105 = vmatprep.subr.mxu0 0.0
    %106 = vmatpush1.msra.mxu0 0.0
    %107 = vmatprep.subr.mxu0 0.0
    %108 = vmatpush1.msra.mxu0 0.0
    %109 = vmatprep.subr.mxu0 0.0
    %110 = vmatpush1.msra.mxu0 0.0
    %111 = vmatprep.subr.mxu0 0.0
    %112 = vmatpush1.msra.mxu0 0.0
    %113 = vmatprep.subr.mxu0 0.0
    %114 = vmatpush1.msra.mxu0 0.0
    %115 = vmatprep.subr.mxu0 0.0
    %116 = vmatpush1.msra.mxu0 0.0
    %117 = vmatprep.subr.mxu0 0.0
    %118 = vmatpush1.msra.mxu0 0.0
    %119 = vmatprep.subr.mxu0 0.0
    %120 = vmatpush1.msra.mxu0 0.0
    %121 = vmatprep.subr.mxu0 0.0
    %122 = vmatpush1.msra.mxu0 0.0
    %123 = vmatprep.subr.mxu0 0.0
    %124 = vmatpush1.msra.mxu0 0.0
    %125 = vmatprep.subr.mxu0 0.0
    %126 = vmatpush1.msra.mxu0 0.0
    %127 = vmatprep.subr.mxu0 0.0
    %128 = vmatpush1.msra.mxu0 0.0
    %129 = vmatprep.subr.mxu0 0.0
    %130 = vmatpush1.msra.mxu0 0.0
    %131 = vmatprep.subr.mxu0 0.0
    %132 = vmatpush1.msra.mxu0 0.0
    %133 = vmatprep.subr.mxu0 0.0
    %134 = vmatpush1.msra.mxu0 0.0
    %135 = vmatprep.subr.mxu0 0.0
    %136 = vmatpush1.msra.mxu0 0.0
    %137 = vmatprep.subr.mxu0 0.0
    %138 = vmatpush1.msra.mxu0 0.0
    %139 = vmatprep.subr.mxu0 0.0
    %140 = vmatpush1.msra.mxu0 0.0
    %141 = vmatprep.subr.mxu0 0.0
    %142 = vmatpush1.msra.mxu0 0.0
    %143 = vmatprep.subr.mxu0 0.0
    %144 = vmatpush1.msra.mxu0 0.0
    %145 = vmatprep.mubr.f32.mxu0 0.0
    %146 = vmatmul.mubr.f32.gmra.mrb[0].mxu0 %v79
    %v147 = vpop.f32.mrb[0].mxu0
    %v148 = vadd.f32 %v70, %v147
    %v149 = vpop.f32.mrb[0].mxu0
    %v150 = vadd.f32 %v74, %v149
    %151 = vdwg.mxu0
    %vm152 = vcmask 257024
    %153 = vst.msk [vmem:[#allocation2] sm:$0xf] %vm152, %v148
    %155 = vrot.lane.b32.xlu0 %v148, 96
    %v156 = vpop.permute.xlu0 %155
    %s158 = scalar_lea.vmem [#allocation2], 4
    %159 = vst.msk [vmem:[%s158] sm:$0xf] %vm152, %v156
    %160 = vrot.lane.b32.xlu0 %v148, 64
    %v161 = vpop.permute.xlu0 %160
    %s163 = scalar_lea.vmem [#allocation2], 8
    %164 = vst.msk [vmem:[%s163] sm:$0xf] %vm152, %v161
    %165 = vrot.lane.b32.xlu0 %v148, 32
    %v166 = vpop.permute.xlu0 %165
    %s168 = scalar_lea.vmem [#allocation2], 12
    %169 = vst.msk [vmem:[%s168] sm:$0xf] %vm152, %v166
    %s170 = scalar_lea.vmem [#allocation2], 16
    %171 = vst.msk [vmem:[%s170] sm:$0xf] %vm152, %v150
    %173 = vrot.lane.b32.xlu0 %v150, 96
    %v174 = vpop.permute.xlu0 %173
    %s176 = scalar_lea.vmem [#allocation2], 20
    %177 = vst.msk [vmem:[%s176] sm:$0xf] %vm152, %v174
    %178 = vrot.lane.b32.xlu0 %v150, 64
    %v179 = vpop.permute.xlu0 %178
    %s181 = scalar_lea.vmem [#allocation2], 24
    %182 = vst.msk [vmem:[%s181] sm:$0xf] %vm152, %v179
    %183 = vrot.lane.b32.xlu0 %v150, 32
    %v184 = vpop.permute.xlu0 %183
    %s186 = scalar_lea.vmem [#allocation2], 28
    %187 = vst.msk [vmem:[%s186] sm:$0xf] %vm152, %v184
    %s188 = scalar_lea.vmem %s1, 4
    %v189 = vld [vmem:[%s188] sm:$0xf]
    %v191 = vsel %vm77, %v189, 0
    %193 = vmatprep.subr.mxu0 %v61
    %194 = vmatpush1.msra.mxu0 %v60
    %195 = vmatprep.subr.mxu0 %v63
    %196 = vmatpush1.msra.mxu0 %v62
    %197 = vmatprep.subr.mxu0 0.0
    %198 = vmatpush1.msra.mxu0 0.0
    %199 = vmatprep.subr.mxu0 0.0
    %200 = vmatpush1.msra.mxu0 0.0
    %201 = vmatprep.subr.mxu0 0.0
    %202 = vmatpush1.msra.mxu0 0.0
    %203 = vmatprep.subr.mxu0 0.0
    %204 = vmatpush1.msra.mxu0 0.0
    %205 = vmatprep.subr.mxu0 0.0
    %206 = vmatpush1.msra.mxu0 0.0
    %207 = vmatprep.subr.mxu0 0.0
    %208 = vmatpush1.msra.mxu0 0.0
    %209 = vmatprep.subr.mxu0 0.0
    %210 = vmatpush1.msra.mxu0 0.0
    %211 = vmatprep.subr.mxu0 0.0
    %212 = vmatpush1.msra.mxu0 0.0
    %213 = vmatprep.subr.mxu0 0.0
    %214 = vmatpush1.msra.mxu0 0.0
    %215 = vmatprep.subr.mxu0 0.0
    %216 = vmatpush1.msra.mxu0 0.0
    %217 = vmatprep.subr.mxu0 0.0
    %218 = vmatpush1.msra.mxu0 0.0
    %219 = vmatprep.subr.mxu0 0.0
    %220 = vmatpush1.msra.mxu0 0.0
    %221 = vmatprep.subr.mxu0 0.0
    %222 = vmatpush1.msra.mxu0 0.0
    %223 = vmatprep.subr.mxu0 0.0
    %224 = vmatpush1.msra.mxu0 0.0
    %225 = vmatprep.subr.mxu0 0.0
    %226 = vmatpush1.msra.mxu0 0.0
    %227 = vmatprep.subr.mxu0 0.0
    %228 = vmatpush1.msra.mxu0 0.0
    %229 = vmatprep.subr.mxu0 0.0
    %230 = vmatpush1.msra.mxu0 0.0
    %231 = vmatprep.subr.mxu0 0.0
    %232 = vmatpush1.msra.mxu0 0.0
    %233 = vmatprep.subr.mxu0 0.0
    %234 = vmatpush1.msra.mxu0 0.0
    %235 = vmatprep.subr.mxu0 0.0
    %236 = vmatpush1.msra.mxu0 0.0
    %237 = vmatprep.subr.mxu0 0.0
    %238 = vmatpush1.msra.mxu0 0.0
    %239 = vmatprep.subr.mxu0 0.0
    %240 = vmatpush1.msra.mxu0 0.0
    %241 = vmatprep.subr.mxu0 0.0
    %242 = vmatpush1.msra.mxu0 0.0
    %243 = vmatprep.subr.mxu0 0.0
    %244 = vmatpush1.msra.mxu0 0.0
    %245 = vmatprep.subr.mxu0 0.0
    %246 = vmatpush1.msra.mxu0 0.0
    %247 = vmatprep.subr.mxu0 0.0
    %248 = vmatpush1.msra.mxu0 0.0
    %249 = vmatprep.subr.mxu0 0.0
    %250 = vmatpush1.msra.mxu0 0.0
    %251 = vmatprep.subr.mxu0 0.0
    %252 = vmatpush1.msra.mxu0 0.0
    %253 = vmatprep.subr.mxu0 0.0
    %254 = vmatpush1.msra.mxu0 0.0
    %255 = vmatprep.subr.mxu0 0.0
    %256 = vmatpush1.msra.mxu0 0.0
    %257 = vmatprep.mubr.f32.mxu0 0.0
    %258 = vmatmul.mubr.f32.gmra.mrb[0].mxu0 %v191
    %v259 = vpop.f32.mrb[0].mxu0
    %v260 = vadd.f32 %v70, %v259
    %v261 = vpop.f32.mrb[0].mxu0
    %v262 = vadd.f32 %v74, %v261
    %263 = vdwg.mxu0
    %s264 = scalar_lea.vmem [#allocation2], 32
    %265 = vst.msk [vmem:[%s264] sm:$0xf] %vm152, %v260
    %267 = vrot.lane.b32.xlu0 %v260, 96
    %v268 = vpop.permute.xlu0 %267
    %s270 = scalar_lea.vmem [#allocation2], 36
    %271 = vst.msk [vmem:[%s270] sm:$0xf] %vm152, %v268
    %272 = vrot.lane.b32.xlu0 %v260, 64
    %v273 = vpop.permute.xlu0 %272
    %s275 = scalar_lea.vmem [#allocation2], 40
    %276 = vst.msk [vmem:[%s275] sm:$0xf] %vm152, %v273
    %277 = vrot.lane.b32.xlu0 %v260, 32
    %v278 = vpop.permute.xlu0 %277
    %s280 = scalar_lea.vmem [#allocation2], 44
    %281 = vst.msk [vmem:[%s280] sm:$0xf] %vm152, %v278
    %s282 = scalar_lea.vmem [#allocation2], 48
    %283 = vst.msk [vmem:[%s282] sm:$0xf] %vm152, %v262
    %285 = vrot.lane.b32.xlu0 %v262, 96
    %v286 = vpop.permute.xlu0 %285
    %s288 = scalar_lea.vmem [#allocation2], 52
    %289 = vst.msk [vmem:[%s288] sm:$0xf] %vm152, %v286
    %290 = vrot.lane.b32.xlu0 %v262, 64
    %v291 = vpop.permute.xlu0 %290
    %s293 = scalar_lea.vmem [#allocation2], 56
    %294 = vst.msk [vmem:[%s293] sm:$0xf] %vm152, %v291
    %295 = vrot.lane.b32.xlu0 %v262, 32
    %v296 = vpop.permute.xlu0 %295
    %s298 = scalar_lea.vmem [#allocation2], 60
    %299 = vst.msk [vmem:[%s298] sm:$0xf] %vm152, %v296
    %s300 = scalar_lea.vmem %s1, 8
    %v301 = vld [vmem:[%s300] sm:$0xf]
    %v303 = vsel %vm77, %v301, 0
    %305 = vmatprep.subr.mxu0 %v61
    %306 = vmatpush1.msra.mxu0 %v60
    %307 = vmatprep.subr.mxu0 %v63
    %308 = vmatpush1.msra.mxu0 %v62
    %309 = vmatprep.subr.mxu0 0.0
    %310 = vmatpush1.msra.mxu0 0.0
    %311 = vmatprep.subr.mxu0 0.0
    %312 = vmatpush1.msra.mxu0 0.0
    %313 = vmatprep.subr.mxu0 0.0
    %314 = vmatpush1.msra.mxu0 0.0
    %315 = vmatprep.subr.mxu0 0.0
    %316 = vmatpush1.msra.mxu0 0.0
    %317 = vmatprep.subr.mxu0 0.0
    %318 = vmatpush1.msra.mxu0 0.0
    %319 = vmatprep.subr.mxu0 0.0
    %320 = vmatpush1.msra.mxu0 0.0
    %321 = vmatprep.subr.mxu0 0.0
    %322 = vmatpush1.msra.mxu0 0.0
    %323 = vmatprep.subr.mxu0 0.0
    %324 = vmatpush1.msra.mxu0 0.0
    %325 = vmatprep.subr.mxu0 0.0
    %326 = vmatpush1.msra.mxu0 0.0
    %327 = vmatprep.subr.mxu0 0.0
    %328 = vmatpush1.msra.mxu0 0.0
    %329 = vmatprep.subr.mxu0 0.0
    %330 = vmatpush1.msra.mxu0 0.0
    %331 = vmatprep.subr.mxu0 0.0
    %332 = vmatpush1.msra.mxu0 0.0
    %333 = vmatprep.subr.mxu0 0.0
    %334 = vmatpush1.msra.mxu0 0.0
    %335 = vmatprep.subr.mxu0 0.0
    %336 = vmatpush1.msra.mxu0 0.0
    %337 = vmatprep.subr.mxu0 0.0
    %338 = vmatpush1.msra.mxu0 0.0
    %339 = vmatprep.subr.mxu0 0.0
    %340 = vmatpush1.msra.mxu0 0.0
    %341 = vmatprep.subr.mxu0 0.0
    %342 = vmatpush1.msra.mxu0 0.0
    %343 = vmatprep.subr.mxu0 0.0
    %344 = vmatpush1.msra.mxu0 0.0
    %345 = vmatprep.subr.mxu0 0.0
    %346 = vmatpush1.msra.mxu0 0.0
    %347 = vmatprep.subr.mxu0 0.0
    %348 = vmatpush1.msra.mxu0 0.0
    %349 = vmatprep.subr.mxu0 0.0
    %350 = vmatpush1.msra.mxu0 0.0
    %351 = vmatprep.subr.mxu0 0.0
    %352 = vmatpush1.msra.mxu0 0.0
    %353 = vmatprep.subr.mxu0 0.0
    %354 = vmatpush1.msra.mxu0 0.0
    %355 = vmatprep.subr.mxu0 0.0
    %356 = vmatpush1.msra.mxu0 0.0
    %357 = vmatprep.subr.mxu0 0.0
    %358 = vmatpush1.msra.mxu0 0.0
    %359 = vmatprep.subr.mxu0 0.0
    %360 = vmatpush1.msra.mxu0 0.0
    %361 = vmatprep.subr.mxu0 0.0
    %362 = vmatpush1.msra.mxu0 0.0
    %363 = vmatprep.subr.mxu0 0.0
    %364 = vmatpush1.msra.mxu0 0.0
    %365 = vmatprep.subr.mxu0 0.0
    %366 = vmatpush1.msra.mxu0 0.0
    %367 = vmatprep.subr.mxu0 0.0
    %368 = vmatpush1.msra.mxu0 0.0
    %369 = vmatprep.mubr.f32.mxu0 0.0
    %370 = vmatmul.mubr.f32.gmra.mrb[0].mxu0 %v303
    %v371 = vpop.f32.mrb[0].mxu0
    %v372 = vadd.f32 %v70, %v371
    %v373 = vpop.f32.mrb[0].mxu0
    %v374 = vadd.f32 %v74, %v373
    %375 = vdwg.mxu0
    %s376 = scalar_lea.vmem [#allocation2], 64
    %377 = vst.msk [vmem:[%s376] sm:$0xf] %vm152, %v372
    %379 = vrot.lane.b32.xlu0 %v372, 96
    %v380 = vpop.permute.xlu0 %379
    %s382 = scalar_lea.vmem [#allocation2], 68
    %383 = vst.msk [vmem:[%s382] sm:$0xf] %vm152, %v380
    %384 = vrot.lane.b32.xlu0 %v372, 64
    %v385 = vpop.permute.xlu0 %384
    %s387 = scalar_lea.vmem [#allocation2], 72
    %388 = vst.msk [vmem:[%s387] sm:$0xf] %vm152, %v385
    %389 = vrot.lane.b32.xlu0 %v372, 32
    %v390 = vpop.permute.xlu0 %389
    %s392 = scalar_lea.vmem [#allocation2], 76
    %393 = vst.msk [vmem:[%s392] sm:$0xf] %vm152, %v390
    %s394 = scalar_lea.vmem [#allocation2], 80
    %395 = vst.msk [vmem:[%s394] sm:$0xf] %vm152, %v374
    %397 = vrot.lane.b32.xlu0 %v374, 96
    %v398 = vpop.permute.xlu0 %397
    %s400 = scalar_lea.vmem [#allocation2], 84
    %401 = vst.msk [vmem:[%s400] sm:$0xf] %vm152, %v398
    %402 = vrot.lane.b32.xlu0 %v374, 64
    %v403 = vpop.permute.xlu0 %402
    %s405 = scalar_lea.vmem [#allocation2], 88
    %406 = vst.msk [vmem:[%s405] sm:$0xf] %vm152, %v403
    %407 = vrot.lane.b32.xlu0 %v374, 32
    %v408 = vpop.permute.xlu0 %407
    %s410 = scalar_lea.vmem [#allocation2], 92
    %411 = vst.msk [vmem:[%s410] sm:$0xf] %vm152, %v408
    %s412 = scalar_lea.vmem %s1, 12
    %v413 = vld [vmem:[%s412] sm:$0xf]
    %v415 = vsel %vm77, %v413, 0
    %417 = vmatprep.subr.mxu0 %v61
    %418 = vmatpush1.msra.mxu0 %v60
    %419 = vmatprep.subr.mxu0 %v63
    %420 = vmatpush1.msra.mxu0 %v62
    %421 = vmatprep.subr.mxu0 0.0
    %422 = vmatpush1.msra.mxu0 0.0
    %423 = vmatprep.subr.mxu0 0.0
    %424 = vmatpush1.msra.mxu0 0.0
    %425 = vmatprep.subr.mxu0 0.0
    %426 = vmatpush1.msra.mxu0 0.0
    %427 = vmatprep.subr.mxu0 0.0
    %428 = vmatpush1.msra.mxu0 0.0
    %429 = vmatprep.subr.mxu0 0.0
    %430 = vmatpush1.msra.mxu0 0.0
    %431 = vmatprep.subr.mxu0 0.0
    %432 = vmatpush1.msra.mxu0 0.0
    %433 = vmatprep.subr.mxu0 0.0
    %434 = vmatpush1.msra.mxu0 0.0
    %435 = vmatprep.subr.mxu0 0.0
    %436 = vmatpush1.msra.mxu0 0.0
    %437 = vmatprep.subr.mxu0 0.0
    %438 = vmatpush1.msra.mxu0 0.0
    %439 = vmatprep.subr.mxu0 0.0
    %440 = vmatpush1.msra.mxu0 0.0
    %441 = vmatprep.subr.mxu0 0.0
    %442 = vmatpush1.msra.mxu0 0.0
    %443 = vmatprep.subr.mxu0 0.0
    %444 = vmatpush1.msra.mxu0 0.0
    %445 = vmatprep.subr.mxu0 0.0
    %446 = vmatpush1.msra.mxu0 0.0
    %447 = vmatprep.subr.mxu0 0.0
    %448 = vmatpush1.msra.mxu0 0.0
    %449 = vmatprep.subr.mxu0 0.0
    %450 = vmatpush1.msra.mxu0 0.0
    %451 = vmatprep.subr.mxu0 0.0
    %452 = vmatpush1.msra.mxu0 0.0
    %453 = vmatprep.subr.mxu0 0.0
    %454 = vmatpush1.msra.mxu0 0.0
    %455 = vmatprep.subr.mxu0 0.0
    %456 = vmatpush1.msra.mxu0 0.0
    %457 = vmatprep.subr.mxu0 0.0
    %458 = vmatpush1.msra.mxu0 0.0
    %459 = vmatprep.subr.mxu0 0.0
    %460 = vmatpush1.msra.mxu0 0.0
    %461 = vmatprep.subr.mxu0 0.0
    %462 = vmatpush1.msra.mxu0 0.0
    %463 = vmatprep.subr.mxu0 0.0
    %464 = vmatpush1.msra.mxu0 0.0
    %465 = vmatprep.subr.mxu0 0.0
    %466 = vmatpush1.msra.mxu0 0.0
    %467 = vmatprep.subr.mxu0 0.0
    %468 = vmatpush1.msra.mxu0 0.0
    %469 = vmatprep.subr.mxu0 0.0
    %470 = vmatpush1.msra.mxu0 0.0
    %471 = vmatprep.subr.mxu0 0.0
    %472 = vmatpush1.msra.mxu0 0.0
    %473 = vmatprep.subr.mxu0 0.0
    %474 = vmatpush1.msra.mxu0 0.0
    %475 = vmatprep.subr.mxu0 0.0
    %476 = vmatpush1.msra.mxu0 0.0
    %477 = vmatprep.subr.mxu0 0.0
    %478 = vmatpush1.msra.mxu0 0.0
    %479 = vmatprep.subr.mxu0 0.0
    %480 = vmatpush1.msra.mxu0 0.0
    %481 = vmatprep.mubr.f32.mxu0 0.0
    %482 = vmatmul.mubr.f32.gmra.mrb[0].mxu0 %v415
    %v483 = vpop.f32.mrb[0].mxu0
    %v484 = vadd.f32 %v70, %v483
    %v485 = vpop.f32.mrb[0].mxu0
    %v486 = vadd.f32 %v74, %v485
    %487 = vdwg.mxu0
    %s488 = scalar_lea.vmem [#allocation2], 96
    %489 = vst.msk [vmem:[%s488] sm:$0xf] %vm152, %v484
    %491 = vrot.lane.b32.xlu0 %v484, 96
    %v492 = vpop.permute.xlu0 %491
    %s494 = scalar_lea.vmem [#allocation2], 100
    %495 = vst.msk [vmem:[%s494] sm:$0xf] %vm152, %v492
    %496 = vrot.lane.b32.xlu0 %v484, 64
    %v497 = vpop.permute.xlu0 %496
    %s499 = scalar_lea.vmem [#allocation2], 104
    %500 = vst.msk [vmem:[%s499] sm:$0xf] %vm152, %v497
    %501 = vrot.lane.b32.xlu0 %v484, 32
    %v502 = vpop.permute.xlu0 %501
    %s504 = scalar_lea.vmem [#allocation2], 108
    %505 = vst.msk [vmem:[%s504] sm:$0xf] %vm152, %v502
    %s506 = scalar_lea.vmem [#allocation2], 112
    %507 = vst.msk [vmem:[%s506] sm:$0xf] %vm152, %v486
    %509 = vrot.lane.b32.xlu0 %v486, 96
    %v510 = vpop.permute.xlu0 %509
    %s512 = scalar_lea.vmem [#allocation2], 116
    %513 = vst.msk [vmem:[%s512] sm:$0xf] %vm152, %v510
    %514 = vrot.lane.b32.xlu0 %v486, 64
    %v515 = vpop.permute.xlu0 %514
    %s517 = scalar_lea.vmem [#allocation2], 120
    %518 = vst.msk [vmem:[%s517] sm:$0xf] %vm152, %v515
    %519 = vrot.lane.b32.xlu0 %v486, 32
    %v520 = vpop.permute.xlu0 %519
    %s522 = scalar_lea.vmem [#allocation2], 124
    %523 = vst.msk [vmem:[%s522] sm:$0xf] %vm152, %v520
    %s524 = scalar_lea.vmem %s1, 16
    %v525 = vld [vmem:[%s524] sm:$0xf]
    %v527 = vsel %vm77, %v525, 0
    %529 = vmatprep.subr.mxu0 %v61
    %530 = vmatpush1.msra.mxu0 %v60
    %531 = vmatprep.subr.mxu0 %v63
    %532 = vmatpush1.msra.mxu0 %v62
    %533 = vmatprep.subr.mxu0 0.0
    %534 = vmatpush1.msra.mxu0 0.0
    %535 = vmatprep.subr.mxu0 0.0
    %536 = vmatpush1.msra.mxu0 0.0
    %537 = vmatprep.subr.mxu0 0.0
    %538 = vmatpush1.msra.mxu0 0.0
    %539 = vmatprep.subr.mxu0 0.0
    %540 = vmatpush1.msra.mxu0 0.0
    %541 = vmatprep.subr.mxu0 0.0
    %542 = vmatpush1.msra.mxu0 0.0
    %543 = vmatprep.subr.mxu0 0.0
    %544 = vmatpush1.msra.mxu0 0.0
    %545 = vmatprep.subr.mxu0 0.0
    %546 = vmatpush1.msra.mxu0 0.0
    %547 = vmatprep.subr.mxu0 0.0
    %548 = vmatpush1.msra.mxu0 0.0
    %549 = vmatprep.subr.mxu0 0.0
    %550 = vmatpush1.msra.mxu0 0.0
    %551 = vmatprep.subr.mxu0 0.0
    %552 = vmatpush1.msra.mxu0 0.0
    %553 = vmatprep.subr.mxu0 0.0
    %554 = vmatpush1.msra.mxu0 0.0
    %555 = vmatprep.subr.mxu0 0.0
    %556 = vmatpush1.msra.mxu0 0.0
    %557 = vmatprep.subr.mxu0 0.0
    %558 = vmatpush1.msra.mxu0 0.0
    %559 = vmatprep.subr.mxu0 0.0
    %560 = vmatpush1.msra.mxu0 0.0
    %561 = vmatprep.subr.mxu0 0.0
    %562 = vmatpush1.msra.mxu0 0.0
    %563 = vmatprep.subr.mxu0 0.0
    %564 = vmatpush1.msra.mxu0 0.0
    %565 = vmatprep.subr.mxu0 0.0
    %566 = vmatpush1.msra.mxu0 0.0
    %567 = vmatprep.subr.mxu0 0.0
    %568 = vmatpush1.msra.mxu0 0.0
    %569 = vmatprep.subr.mxu0 0.0
    %570 = vmatpush1.msra.mxu0 0.0
    %571 = vmatprep.subr.mxu0 0.0
    %572 = vmatpush1.msra.mxu0 0.0
    %573 = vmatprep.subr.mxu0 0.0
    %574 = vmatpush1.msra.mxu0 0.0
    %575 = vmatprep.subr.mxu0 0.0
    %576 = vmatpush1.msra.mxu0 0.0
    %577 = vmatprep.subr.mxu0 0.0
    %578 = vmatpush1.msra.mxu0 0.0
    %579 = vmatprep.subr.mxu0 0.0
    %580 = vmatpush1.msra.mxu0 0.0
    %581 = vmatprep.subr.mxu0 0.0
    %582 = vmatpush1.msra.mxu0 0.0
    %583 = vmatprep.subr.mxu0 0.0
    %584 = vmatpush1.msra.mxu0 0.0
    %585 = vmatprep.subr.mxu0 0.0
    %586 = vmatpush1.msra.mxu0 0.0
    %587 = vmatprep.subr.mxu0 0.0
    %588 = vmatpush1.msra.mxu0 0.0
    %589 = vmatprep.subr.mxu0 0.0
    %590 = vmatpush1.msra.mxu0 0.0
    %591 = vmatprep.subr.mxu0 0.0
    %592 = vmatpush1.msra.mxu0 0.0
    %593 = vmatprep.mubr.f32.mxu0 0.0
    %594 = vmatmul.mubr.f32.gmra.mrb[0].mxu0 %v527
    %v595 = vpop.f32.mrb[0].mxu0
    %v596 = vadd.f32 %v70, %v595
    %v597 = vpop.f32.mrb[0].mxu0
    %v598 = vadd.f32 %v74, %v597
    %599 = vdwg.mxu0
    %s600 = scalar_lea.vmem [#allocation2], 128
    %601 = vst.msk [vmem:[%s600] sm:$0xf] %vm152, %v596
    %603 = vrot.lane.b32.xlu0 %v596, 96
    %v604 = vpop.permute.xlu0 %603
    %s606 = scalar_lea.vmem [#allocation2], 132
    %607 = vst.msk [vmem:[%s606] sm:$0xf] %vm152, %v604
    %608 = vrot.lane.b32.xlu0 %v596, 64
    %v609 = vpop.permute.xlu0 %608
    %s611 = scalar_lea.vmem [#allocation2], 136
    %612 = vst.msk [vmem:[%s611] sm:$0xf] %vm152, %v609
    %613 = vrot.lane.b32.xlu0 %v596, 32
    %v614 = vpop.permute.xlu0 %613
    %s616 = scalar_lea.vmem [#allocation2], 140
    %617 = vst.msk [vmem:[%s616] sm:$0xf] %vm152, %v614
    %s618 = scalar_lea.vmem [#allocation2], 144
    %619 = vst.msk [vmem:[%s618] sm:$0xf] %vm152, %v598
    %621 = vrot.lane.b32.xlu0 %v598, 96
    %v622 = vpop.permute.xlu0 %621
    %s624 = scalar_lea.vmem [#allocation2], 148
    %625 = vst.msk [vmem:[%s624] sm:$0xf] %vm152, %v622
    %626 = vrot.lane.b32.xlu0 %v598, 64
    %v627 = vpop.permute.xlu0 %626
    %s629 = scalar_lea.vmem [#allocation2], 152
    %630 = vst.msk [vmem:[%s629] sm:$0xf] %vm152, %v627
    %631 = vrot.lane.b32.xlu0 %v598, 32
    %v632 = vpop.permute.xlu0 %631
    %s634 = scalar_lea.vmem [#allocation2], 156
    %635 = vst.msk [vmem:[%s634] sm:$0xf] %vm152, %v632
    %s636 = scalar_lea.vmem %s1, 20
    %v637 = vld [vmem:[%s636] sm:$0xf]
    %v639 = vsel %vm77, %v637, 0
    %641 = vmatprep.subr.mxu0 %v61
    %642 = vmatpush1.msra.mxu0 %v60
    %643 = vmatprep.subr.mxu0 %v63
    %644 = vmatpush1.msra.mxu0 %v62
    %645 = vmatprep.subr.mxu0 0.0
    %646 = vmatpush1.msra.mxu0 0.0
    %647 = vmatprep.subr.mxu0 0.0
    %648 = vmatpush1.msra.mxu0 0.0
    %649 = vmatprep.subr.mxu0 0.0
    %650 = vmatpush1.msra.mxu0 0.0
    %651 = vmatprep.subr.mxu0 0.0
    %652 = vmatpush1.msra.mxu0 0.0
    %653 = vmatprep.subr.mxu0 0.0
    %654 = vmatpush1.msra.mxu0 0.0
    %655 = vmatprep.subr.mxu0 0.0
    %656 = vmatpush1.msra.mxu0 0.0
    %657 = vmatprep.subr.mxu0 0.0
    %658 = vmatpush1.msra.mxu0 0.0
    %659 = vmatprep.subr.mxu0 0.0
    %660 = vmatpush1.msra.mxu0 0.0
    %661 = vmatprep.subr.mxu0 0.0
    %662 = vmatpush1.msra.mxu0 0.0
    %663 = vmatprep.subr.mxu0 0.0
    %664 = vmatpush1.msra.mxu0 0.0
    %665 = vmatprep.subr.mxu0 0.0
    %666 = vmatpush1.msra.mxu0 0.0
    %667 = vmatprep.subr.mxu0 0.0
    %668 = vmatpush1.msra.mxu0 0.0
    %669 = vmatprep.subr.mxu0 0.0
    %670 = vmatpush1.msra.mxu0 0.0
    %671 = vmatprep.subr.mxu0 0.0
    %672 = vmatpush1.msra.mxu0 0.0
    %673 = vmatprep.subr.mxu0 0.0
    %674 = vmatpush1.msra.mxu0 0.0
    %675 = vmatprep.subr.mxu0 0.0
    %676 = vmatpush1.msra.mxu0 0.0
    %677 = vmatprep.subr.mxu0 0.0
    %678 = vmatpush1.msra.mxu0 0.0
    %679 = vmatprep.subr.mxu0 0.0
    %680 = vmatpush1.msra.mxu0 0.0
    %681 = vmatprep.subr.mxu0 0.0
    %682 = vmatpush1.msra.mxu0 0.0
    %683 = vmatprep.subr.mxu0 0.0
    %684 = vmatpush1.msra.mxu0 0.0
    %685 = vmatprep.subr.mxu0 0.0
    %686 = vmatpush1.msra.mxu0 0.0
    %687 = vmatprep.subr.mxu0 0.0
    %688 = vmatpush1.msra.mxu0 0.0
    %689 = vmatprep.subr.mxu0 0.0
    %690 = vmatpush1.msra.mxu0 0.0
    %691 = vmatprep.subr.mxu0 0.0
    %692 = vmatpush1.msra.mxu0 0.0
    %693 = vmatprep.subr.mxu0 0.0
    %694 = vmatpush1.msra.mxu0 0.0
    %695 = vmatprep.subr.mxu0 0.0
    %696 = vmatpush1.msra.mxu0 0.0
    %697 = vmatprep.subr.mxu0 0.0
    %698 = vmatpush1.msra.mxu0 0.0
    %699 = vmatprep.subr.mxu0 0.0
    %700 = vmatpush1.msra.mxu0 0.0
    %701 = vmatprep.subr.mxu0 0.0
    %702 = vmatpush1.msra.mxu0 0.0
    %703 = vmatprep.subr.mxu0 0.0
    %704 = vmatpush1.msra.mxu0 0.0
    %705 = vmatprep.mubr.f32.mxu0 0.0
    %706 = vmatmul.mubr.f32.gmra.mrb[0].mxu0 %v639
    %v707 = vpop.f32.mrb[0].mxu0
    %v708 = vadd.f32 %v70, %v707
    %v709 = vpop.f32.mrb[0].mxu0
    %v710 = vadd.f32 %v74, %v709
    %711 = vdwg.mxu0
    %s712 = scalar_lea.vmem [#allocation2], 160
    %713 = vst.msk [vmem:[%s712] sm:$0xf] %vm152, %v708
    %715 = vrot.lane.b32.xlu0 %v708, 96
    %v716 = vpop.permute.xlu0 %715
    %s718 = scalar_lea.vmem [#allocation2], 164
    %719 = vst.msk [vmem:[%s718] sm:$0xf] %vm152, %v716
    %720 = vrot.lane.b32.xlu0 %v708, 64
    %v721 = vpop.permute.xlu0 %720
    %s723 = scalar_lea.vmem [#allocation2], 168
    %724 = vst.msk [vmem:[%s723] sm:$0xf] %vm152, %v721
    %725 = vrot.lane.b32.xlu0 %v708, 32
    %v726 = vpop.permute.xlu0 %725
    %s728 = scalar_lea.vmem [#allocation2], 172
    %729 = vst.msk [vmem:[%s728] sm:$0xf] %vm152, %v726
    %s730 = scalar_lea.vmem [#allocation2], 176
    %731 = vst.msk [vmem:[%s730] sm:$0xf] %vm152, %v710
    %733 = vrot.lane.b32.xlu0 %v710, 96
    %v734 = vpop.permute.xlu0 %733
    %s736 = scalar_lea.vmem [#allocation2], 180
    %737 = vst.msk [vmem:[%s736] sm:$0xf] %vm152, %v734
    %738 = vrot.lane.b32.xlu0 %v710, 64
    %v739 = vpop.permute.xlu0 %738
    %s741 = scalar_lea.vmem [#allocation2], 184
    %742 = vst.msk [vmem:[%s741] sm:$0xf] %vm152, %v739
    %743 = vrot.lane.b32.xlu0 %v710, 32
    %v744 = vpop.permute.xlu0 %743
    %s746 = scalar_lea.vmem [#allocation2], 188
    %747 = vst.msk [vmem:[%s746] sm:$0xf] %vm152, %v744
    %s748 = scalar_lea.vmem %s1, 24
    %v749 = vld [vmem:[%s748] sm:$0xf]
    %v751 = vsel %vm77, %v749, 0
    %753 = vmatprep.subr.mxu0 %v61
    %754 = vmatpush1.msra.mxu0 %v60
    %755 = vmatprep.subr.mxu0 %v63
    %756 = vmatpush1.msra.mxu0 %v62
    %757 = vmatprep.subr.mxu0 0.0
    %758 = vmatpush1.msra.mxu0 0.0
    %759 = vmatprep.subr.mxu0 0.0
    %760 = vmatpush1.msra.mxu0 0.0
    %761 = vmatprep.subr.mxu0 0.0
    %762 = vmatpush1.msra.mxu0 0.0
    %763 = vmatprep.subr.mxu0 0.0
    %764 = vmatpush1.msra.mxu0 0.0
    %765 = vmatprep.subr.mxu0 0.0
    %766 = vmatpush1.msra.mxu0 0.0
    %767 = vmatprep.subr.mxu0 0.0
    %768 = vmatpush1.msra.mxu0 0.0
    %769 = vmatprep.subr.mxu0 0.0
    %770 = vmatpush1.msra.mxu0 0.0
    %771 = vmatprep.subr.mxu0 0.0
    %772 = vmatpush1.msra.mxu0 0.0
    %773 = vmatprep.subr.mxu0 0.0
    %774 = vmatpush1.msra.mxu0 0.0
    %775 = vmatprep.subr.mxu0 0.0
    %776 = vmatpush1.msra.mxu0 0.0
    %777 = vmatprep.subr.mxu0 0.0
    %778 = vmatpush1.msra.mxu0 0.0
    %779 = vmatprep.subr.mxu0 0.0
    %780 = vmatpush1.msra.mxu0 0.0
    %781 = vmatprep.subr.mxu0 0.0
    %782 = vmatpush1.msra.mxu0 0.0
    %783 = vmatprep.subr.mxu0 0.0
    %784 = vmatpush1.msra.mxu0 0.0
    %785 = vmatprep.subr.mxu0 0.0
    %786 = vmatpush1.msra.mxu0 0.0
    %787 = vmatprep.subr.mxu0 0.0
    %788 = vmatpush1.msra.mxu0 0.0
    %789 = vmatprep.subr.mxu0 0.0
    %790 = vmatpush1.msra.mxu0 0.0
    %791 = vmatprep.subr.mxu0 0.0
    %792 = vmatpush1.msra.mxu0 0.0
    %793 = vmatprep.subr.mxu0 0.0
    %794 = vmatpush1.msra.mxu0 0.0
    %795 = vmatprep.subr.mxu0 0.0
    %796 = vmatpush1.msra.mxu0 0.0
    %797 = vmatprep.subr.mxu0 0.0
    %798 = vmatpush1.msra.mxu0 0.0
    %799 = vmatprep.subr.mxu0 0.0
    %800 = vmatpush1.msra.mxu0 0.0
    %801 = vmatprep.subr.mxu0 0.0
    %802 = vmatpush1.msra.mxu0 0.0
    %803 = vmatprep.subr.mxu0 0.0
    %804 = vmatpush1.msra.mxu0 0.0
    %805 = vmatprep.subr.mxu0 0.0
    %806 = vmatpush1.msra.mxu0 0.0
    %807 = vmatprep.subr.mxu0 0.0
    %808 = vmatpush1.msra.mxu0 0.0
    %809 = vmatprep.subr.mxu0 0.0
    %810 = vmatpush1.msra.mxu0 0.0
    %811 = vmatprep.subr.mxu0 0.0
    %812 = vmatpush1.msra.mxu0 0.0
    %813 = vmatprep.subr.mxu0 0.0
    %814 = vmatpush1.msra.mxu0 0.0
    %815 = vmatprep.subr.mxu0 0.0
    %816 = vmatpush1.msra.mxu0 0.0
    %817 = vmatprep.mubr.f32.mxu0 0.0
    %818 = vmatmul.mubr.f32.gmra.mrb[0].mxu0 %v751
    %v819 = vpop.f32.mrb[0].mxu0
    %v820 = vadd.f32 %v70, %v819
    %v821 = vpop.f32.mrb[0].mxu0
    %v822 = vadd.f32 %v74, %v821
    %823 = vdwg.mxu0
    %s824 = scalar_lea.vmem [#allocation2], 192
    %825 = vst.msk [vmem:[%s824] sm:$0xf] %vm152, %v820
    %827 = vrot.lane.b32.xlu0 %v820, 96
    %v828 = vpop.permute.xlu0 %827
    %s830 = scalar_lea.vmem [#allocation2], 196
    %831 = vst.msk [vmem:[%s830] sm:$0xf] %vm152, %v828
    %832 = vrot.lane.b32.xlu0 %v820, 64
    %v833 = vpop.permute.xlu0 %832
    %s835 = scalar_lea.vmem [#allocation2], 200
    %836 = vst.msk [vmem:[%s835] sm:$0xf] %vm152, %v833
    %837 = vrot.lane.b32.xlu0 %v820, 32
    %v838 = vpop.permute.xlu0 %837
    %s840 = scalar_lea.vmem [#allocation2], 204
    %841 = vst.msk [vmem:[%s840] sm:$0xf] %vm152, %v838
    %s842 = scalar_lea.vmem [#allocation2], 208
    %843 = vst.msk [vmem:[%s842] sm:$0xf] %vm152, %v822
    %845 = vrot.lane.b32.xlu0 %v822, 96
    %v846 = vpop.permute.xlu0 %845
    %s848 = scalar_lea.vmem [#allocation2], 212
    %849 = vst.msk [vmem:[%s848] sm:$0xf] %vm152, %v846
    %850 = vrot.lane.b32.xlu0 %v822, 64
    %v851 = vpop.permute.xlu0 %850
    %s853 = scalar_lea.vmem [#allocation2], 216
    %854 = vst.msk [vmem:[%s853] sm:$0xf] %vm152, %v851
    %855 = vrot.lane.b32.xlu0 %v822, 32
    %v856 = vpop.permute.xlu0 %855
    %s858 = scalar_lea.vmem [#allocation2], 220
    %859 = vst.msk [vmem:[%s858] sm:$0xf] %vm152, %v856
    %s860 = scalar_lea.vmem %s1, 28
    %v861 = vld [vmem:[%s860] sm:$0xf]
    %v863 = vsel %vm77, %v861, 0
    %865 = vmatprep.subr.mxu0 %v61
    %866 = vmatpush1.msra.mxu0 %v60
    %867 = vmatprep.subr.mxu0 %v63
    %868 = vmatpush1.msra.mxu0 %v62
    %869 = vmatprep.subr.mxu0 0.0
    %870 = vmatpush1.msra.mxu0 0.0
    %871 = vmatprep.subr.mxu0 0.0
    %872 = vmatpush1.msra.mxu0 0.0
    %873 = vmatprep.subr.mxu0 0.0
    %874 = vmatpush1.msra.mxu0 0.0
    %875 = vmatprep.subr.mxu0 0.0
    %876 = vmatpush1.msra.mxu0 0.0
    %877 = vmatprep.subr.mxu0 0.0
    %878 = vmatpush1.msra.mxu0 0.0
    %879 = vmatprep.subr.mxu0 0.0
    %880 = vmatpush1.msra.mxu0 0.0
    %881 = vmatprep.subr.mxu0 0.0
    %882 = vmatpush1.msra.mxu0 0.0
    %883 = vmatprep.subr.mxu0 0.0
    %884 = vmatpush1.msra.mxu0 0.0
    %885 = vmatprep.subr.mxu0 0.0
    %886 = vmatpush1.msra.mxu0 0.0
    %887 = vmatprep.subr.mxu0 0.0
    %888 = vmatpush1.msra.mxu0 0.0
    %889 = vmatprep.subr.mxu0 0.0
    %890 = vmatpush1.msra.mxu0 0.0
    %891 = vmatprep.subr.mxu0 0.0
    %892 = vmatpush1.msra.mxu0 0.0
    %893 = vmatprep.subr.mxu0 0.0
    %894 = vmatpush1.msra.mxu0 0.0
    %895 = vmatprep.subr.mxu0 0.0
    %896 = vmatpush1.msra.mxu0 0.0
    %897 = vmatprep.subr.mxu0 0.0
    %898 = vmatpush1.msra.mxu0 0.0
    %899 = vmatprep.subr.mxu0 0.0
    %900 = vmatpush1.msra.mxu0 0.0
    %901 = vmatprep.subr.mxu0 0.0
    %902 = vmatpush1.msra.mxu0 0.0
    %903 = vmatprep.subr.mxu0 0.0
    %904 = vmatpush1.msra.mxu0 0.0
    %905 = vmatprep.subr.mxu0 0.0
    %906 = vmatpush1.msra.mxu0 0.0
    %907 = vmatprep.subr.mxu0 0.0
    %908 = vmatpush1.msra.mxu0 0.0
    %909 = vmatprep.subr.mxu0 0.0
    %910 = vmatpush1.msra.mxu0 0.0
    %911 = vmatprep.subr.mxu0 0.0
    %912 = vmatpush1.msra.mxu0 0.0
    %913 = vmatprep.subr.mxu0 0.0
    %914 = vmatpush1.msra.mxu0 0.0
    %915 = vmatprep.subr.mxu0 0.0
    %916 = vmatpush1.msra.mxu0 0.0
    %917 = vmatprep.subr.mxu0 0.0
    %918 = vmatpush1.msra.mxu0 0.0
    %919 = vmatprep.subr.mxu0 0.0
    %920 = vmatpush1.msra.mxu0 0.0
    %921 = vmatprep.subr.mxu0 0.0
    %922 = vmatpush1.msra.mxu0 0.0
    %923 = vmatprep.subr.mxu0 0.0
    %924 = vmatpush1.msra.mxu0 0.0
    %925 = vmatprep.subr.mxu0 0.0
    %926 = vmatpush1.msra.mxu0 0.0
    %927 = vmatprep.subr.mxu0 0.0
    %928 = vmatpush1.msra.mxu0 0.0
    %929 = vmatprep.mubr.f32.mxu0 0.0
    %930 = vmatmul.mubr.f32.gmra.mrb[0].mxu0 %v863
    %v931 = vpop.f32.mrb[0].mxu0
    %v932 = vadd.f32 %v70, %v931
    %v933 = vpop.f32.mrb[0].mxu0
    %v934 = vadd.f32 %v74, %v933
    %935 = vdwg.mxu0
    %s936 = scalar_lea.vmem [#allocation2], 224
    %937 = vst.msk [vmem:[%s936] sm:$0xf] %vm152, %v932
    %939 = vrot.lane.b32.xlu0 %v932, 96
    %v940 = vpop.permute.xlu0 %939
    %s942 = scalar_lea.vmem [#allocation2], 228
    %943 = vst.msk [vmem:[%s942] sm:$0xf] %vm152, %v940
    %944 = vrot.lane.b32.xlu0 %v932, 64
    %v945 = vpop.permute.xlu0 %944
    %s947 = scalar_lea.vmem [#allocation2], 232
    %948 = vst.msk [vmem:[%s947] sm:$0xf] %vm152, %v945
    %949 = vrot.lane.b32.xlu0 %v932, 32
    %v950 = vpop.permute.xlu0 %949
    %s952 = scalar_lea.vmem [#allocation2], 236
    %953 = vst.msk [vmem:[%s952] sm:$0xf] %vm152, %v950
    %s954 = scalar_lea.vmem [#allocation2], 240
    %955 = vst.msk [vmem:[%s954] sm:$0xf] %vm152, %v934
    %957 = vrot.lane.b32.xlu0 %v934, 96
    %v958 = vpop.permute.xlu0 %957
    %s960 = scalar_lea.vmem [#allocation2], 244
    %961 = vst.msk [vmem:[%s960] sm:$0xf] %vm152, %v958
    %962 = vrot.lane.b32.xlu0 %v934, 64
    %v963 = vpop.permute.xlu0 %962
    %s965 = scalar_lea.vmem [#allocation2], 248
    %966 = vst.msk [vmem:[%s965] sm:$0xf] %vm152, %v963
    %967 = vrot.lane.b32.xlu0 %v934, 32
    %v968 = vpop.permute.xlu0 %967
    %s970 = scalar_lea.vmem [#allocation2], 252
    %971 = vst.msk [vmem:[%s970] sm:$0xf] %vm152, %v968
    %v972 = vld [vmem:[#allocation7] sm:$0xff]
    %v973 = vld [vmem:[#allocation7 + $0x8] sm:$0xff]
    %v974 = vld [vmem:[#allocation7 + $0x10] sm:$0xff]
    %v975 = vld [vmem:[#allocation7 + $0x18] sm:$0xff]
    %s976 = scalar_lea.vmem [#allocation7], 32
    %v977 = vld [vmem:[%s976] sm:$0xff]
    %v978 = vld [vmem:[%s976 + $0x8] sm:$0xff]
    %v979 = vld [vmem:[%s976 + $0x10] sm:$0xff]
    %v980 = vld [vmem:[%s976 + $0x18] sm:$0xff]
    %s981 = scalar_lea.vmem [#allocation7], 64
    %v982 = vld [vmem:[%s981] sm:$0xff]
    %v983 = vld [vmem:[%s981 + $0x8] sm:$0xff]
    %v984 = vld [vmem:[%s981 + $0x10] sm:$0xff]
    %v985 = vld [vmem:[%s981 + $0x18] sm:$0xff]
    %s986 = scalar_lea.vmem [#allocation7], 96
    %v987 = vld [vmem:[%s986] sm:$0xff]
    %v988 = vld [vmem:[%s986 + $0x8] sm:$0xff]
    %v989 = vld [vmem:[%s986 + $0x10] sm:$0xff]
    %v990 = vld [vmem:[%s986 + $0x18] sm:$0xff]
    %s991 = scalar_lea.vmem [#allocation7], 128
    %v992 = vld [vmem:[%s991] sm:$0xff]
    %v993 = vld [vmem:[%s991 + $0x8] sm:$0xff]
    %v994 = vld [vmem:[%s991 + $0x10] sm:$0xff]
    %v995 = vld [vmem:[%s991 + $0x18] sm:$0xff]
    %s996 = scalar_lea.vmem [#allocation7], 160
    %v997 = vld [vmem:[%s996] sm:$0xff]
    %v998 = vld [vmem:[%s996 + $0x8] sm:$0xff]
    %v999 = vld [vmem:[%s996 + $0x10] sm:$0xff]
    %v1000 = vld [vmem:[%s996 + $0x18] sm:$0xff]
    %s1001 = scalar_lea.vmem [#allocation7], 192
    %v1002 = vld [vmem:[%s1001] sm:$0xff]
    %v1003 = vld [vmem:[%s1001 + $0x8] sm:$0xff]
    %v1004 = vld [vmem:[%s1001 + $0x10] sm:$0xff]
    %v1005 = vld [vmem:[%s1001 + $0x18] sm:$0xff]
    %s1006 = scalar_lea.vmem [#allocation7], 224
    %v1007 = vld [vmem:[%s1006] sm:$0xff]
    %v1008 = vld [vmem:[%s1006 + $0x8] sm:$0xff]
    %v1009 = vld [vmem:[%s1006 + $0x10] sm:$0xff]
    %v1010 = vld [vmem:[%s1006 + $0x18] sm:$0xff]
    %v1011 = vld [vmem:[#allocation2] sm:$0xf]
    %vm1012 = vcmask 261120
    %v1014 = vsel %vm1012, 0.0, 0
    %1016 = vmatprep.subr.mxu0 0.0
    %1017 = vmatpush1.msra.mxu0 %v972
    %1018 = vmatprep.subr.mxu0 0.0
    %1019 = vmatpush1.msra.mxu0 %v973
    %1020 = vmatprep.subr.mxu0 0.0
    %1021 = vmatpush1.msra.mxu0 %v974
    %1022 = vmatprep.subr.mxu0 0.0
    %1023 = vmatpush1.msra.mxu0 %v975
    %1024 = vmatprep.subr.mxu0 0.0
    %1025 = vmatpush1.msra.mxu0 0.0
    %1026 = vmatprep.subr.mxu0 0.0
    %1027 = vmatpush1.msra.mxu0 0.0
    %1028 = vmatprep.subr.mxu0 0.0
    %1029 = vmatpush1.msra.mxu0 0.0
    %1030 = vmatprep.subr.mxu0 0.0
    %1031 = vmatpush1.msra.mxu0 0.0
    %1032 = vmatprep.subr.mxu0 0.0
    %1033 = vmatpush1.msra.mxu0 0.0
    %1034 = vmatprep.subr.mxu0 0.0
    %1035 = vmatpush1.msra.mxu0 0.0
    %1036 = vmatprep.subr.mxu0 0.0
    %1037 = vmatpush1.msra.mxu0 0.0
    %1038 = vmatprep.subr.mxu0 0.0
    %1039 = vmatpush1.msra.mxu0 0.0
    %1040 = vmatprep.subr.mxu0 0.0
    %1041 = vmatpush1.msra.mxu0 0.0
    %1042 = vmatprep.subr.mxu0 0.0
    %1043 = vmatpush1.msra.mxu0 0.0
    %1044 = vmatprep.subr.mxu0 0.0
    %1045 = vmatpush1.msra.mxu0 0.0
    %1046 = vmatprep.subr.mxu0 0.0
    %1047 = vmatpush1.msra.mxu0 0.0
    %1048 = vmatprep.subr.mxu0 0.0
    %1049 = vmatpush1.msra.mxu0 0.0
    %1050 = vmatprep.subr.mxu0 0.0
    %1051 = vmatpush1.msra.mxu0 0.0
    %1052 = vmatprep.subr.mxu0 0.0
    %1053 = vmatpush1.msra.mxu0 0.0
    %1054 = vmatprep.subr.mxu0 0.0
    %1055 = vmatpush1.msra.mxu0 0.0
    %1056 = vmatprep.subr.mxu0 0.0
    %1057 = vmatpush1.msra.mxu0 0.0
    %1058 = vmatprep.subr.mxu0 0.0
    %1059 = vmatpush1.msra.mxu0 0.0
    %1060 = vmatprep.subr.mxu0 0.0
    %1061 = vmatpush1.msra.mxu0 0.0
    %1062 = vmatprep.subr.mxu0 0.0
    %1063 = vmatpush1.msra.mxu0 0.0
    %1064 = vmatprep.subr.mxu0 0.0
    %1065 = vmatpush1.msra.mxu0 0.0
    %1066 = vmatprep.subr.mxu0 0.0
    %1067 = vmatpush1.msra.mxu0 0.0
    %1068 = vmatprep.subr.mxu0 0.0
    %1069 = vmatpush1.msra.mxu0 0.0
    %1070 = vmatprep.subr.mxu0 0.0
    %1071 = vmatpush1.msra.mxu0 0.0
    %1072 = vmatprep.subr.mxu0 0.0
    %1073 = vmatpush1.msra.mxu0 0.0
    %1074 = vmatprep.subr.mxu0 0.0
    %1075 = vmatpush1.msra.mxu0 0.0
    %1076 = vmatprep.subr.mxu0 0.0
    %1077 = vmatpush1.msra.mxu0 0.0
    %1078 = vmatprep.subr.mxu0 0.0
    %1079 = vmatpush1.msra.mxu0 0.0
    %1080 = vmatprep.mubr.f32.mxu0 0.0
    %1081 = vmatmul.mubr.f32.gmra.mrb[0].mxu0 %v1014
    %v1082 = vpop.f32.mrb[0].mxu0
    %v1083 = vadd.f32 0.0, %v1082
    %v1084 = vpop.f32.mrb[0].mxu0
    %1085 = vdwg.mxu0
    %v1086 = vadd.f32 %v1011, %v1083
    %v1087 = vld [vmem:[%s158] sm:$0xf]
    %1088 = vmatprep.subr.mxu0 0.0
    %1089 = vmatpush1.msra.mxu0 %v977
    %1090 = vmatprep.subr.mxu0 0.0
    %1091 = vmatpush1.msra.mxu0 %v978
    %1092 = vmatprep.subr.mxu0 0.0
    %1093 = vmatpush1.msra.mxu0 %v979
    %1094 = vmatprep.subr.mxu0 0.0
    %1095 = vmatpush1.msra.mxu0 %v980
    %1096 = vmatprep.subr.mxu0 0.0
    %1097 = vmatpush1.msra.mxu0 0.0
    %1098 = vmatprep.subr.mxu0 0.0
    %1099 = vmatpush1.msra.mxu0 0.0
    %1100 = vmatprep.subr.mxu0 0.0
    %1101 = vmatpush1.msra.mxu0 0.0
    %1102 = vmatprep.subr.mxu0 0.0
    %1103 = vmatpush1.msra.mxu0 0.0
    %1104 = vmatprep.subr.mxu0 0.0
    %1105 = vmatpush1.msra.mxu0 0.0
    %1106 = vmatprep.subr.mxu0 0.0
    %1107 = vmatpush1.msra.mxu0 0.0
    %1108 = vmatprep.subr.mxu0 0.0
    %1109 = vmatpush1.msra.mxu0 0.0
    %1110 = vmatprep.subr.mxu0 0.0
    %1111 = vmatpush1.msra.mxu0 0.0
    %1112 = vmatprep.subr.mxu0 0.0
    %1113 = vmatpush1.msra.mxu0 0.0
    %1114 = vmatprep.subr.mxu0 0.0
    %1115 = vmatpush1.msra.mxu0 0.0
    %1116 = vmatprep.subr.mxu0 0.0
    %1117 = vmatpush1.msra.mxu0 0.0
    %1118 = vmatprep.subr.mxu0 0.0
    %1119 = vmatpush1.msra.mxu0 0.0
    %1120 = vmatprep.subr.mxu0 0.0
    %1121 = vmatpush1.msra.mxu0 0.0
    %1122 = vmatprep.subr.mxu0 0.0
    %1123 = vmatpush1.msra.mxu0 0.0
    %1124 = vmatprep.subr.mxu0 0.0
    %1125 = vmatpush1.msra.mxu0 0.0
    %1126 = vmatprep.subr.mxu0 0.0
    %1127 = vmatpush1.msra.mxu0 0.0
    %1128 = vmatprep.subr.mxu0 0.0
    %1129 = vmatpush1.msra.mxu0 0.0
    %1130 = vmatprep.subr.mxu0 0.0
    %1131 = vmatpush1.msra.mxu0 0.0
    %1132 = vmatprep.subr.mxu0 0.0
    %1133 = vmatpush1.msra.mxu0 0.0
    %1134 = vmatprep.subr.mxu0 0.0
    %1135 = vmatpush1.msra.mxu0 0.0
    %1136 = vmatprep.subr.mxu0 0.0
    %1137 = vmatpush1.msra.mxu0 0.0
    %1138 = vmatprep.subr.mxu0 0.0
    %1139 = vmatpush1.msra.mxu0 0.0
    %1140 = vmatprep.subr.mxu0 0.0
    %1141 = vmatpush1.msra.mxu0 0.0
    %1142 = vmatprep.subr.mxu0 0.0
    %1143 = vmatpush1.msra.mxu0 0.0
    %1144 = vmatprep.subr.mxu0 0.0
    %1145 = vmatpush1.msra.mxu0 0.0
    %1146 = vmatprep.subr.mxu0 0.0
    %1147 = vmatpush1.msra.mxu0 0.0
    %1148 = vmatprep.subr.mxu0 0.0
    %1149 = vmatpush1.msra.mxu0 0.0
    %1150 = vmatprep.subr.mxu0 0.0
    %1151 = vmatpush1.msra.mxu0 0.0
    %1152 = vmatprep.mubr.f32.mxu0 0.0
    %1153 = vmatmul.mubr.f32.gmra.mrb[0].mxu0 %v1014
    %v1154 = vpop.f32.mrb[0].mxu0
    %v1155 = vadd.f32 0.0, %v1154
    %v1156 = vpop.f32.mrb[0].mxu0
    %1157 = vdwg.mxu0
    %v1158 = vadd.f32 %v1087, %v1155
    %v1159 = vld [vmem:[%s163] sm:$0xf]
    %1160 = vmatprep.subr.mxu0 0.0
    %1161 = vmatpush1.msra.mxu0 %v982
    %1162 = vmatprep.subr.mxu0 0.0
    %1163 = vmatpush1.msra.mxu0 %v983
    %1164 = vmatprep.subr.mxu0 0.0
    %1165 = vmatpush1.msra.mxu0 %v984
    %1166 = vmatprep.subr.mxu0 0.0
    %1167 = vmatpush1.msra.mxu0 %v985
    %1168 = vmatprep.subr.mxu0 0.0
    %1169 = vmatpush1.msra.mxu0 0.0
    %1170 = vmatprep.subr.mxu0 0.0
    %1171 = vmatpush1.msra.mxu0 0.0
    %1172 = vmatprep.subr.mxu0 0.0
    %1173 = vmatpush1.msra.mxu0 0.0
    %1174 = vmatprep.subr.mxu0 0.0
    %1175 = vmatpush1.msra.mxu0 0.0
    %1176 = vmatprep.subr.mxu0 0.0
    %1177 = vmatpush1.msra.mxu0 0.0
    %1178 = vmatprep.subr.mxu0 0.0
    %1179 = vmatpush1.msra.mxu0 0.0
    %1180 = vmatprep.subr.mxu0 0.0
    %1181 = vmatpush1.msra.mxu0 0.0
    %1182 = vmatprep.subr.mxu0 0.0
    %1183 = vmatpush1.msra.mxu0 0.0
    %1184 = vmatprep.subr.mxu0 0.0
    %1185 = vmatpush1.msra.mxu0 0.0
    %1186 = vmatprep.subr.mxu0 0.0
    %1187 = vmatpush1.msra.mxu0 0.0
    %1188 = vmatprep.subr.mxu0 0.0
    %1189 = vmatpush1.msra.mxu0 0.0
    %1190 = vmatprep.subr.mxu0 0.0
    %1191 = vmatpush1.msra.mxu0 0.0
    %1192 = vmatprep.subr.mxu0 0.0
    %1193 = vmatpush1.msra.mxu0 0.0
    %1194 = vmatprep.subr.mxu0 0.0
    %1195 = vmatpush1.msra.mxu0 0.0
    %1196 = vmatprep.subr.mxu0 0.0
    %1197 = vmatpush1.msra.mxu0 0.0
    %1198 = vmatprep.subr.mxu0 0.0
    %1199 = vmatpush1.msra.mxu0 0.0
    %1200 = vmatprep.subr.mxu0 0.0
    %1201 = vmatpush1.msra.mxu0 0.0
    %1202 = vmatprep.subr.mxu0 0.0
    %1203 = vmatpush1.msra.mxu0 0.0
    %1204 = vmatprep.subr.mxu0 0.0
    %1205 = vmatpush1.msra.mxu0 0.0
    %1206 = vmatprep.subr.mxu0 0.0
    %1207 = vmatpush1.msra.mxu0 0.0
    %1208 = vmatprep.subr.mxu0 0.0
    %1209 = vmatpush1.msra.mxu0 0.0
    %1210 = vmatprep.subr.mxu0 0.0
    %1211 = vmatpush1.msra.mxu0 0.0
    %1212 = vmatprep.subr.mxu0 0.0
    %1213 = vmatpush1.msra.mxu0 0.0
    %1214 = vmatprep.subr.mxu0 0.0
    %1215 = vmatpush1.msra.mxu0 0.0
    %1216 = vmatprep.subr.mxu0 0.0
    %1217 = vmatpush1.msra.mxu0 0.0
    %1218 = vmatprep.subr.mxu0 0.0
    %1219 = vmatpush1.msra.mxu0 0.0
    %1220 = vmatprep.subr.mxu0 0.0
    %1221 = vmatpush1.msra.mxu0 0.0
    %1222 = vmatprep.subr.mxu0 0.0
    %1223 = vmatpush1.msra.mxu0 0.0
    %1224 = vmatprep.mubr.f32.mxu0 0.0
    %1225 = vmatmul.mubr.f32.gmra.mrb[0].mxu0 %v1014
    %v1226 = vpop.f32.mrb[0].mxu0
    %v1227 = vadd.f32 0.0, %v1226
    %v1228 = vpop.f32.mrb[0].mxu0
    %1229 = vdwg.mxu0
    %v1230 = vadd.f32 %v1159, %v1227
    %v1231 = vld [vmem:[%s168] sm:$0xf]
    %1232 = vmatprep.subr.mxu0 0.0
    %1233 = vmatpush1.msra.mxu0 %v987
    %1234 = vmatprep.subr.mxu0 0.0
    %1235 = vmatpush1.msra.mxu0 %v988
    %1236 = vmatprep.subr.mxu0 0.0
    %1237 = vmatpush1.msra.mxu0 %v989
    %1238 = vmatprep.subr.mxu0 0.0
    %1239 = vmatpush1.msra.mxu0 %v990
    %1240 = vmatprep.subr.mxu0 0.0
    %1241 = vmatpush1.msra.mxu0 0.0
    %1242 = vmatprep.subr.mxu0 0.0
    %1243 = vmatpush1.msra.mxu0 0.0
    %1244 = vmatprep.subr.mxu0 0.0
    %1245 = vmatpush1.msra.mxu0 0.0
    %1246 = vmatprep.subr.mxu0 0.0
    %1247 = vmatpush1.msra.mxu0 0.0
    %1248 = vmatprep.subr.mxu0 0.0
    %1249 = vmatpush1.msra.mxu0 0.0
    %1250 = vmatprep.subr.mxu0 0.0
    %1251 = vmatpush1.msra.mxu0 0.0
    %1252 = vmatprep.subr.mxu0 0.0
    %1253 = vmatpush1.msra.mxu0 0.0
    %1254 = vmatprep.subr.mxu0 0.0
    %1255 = vmatpush1.msra.mxu0 0.0
    %1256 = vmatprep.subr.mxu0 0.0
    %1257 = vmatpush1.msra.mxu0 0.0
    %1258 = vmatprep.subr.mxu0 0.0
    %1259 = vmatpush1.msra.mxu0 0.0
    %1260 = vmatprep.subr.mxu0 0.0
    %1261 = vmatpush1.msra.mxu0 0.0
    %1262 = vmatprep.subr.mxu0 0.0
    %1263 = vmatpush1.msra.mxu0 0.0
    %1264 = vmatprep.subr.mxu0 0.0
    %1265 = vmatpush1.msra.mxu0 0.0
    %1266 = vmatprep.subr.mxu0 0.0
    %1267 = vmatpush1.msra.mxu0 0.0
    %1268 = vmatprep.subr.mxu0 0.0
    %1269 = vmatpush1.msra.mxu0 0.0
    %1270 = vmatprep.subr.mxu0 0.0
    %1271 = vmatpush1.msra.mxu0 0.0
    %1272 = vmatprep.subr.mxu0 0.0
    %1273 = vmatpush1.msra.mxu0 0.0
    %1274 = vmatprep.subr.mxu0 0.0
    %1275 = vmatpush1.msra.mxu0 0.0
    %1276 = vmatprep.subr.mxu0 0.0
    %1277 = vmatpush1.msra.mxu0 0.0
    %1278 = vmatprep.subr.mxu0 0.0
    %1279 = vmatpush1.msra.mxu0 0.0
    %1280 = vmatprep.subr.mxu0 0.0
    %1281 = vmatpush1.msra.mxu0 0.0
    %1282 = vmatprep.subr.mxu0 0.0
    %1283 = vmatpush1.msra.mxu0 0.0
    %1284 = vmatprep.subr.mxu0 0.0
    %1285 = vmatpush1.msra.mxu0 0.0
    %1286 = vmatprep.subr.mxu0 0.0
    %1287 = vmatpush1.msra.mxu0 0.0
    %1288 = vmatprep.subr.mxu0 0.0
    %1289 = vmatpush1.msra.mxu0 0.0
    %1290 = vmatprep.subr.mxu0 0.0
    %1291 = vmatpush1.msra.mxu0 0.0
    %1292 = vmatprep.subr.mxu0 0.0
    %1293 = vmatpush1.msra.mxu0 0.0
    %1294 = vmatprep.subr.mxu0 0.0
    %1295 = vmatpush1.msra.mxu0 0.0
    %1296 = vmatprep.mubr.f32.mxu0 0.0
    %1297 = vmatmul.mubr.f32.gmra.mrb[0].mxu0 %v1014
    %v1298 = vpop.f32.mrb[0].mxu0
    %v1299 = vadd.f32 0.0, %v1298
    %v1300 = vpop.f32.mrb[0].mxu0
    %1301 = vdwg.mxu0
    %v1302 = vadd.f32 %v1231, %v1299
    %v1303 = vld [vmem:[%s954] sm:$0xf]
    %1304 = vmatprep.subr.mxu0 0.0
    %1305 = vmatpush1.msra.mxu0 %v992
    %1306 = vmatprep.subr.mxu0 0.0
    %1307 = vmatpush1.msra.mxu0 %v993
    %1308 = vmatprep.subr.mxu0 0.0
    %1309 = vmatpush1.msra.mxu0 %v994
    %1310 = vmatprep.subr.mxu0 0.0
    %1311 = vmatpush1.msra.mxu0 %v995
    %1312 = vmatprep.subr.mxu0 0.0
    %1313 = vmatpush1.msra.mxu0 0.0
    %1314 = vmatprep.subr.mxu0 0.0
    %1315 = vmatpush1.msra.mxu0 0.0
    %1316 = vmatprep.subr.mxu0 0.0
    %1317 = vmatpush1.msra.mxu0 0.0
    %1318 = vmatprep.subr.mxu0 0.0
    %1319 = vmatpush1.msra.mxu0 0.0
    %1320 = vmatprep.subr.mxu0 0.0
    %1321 = vmatpush1.msra.mxu0 0.0
    %1322 = vmatprep.subr.mxu0 0.0
    %1323 = vmatpush1.msra.mxu0 0.0
    %1324 = vmatprep.subr.mxu0 0.0
    %1325 = vmatpush1.msra.mxu0 0.0
    %1326 = vmatprep.subr.mxu0 0.0
    %1327 = vmatpush1.msra.mxu0 0.0
    %1328 = vmatprep.subr.mxu0 0.0
    %1329 = vmatpush1.msra.mxu0 0.0
    %1330 = vmatprep.subr.mxu0 0.0
    %1331 = vmatpush1.msra.mxu0 0.0
    %1332 = vmatprep.subr.mxu0 0.0
    %1333 = vmatpush1.msra.mxu0 0.0
    %1334 = vmatprep.subr.mxu0 0.0
    %1335 = vmatpush1.msra.mxu0 0.0
    %1336 = vmatprep.subr.mxu0 0.0
    %1337 = vmatpush1.msra.mxu0 0.0
    %1338 = vmatprep.subr.mxu0 0.0
    %1339 = vmatpush1.msra.mxu0 0.0
    %1340 = vmatprep.subr.mxu0 0.0
    %1341 = vmatpush1.msra.mxu0 0.0
    %1342 = vmatprep.subr.mxu0 0.0
    %1343 = vmatpush1.msra.mxu0 0.0
    %1344 = vmatprep.subr.mxu0 0.0
    %1345 = vmatpush1.msra.mxu0 0.0
    %1346 = vmatprep.subr.mxu0 0.0
    %1347 = vmatpush1.msra.mxu0 0.0
    %1348 = vmatprep.subr.mxu0 0.0
    %1349 = vmatpush1.msra.mxu0 0.0
    %1350 = vmatprep.subr.mxu0 0.0
    %1351 = vmatpush1.msra.mxu0 0.0
    %1352 = vmatprep.subr.mxu0 0.0
    %1353 = vmatpush1.msra.mxu0 0.0
    %1354 = vmatprep.subr.mxu0 0.0
    %1355 = vmatpush1.msra.mxu0 0.0
    %1356 = vmatprep.subr.mxu0 0.0
    %1357 = vmatpush1.msra.mxu0 0.0
    %1358 = vmatprep.subr.mxu0 0.0
    %1359 = vmatpush1.msra.mxu0 0.0
    %1360 = vmatprep.subr.mxu0 0.0
    %1361 = vmatpush1.msra.mxu0 0.0
    %1362 = vmatprep.subr.mxu0 0.0
    %1363 = vmatpush1.msra.mxu0 0.0
    %1364 = vmatprep.subr.mxu0 0.0
    %1365 = vmatpush1.msra.mxu0 0.0
    %1366 = vmatprep.subr.mxu0 0.0
    %1367 = vmatpush1.msra.mxu0 0.0
    %1368 = vmatprep.mubr.f32.mxu0 0.0
    %1369 = vmatmul.mubr.f32.gmra.mrb[0].mxu0 %v1014
    %v1370 = vpop.f32.mrb[0].mxu0
    %v1371 = vadd.f32 0.0, %v1370
    %v1372 = vpop.f32.mrb[0].mxu0
    %1373 = vdwg.mxu0
    %v1374 = vadd.f32 %v1303, %v1371
    %v1375 = vld [vmem:[%s960] sm:$0xf]
    %1376 = vmatprep.subr.mxu0 0.0
    %1377 = vmatpush1.msra.mxu0 %v997
    %1378 = vmatprep.subr.mxu0 0.0
    %1379 = vmatpush1.msra.mxu0 %v998
    %1380 = vmatprep.subr.mxu0 0.0
    %1381 = vmatpush1.msra.mxu0 %v999
    %1382 = vmatprep.subr.mxu0 0.0
    %1383 = vmatpush1.msra.mxu0 %v1000
    %1384 = vmatprep.subr.mxu0 0.0
    %1385 = vmatpush1.msra.mxu0 0.0
    %1386 = vmatprep.subr.mxu0 0.0
    %1387 = vmatpush1.msra.mxu0 0.0
    %1388 = vmatprep.subr.mxu0 0.0
    %1389 = vmatpush1.msra.mxu0 0.0
    %1390 = vmatprep.subr.mxu0 0.0
    %1391 = vmatpush1.msra.mxu0 0.0
    %1392 = vmatprep.subr.mxu0 0.0
    %1393 = vmatpush1.msra.mxu0 0.0
    %1394 = vmatprep.subr.mxu0 0.0
    %1395 = vmatpush1.msra.mxu0 0.0
    %1396 = vmatprep.subr.mxu0 0.0
    %1397 = vmatpush1.msra.mxu0 0.0
    %1398 = vmatprep.subr.mxu0 0.0
    %1399 = vmatpush1.msra.mxu0 0.0
    %1400 = vmatprep.subr.mxu0 0.0
    %1401 = vmatpush1.msra.mxu0 0.0
    %1402 = vmatprep.subr.mxu0 0.0
    %1403 = vmatpush1.msra.mxu0 0.0
    %1404 = vmatprep.subr.mxu0 0.0
    %1405 = vmatpush1.msra.mxu0 0.0
    %1406 = vmatprep.subr.mxu0 0.0
    %1407 = vmatpush1.msra.mxu0 0.0
    %1408 = vmatprep.subr.mxu0 0.0
    %1409 = vmatpush1.msra.mxu0 0.0
    %1410 = vmatprep.subr.mxu0 0.0
    %1411 = vmatpush1.msra.mxu0 0.0
    %1412 = vmatprep.subr.mxu0 0.0
    %1413 = vmatpush1.msra.mxu0 0.0
    %1414 = vmatprep.subr.mxu0 0.0
    %1415 = vmatpush1.msra.mxu0 0.0
    %1416 = vmatprep.subr.mxu0 0.0
    %1417 = vmatpush1.msra.mxu0 0.0
    %1418 = vmatprep.subr.mxu0 0.0
    %1419 = vmatpush1.msra.mxu0 0.0
    %1420 = vmatprep.subr.mxu0 0.0
    %1421 = vmatpush1.msra.mxu0 0.0
    %1422 = vmatprep.subr.mxu0 0.0
    %1423 = vmatpush1.msra.mxu0 0.0
    %1424 = vmatprep.subr.mxu0 0.0
    %1425 = vmatpush1.msra.mxu0 0.0
    %1426 = vmatprep.subr.mxu0 0.0
    %1427 = vmatpush1.msra.mxu0 0.0
    %1428 = vmatprep.subr.mxu0 0.0
    %1429 = vmatpush1.msra.mxu0 0.0
    %1430 = vmatprep.subr.mxu0 0.0
    %1431 = vmatpush1.msra.mxu0 0.0
    %1432 = vmatprep.subr.mxu0 0.0
    %1433 = vmatpush1.msra.mxu0 0.0
    %1434 = vmatprep.subr.mxu0 0.0
    %1435 = vmatpush1.msra.mxu0 0.0
    %1436 = vmatprep.subr.mxu0 0.0
    %1437 = vmatpush1.msra.mxu0 0.0
    %1438 = vmatprep.subr.mxu0 0.0
    %1439 = vmatpush1.msra.mxu0 0.0
    %1440 = vmatprep.mubr.f32.mxu0 0.0
    %1441 = vmatmul.mubr.f32.gmra.mrb[0].mxu0 %v1014
    %v1442 = vpop.f32.mrb[0].mxu0
    %v1443 = vadd.f32 0.0, %v1442
    %v1444 = vpop.f32.mrb[0].mxu0
    %1445 = vdwg.mxu0
    %v1446 = vadd.f32 %v1375, %v1443
    %v1447 = vld [vmem:[%s965] sm:$0xf]
    %1448 = vmatprep.subr.mxu0 0.0
    %1449 = vmatpush1.msra.mxu0 %v1002
    %1450 = vmatprep.subr.mxu0 0.0
    %1451 = vmatpush1.msra.mxu0 %v1003
    %1452 = vmatprep.subr.mxu0 0.0
    %1453 = vmatpush1.msra.mxu0 %v1004
    %1454 = vmatprep.subr.mxu0 0.0
    %1455 = vmatpush1.msra.mxu0 %v1005
    %1456 = vmatprep.subr.mxu0 0.0
    %1457 = vmatpush1.msra.mxu0 0.0
    %1458 = vmatprep.subr.mxu0 0.0
    %1459 = vmatpush1.msra.mxu0 0.0
    %1460 = vmatprep.subr.mxu0 0.0
    %1461 = vmatpush1.msra.mxu0 0.0
    %1462 = vmatprep.subr.mxu0 0.0
    %1463 = vmatpush1.msra.mxu0 0.0
    %1464 = vmatprep.subr.mxu0 0.0
    %1465 = vmatpush1.msra.mxu0 0.0
    %1466 = vmatprep.subr.mxu0 0.0
    %1467 = vmatpush1.msra.mxu0 0.0
    %1468 = vmatprep.subr.mxu0 0.0
    %1469 = vmatpush1.msra.mxu0 0.0
    %1470 = vmatprep.subr.mxu0 0.0
    %1471 = vmatpush1.msra.mxu0 0.0
    %1472 = vmatprep.subr.mxu0 0.0
    %1473 = vmatpush1.msra.mxu0 0.0
    %1474 = vmatprep.subr.mxu0 0.0
    %1475 = vmatpush1.msra.mxu0 0.0
    %1476 = vmatprep.subr.mxu0 0.0
    %1477 = vmatpush1.msra.mxu0 0.0
    %1478 = vmatprep.subr.mxu0 0.0
    %1479 = vmatpush1.msra.mxu0 0.0
    %1480 = vmatprep.subr.mxu0 0.0
    %1481 = vmatpush1.msra.mxu0 0.0
    %1482 = vmatprep.subr.mxu0 0.0
    %1483 = vmatpush1.msra.mxu0 0.0
    %1484 = vmatprep.subr.mxu0 0.0
    %1485 = vmatpush1.msra.mxu0 0.0
    %1486 = vmatprep.subr.mxu0 0.0
    %1487 = vmatpush1.msra.mxu0 0.0
    %1488 = vmatprep.subr.mxu0 0.0
    %1489 = vmatpush1.msra.mxu0 0.0
    %1490 = vmatprep.subr.mxu0 0.0
    %1491 = vmatpush1.msra.mxu0 0.0
    %1492 = vmatprep.subr.mxu0 0.0
    %1493 = vmatpush1.msra.mxu0 0.0
    %1494 = vmatprep.subr.mxu0 0.0
    %1495 = vmatpush1.msra.mxu0 0.0
    %1496 = vmatprep.subr.mxu0 0.0
    %1497 = vmatpush1.msra.mxu0 0.0
    %1498 = vmatprep.subr.mxu0 0.0
    %1499 = vmatpush1.msra.mxu0 0.0
    %1500 = vmatprep.subr.mxu0 0.0
    %1501 = vmatpush1.msra.mxu0 0.0
    %1502 = vmatprep.subr.mxu0 0.0
    %1503 = vmatpush1.msra.mxu0 0.0
    %1504 = vmatprep.subr.mxu0 0.0
    %1505 = vmatpush1.msra.mxu0 0.0
    %1506 = vmatprep.subr.mxu0 0.0
    %1507 = vmatpush1.msra.mxu0 0.0
    %1508 = vmatprep.subr.mxu0 0.0
    %1509 = vmatpush1.msra.mxu0 0.0
    %1510 = vmatprep.subr.mxu0 0.0
    %1511 = vmatpush1.msra.mxu0 0.0
    %1512 = vmatprep.mubr.f32.mxu0 0.0
    %1513 = vmatmul.mubr.f32.gmra.mrb[0].mxu0 %v1014
    %v1514 = vpop.f32.mrb[0].mxu0
    %v1515 = vadd.f32 0.0, %v1514
    %v1516 = vpop.f32.mrb[0].mxu0
    %1517 = vdwg.mxu0
    %v1518 = vadd.f32 %v1447, %v1515
    %v1519 = vld [vmem:[%s970] sm:$0xf]
    %1520 = vmatprep.subr.mxu0 0.0
    %1521 = vmatpush1.msra.mxu0 %v1007
    %1522 = vmatprep.subr.mxu0 0.0
    %1523 = vmatpush1.msra.mxu0 %v1008
    %1524 = vmatprep.subr.mxu0 0.0
    %1525 = vmatpush1.msra.mxu0 %v1009
    %1526 = vmatprep.subr.mxu0 0.0
    %1527 = vmatpush1.msra.mxu0 %v1010
    %1528 = vmatprep.subr.mxu0 0.0
    %1529 = vmatpush1.msra.mxu0 0.0
    %1530 = vmatprep.subr.mxu0 0.0
    %1531 = vmatpush1.msra.mxu0 0.0
    %1532 = vmatprep.subr.mxu0 0.0
    %1533 = vmatpush1.msra.mxu0 0.0
    %1534 = vmatprep.subr.mxu0 0.0
    %1535 = vmatpush1.msra.mxu0 0.0
    %1536 = vmatprep.subr.mxu0 0.0
    %1537 = vmatpush1.msra.mxu0 0.0
    %1538 = vmatprep.subr.mxu0 0.0
    %1539 = vmatpush1.msra.mxu0 0.0
    %1540 = vmatprep.subr.mxu0 0.0
    %1541 = vmatpush1.msra.mxu0 0.0
    %1542 = vmatprep.subr.mxu0 0.0
    %1543 = vmatpush1.msra.mxu0 0.0
    %1544 = vmatprep.subr.mxu0 0.0
    %1545 = vmatpush1.msra.mxu0 0.0
    %1546 = vmatprep.subr.mxu0 0.0
    %1547 = vmatpush1.msra.mxu0 0.0
    %1548 = vmatprep.subr.mxu0 0.0
    %1549 = vmatpush1.msra.mxu0 0.0
    %1550 = vmatprep.subr.mxu0 0.0
    %1551 = vmatpush1.msra.mxu0 0.0
    %1552 = vmatprep.subr.mxu0 0.0
    %1553 = vmatpush1.msra.mxu0 0.0
    %1554 = vmatprep.subr.mxu0 0.0
    %1555 = vmatpush1.msra.mxu0 0.0
    %1556 = vmatprep.subr.mxu0 0.0
    %1557 = vmatpush1.msra.mxu0 0.0
    %1558 = vmatprep.subr.mxu0 0.0
    %1559 = vmatpush1.msra.mxu0 0.0
    %1560 = vmatprep.subr.mxu0 0.0
    %1561 = vmatpush1.msra.mxu0 0.0
    %1562 = vmatprep.subr.mxu0 0.0
    %1563 = vmatpush1.msra.mxu0 0.0
    %1564 = vmatprep.subr.mxu0 0.0
    %1565 = vmatpush1.msra.mxu0 0.0
    %1566 = vmatprep.subr.mxu0 0.0
    %1567 = vmatpush1.msra.mxu0 0.0
    %1568 = vmatprep.subr.mxu0 0.0
    %1569 = vmatpush1.msra.mxu0 0.0
    %1570 = vmatprep.subr.mxu0 0.0
    %1571 = vmatpush1.msra.mxu0 0.0
    %1572 = vmatprep.subr.mxu0 0.0
    %1573 = vmatpush1.msra.mxu0 0.0
    %1574 = vmatprep.subr.mxu0 0.0
    %1575 = vmatpush1.msra.mxu0 0.0
    %1576 = vmatprep.subr.mxu0 0.0
    %1577 = vmatpush1.msra.mxu0 0.0
    %1578 = vmatprep.subr.mxu0 0.0
    %1579 = vmatpush1.msra.mxu0 0.0
    %1580 = vmatprep.subr.mxu0 0.0
    %1581 = vmatpush1.msra.mxu0 0.0
    %1582 = vmatprep.subr.mxu0 0.0
    %1583 = vmatpush1.msra.mxu0 0.0
    %1584 = vmatprep.mubr.f32.mxu0 0.0
    %1585 = vmatmul.mubr.f32.gmra.mrb[0].mxu0 %v1014
    %v1586 = vpop.f32.mrb[0].mxu0
    %v1587 = vadd.f32 0.0, %v1586
    %v1588 = vpop.f32.mrb[0].mxu0
    %1589 = vdwg.mxu0
    %v1590 = vadd.f32 %v1519, %v1587
    %v1591 = vxor.u32 %v1158, 2147483648
    %v1592 = vmul.f32 %v1591, 1.442695
    %v1593 = vpow.pop %v1592
    %v1594 = vadd.f32 %v1593, 1.0
    %v1595 = vrcp.pop %v1594
    %v1596 = vmul.f32 1.0, %v1595
    %v1597 = vmul.f32 %v1596, 0.0
    %v1598 = vxor.u32 %v1086, 2147483648
    %v1599 = vmul.f32 %v1598, 1.442695
    %v1600 = vpow.pop %v1599
    %v1601 = vadd.f32 %v1600, 1.0
    %v1602 = vrcp.pop %v1601
    %v1603 = vmul.f32 1.0, %v1602
    %v1604 = vtanh.pop %v1230
    %v1605 = vmul.f32 %v1603, %v1604
    %v1606 = vadd.f32 %v1597, %v1605
    %v1607 = vxor.u32 %v1302, 2147483648
    %v1608 = vmul.f32 %v1607, 1.442695
    %v1609 = vpow.pop %v1608
    %v1610 = vadd.f32 %v1609, 1.0
    %v1611 = vrcp.pop %v1610
    %v1612 = vmul.f32 1.0, %v1611
    %v1613 = vtanh.pop %v1606
    %v1614 = vmul.f32 %v1612, %v1613
    %v1615 = vxor.u32 %v1446, 2147483648
    %v1616 = vmul.f32 %v1615, 1.442695
    %v1617 = vpow.pop %v1616
    %v1618 = vadd.f32 %v1617, 1.0
    %v1619 = vrcp.pop %v1618
    %v1620 = vmul.f32 1.0, %v1619
    %v1621 = vmul.f32 %v1620, 0.0
    %v1622 = vxor.u32 %v1374, 2147483648
    %v1623 = vmul.f32 %v1622, 1.442695
    %v1624 = vpow.pop %v1623
    %v1625 = vadd.f32 %v1624, 1.0
    %v1626 = vrcp.pop %v1625
    %v1627 = vmul.f32 1.0, %v1626
    %v1628 = vtanh.pop %v1518
    %v1629 = vmul.f32 %v1627, %v1628
    %v1630 = vadd.f32 %v1621, %v1629
    %v1631 = vxor.u32 %v1590, 2147483648
    %v1632 = vmul.f32 %v1631, 1.442695
    %v1633 = vpow.pop %v1632
    %v1634 = vadd.f32 %v1633, 1.0
    %v1635 = vrcp.pop %v1634
    %v1636 = vmul.f32 1.0, %v1635
    %v1637 = vtanh.pop %v1630
    %v1638 = vmul.f32 %v1636, %v1637
    %v1639 = vld [vmem:[%s264] sm:$0xf]
    %v1641 = vsel %vm1012, %v1614, 0
    %1643 = vmatprep.subr.mxu0 0.0
    %1644 = vmatpush1.msra.mxu0 %v972
    %1645 = vmatprep.subr.mxu0 0.0
    %1646 = vmatpush1.msra.mxu0 %v973
    %1647 = vmatprep.subr.mxu0 0.0
    %1648 = vmatpush1.msra.mxu0 %v974
    %1649 = vmatprep.subr.mxu0 0.0
    %1650 = vmatpush1.msra.mxu0 %v975
    %1651 = vmatprep.subr.mxu0 0.0
    %1652 = vmatpush1.msra.mxu0 0.0
    %1653 = vmatprep.subr.mxu0 0.0
    %1654 = vmatpush1.msra.mxu0 0.0
    %1655 = vmatprep.subr.mxu0 0.0
    %1656 = vmatpush1.msra.mxu0 0.0
    %1657 = vmatprep.subr.mxu0 0.0
    %1658 = vmatpush1.msra.mxu0 0.0
    %1659 = vmatprep.subr.mxu0 0.0
    %1660 = vmatpush1.msra.mxu0 0.0
    %1661 = vmatprep.subr.mxu0 0.0
    %1662 = vmatpush1.msra.mxu0 0.0
    %1663 = vmatprep.subr.mxu0 0.0
    %1664 = vmatpush1.msra.mxu0 0.0
    %1665 = vmatprep.subr.mxu0 0.0
    %1666 = vmatpush1.msra.mxu0 0.0
    %1667 = vmatprep.subr.mxu0 0.0
    %1668 = vmatpush1.msra.mxu0 0.0
    %1669 = vmatprep.subr.mxu0 0.0
    %1670 = vmatpush1.msra.mxu0 0.0
    %1671 = vmatprep.subr.mxu0 0.0
    %1672 = vmatpush1.msra.mxu0 0.0
    %1673 = vmatprep.subr.mxu0 0.0
    %1674 = vmatpush1.msra.mxu0 0.0
    %1675 = vmatprep.subr.mxu0 0.0
    %1676 = vmatpush1.msra.mxu0 0.0
    %1677 = vmatprep.subr.mxu0 0.0
    %1678 = vmatpush1.msra.mxu0 0.0
    %1679 = vmatprep.subr.mxu0 0.0
    %1680 = vmatpush1.msra.mxu0 0.0
    %1681 = vmatprep.subr.mxu0 0.0
    %1682 = vmatpush1.msra.mxu0 0.0
    %1683 = vmatprep.subr.mxu0 0.0
    %1684 = vmatpush1.msra.mxu0 0.0
    %1685 = vmatprep.subr.mxu0 0.0
    %1686 = vmatpush1.msra.mxu0 0.0
    %1687 = vmatprep.subr.mxu0 0.0
    %1688 = vmatpush1.msra.mxu0 0.0
    %1689 = vmatprep.subr.mxu0 0.0
    %1690 = vmatpush1.msra.mxu0 0.0
    %1691 = vmatprep.subr.mxu0 0.0
    %1692 = vmatpush1.msra.mxu0 0.0
    %1693 = vmatprep.subr.mxu0 0.0
    %1694 = vmatpush1.msra.mxu0 0.0
    %1695 = vmatprep.subr.mxu0 0.0
    %1696 = vmatpush1.msra.mxu0 0.0
    %1697 = vmatprep.subr.mxu0 0.0
    %1698 = vmatpush1.msra.mxu0 0.0
    %1699 = vmatprep.subr.mxu0 0.0
    %1700 = vmatpush1.msra.mxu0 0.0
    %1701 = vmatprep.subr.mxu0 0.0
    %1702 = vmatpush1.msra.mxu0 0.0
    %1703 = vmatprep.subr.mxu0 0.0
    %1704 = vmatpush1.msra.mxu0 0.0
    %1705 = vmatprep.subr.mxu0 0.0
    %1706 = vmatpush1.msra.mxu0 0.0
    %1707 = vmatprep.mubr.f32.mxu0 0.0
    %1708 = vmatmul.mubr.f32.gmra.mrb[0].mxu0 %v1641
    %v1709 = vpop.f32.mrb[0].mxu0
    %v1710 = vadd.f32 0.0, %v1709
    %v1711 = vpop.f32.mrb[0].mxu0
    %1712 = vdwg.mxu0
    %v1713 = vadd.f32 %v1639, %v1710
    %v1714 = vld [vmem:[%s270] sm:$0xf]
    %1715 = vmatprep.subr.mxu0 0.0
    %1716 = vmatpush1.msra.mxu0 %v977
    %1717 = vmatprep.subr.mxu0 0.0
    %1718 = vmatpush1.msra.mxu0 %v978
    %1719 = vmatprep.subr.mxu0 0.0
    %1720 = vmatpush1.msra.mxu0 %v979
    %1721 = vmatprep.subr.mxu0 0.0
    %1722 = vmatpush1.msra.mxu0 %v980
    %1723 = vmatprep.subr.mxu0 0.0
    %1724 = vmatpush1.msra.mxu0 0.0
    %1725 = vmatprep.subr.mxu0 0.0
    %1726 = vmatpush1.msra.mxu0 0.0
    %1727 = vmatprep.subr.mxu0 0.0
    %1728 = vmatpush1.msra.mxu0 0.0
    %1729 = vmatprep.subr.mxu0 0.0
    %1730 = vmatpush1.msra.mxu0 0.0
    %1731 = vmatprep.subr.mxu0 0.0
    %1732 = vmatpush1.msra.mxu0 0.0
    %1733 = vmatprep.subr.mxu0 0.0
    %1734 = vmatpush1.msra.mxu0 0.0
    %1735 = vmatprep.subr.mxu0 0.0
    %1736 = vmatpush1.msra.mxu0 0.0
    %1737 = vmatprep.subr.mxu0 0.0
    %1738 = vmatpush1.msra.mxu0 0.0
    %1739 = vmatprep.subr.mxu0 0.0
    %1740 = vmatpush1.msra.mxu0 0.0
    %1741 = vmatprep.subr.mxu0 0.0
    %1742 = vmatpush1.msra.mxu0 0.0
    %1743 = vmatprep.subr.mxu0 0.0
    %1744 = vmatpush1.msra.mxu0 0.0
    %1745 = vmatprep.subr.mxu0 0.0
    %1746 = vmatpush1.msra.mxu0 0.0
    %1747 = vmatprep.subr.mxu0 0.0
    %1748 = vmatpush1.msra.mxu0 0.0
    %1749 = vmatprep.subr.mxu0 0.0
    %1750 = vmatpush1.msra.mxu0 0.0
    %1751 = vmatprep.subr.mxu0 0.0
    %1752 = vmatpush1.msra.mxu0 0.0
    %1753 = vmatprep.subr.mxu0 0.0
    %1754 = vmatpush1.msra.mxu0 0.0
    %1755 = vmatprep.subr.mxu0 0.0
    %1756 = vmatpush1.msra.mxu0 0.0
    %1757 = vmatprep.subr.mxu0 0.0
    %1758 = vmatpush1.msra.mxu0 0.0
    %1759 = vmatprep.subr.mxu0 0.0
    %1760 = vmatpush1.msra.mxu0 0.0
    %1761 = vmatprep.subr.mxu0 0.0
    %1762 = vmatpush1.msra.mxu0 0.0
    %1763 = vmatprep.subr.mxu0 0.0
    %1764 = vmatpush1.msra.mxu0 0.0
    %1765 = vmatprep.subr.mxu0 0.0
    %1766 = vmatpush1.msra.mxu0 0.0
    %1767 = vmatprep.subr.mxu0 0.0
    %1768 = vmatpush1.msra.mxu0 0.0
    %1769 = vmatprep.subr.mxu0 0.0
    %1770 = vmatpush1.msra.mxu0 0.0
    %1771 = vmatprep.subr.mxu0 0.0
    %1772 = vmatpush1.msra.mxu0 0.0
    %1773 = vmatprep.subr.mxu0 0.0
    %1774 = vmatpush1.msra.mxu0 0.0
    %1775 = vmatprep.subr.mxu0 0.0
    %1776 = vmatpush1.msra.mxu0 0.0
    %1777 = vmatprep.subr.mxu0 0.0
    %1778 = vmatpush1.msra.mxu0 0.0
    %1779 = vmatprep.mubr.f32.mxu0 0.0
    %1780 = vmatmul.mubr.f32.gmra.mrb[0].mxu0 %v1641
    %v1781 = vpop.f32.mrb[0].mxu0
    %v1782 = vadd.f32 0.0, %v1781
    %v1783 = vpop.f32.mrb[0].mxu0
    %1784 = vdwg.mxu0
    %v1785 = vadd.f32 %v1714, %v1782
    %v1786 = vld [vmem:[%s275] sm:$0xf]
    %1787 = vmatprep.subr.mxu0 0.0
    %1788 = vmatpush1.msra.mxu0 %v982
    %1789 = vmatprep.subr.mxu0 0.0
    %1790 = vmatpush1.msra.mxu0 %v983
    %1791 = vmatprep.subr.mxu0 0.0
    %1792 = vmatpush1.msra.mxu0 %v984
    %1793 = vmatprep.subr.mxu0 0.0
    %1794 = vmatpush1.msra.mxu0 %v985
    %1795 = vmatprep.subr.mxu0 0.0
    %1796 = vmatpush1.msra.mxu0 0.0
    %1797 = vmatprep.subr.mxu0 0.0
    %1798 = vmatpush1.msra.mxu0 0.0
    %1799 = vmatprep.subr.mxu0 0.0
    %1800 = vmatpush1.msra.mxu0 0.0
    %1801 = vmatprep.subr.mxu0 0.0
    %1802 = vmatpush1.msra.mxu0 0.0
    %1803 = vmatprep.subr.mxu0 0.0
    %1804 = vmatpush1.msra.mxu0 0.0
    %1805 = vmatprep.subr.mxu0 0.0
    %1806 = vmatpush1.msra.mxu0 0.0
    %1807 = vmatprep.subr.mxu0 0.0
    %1808 = vmatpush1.msra.mxu0 0.0
    %1809 = vmatprep.subr.mxu0 0.0
    %1810 = vmatpush1.msra.mxu0 0.0
    %1811 = vmatprep.subr.mxu0 0.0
    %1812 = vmatpush1.msra.mxu0 0.0
    %1813 = vmatprep.subr.mxu0 0.0
    %1814 = vmatpush1.msra.mxu0 0.0
    %1815 = vmatprep.subr.mxu0 0.0
    %1816 = vmatpush1.msra.mxu0 0.0
    %1817 = vmatprep.subr.mxu0 0.0
    %1818 = vmatpush1.msra.mxu0 0.0
    %1819 = vmatprep.subr.mxu0 0.0
    %1820 = vmatpush1.msra.mxu0 0.0
    %1821 = vmatprep.subr.mxu0 0.0
    %1822 = vmatpush1.msra.mxu0 0.0
    %1823 = vmatprep.subr.mxu0 0.0
    %1824 = vmatpush1.msra.mxu0 0.0
    %1825 = vmatprep.subr.mxu0 0.0
    %1826 = vmatpush1.msra.mxu0 0.0
    %1827 = vmatprep.subr.mxu0 0.0
    %1828 = vmatpush1.msra.mxu0 0.0
    %1829 = vmatprep.subr.mxu0 0.0
    %1830 = vmatpush1.msra.mxu0 0.0
    %1831 = vmatprep.subr.mxu0 0.0
    %1832 = vmatpush1.msra.mxu0 0.0
    %1833 = vmatprep.subr.mxu0 0.0
    %1834 = vmatpush1.msra.mxu0 0.0
    %1835 = vmatprep.subr.mxu0 0.0
    %1836 = vmatpush1.msra.mxu0 0.0
    %1837 = vmatprep.subr.mxu0 0.0
    %1838 = vmatpush1.msra.mxu0 0.0
    %1839 = vmatprep.subr.mxu0 0.0
    %1840 = vmatpush1.msra.mxu0 0.0
    %1841 = vmatprep.subr.mxu0 0.0
    %1842 = vmatpush1.msra.mxu0 0.0
    %1843 = vmatprep.subr.mxu0 0.0
    %1844 = vmatpush1.msra.mxu0 0.0
    %1845 = vmatprep.subr.mxu0 0.0
    %1846 = vmatpush1.msra.mxu0 0.0
    %1847 = vmatprep.subr.mxu0 0.0
    %1848 = vmatpush1.msra.mxu0 0.0
    %1849 = vmatprep.subr.mxu0 0.0
    %1850 = vmatpush1.msra.mxu0 0.0
    %1851 = vmatprep.mubr.f32.mxu0 0.0
    %1852 = vmatmul.mubr.f32.gmra.mrb[0].mxu0 %v1641
    %v1853 = vpop.f32.mrb[0].mxu0
    %v1854 = vadd.f32 0.0, %v1853
    %v1855 = vpop.f32.mrb[0].mxu0
    %1856 = vdwg.mxu0
    %v1857 = vadd.f32 %v1786, %v1854
    %v1858 = vld [vmem:[%s280] sm:$0xf]
    %1859 = vmatprep.subr.mxu0 0.0
    %1860 = vmatpush1.msra.mxu0 %v987
    %1861 = vmatprep.subr.mxu0 0.0
    %1862 = vmatpush1.msra.mxu0 %v988
    %1863 = vmatprep.subr.mxu0 0.0
    %1864 = vmatpush1.msra.mxu0 %v989
    %1865 = vmatprep.subr.mxu0 0.0
    %1866 = vmatpush1.msra.mxu0 %v990
    %1867 = vmatprep.subr.mxu0 0.0
    %1868 = vmatpush1.msra.mxu0 0.0
    %1869 = vmatprep.subr.mxu0 0.0
    %1870 = vmatpush1.msra.mxu0 0.0
    %1871 = vmatprep.subr.mxu0 0.0
    %1872 = vmatpush1.msra.mxu0 0.0
    %1873 = vmatprep.subr.mxu0 0.0
    %1874 = vmatpush1.msra.mxu0 0.0
    %1875 = vmatprep.subr.mxu0 0.0
    %1876 = vmatpush1.msra.mxu0 0.0
    %1877 = vmatprep.subr.mxu0 0.0
    %1878 = vmatpush1.msra.mxu0 0.0
    %1879 = vmatprep.subr.mxu0 0.0
    %1880 = vmatpush1.msra.mxu0 0.0
    %1881 = vmatprep.subr.mxu0 0.0
    %1882 = vmatpush1.msra.mxu0 0.0
    %1883 = vmatprep.subr.mxu0 0.0
    %1884 = vmatpush1.msra.mxu0 0.0
    %1885 = vmatprep.subr.mxu0 0.0
    %1886 = vmatpush1.msra.mxu0 0.0
    %1887 = vmatprep.subr.mxu0 0.0
    %1888 = vmatpush1.msra.mxu0 0.0
    %1889 = vmatprep.subr.mxu0 0.0
    %1890 = vmatpush1.msra.mxu0 0.0
    %1891 = vmatprep.subr.mxu0 0.0
    %1892 = vmatpush1.msra.mxu0 0.0
    %1893 = vmatprep.subr.mxu0 0.0
    %1894 = vmatpush1.msra.mxu0 0.0
    %1895 = vmatprep.subr.mxu0 0.0
    %1896 = vmatpush1.msra.mxu0 0.0
    %1897 = vmatprep.subr.mxu0 0.0
    %1898 = vmatpush1.msra.mxu0 0.0
    %1899 = vmatprep.subr.mxu0 0.0
    %1900 = vmatpush1.msra.mxu0 0.0
    %1901 = vmatprep.subr.mxu0 0.0
    %1902 = vmatpush1.msra.mxu0 0.0
    %1903 = vmatprep.subr.mxu0 0.0
    %1904 = vmatpush1.msra.mxu0 0.0
    %1905 = vmatprep.subr.mxu0 0.0
    %1906 = vmatpush1.msra.mxu0 0.0
    %1907 = vmatprep.subr.mxu0 0.0
    %1908 = vmatpush1.msra.mxu0 0.0
    %1909 = vmatprep.subr.mxu0 0.0
    %1910 = vmatpush1.msra.mxu0 0.0
    %1911 = vmatprep.subr.mxu0 0.0
    %1912 = vmatpush1.msra.mxu0 0.0
    %1913 = vmatprep.subr.mxu0 0.0
    %1914 = vmatpush1.msra.mxu0 0.0
    %1915 = vmatprep.subr.mxu0 0.0
    %1916 = vmatpush1.msra.mxu0 0.0
    %1917 = vmatprep.subr.mxu0 0.0
    %1918 = vmatpush1.msra.mxu0 0.0
    %1919 = vmatprep.subr.mxu0 0.0
    %1920 = vmatpush1.msra.mxu0 0.0
    %1921 = vmatprep.subr.mxu0 0.0
    %1922 = vmatpush1.msra.mxu0 0.0
    %1923 = vmatprep.mubr.f32.mxu0 0.0
    %1924 = vmatmul.mubr.f32.gmra.mrb[0].mxu0 %v1641
    %v1925 = vpop.f32.mrb[0].mxu0
    %v1926 = vadd.f32 0.0, %v1925
    %v1927 = vpop.f32.mrb[0].mxu0
    %1928 = vdwg.mxu0
    %v1929 = vadd.f32 %v1858, %v1926
    %v1930 = vld [vmem:[%s842] sm:$0xf]
    %v1932 = vsel %vm1012, %v1638, 0
    %1934 = vmatprep.subr.mxu0 0.0
    %1935 = vmatpush1.msra.mxu0 %v992
    %1936 = vmatprep.subr.mxu0 0.0
    %1937 = vmatpush1.msra.mxu0 %v993
    %1938 = vmatprep.subr.mxu0 0.0
    %1939 = vmatpush1.msra.mxu0 %v994
    %1940 = vmatprep.subr.mxu0 0.0
    %1941 = vmatpush1.msra.mxu0 %v995
    %1942 = vmatprep.subr.mxu0 0.0
    %1943 = vmatpush1.msra.mxu0 0.0
    %1944 = vmatprep.subr.mxu0 0.0
    %1945 = vmatpush1.msra.mxu0 0.0
    %1946 = vmatprep.subr.mxu0 0.0
    %1947 = vmatpush1.msra.mxu0 0.0
    %1948 = vmatprep.subr.mxu0 0.0
    %1949 = vmatpush1.msra.mxu0 0.0
    %1950 = vmatprep.subr.mxu0 0.0
    %1951 = vmatpush1.msra.mxu0 0.0
    %1952 = vmatprep.subr.mxu0 0.0
    %1953 = vmatpush1.msra.mxu0 0.0
    %1954 = vmatprep.subr.mxu0 0.0
    %1955 = vmatpush1.msra.mxu0 0.0
    %1956 = vmatprep.subr.mxu0 0.0
    %1957 = vmatpush1.msra.mxu0 0.0
    %1958 = vmatprep.subr.mxu0 0.0
    %1959 = vmatpush1.msra.mxu0 0.0
    %1960 = vmatprep.subr.mxu0 0.0
    %1961 = vmatpush1.msra.mxu0 0.0
    %1962 = vmatprep.subr.mxu0 0.0
    %1963 = vmatpush1.msra.mxu0 0.0
    %1964 = vmatprep.subr.mxu0 0.0
    %1965 = vmatpush1.msra.mxu0 0.0
    %1966 = vmatprep.subr.mxu0 0.0
    %1967 = vmatpush1.msra.mxu0 0.0
    %1968 = vmatprep.subr.mxu0 0.0
    %1969 = vmatpush1.msra.mxu0 0.0
    %1970 = vmatprep.subr.mxu0 0.0
    %1971 = vmatpush1.msra.mxu0 0.0
    %1972 = vmatprep.subr.mxu0 0.0
    %1973 = vmatpush1.msra.mxu0 0.0
    %1974 = vmatprep.subr.mxu0 0.0
    %1975 = vmatpush1.msra.mxu0 0.0
    %1976 = vmatprep.subr.mxu0 0.0
    %1977 = vmatpush1.msra.mxu0 0.0
    %1978 = vmatprep.subr.mxu0 0.0
    %1979 = vmatpush1.msra.mxu0 0.0
    %1980 = vmatprep.subr.mxu0 0.0
    %1981 = vmatpush1.msra.mxu0 0.0
    %1982 = vmatprep.subr.mxu0 0.0
    %1983 = vmatpush1.msra.mxu0 0.0
    %1984 = vmatprep.subr.mxu0 0.0
    %1985 = vmatpush1.msra.mxu0 0.0
    %1986 = vmatprep.subr.mxu0 0.0
    %1987 = vmatpush1.msra.mxu0 0.0
    %1988 = vmatprep.subr.mxu0 0.0
    %1989 = vmatpush1.msra.mxu0 0.0
    %1990 = vmatprep.subr.mxu0 0.0
    %1991 = vmatpush1.msra.mxu0 0.0
    %1992 = vmatprep.subr.mxu0 0.0
    %1993 = vmatpush1.msra.mxu0 0.0
    %1994 = vmatprep.subr.mxu0 0.0
    %1995 = vmatpush1.msra.mxu0 0.0
    %1996 = vmatprep.subr.mxu0 0.0
    %1997 = vmatpush1.msra.mxu0 0.0
    %1998 = vmatprep.mubr.f32.mxu0 0.0
    %1999 = vmatmul.mubr.f32.gmra.mrb[0].mxu0 %v1932
    %v2000 = vpop.f32.mrb[0].mxu0
    %v2001 = vadd.f32 0.0, %v2000
    %v2002 = vpop.f32.mrb[0].mxu0
    %2003 = vdwg.mxu0
    %v2004 = vadd.f32 %v1930, %v2001
    %v2005 = vld [vmem:[%s848] sm:$0xf]
    %2006 = vmatprep.subr.mxu0 0.0
    %2007 = vmatpush1.msra.mxu0 %v997
    %2008 = vmatprep.subr.mxu0 0.0
    %2009 = vmatpush1.msra.mxu0 %v998
    %2010 = vmatprep.subr.mxu0 0.0
    %2011 = vmatpush1.msra.mxu0 %v999
    %2012 = vmatprep.subr.mxu0 0.0
    %2013 = vmatpush1.msra.mxu0 %v1000
    %2014 = vmatprep.subr.mxu0 0.0
    %2015 = vmatpush1.msra.mxu0 0.0
    %2016 = vmatprep.subr.mxu0 0.0
    %2017 = vmatpush1.msra.mxu0 0.0
    %2018 = vmatprep.subr.mxu0 0.0
    %2019 = vmatpush1.msra.mxu0 0.0
    %2020 = vmatprep.subr.mxu0 0.0
    %2021 = vmatpush1.msra.mxu0 0.0
    %2022 = vmatprep.subr.mxu0 0.0
    %2023 = vmatpush1.msra.mxu0 0.0
    %2024 = vmatprep.subr.mxu0 0.0
    %2025 = vmatpush1.msra.mxu0 0.0
    %2026 = vmatprep.subr.mxu0 0.0
    %2027 = vmatpush1.msra.mxu0 0.0
    %2028 = vmatprep.subr.mxu0 0.0
    %2029 = vmatpush1.msra.mxu0 0.0
    %2030 = vmatprep.subr.mxu0 0.0
    %2031 = vmatpush1.msra.mxu0 0.0
    %2032 = vmatprep.subr.mxu0 0.0
    %2033 = vmatpush1.msra.mxu0 0.0
    %2034 = vmatprep.subr.mxu0 0.0
    %2035 = vmatpush1.msra.mxu0 0.0
    %2036 = vmatprep.subr.mxu0 0.0
    %2037 = vmatpush1.msra.mxu0 0.0
    %2038 = vmatprep.subr.mxu0 0.0
    %2039 = vmatpush1.msra.mxu0 0.0
    %2040 = vmatprep.subr.mxu0 0.0
    %2041 = vmatpush1.msra.mxu0 0.0
    %2042 = vmatprep.subr.mxu0 0.0
    %2043 = vmatpush1.msra.mxu0 0.0
    %2044 = vmatprep.subr.mxu0 0.0
    %2045 = vmatpush1.msra.mxu0 0.0
    %2046 = vmatprep.subr.mxu0 0.0
    %2047 = vmatpush1.msra.mxu0 0.0
    %2048 = vmatprep.subr.mxu0 0.0
    %2049 = vmatpush1.msra.mxu0 0.0
    %2050 = vmatprep.subr.mxu0 0.0
    %2051 = vmatpush1.msra.mxu0 0.0
    %2052 = vmatprep.subr.mxu0 0.0
    %2053 = vmatpush1.msra.mxu0 0.0
    %2054 = vmatprep.subr.mxu0 0.0
    %2055 = vmatpush1.msra.mxu0 0.0
    %2056 = vmatprep.subr.mxu0 0.0
    %2057 = vmatpush1.msra.mxu0 0.0
    %2058 = vmatprep.subr.mxu0 0.0
    %2059 = vmatpush1.msra.mxu0 0.0
    %2060 = vmatprep.subr.mxu0 0.0
    %2061 = vmatpush1.msra.mxu0 0.0
    %2062 = vmatprep.subr.mxu0 0.0
    %2063 = vmatpush1.msra.mxu0 0.0
    %2064 = vmatprep.subr.mxu0 0.0
    %2065 = vmatpush1.msra.mxu0 0.0
    %2066 = vmatprep.subr.mxu0 0.0
    %2067 = vmatpush1.msra.mxu0 0.0
    %2068 = vmatprep.subr.mxu0 0.0
    %2069 = vmatpush1.msra.mxu0 0.0
    %2070 = vmatprep.mubr.f32.mxu0 0.0
    %2071 = vmatmul.mubr.f32.gmra.mrb[0].mxu0 %v1932
    %v2072 = vpop.f32.mrb[0].mxu0
    %v2073 = vadd.f32 0.0, %v2072
    %v2074 = vpop.f32.mrb[0].mxu0
    %2075 = vdwg.mxu0
    %v2076 = vadd.f32 %v2005, %v2073
    %v2077 = vld [vmem:[%s853] sm:$0xf]
    %2078 = vmatprep.subr.mxu0 0.0
    %2079 = vmatpush1.msra.mxu0 %v1002
    %2080 = vmatprep.subr.mxu0 0.0
    %2081 = vmatpush1.msra.mxu0 %v1003
    %2082 = vmatprep.subr.mxu0 0.0
    %2083 = vmatpush1.msra.mxu0 %v1004
    %2084 = vmatprep.subr.mxu0 0.0
    %2085 = vmatpush1.msra.mxu0 %v1005
    %2086 = vmatprep.subr.mxu0 0.0
    %2087 = vmatpush1.msra.mxu0 0.0
    %2088 = vmatprep.subr.mxu0 0.0
    %2089 = vmatpush1.msra.mxu0 0.0
    %2090 = vmatprep.subr.mxu0 0.0
    %2091 = vmatpush1.msra.mxu0 0.0
    %2092 = vmatprep.subr.mxu0 0.0
    %2093 = vmatpush1.msra.mxu0 0.0
    %2094 = vmatprep.subr.mxu0 0.0
    %2095 = vmatpush1.msra.mxu0 0.0
    %2096 = vmatprep.subr.mxu0 0.0
    %2097 = vmatpush1.msra.mxu0 0.0
    %2098 = vmatprep.subr.mxu0 0.0
    %2099 = vmatpush1.msra.mxu0 0.0
    %2100 = vmatprep.subr.mxu0 0.0
    %2101 = vmatpush1.msra.mxu0 0.0
    %2102 = vmatprep.subr.mxu0 0.0
    %2103 = vmatpush1.msra.mxu0 0.0
    %2104 = vmatprep.subr.mxu0 0.0
    %2105 = vmatpush1.msra.mxu0 0.0
    %2106 = vmatprep.subr.mxu0 0.0
    %2107 = vmatpush1.msra.mxu0 0.0
    %2108 = vmatprep.subr.mxu0 0.0
    %2109 = vmatpush1.msra.mxu0 0.0
    %2110 = vmatprep.subr.mxu0 0.0
    %2111 = vmatpush1.msra.mxu0 0.0
    %2112 = vmatprep.subr.mxu0 0.0
    %2113 = vmatpush1.msra.mxu0 0.0
    %2114 = vmatprep.subr.mxu0 0.0
    %2115 = vmatpush1.msra.mxu0 0.0
    %2116 = vmatprep.subr.mxu0 0.0
    %2117 = vmatpush1.msra.mxu0 0.0
    %2118 = vmatprep.subr.mxu0 0.0
    %2119 = vmatpush1.msra.mxu0 0.0
    %2120 = vmatprep.subr.mxu0 0.0
    %2121 = vmatpush1.msra.mxu0 0.0
    %2122 = vmatprep.subr.mxu0 0.0
    %2123 = vmatpush1.msra.mxu0 0.0
    %2124 = vmatprep.subr.mxu0 0.0
    %2125 = vmatpush1.msra.mxu0 0.0
    %2126 = vmatprep.subr.mxu0 0.0
    %2127 = vmatpush1.msra.mxu0 0.0
    %2128 = vmatprep.subr.mxu0 0.0
    %2129 = vmatpush1.msra.mxu0 0.0
    %2130 = vmatprep.subr.mxu0 0.0
    %2131 = vmatpush1.msra.mxu0 0.0
    %2132 = vmatprep.subr.mxu0 0.0
    %2133 = vmatpush1.msra.mxu0 0.0
    %2134 = vmatprep.subr.mxu0 0.0
    %2135 = vmatpush1.msra.mxu0 0.0
    %2136 = vmatprep.subr.mxu0 0.0
    %2137 = vmatpush1.msra.mxu0 0.0
    %2138 = vmatprep.subr.mxu0 0.0
    %2139 = vmatpush1.msra.mxu0 0.0
    %2140 = vmatprep.subr.mxu0 0.0
    %2141 = vmatpush1.msra.mxu0 0.0
    %2142 = vmatprep.mubr.f32.mxu0 0.0
    %2143 = vmatmul.mubr.f32.gmra.mrb[0].mxu0 %v1932
    %v2144 = vpop.f32.mrb[0].mxu0
    %v2145 = vadd.f32 0.0, %v2144
    %v2146 = vpop.f32.mrb[0].mxu0
    %2147 = vdwg.mxu0
    %v2148 = vadd.f32 %v2077, %v2145
    %v2149 = vld [vmem:[%s858] sm:$0xf]
    %2150 = vmatprep.subr.mxu0 0.0
    %2151 = vmatpush1.msra.mxu0 %v1007
    %2152 = vmatprep.subr.mxu0 0.0
    %2153 = vmatpush1.msra.mxu0 %v1008
    %2154 = vmatprep.subr.mxu0 0.0
    %2155 = vmatpush1.msra.mxu0 %v1009
    %2156 = vmatprep.subr.mxu0 0.0
    %2157 = vmatpush1.msra.mxu0 %v1010
    %2158 = vmatprep.subr.mxu0 0.0
    %2159 = vmatpush1.msra.mxu0 0.0
    %2160 = vmatprep.subr.mxu0 0.0
    %2161 = vmatpush1.msra.mxu0 0.0
    %2162 = vmatprep.subr.mxu0 0.0
    %2163 = vmatpush1.msra.mxu0 0.0
    %2164 = vmatprep.subr.mxu0 0.0
    %2165 = vmatpush1.msra.mxu0 0.0
    %2166 = vmatprep.subr.mxu0 0.0
    %2167 = vmatpush1.msra.mxu0 0.0
    %2168 = vmatprep.subr.mxu0 0.0
    %2169 = vmatpush1.msra.mxu0 0.0
    %2170 = vmatprep.subr.mxu0 0.0
    %2171 = vmatpush1.msra.mxu0 0.0
    %2172 = vmatprep.subr.mxu0 0.0
    %2173 = vmatpush1.msra.mxu0 0.0
    %2174 = vmatprep.subr.mxu0 0.0
    %2175 = vmatpush1.msra.mxu0 0.0
    %2176 = vmatprep.subr.mxu0 0.0
    %2177 = vmatpush1.msra.mxu0 0.0
    %2178 = vmatprep.subr.mxu0 0.0
    %2179 = vmatpush1.msra.mxu0 0.0
    %2180 = vmatprep.subr.mxu0 0.0
    %2181 = vmatpush1.msra.mxu0 0.0
    %2182 = vmatprep.subr.mxu0 0.0
    %2183 = vmatpush1.msra.mxu0 0.0
    %2184 = vmatprep.subr.mxu0 0.0
    %2185 = vmatpush1.msra.mxu0 0.0
    %2186 = vmatprep.subr.mxu0 0.0
    %2187 = vmatpush1.msra.mxu0 0.0
    %2188 = vmatprep.subr.mxu0 0.0
    %2189 = vmatpush1.msra.mxu0 0.0
    %2190 = vmatprep.subr.mxu0 0.0
    %2191 = vmatpush1.msra.mxu0 0.0
    %2192 = vmatprep.subr.mxu0 0.0
    %2193 = vmatpush1.msra.mxu0 0.0
    %2194 = vmatprep.subr.mxu0 0.0
    %2195 = vmatpush1.msra.mxu0 0.0
    %2196 = vmatprep.subr.mxu0 0.0
    %2197 = vmatpush1.msra.mxu0 0.0
    %2198 = vmatprep.subr.mxu0 0.0
    %2199 = vmatpush1.msra.mxu0 0.0
    %2200 = vmatprep.subr.mxu0 0.0
    %2201 = vmatpush1.msra.mxu0 0.0
    %2202 = vmatprep.subr.mxu0 0.0
    %2203 = vmatpush1.msra.mxu0 0.0
    %2204 = vmatprep.subr.mxu0 0.0
    %2205 = vmatpush1.msra.mxu0 0.0
    %2206 = vmatprep.subr.mxu0 0.0
    %2207 = vmatpush1.msra.mxu0 0.0
    %2208 = vmatprep.subr.mxu0 0.0
    %2209 = vmatpush1.msra.mxu0 0.0
    %2210 = vmatprep.subr.mxu0 0.0
    %2211 = vmatpush1.msra.mxu0 0.0
    %2212 = vmatprep.subr.mxu0 0.0
    %2213 = vmatpush1.msra.mxu0 0.0
    %2214 = vmatprep.mubr.f32.mxu0 0.0
    %2215 = vmatmul.mubr.f32.gmra.mrb[0].mxu0 %v1932
    %v2216 = vpop.f32.mrb[0].mxu0
    %v2217 = vadd.f32 0.0, %v2216
    %v2218 = vpop.f32.mrb[0].mxu0
    %2219 = vdwg.mxu0
    %v2220 = vadd.f32 %v2149, %v2217
    %v2221 = vxor.u32 %v1785, 2147483648
    %v2222 = vmul.f32 %v2221, 1.442695
    %v2223 = vpow.pop %v2222
    %v2224 = vadd.f32 %v2223, 1.0
    %v2225 = vrcp.pop %v2224
    %v2226 = vmul.f32 1.0, %v2225
    %v2227 = vmul.f32 %v2226, %v1606
    %v2228 = vxor.u32 %v1713, 2147483648
    %v2229 = vmul.f32 %v2228, 1.442695
    %v2230 = vpow.pop %v2229
    %v2231 = vadd.f32 %v2230, 1.0
    %v2232 = vrcp.pop %v2231
    %v2233 = vmul.f32 1.0, %v2232
    %v2234 = vtanh.pop %v1857
    %v2235 = vmul.f32 %v2233, %v2234
    %v2236 = vadd.f32 %v2227, %v2235
    %v2237 = vxor.u32 %v1929, 2147483648
    %v2238 = vmul.f32 %v2237, 1.442695
    %v2239 = vpow.pop %v2238
    %v2240 = vadd.f32 %v2239, 1.0
    %v2241 = vrcp.pop %v2240
    %v2242 = vmul.f32 1.0, %v2241
    %v2243 = vtanh.pop %v2236
    %v2244 = vmul.f32 %v2242, %v2243
    %v2245 = vxor.u32 %v2076, 2147483648
    %v2246 = vmul.f32 %v2245, 1.442695
    %v2247 = vpow.pop %v2246
    %v2248 = vadd.f32 %v2247, 1.0
    %v2249 = vrcp.pop %v2248
    %v2250 = vmul.f32 1.0, %v2249
    %v2251 = vmul.f32 %v2250, %v1630
    %v2252 = vxor.u32 %v2004, 2147483648
    %v2253 = vmul.f32 %v2252, 1.442695
    %v2254 = vpow.pop %v2253
    %v2255 = vadd.f32 %v2254, 1.0
    %v2256 = vrcp.pop %v2255
    %v2257 = vmul.f32 1.0, %v2256
    %v2258 = vtanh.pop %v2148
    %v2259 = vmul.f32 %v2257, %v2258
    %v2260 = vadd.f32 %v2251, %v2259
    %v2261 = vxor.u32 %v2220, 2147483648
    %v2262 = vmul.f32 %v2261, 1.442695
    %v2263 = vpow.pop %v2262
    %v2264 = vadd.f32 %v2263, 1.0
    %v2265 = vrcp.pop %v2264
    %v2266 = vmul.f32 1.0, %v2265
    %v2267 = vtanh.pop %v2260
    %v2268 = vmul.f32 %v2266, %v2267
    %v2269 = vld [vmem:[%s376] sm:$0xf]
    %v2271 = vsel %vm1012, %v2244, 0
    %2273 = vmatprep.subr.mxu0 0.0
    %2274 = vmatpush1.msra.mxu0 %v972
    %2275 = vmatprep.subr.mxu0 0.0
    %2276 = vmatpush1.msra.mxu0 %v973
    %2277 = vmatprep.subr.mxu0 0.0
    %2278 = vmatpush1.msra.mxu0 %v974
    %2279 = vmatprep.subr.mxu0 0.0
    %2280 = vmatpush1.msra.mxu0 %v975
    %2281 = vmatprep.subr.mxu0 0.0
    %2282 = vmatpush1.msra.mxu0 0.0
    %2283 = vmatprep.subr.mxu0 0.0
    %2284 = vmatpush1.msra.mxu0 0.0
    %2285 = vmatprep.subr.mxu0 0.0
    %2286 = vmatpush1.msra.mxu0 0.0
    %2287 = vmatprep.subr.mxu0 0.0
    %2288 = vmatpush1.msra.mxu0 0.0
    %2289 = vmatprep.subr.mxu0 0.0
    %2290 = vmatpush1.msra.mxu0 0.0
    %2291 = vmatprep.subr.mxu0 0.0
    %2292 = vmatpush1.msra.mxu0 0.0
    %2293 = vmatprep.subr.mxu0 0.0
    %2294 = vmatpush1.msra.mxu0 0.0
    %2295 = vmatprep.subr.mxu0 0.0
    %2296 = vmatpush1.msra.mxu0 0.0
    %2297 = vmatprep.subr.mxu0 0.0
    %2298 = vmatpush1.msra.mxu0 0.0
    %2299 = vmatprep.subr.mxu0 0.0
    %2300 = vmatpush1.msra.mxu0 0.0
    %2301 = vmatprep.subr.mxu0 0.0
    %2302 = vmatpush1.msra.mxu0 0.0
    %2303 = vmatprep.subr.mxu0 0.0
    %2304 = vmatpush1.msra.mxu0 0.0
    %2305 = vmatprep.subr.mxu0 0.0
    %2306 = vmatpush1.msra.mxu0 0.0
    %2307 = vmatprep.subr.mxu0 0.0
    %2308 = vmatpush1.msra.mxu0 0.0
    %2309 = vmatprep.subr.mxu0 0.0
    %2310 = vmatpush1.msra.mxu0 0.0
    %2311 = vmatprep.subr.mxu0 0.0
    %2312 = vmatpush1.msra.mxu0 0.0
    %2313 = vmatprep.subr.mxu0 0.0
    %2314 = vmatpush1.msra.mxu0 0.0
    %2315 = vmatprep.subr.mxu0 0.0
    %2316 = vmatpush1.msra.mxu0 0.0
    %2317 = vmatprep.subr.mxu0 0.0
    %2318 = vmatpush1.msra.mxu0 0.0
    %2319 = vmatprep.subr.mxu0 0.0
    %2320 = vmatpush1.msra.mxu0 0.0
    %2321 = vmatprep.subr.mxu0 0.0
    %2322 = vmatpush1.msra.mxu0 0.0
    %2323 = vmatprep.subr.mxu0 0.0
    %2324 = vmatpush1.msra.mxu0 0.0
    %2325 = vmatprep.subr.mxu0 0.0
    %2326 = vmatpush1.msra.mxu0 0.0
    %2327 = vmatprep.subr.mxu0 0.0
    %2328 = vmatpush1.msra.mxu0 0.0
    %2329 = vmatprep.subr.mxu0 0.0
    %2330 = vmatpush1.msra.mxu0 0.0
    %2331 = vmatprep.subr.mxu0 0.0
    %2332 = vmatpush1.msra.mxu0 0.0
    %2333 = vmatprep.subr.mxu0 0.0
    %2334 = vmatpush1.msra.mxu0 0.0
    %2335 = vmatprep.subr.mxu0 0.0
    %2336 = vmatpush1.msra.mxu0 0.0
    %2337 = vmatprep.mubr.f32.mxu0 0.0
    %2338 = vmatmul.mubr.f32.gmra.mrb[0].mxu0 %v2271
    %v2339 = vpop.f32.mrb[0].mxu0
    %v2340 = vadd.f32 0.0, %v2339
    %v2341 = vpop.f32.mrb[0].mxu0
    %2342 = vdwg.mxu0
    %v2343 = vadd.f32 %v2269, %v2340
    %v2344 = vld [vmem:[%s382] sm:$0xf]
    %2345 = vmatprep.subr.mxu0 0.0
    %2346 = vmatpush1.msra.mxu0 %v977
    %2347 = vmatprep.subr.mxu0 0.0
    %2348 = vmatpush1.msra.mxu0 %v978
    %2349 = vmatprep.subr.mxu0 0.0
    %2350 = vmatpush1.msra.mxu0 %v979
    %2351 = vmatprep.subr.mxu0 0.0
    %2352 = vmatpush1.msra.mxu0 %v980
    %2353 = vmatprep.subr.mxu0 0.0
    %2354 = vmatpush1.msra.mxu0 0.0
    %2355 = vmatprep.subr.mxu0 0.0
    %2356 = vmatpush1.msra.mxu0 0.0
    %2357 = vmatprep.subr.mxu0 0.0
    %2358 = vmatpush1.msra.mxu0 0.0
    %2359 = vmatprep.subr.mxu0 0.0
    %2360 = vmatpush1.msra.mxu0 0.0
    %2361 = vmatprep.subr.mxu0 0.0
    %2362 = vmatpush1.msra.mxu0 0.0
    %2363 = vmatprep.subr.mxu0 0.0
    %2364 = vmatpush1.msra.mxu0 0.0
    %2365 = vmatprep.subr.mxu0 0.0
    %2366 = vmatpush1.msra.mxu0 0.0
    %2367 = vmatprep.subr.mxu0 0.0
    %2368 = vmatpush1.msra.mxu0 0.0
    %2369 = vmatprep.subr.mxu0 0.0
    %2370 = vmatpush1.msra.mxu0 0.0
    %2371 = vmatprep.subr.mxu0 0.0
    %2372 = vmatpush1.msra.mxu0 0.0
    %2373 = vmatprep.subr.mxu0 0.0
    %2374 = vmatpush1.msra.mxu0 0.0
    %2375 = vmatprep.subr.mxu0 0.0
    %2376 = vmatpush1.msra.mxu0 0.0
    %2377 = vmatprep.subr.mxu0 0.0
    %2378 = vmatpush1.msra.mxu0 0.0
    %2379 = vmatprep.subr.mxu0 0.0
    %2380 = vmatpush1.msra.mxu0 0.0
    %2381 = vmatprep.subr.mxu0 0.0
    %2382 = vmatpush1.msra.mxu0 0.0
    %2383 = vmatprep.subr.mxu0 0.0
    %2384 = vmatpush1.msra.mxu0 0.0
    %2385 = vmatprep.subr.mxu0 0.0
    %2386 = vmatpush1.msra.mxu0 0.0
    %2387 = vmatprep.subr.mxu0 0.0
    %2388 = vmatpush1.msra.mxu0 0.0
    %2389 = vmatprep.subr.mxu0 0.0
    %2390 = vmatpush1.msra.mxu0 0.0
    %2391 = vmatprep.subr.mxu0 0.0
    %2392 = vmatpush1.msra.mxu0 0.0
    %2393 = vmatprep.subr.mxu0 0.0
    %2394 = vmatpush1.msra.mxu0 0.0
    %2395 = vmatprep.subr.mxu0 0.0
    %2396 = vmatpush1.msra.mxu0 0.0
    %2397 = vmatprep.subr.mxu0 0.0
    %2398 = vmatpush1.msra.mxu0 0.0
    %2399 = vmatprep.subr.mxu0 0.0
    %2400 = vmatpush1.msra.mxu0 0.0
    %2401 = vmatprep.subr.mxu0 0.0
    %2402 = vmatpush1.msra.mxu0 0.0
    %2403 = vmatprep.subr.mxu0 0.0
    %2404 = vmatpush1.msra.mxu0 0.0
    %2405 = vmatprep.subr.mxu0 0.0
    %2406 = vmatpush1.msra.mxu0 0.0
    %2407 = vmatprep.subr.mxu0 0.0
    %2408 = vmatpush1.msra.mxu0 0.0
    %2409 = vmatprep.mubr.f32.mxu0 0.0
    %2410 = vmatmul.mubr.f32.gmra.mrb[0].mxu0 %v2271
    %v2411 = vpop.f32.mrb[0].mxu0
    %v2412 = vadd.f32 0.0, %v2411
    %v2413 = vpop.f32.mrb[0].mxu0
    %2414 = vdwg.mxu0
    %v2415 = vadd.f32 %v2344, %v2412
    %v2416 = vld [vmem:[%s387] sm:$0xf]
    %2417 = vmatprep.subr.mxu0 0.0
    %2418 = vmatpush1.msra.mxu0 %v982
    %2419 = vmatprep.subr.mxu0 0.0
    %2420 = vmatpush1.msra.mxu0 %v983
    %2421 = vmatprep.subr.mxu0 0.0
    %2422 = vmatpush1.msra.mxu0 %v984
    %2423 = vmatprep.subr.mxu0 0.0
    %2424 = vmatpush1.msra.mxu0 %v985
    %2425 = vmatprep.subr.mxu0 0.0
    %2426 = vmatpush1.msra.mxu0 0.0
    %2427 = vmatprep.subr.mxu0 0.0
    %2428 = vmatpush1.msra.mxu0 0.0
    %2429 = vmatprep.subr.mxu0 0.0
    %2430 = vmatpush1.msra.mxu0 0.0
    %2431 = vmatprep.subr.mxu0 0.0
    %2432 = vmatpush1.msra.mxu0 0.0
    %2433 = vmatprep.subr.mxu0 0.0
    %2434 = vmatpush1.msra.mxu0 0.0
    %2435 = vmatprep.subr.mxu0 0.0
    %2436 = vmatpush1.msra.mxu0 0.0
    %2437 = vmatprep.subr.mxu0 0.0
    %2438 = vmatpush1.msra.mxu0 0.0
    %2439 = vmatprep.subr.mxu0 0.0
    %2440 = vmatpush1.msra.mxu0 0.0
    %2441 = vmatprep.subr.mxu0 0.0
    %2442 = vmatpush1.msra.mxu0 0.0
    %2443 = vmatprep.subr.mxu0 0.0
    %2444 = vmatpush1.msra.mxu0 0.0
    %2445 = vmatprep.subr.mxu0 0.0
    %2446 = vmatpush1.msra.mxu0 0.0
    %2447 = vmatprep.subr.mxu0 0.0
    %2448 = vmatpush1.msra.mxu0 0.0
    %2449 = vmatprep.subr.mxu0 0.0
    %2450 = vmatpush1.msra.mxu0 0.0
    %2451 = vmatprep.subr.mxu0 0.0
    %2452 = vmatpush1.msra.mxu0 0.0
    %2453 = vmatprep.subr.mxu0 0.0
    %2454 = vmatpush1.msra.mxu0 0.0
    %2455 = vmatprep.subr.mxu0 0.0
    %2456 = vmatpush1.msra.mxu0 0.0
    %2457 = vmatprep.subr.mxu0 0.0
    %2458 = vmatpush1.msra.mxu0 0.0
    %2459 = vmatprep.subr.mxu0 0.0
    %2460 = vmatpush1.msra.mxu0 0.0
    %2461 = vmatprep.subr.mxu0 0.0
    %2462 = vmatpush1.msra.mxu0 0.0
    %2463 = vmatprep.subr.mxu0 0.0
    %2464 = vmatpush1.msra.mxu0 0.0
    %2465 = vmatprep.subr.mxu0 0.0
    %2466 = vmatpush1.msra.mxu0 0.0
    %2467 = vmatprep.subr.mxu0 0.0
    %2468 = vmatpush1.msra.mxu0 0.0
    %2469 = vmatprep.subr.mxu0 0.0
    %2470 = vmatpush1.msra.mxu0 0.0
    %2471 = vmatprep.subr.mxu0 0.0
    %2472 = vmatpush1.msra.mxu0 0.0
    %2473 = vmatprep.subr.mxu0 0.0
    %2474 = vmatpush1.msra.mxu0 0.0
    %2475 = vmatprep.subr.mxu0 0.0
    %2476 = vmatpush1.msra.mxu0 0.0
    %2477 = vmatprep.subr.mxu0 0.0
    %2478 = vmatpush1.msra.mxu0 0.0
    %2479 = vmatprep.subr.mxu0 0.0
    %2480 = vmatpush1.msra.mxu0 0.0
    %2481 = vmatprep.mubr.f32.mxu0 0.0
    %2482 = vmatmul.mubr.f32.gmra.mrb[0].mxu0 %v2271
    %v2483 = vpop.f32.mrb[0].mxu0
    %v2484 = vadd.f32 0.0, %v2483
    %v2485 = vpop.f32.mrb[0].mxu0
    %2486 = vdwg.mxu0
    %v2487 = vadd.f32 %v2416, %v2484
    %v2488 = vld [vmem:[%s392] sm:$0xf]
    %2489 = vmatprep.subr.mxu0 0.0
    %2490 = vmatpush1.msra.mxu0 %v987
    %2491 = vmatprep.subr.mxu0 0.0
    %2492 = vmatpush1.msra.mxu0 %v988
    %2493 = vmatprep.subr.mxu0 0.0
    %2494 = vmatpush1.msra.mxu0 %v989
    %2495 = vmatprep.subr.mxu0 0.0
    %2496 = vmatpush1.msra.mxu0 %v990
    %2497 = vmatprep.subr.mxu0 0.0
    %2498 = vmatpush1.msra.mxu0 0.0
    %2499 = vmatprep.subr.mxu0 0.0
    %2500 = vmatpush1.msra.mxu0 0.0
    %2501 = vmatprep.subr.mxu0 0.0
    %2502 = vmatpush1.msra.mxu0 0.0
    %2503 = vmatprep.subr.mxu0 0.0
    %2504 = vmatpush1.msra.mxu0 0.0
    %2505 = vmatprep.subr.mxu0 0.0
    %2506 = vmatpush1.msra.mxu0 0.0
    %2507 = vmatprep.subr.mxu0 0.0
    %2508 = vmatpush1.msra.mxu0 0.0
    %2509 = vmatprep.subr.mxu0 0.0
    %2510 = vmatpush1.msra.mxu0 0.0
    %2511 = vmatprep.subr.mxu0 0.0
    %2512 = vmatpush1.msra.mxu0 0.0
    %2513 = vmatprep.subr.mxu0 0.0
    %2514 = vmatpush1.msra.mxu0 0.0
    %2515 = vmatprep.subr.mxu0 0.0
    %2516 = vmatpush1.msra.mxu0 0.0
    %2517 = vmatprep.subr.mxu0 0.0
    %2518 = vmatpush1.msra.mxu0 0.0
    %2519 = vmatprep.subr.mxu0 0.0
    %2520 = vmatpush1.msra.mxu0 0.0
    %2521 = vmatprep.subr.mxu0 0.0
    %2522 = vmatpush1.msra.mxu0 0.0
    %2523 = vmatprep.subr.mxu0 0.0
    %2524 = vmatpush1.msra.mxu0 0.0
    %2525 = vmatprep.subr.mxu0 0.0
    %2526 = vmatpush1.msra.mxu0 0.0
    %2527 = vmatprep.subr.mxu0 0.0
    %2528 = vmatpush1.msra.mxu0 0.0
    %2529 = vmatprep.subr.mxu0 0.0
    %2530 = vmatpush1.msra.mxu0 0.0
    %2531 = vmatprep.subr.mxu0 0.0
    %2532 = vmatpush1.msra.mxu0 0.0
    %2533 = vmatprep.subr.mxu0 0.0
    %2534 = vmatpush1.msra.mxu0 0.0
    %2535 = vmatprep.subr.mxu0 0.0
    %2536 = vmatpush1.msra.mxu0 0.0
    %2537 = vmatprep.subr.mxu0 0.0
    %2538 = vmatpush1.msra.mxu0 0.0
    %2539 = vmatprep.subr.mxu0 0.0
    %2540 = vmatpush1.msra.mxu0 0.0
    %2541 = vmatprep.subr.mxu0 0.0
    %2542 = vmatpush1.msra.mxu0 0.0
    %2543 = vmatprep.subr.mxu0 0.0
    %2544 = vmatpush1.msra.mxu0 0.0
    %2545 = vmatprep.subr.mxu0 0.0
    %2546 = vmatpush1.msra.mxu0 0.0
    %2547 = vmatprep.subr.mxu0 0.0
    %2548 = vmatpush1.msra.mxu0 0.0
    %2549 = vmatprep.subr.mxu0 0.0
    %2550 = vmatpush1.msra.mxu0 0.0
    %2551 = vmatprep.subr.mxu0 0.0
    %2552 = vmatpush1.msra.mxu0 0.0
    %2553 = vmatprep.mubr.f32.mxu0 0.0
    %2554 = vmatmul.mubr.f32.gmra.mrb[0].mxu0 %v2271
    %v2555 = vpop.f32.mrb[0].mxu0
    %v2556 = vadd.f32 0.0, %v2555
    %v2557 = vpop.f32.mrb[0].mxu0
    %2558 = vdwg.mxu0
    %v2559 = vadd.f32 %v2488, %v2556
    %v2560 = vld [vmem:[%s730] sm:$0xf]
    %v2562 = vsel %vm1012, %v2268, 0
    %2564 = vmatprep.subr.mxu0 0.0
    %2565 = vmatpush1.msra.mxu0 %v992
    %2566 = vmatprep.subr.mxu0 0.0
    %2567 = vmatpush1.msra.mxu0 %v993
    %2568 = vmatprep.subr.mxu0 0.0
    %2569 = vmatpush1.msra.mxu0 %v994
    %2570 = vmatprep.subr.mxu0 0.0
    %2571 = vmatpush1.msra.mxu0 %v995
    %2572 = vmatprep.subr.mxu0 0.0
    %2573 = vmatpush1.msra.mxu0 0.0
    %2574 = vmatprep.subr.mxu0 0.0
    %2575 = vmatpush1.msra.mxu0 0.0
    %2576 = vmatprep.subr.mxu0 0.0
    %2577 = vmatpush1.msra.mxu0 0.0
    %2578 = vmatprep.subr.mxu0 0.0
    %2579 = vmatpush1.msra.mxu0 0.0
    %2580 = vmatprep.subr.mxu0 0.0
    %2581 = vmatpush1.msra.mxu0 0.0
    %2582 = vmatprep.subr.mxu0 0.0
    %2583 = vmatpush1.msra.mxu0 0.0
    %2584 = vmatprep.subr.mxu0 0.0
    %2585 = vmatpush1.msra.mxu0 0.0
    %2586 = vmatprep.subr.mxu0 0.0
    %2587 = vmatpush1.msra.mxu0 0.0
    %2588 = vmatprep.subr.mxu0 0.0
    %2589 = vmatpush1.msra.mxu0 0.0
    %2590 = vmatprep.subr.mxu0 0.0
    %2591 = vmatpush1.msra.mxu0 0.0
    %2592 = vmatprep.subr.mxu0 0.0
    %2593 = vmatpush1.msra.mxu0 0.0
    %2594 = vmatprep.subr.mxu0 0.0
    %2595 = vmatpush1.msra.mxu0 0.0
    %2596 = vmatprep.subr.mxu0 0.0
    %2597 = vmatpush1.msra.mxu0 0.0
    %2598 = vmatprep.subr.mxu0 0.0
    %2599 = vmatpush1.msra.mxu0 0.0
    %2600 = vmatprep.subr.mxu0 0.0
    %2601 = vmatpush1.msra.mxu0 0.0
    %2602 = vmatprep.subr.mxu0 0.0
    %2603 = vmatpush1.msra.mxu0 0.0
    %2604 = vmatprep.subr.mxu0 0.0
    %2605 = vmatpush1.msra.mxu0 0.0
    %2606 = vmatprep.subr.mxu0 0.0
    %2607 = vmatpush1.msra.mxu0 0.0
    %2608 = vmatprep.subr.mxu0 0.0
    %2609 = vmatpush1.msra.mxu0 0.0
    %2610 = vmatprep.subr.mxu0 0.0
    %2611 = vmatpush1.msra.mxu0 0.0
    %2612 = vmatprep.subr.mxu0 0.0
    %2613 = vmatpush1.msra.mxu0 0.0
    %2614 = vmatprep.subr.mxu0 0.0
    %2615 = vmatpush1.msra.mxu0 0.0
    %2616 = vmatprep.subr.mxu0 0.0
    %2617 = vmatpush1.msra.mxu0 0.0
    %2618 = vmatprep.subr.mxu0 0.0
    %2619 = vmatpush1.msra.mxu0 0.0
    %2620 = vmatprep.subr.mxu0 0.0
    %2621 = vmatpush1.msra.mxu0 0.0
    %2622 = vmatprep.subr.mxu0 0.0
    %2623 = vmatpush1.msra.mxu0 0.0
    %2624 = vmatprep.subr.mxu0 0.0
    %2625 = vmatpush1.msra.mxu0 0.0
    %2626 = vmatprep.subr.mxu0 0.0
    %2627 = vmatpush1.msra.mxu0 0.0
    %2628 = vmatprep.mubr.f32.mxu0 0.0
    %2629 = vmatmul.mubr.f32.gmra.mrb[0].mxu0 %v2562
    %v2630 = vpop.f32.mrb[0].mxu0
    %v2631 = vadd.f32 0.0, %v2630
    %v2632 = vpop.f32.mrb[0].mxu0
    %2633 = vdwg.mxu0
    %v2634 = vadd.f32 %v2560, %v2631
    %v2635 = vld [vmem:[%s736] sm:$0xf]
    %2636 = vmatprep.subr.mxu0 0.0
    %2637 = vmatpush1.msra.mxu0 %v997
    %2638 = vmatprep.subr.mxu0 0.0
    %2639 = vmatpush1.msra.mxu0 %v998
    %2640 = vmatprep.subr.mxu0 0.0
    %2641 = vmatpush1.msra.mxu0 %v999
    %2642 = vmatprep.subr.mxu0 0.0
    %2643 = vmatpush1.msra.mxu0 %v1000
    %2644 = vmatprep.subr.mxu0 0.0
    %2645 = vmatpush1.msra.mxu0 0.0
    %2646 = vmatprep.subr.mxu0 0.0
    %2647 = vmatpush1.msra.mxu0 0.0
    %2648 = vmatprep.subr.mxu0 0.0
    %2649 = vmatpush1.msra.mxu0 0.0
    %2650 = vmatprep.subr.mxu0 0.0
    %2651 = vmatpush1.msra.mxu0 0.0
    %2652 = vmatprep.subr.mxu0 0.0
    %2653 = vmatpush1.msra.mxu0 0.0
    %2654 = vmatprep.subr.mxu0 0.0
    %2655 = vmatpush1.msra.mxu0 0.0
    %2656 = vmatprep.subr.mxu0 0.0
    %2657 = vmatpush1.msra.mxu0 0.0
    %2658 = vmatprep.subr.mxu0 0.0
    %2659 = vmatpush1.msra.mxu0 0.0
    %2660 = vmatprep.subr.mxu0 0.0
    %2661 = vmatpush1.msra.mxu0 0.0
    %2662 = vmatprep.subr.mxu0 0.0
    %2663 = vmatpush1.msra.mxu0 0.0
    %2664 = vmatprep.subr.mxu0 0.0
    %2665 = vmatpush1.msra.mxu0 0.0
    %2666 = vmatprep.subr.mxu0 0.0
    %2667 = vmatpush1.msra.mxu0 0.0
    %2668 = vmatprep.subr.mxu0 0.0
    %2669 = vmatpush1.msra.mxu0 0.0
    %2670 = vmatprep.subr.mxu0 0.0
    %2671 = vmatpush1.msra.mxu0 0.0
    %2672 = vmatprep.subr.mxu0 0.0
    %2673 = vmatpush1.msra.mxu0 0.0
    %2674 = vmatprep.subr.mxu0 0.0
    %2675 = vmatpush1.msra.mxu0 0.0
    %2676 = vmatprep.subr.mxu0 0.0
    %2677 = vmatpush1.msra.mxu0 0.0
    %2678 = vmatprep.subr.mxu0 0.0
    %2679 = vmatpush1.msra.mxu0 0.0
    %2680 = vmatprep.subr.mxu0 0.0
    %2681 = vmatpush1.msra.mxu0 0.0
    %2682 = vmatprep.subr.mxu0 0.0
    %2683 = vmatpush1.msra.mxu0 0.0
    %2684 = vmatprep.subr.mxu0 0.0
    %2685 = vmatpush1.msra.mxu0 0.0
    %2686 = vmatprep.subr.mxu0 0.0
    %2687 = vmatpush1.msra.mxu0 0.0
    %2688 = vmatprep.subr.mxu0 0.0
    %2689 = vmatpush1.msra.mxu0 0.0
    %2690 = vmatprep.subr.mxu0 0.0
    %2691 = vmatpush1.msra.mxu0 0.0
    %2692 = vmatprep.subr.mxu0 0.0
    %2693 = vmatpush1.msra.mxu0 0.0
    %2694 = vmatprep.subr.mxu0 0.0
    %2695 = vmatpush1.msra.mxu0 0.0
    %2696 = vmatprep.subr.mxu0 0.0
    %2697 = vmatpush1.msra.mxu0 0.0
    %2698 = vmatprep.subr.mxu0 0.0
    %2699 = vmatpush1.msra.mxu0 0.0
    %2700 = vmatprep.mubr.f32.mxu0 0.0
    %2701 = vmatmul.mubr.f32.gmra.mrb[0].mxu0 %v2562
    %v2702 = vpop.f32.mrb[0].mxu0
    %v2703 = vadd.f32 0.0, %v2702
    %v2704 = vpop.f32.mrb[0].mxu0
    %2705 = vdwg.mxu0
    %v2706 = vadd.f32 %v2635, %v2703
    %v2707 = vld [vmem:[%s741] sm:$0xf]
    %2708 = vmatprep.subr.mxu0 0.0
    %2709 = vmatpush1.msra.mxu0 %v1002
    %2710 = vmatprep.subr.mxu0 0.0
    %2711 = vmatpush1.msra.mxu0 %v1003
    %2712 = vmatprep.subr.mxu0 0.0
    %2713 = vmatpush1.msra.mxu0 %v1004
    %2714 = vmatprep.subr.mxu0 0.0
    %2715 = vmatpush1.msra.mxu0 %v1005
    %2716 = vmatprep.subr.mxu0 0.0
    %2717 = vmatpush1.msra.mxu0 0.0
    %2718 = vmatprep.subr.mxu0 0.0
    %2719 = vmatpush1.msra.mxu0 0.0
    %2720 = vmatprep.subr.mxu0 0.0
    %2721 = vmatpush1.msra.mxu0 0.0
    %2722 = vmatprep.subr.mxu0 0.0
    %2723 = vmatpush1.msra.mxu0 0.0
    %2724 = vmatprep.subr.mxu0 0.0
    %2725 = vmatpush1.msra.mxu0 0.0
    %2726 = vmatprep.subr.mxu0 0.0
    %2727 = vmatpush1.msra.mxu0 0.0
    %2728 = vmatprep.subr.mxu0 0.0
    %2729 = vmatpush1.msra.mxu0 0.0
    %2730 = vmatprep.subr.mxu0 0.0
    %2731 = vmatpush1.msra.mxu0 0.0
    %2732 = vmatprep.subr.mxu0 0.0
    %2733 = vmatpush1.msra.mxu0 0.0
    %2734 = vmatprep.subr.mxu0 0.0
    %2735 = vmatpush1.msra.mxu0 0.0
    %2736 = vmatprep.subr.mxu0 0.0
    %2737 = vmatpush1.msra.mxu0 0.0
    %2738 = vmatprep.subr.mxu0 0.0
    %2739 = vmatpush1.msra.mxu0 0.0
    %2740 = vmatprep.subr.mxu0 0.0
    %2741 = vmatpush1.msra.mxu0 0.0
    %2742 = vmatprep.subr.mxu0 0.0
    %2743 = vmatpush1.msra.mxu0 0.0
    %2744 = vmatprep.subr.mxu0 0.0
    %2745 = vmatpush1.msra.mxu0 0.0
    %2746 = vmatprep.subr.mxu0 0.0
    %2747 = vmatpush1.msra.mxu0 0.0
    %2748 = vmatprep.subr.mxu0 0.0
    %2749 = vmatpush1.msra.mxu0 0.0
    %2750 = vmatprep.subr.mxu0 0.0
    %2751 = vmatpush1.msra.mxu0 0.0
    %2752 = vmatprep.subr.mxu0 0.0
    %2753 = vmatpush1.msra.mxu0 0.0
    %2754 = vmatprep.subr.mxu0 0.0
    %2755 = vmatpush1.msra.mxu0 0.0
    %2756 = vmatprep.subr.mxu0 0.0
    %2757 = vmatpush1.msra.mxu0 0.0
    %2758 = vmatprep.subr.mxu0 0.0
    %2759 = vmatpush1.msra.mxu0 0.0
    %2760 = vmatprep.subr.mxu0 0.0
    %2761 = vmatpush1.msra.mxu0 0.0
    %2762 = vmatprep.subr.mxu0 0.0
    %2763 = vmatpush1.msra.mxu0 0.0
    %2764 = vmatprep.subr.mxu0 0.0
    %2765 = vmatpush1.msra.mxu0 0.0
    %2766 = vmatprep.subr.mxu0 0.0
    %2767 = vmatpush1.msra.mxu0 0.0
    %2768 = vmatprep.subr.mxu0 0.0
    %2769 = vmatpush1.msra.mxu0 0.0
    %2770 = vmatprep.subr.mxu0 0.0
    %2771 = vmatpush1.msra.mxu0 0.0
    %2772 = vmatprep.mubr.f32.mxu0 0.0
    %2773 = vmatmul.mubr.f32.gmra.mrb[0].mxu0 %v2562
    %v2774 = vpop.f32.mrb[0].mxu0
    %v2775 = vadd.f32 0.0, %v2774
    %v2776 = vpop.f32.mrb[0].mxu0
    %2777 = vdwg.mxu0
    %v2778 = vadd.f32 %v2707, %v2775
    %v2779 = vld [vmem:[%s746] sm:$0xf]
    %2780 = vmatprep.subr.mxu0 0.0
    %2781 = vmatpush1.msra.mxu0 %v1007
    %2782 = vmatprep.subr.mxu0 0.0
    %2783 = vmatpush1.msra.mxu0 %v1008
    %2784 = vmatprep.subr.mxu0 0.0
    %2785 = vmatpush1.msra.mxu0 %v1009
    %2786 = vmatprep.subr.mxu0 0.0
    %2787 = vmatpush1.msra.mxu0 %v1010
    %2788 = vmatprep.subr.mxu0 0.0
    %2789 = vmatpush1.msra.mxu0 0.0
    %2790 = vmatprep.subr.mxu0 0.0
    %2791 = vmatpush1.msra.mxu0 0.0
    %2792 = vmatprep.subr.mxu0 0.0
    %2793 = vmatpush1.msra.mxu0 0.0
    %2794 = vmatprep.subr.mxu0 0.0
    %2795 = vmatpush1.msra.mxu0 0.0
    %2796 = vmatprep.subr.mxu0 0.0
    %2797 = vmatpush1.msra.mxu0 0.0
    %2798 = vmatprep.subr.mxu0 0.0
    %2799 = vmatpush1.msra.mxu0 0.0
    %2800 = vmatprep.subr.mxu0 0.0
    %2801 = vmatpush1.msra.mxu0 0.0
    %2802 = vmatprep.subr.mxu0 0.0
    %2803 = vmatpush1.msra.mxu0 0.0
    %2804 = vmatprep.subr.mxu0 0.0
    %2805 = vmatpush1.msra.mxu0 0.0
    %2806 = vmatprep.subr.mxu0 0.0
    %2807 = vmatpush1.msra.mxu0 0.0
    %2808 = vmatprep.subr.mxu0 0.0
    %2809 = vmatpush1.msra.mxu0 0.0
    %2810 = vmatprep.subr.mxu0 0.0
    %2811 = vmatpush1.msra.mxu0 0.0
    %2812 = vmatprep.subr.mxu0 0.0
    %2813 = vmatpush1.msra.mxu0 0.0
    %2814 = vmatprep.subr.mxu0 0.0
    %2815 = vmatpush1.msra.mxu0 0.0
    %2816 = vmatprep.subr.mxu0 0.0
    %2817 = vmatpush1.msra.mxu0 0.0
    %2818 = vmatprep.subr.mxu0 0.0
    %2819 = vmatpush1.msra.mxu0 0.0
    %2820 = vmatprep.subr.mxu0 0.0
    %2821 = vmatpush1.msra.mxu0 0.0
    %2822 = vmatprep.subr.mxu0 0.0
    %2823 = vmatpush1.msra.mxu0 0.0
    %2824 = vmatprep.subr.mxu0 0.0
    %2825 = vmatpush1.msra.mxu0 0.0
    %2826 = vmatprep.subr.mxu0 0.0
    %2827 = vmatpush1.msra.mxu0 0.0
    %2828 = vmatprep.subr.mxu0 0.0
    %2829 = vmatpush1.msra.mxu0 0.0
    %2830 = vmatprep.subr.mxu0 0.0
    %2831 = vmatpush1.msra.mxu0 0.0
    %2832 = vmatprep.subr.mxu0 0.0
    %2833 = vmatpush1.msra.mxu0 0.0
    %2834 = vmatprep.subr.mxu0 0.0
    %2835 = vmatpush1.msra.mxu0 0.0
    %2836 = vmatprep.subr.mxu0 0.0
    %2837 = vmatpush1.msra.mxu0 0.0
    %2838 = vmatprep.subr.mxu0 0.0
    %2839 = vmatpush1.msra.mxu0 0.0
    %2840 = vmatprep.subr.mxu0 0.0
    %2841 = vmatpush1.msra.mxu0 0.0
    %2842 = vmatprep.subr.mxu0 0.0
    %2843 = vmatpush1.msra.mxu0 0.0
    %2844 = vmatprep.mubr.f32.mxu0 0.0
    %2845 = vmatmul.mubr.f32.gmra.mrb[0].mxu0 %v2562
    %v2846 = vpop.f32.mrb[0].mxu0
    %v2847 = vadd.f32 0.0, %v2846
    %v2848 = vpop.f32.mrb[0].mxu0
    %2849 = vdwg.mxu0
    %v2850 = vadd.f32 %v2779, %v2847
    %v2851 = vxor.u32 %v2415, 2147483648
    %v2852 = vmul.f32 %v2851, 1.442695
    %v2853 = vpow.pop %v2852
    %v2854 = vadd.f32 %v2853, 1.0
    %v2855 = vrcp.pop %v2854
    %v2856 = vmul.f32 1.0, %v2855
    %v2857 = vmul.f32 %v2856, %v2236
    %v2858 = vxor.u32 %v2343, 2147483648
    %v2859 = vmul.f32 %v2858, 1.442695
    %v2860 = vpow.pop %v2859
    %v2861 = vadd.f32 %v2860, 1.0
    %v2862 = vrcp.pop %v2861
    %v2863 = vmul.f32 1.0, %v2862
    %v2864 = vtanh.pop %v2487
    %v2865 = vmul.f32 %v2863, %v2864
    %v2866 = vadd.f32 %v2857, %v2865
    %v2867 = vxor.u32 %v2559, 2147483648
    %v2868 = vmul.f32 %v2867, 1.442695
    %v2869 = vpow.pop %v2868
    %v2870 = vadd.f32 %v2869, 1.0
    %v2871 = vrcp.pop %v2870
    %v2872 = vmul.f32 1.0, %v2871
    %v2873 = vtanh.pop %v2866
    %v2874 = vmul.f32 %v2872, %v2873
    %v2875 = vxor.u32 %v2706, 2147483648
    %v2876 = vmul.f32 %v2875, 1.442695
    %v2877 = vpow.pop %v2876
    %v2878 = vadd.f32 %v2877, 1.0
    %v2879 = vrcp.pop %v2878
    %v2880 = vmul.f32 1.0, %v2879
    %v2881 = vmul.f32 %v2880, %v2260
    %v2882 = vxor.u32 %v2634, 2147483648
    %v2883 = vmul.f32 %v2882, 1.442695
    %v2884 = vpow.pop %v2883
    %v2885 = vadd.f32 %v2884, 1.0
    %v2886 = vrcp.pop %v2885
    %v2887 = vmul.f32 1.0, %v2886
    %v2888 = vtanh.pop %v2778
    %v2889 = vmul.f32 %v2887, %v2888
    %v2890 = vadd.f32 %v2881, %v2889
    %v2891 = vxor.u32 %v2850, 2147483648
    %v2892 = vmul.f32 %v2891, 1.442695
    %v2893 = vpow.pop %v2892
    %v2894 = vadd.f32 %v2893, 1.0
    %v2895 = vrcp.pop %v2894
    %v2896 = vmul.f32 1.0, %v2895
    %v2897 = vtanh.pop %v2890
    %v2898 = vmul.f32 %v2896, %v2897
    %v2899 = vld [vmem:[%s488] sm:$0xf]
    %v2901 = vsel %vm1012, %v2874, 0
    %2903 = vmatprep.subr.mxu0 0.0
    %2904 = vmatpush1.msra.mxu0 %v972
    %2905 = vmatprep.subr.mxu0 0.0
    %2906 = vmatpush1.msra.mxu0 %v973
    %2907 = vmatprep.subr.mxu0 0.0
    %2908 = vmatpush1.msra.mxu0 %v974
    %2909 = vmatprep.subr.mxu0 0.0
    %2910 = vmatpush1.msra.mxu0 %v975
    %2911 = vmatprep.subr.mxu0 0.0
    %2912 = vmatpush1.msra.mxu0 0.0
    %2913 = vmatprep.subr.mxu0 0.0
    %2914 = vmatpush1.msra.mxu0 0.0
    %2915 = vmatprep.subr.mxu0 0.0
    %2916 = vmatpush1.msra.mxu0 0.0
    %2917 = vmatprep.subr.mxu0 0.0
    %2918 = vmatpush1.msra.mxu0 0.0
    %2919 = vmatprep.subr.mxu0 0.0
    %2920 = vmatpush1.msra.mxu0 0.0
    %2921 = vmatprep.subr.mxu0 0.0
    %2922 = vmatpush1.msra.mxu0 0.0
    %2923 = vmatprep.subr.mxu0 0.0
    %2924 = vmatpush1.msra.mxu0 0.0
    %2925 = vmatprep.subr.mxu0 0.0
    %2926 = vmatpush1.msra.mxu0 0.0
    %2927 = vmatprep.subr.mxu0 0.0
    %2928 = vmatpush1.msra.mxu0 0.0
    %2929 = vmatprep.subr.mxu0 0.0
    %2930 = vmatpush1.msra.mxu0 0.0
    %2931 = vmatprep.subr.mxu0 0.0
    %2932 = vmatpush1.msra.mxu0 0.0
    %2933 = vmatprep.subr.mxu0 0.0
    %2934 = vmatpush1.msra.mxu0 0.0
    %2935 = vmatprep.subr.mxu0 0.0
    %2936 = vmatpush1.msra.mxu0 0.0
    %2937 = vmatprep.subr.mxu0 0.0
    %2938 = vmatpush1.msra.mxu0 0.0
    %2939 = vmatprep.subr.mxu0 0.0
    %2940 = vmatpush1.msra.mxu0 0.0
    %2941 = vmatprep.subr.mxu0 0.0
    %2942 = vmatpush1.msra.mxu0 0.0
    %2943 = vmatprep.subr.mxu0 0.0
    %2944 = vmatpush1.msra.mxu0 0.0
    %2945 = vmatprep.subr.mxu0 0.0
    %2946 = vmatpush1.msra.mxu0 0.0
    %2947 = vmatprep.subr.mxu0 0.0
    %2948 = vmatpush1.msra.mxu0 0.0
    %2949 = vmatprep.subr.mxu0 0.0
    %2950 = vmatpush1.msra.mxu0 0.0
    %2951 = vmatprep.subr.mxu0 0.0
    %2952 = vmatpush1.msra.mxu0 0.0
    %2953 = vmatprep.subr.mxu0 0.0
    %2954 = vmatpush1.msra.mxu0 0.0
    %2955 = vmatprep.subr.mxu0 0.0
    %2956 = vmatpush1.msra.mxu0 0.0
    %2957 = vmatprep.subr.mxu0 0.0
    %2958 = vmatpush1.msra.mxu0 0.0
    %2959 = vmatprep.subr.mxu0 0.0
    %2960 = vmatpush1.msra.mxu0 0.0
    %2961 = vmatprep.subr.mxu0 0.0
    %2962 = vmatpush1.msra.mxu0 0.0
    %2963 = vmatprep.subr.mxu0 0.0
    %2964 = vmatpush1.msra.mxu0 0.0
    %2965 = vmatprep.subr.mxu0 0.0
    %2966 = vmatpush1.msra.mxu0 0.0
    %2967 = vmatprep.mubr.f32.mxu0 0.0
    %2968 = vmatmul.mubr.f32.gmra.mrb[0].mxu0 %v2901
    %v2969 = vpop.f32.mrb[0].mxu0
    %v2970 = vadd.f32 0.0, %v2969
    %v2971 = vpop.f32.mrb[0].mxu0
    %2972 = vdwg.mxu0
    %v2973 = vadd.f32 %v2899, %v2970
    %v2974 = vld [vmem:[%s494] sm:$0xf]
    %2975 = vmatprep.subr.mxu0 0.0
    %2976 = vmatpush1.msra.mxu0 %v977
    %2977 = vmatprep.subr.mxu0 0.0
    %2978 = vmatpush1.msra.mxu0 %v978
    %2979 = vmatprep.subr.mxu0 0.0
    %2980 = vmatpush1.msra.mxu0 %v979
    %2981 = vmatprep.subr.mxu0 0.0
    %2982 = vmatpush1.msra.mxu0 %v980
    %2983 = vmatprep.subr.mxu0 0.0
    %2984 = vmatpush1.msra.mxu0 0.0
    %2985 = vmatprep.subr.mxu0 0.0
    %2986 = vmatpush1.msra.mxu0 0.0
    %2987 = vmatprep.subr.mxu0 0.0
    %2988 = vmatpush1.msra.mxu0 0.0
    %2989 = vmatprep.subr.mxu0 0.0
    %2990 = vmatpush1.msra.mxu0 0.0
    %2991 = vmatprep.subr.mxu0 0.0
    %2992 = vmatpush1.msra.mxu0 0.0
    %2993 = vmatprep.subr.mxu0 0.0
    %2994 = vmatpush1.msra.mxu0 0.0
    %2995 = vmatprep.subr.mxu0 0.0
    %2996 = vmatpush1.msra.mxu0 0.0
    %2997 = vmatprep.subr.mxu0 0.0
    %2998 = vmatpush1.msra.mxu0 0.0
    %2999 = vmatprep.subr.mxu0 0.0
    %3000 = vmatpush1.msra.mxu0 0.0
    %3001 = vmatprep.subr.mxu0 0.0
    %3002 = vmatpush1.msra.mxu0 0.0
    %3003 = vmatprep.subr.mxu0 0.0
    %3004 = vmatpush1.msra.mxu0 0.0
    %3005 = vmatprep.subr.mxu0 0.0
    %3006 = vmatpush1.msra.mxu0 0.0
    %3007 = vmatprep.subr.mxu0 0.0
    %3008 = vmatpush1.msra.mxu0 0.0
    %3009 = vmatprep.subr.mxu0 0.0
    %3010 = vmatpush1.msra.mxu0 0.0
    %3011 = vmatprep.subr.mxu0 0.0
    %3012 = vmatpush1.msra.mxu0 0.0
    %3013 = vmatprep.subr.mxu0 0.0
    %3014 = vmatpush1.msra.mxu0 0.0
    %3015 = vmatprep.subr.mxu0 0.0
    %3016 = vmatpush1.msra.mxu0 0.0
    %3017 = vmatprep.subr.mxu0 0.0
    %3018 = vmatpush1.msra.mxu0 0.0
    %3019 = vmatprep.subr.mxu0 0.0
    %3020 = vmatpush1.msra.mxu0 0.0
    %3021 = vmatprep.subr.mxu0 0.0
    %3022 = vmatpush1.msra.mxu0 0.0
    %3023 = vmatprep.subr.mxu0 0.0
    %3024 = vmatpush1.msra.mxu0 0.0
    %3025 = vmatprep.subr.mxu0 0.0
    %3026 = vmatpush1.msra.mxu0 0.0
    %3027 = vmatprep.subr.mxu0 0.0
    %3028 = vmatpush1.msra.mxu0 0.0
    %3029 = vmatprep.subr.mxu0 0.0
    %3030 = vmatpush1.msra.mxu0 0.0
    %3031 = vmatprep.subr.mxu0 0.0
    %3032 = vmatpush1.msra.mxu0 0.0
    %3033 = vmatprep.subr.mxu0 0.0
    %3034 = vmatpush1.msra.mxu0 0.0
    %3035 = vmatprep.subr.mxu0 0.0
    %3036 = vmatpush1.msra.mxu0 0.0
    %3037 = vmatprep.subr.mxu0 0.0
    %3038 = vmatpush1.msra.mxu0 0.0
    %3039 = vmatprep.mubr.f32.mxu0 0.0
    %3040 = vmatmul.mubr.f32.gmra.mrb[0].mxu0 %v2901
    %v3041 = vpop.f32.mrb[0].mxu0
    %v3042 = vadd.f32 0.0, %v3041
    %v3043 = vpop.f32.mrb[0].mxu0
    %3044 = vdwg.mxu0
    %v3045 = vadd.f32 %v2974, %v3042
    %v3046 = vld [vmem:[%s499] sm:$0xf]
    %3047 = vmatprep.subr.mxu0 0.0
    %3048 = vmatpush1.msra.mxu0 %v982
    %3049 = vmatprep.subr.mxu0 0.0
    %3050 = vmatpush1.msra.mxu0 %v983
    %3051 = vmatprep.subr.mxu0 0.0
    %3052 = vmatpush1.msra.mxu0 %v984
    %3053 = vmatprep.subr.mxu0 0.0
    %3054 = vmatpush1.msra.mxu0 %v985
    %3055 = vmatprep.subr.mxu0 0.0
    %3056 = vmatpush1.msra.mxu0 0.0
    %3057 = vmatprep.subr.mxu0 0.0
    %3058 = vmatpush1.msra.mxu0 0.0
    %3059 = vmatprep.subr.mxu0 0.0
    %3060 = vmatpush1.msra.mxu0 0.0
    %3061 = vmatprep.subr.mxu0 0.0
    %3062 = vmatpush1.msra.mxu0 0.0
    %3063 = vmatprep.subr.mxu0 0.0
    %3064 = vmatpush1.msra.mxu0 0.0
    %3065 = vmatprep.subr.mxu0 0.0
    %3066 = vmatpush1.msra.mxu0 0.0
    %3067 = vmatprep.subr.mxu0 0.0
    %3068 = vmatpush1.msra.mxu0 0.0
    %3069 = vmatprep.subr.mxu0 0.0
    %3070 = vmatpush1.msra.mxu0 0.0
    %3071 = vmatprep.subr.mxu0 0.0
    %3072 = vmatpush1.msra.mxu0 0.0
    %3073 = vmatprep.subr.mxu0 0.0
    %3074 = vmatpush1.msra.mxu0 0.0
    %3075 = vmatprep.subr.mxu0 0.0
    %3076 = vmatpush1.msra.mxu0 0.0
    %3077 = vmatprep.subr.mxu0 0.0
    %3078 = vmatpush1.msra.mxu0 0.0
    %3079 = vmatprep.subr.mxu0 0.0
    %3080 = vmatpush1.msra.mxu0 0.0
    %3081 = vmatprep.subr.mxu0 0.0
    %3082 = vmatpush1.msra.mxu0 0.0
    %3083 = vmatprep.subr.mxu0 0.0
    %3084 = vmatpush1.msra.mxu0 0.0
    %3085 = vmatprep.subr.mxu0 0.0
    %3086 = vmatpush1.msra.mxu0 0.0
    %3087 = vmatprep.subr.mxu0 0.0
    %3088 = vmatpush1.msra.mxu0 0.0
    %3089 = vmatprep.subr.mxu0 0.0
    %3090 = vmatpush1.msra.mxu0 0.0
    %3091 = vmatprep.subr.mxu0 0.0
    %3092 = vmatpush1.msra.mxu0 0.0
    %3093 = vmatprep.subr.mxu0 0.0
    %3094 = vmatpush1.msra.mxu0 0.0
    %3095 = vmatprep.subr.mxu0 0.0
    %3096 = vmatpush1.msra.mxu0 0.0
    %3097 = vmatprep.subr.mxu0 0.0
    %3098 = vmatpush1.msra.mxu0 0.0
    %3099 = vmatprep.subr.mxu0 0.0
    %3100 = vmatpush1.msra.mxu0 0.0
    %3101 = vmatprep.subr.mxu0 0.0
    %3102 = vmatpush1.msra.mxu0 0.0
    %3103 = vmatprep.subr.mxu0 0.0
    %3104 = vmatpush1.msra.mxu0 0.0
    %3105 = vmatprep.subr.mxu0 0.0
    %3106 = vmatpush1.msra.mxu0 0.0
    %3107 = vmatprep.subr.mxu0 0.0
    %3108 = vmatpush1.msra.mxu0 0.0
    %3109 = vmatprep.subr.mxu0 0.0
    %3110 = vmatpush1.msra.mxu0 0.0
    %3111 = vmatprep.mubr.f32.mxu0 0.0
    %3112 = vmatmul.mubr.f32.gmra.mrb[0].mxu0 %v2901
    %v3113 = vpop.f32.mrb[0].mxu0
    %v3114 = vadd.f32 0.0, %v3113
    %v3115 = vpop.f32.mrb[0].mxu0
    %3116 = vdwg.mxu0
    %v3117 = vadd.f32 %v3046, %v3114
    %v3118 = vld [vmem:[%s504] sm:$0xf]
    %3119 = vmatprep.subr.mxu0 0.0
    %3120 = vmatpush1.msra.mxu0 %v987
    %3121 = vmatprep.subr.mxu0 0.0
    %3122 = vmatpush1.msra.mxu0 %v988
    %3123 = vmatprep.subr.mxu0 0.0
    %3124 = vmatpush1.msra.mxu0 %v989
    %3125 = vmatprep.subr.mxu0 0.0
    %3126 = vmatpush1.msra.mxu0 %v990
    %3127 = vmatprep.subr.mxu0 0.0
    %3128 = vmatpush1.msra.mxu0 0.0
    %3129 = vmatprep.subr.mxu0 0.0
    %3130 = vmatpush1.msra.mxu0 0.0
    %3131 = vmatprep.subr.mxu0 0.0
    %3132 = vmatpush1.msra.mxu0 0.0
    %3133 = vmatprep.subr.mxu0 0.0
    %3134 = vmatpush1.msra.mxu0 0.0
    %3135 = vmatprep.subr.mxu0 0.0
    %3136 = vmatpush1.msra.mxu0 0.0
    %3137 = vmatprep.subr.mxu0 0.0
    %3138 = vmatpush1.msra.mxu0 0.0
    %3139 = vmatprep.subr.mxu0 0.0
    %3140 = vmatpush1.msra.mxu0 0.0
    %3141 = vmatprep.subr.mxu0 0.0
    %3142 = vmatpush1.msra.mxu0 0.0
    %3143 = vmatprep.subr.mxu0 0.0
    %3144 = vmatpush1.msra.mxu0 0.0
    %3145 = vmatprep.subr.mxu0 0.0
    %3146 = vmatpush1.msra.mxu0 0.0
    %3147 = vmatprep.subr.mxu0 0.0
    %3148 = vmatpush1.msra.mxu0 0.0
    %3149 = vmatprep.subr.mxu0 0.0
    %3150 = vmatpush1.msra.mxu0 0.0
    %3151 = vmatprep.subr.mxu0 0.0
    %3152 = vmatpush1.msra.mxu0 0.0
    %3153 = vmatprep.subr.mxu0 0.0
    %3154 = vmatpush1.msra.mxu0 0.0
    %3155 = vmatprep.subr.mxu0 0.0
    %3156 = vmatpush1.msra.mxu0 0.0
    %3157 = vmatprep.subr.mxu0 0.0
    %3158 = vmatpush1.msra.mxu0 0.0
    %3159 = vmatprep.subr.mxu0 0.0
    %3160 = vmatpush1.msra.mxu0 0.0
    %3161 = vmatprep.subr.mxu0 0.0
    %3162 = vmatpush1.msra.mxu0 0.0
    %3163 = vmatprep.subr.mxu0 0.0
    %3164 = vmatpush1.msra.mxu0 0.0
    %3165 = vmatprep.subr.mxu0 0.0
    %3166 = vmatpush1.msra.mxu0 0.0
    %3167 = vmatprep.subr.mxu0 0.0
    %3168 = vmatpush1.msra.mxu0 0.0
    %3169 = vmatprep.subr.mxu0 0.0
    %3170 = vmatpush1.msra.mxu0 0.0
    %3171 = vmatprep.subr.mxu0 0.0
    %3172 = vmatpush1.msra.mxu0 0.0
    %3173 = vmatprep.subr.mxu0 0.0
    %3174 = vmatpush1.msra.mxu0 0.0
    %3175 = vmatprep.subr.mxu0 0.0
    %3176 = vmatpush1.msra.mxu0 0.0
    %3177 = vmatprep.subr.mxu0 0.0
    %3178 = vmatpush1.msra.mxu0 0.0
    %3179 = vmatprep.subr.mxu0 0.0
    %3180 = vmatpush1.msra.mxu0 0.0
    %3181 = vmatprep.subr.mxu0 0.0
    %3182 = vmatpush1.msra.mxu0 0.0
    %3183 = vmatprep.mubr.f32.mxu0 0.0
    %3184 = vmatmul.mubr.f32.gmra.mrb[0].mxu0 %v2901
    %v3185 = vpop.f32.mrb[0].mxu0
    %v3186 = vadd.f32 0.0, %v3185
    %v3187 = vpop.f32.mrb[0].mxu0
    %3188 = vdwg.mxu0
    %v3189 = vadd.f32 %v3118, %v3186
    %v3190 = vld [vmem:[%s618] sm:$0xf]
    %v3192 = vsel %vm1012, %v2898, 0
    %3194 = vmatprep.subr.mxu0 0.0
    %3195 = vmatpush1.msra.mxu0 %v992
    %3196 = vmatprep.subr.mxu0 0.0
    %3197 = vmatpush1.msra.mxu0 %v993
    %3198 = vmatprep.subr.mxu0 0.0
    %3199 = vmatpush1.msra.mxu0 %v994
    %3200 = vmatprep.subr.mxu0 0.0
    %3201 = vmatpush1.msra.mxu0 %v995
    %3202 = vmatprep.subr.mxu0 0.0
    %3203 = vmatpush1.msra.mxu0 0.0
    %3204 = vmatprep.subr.mxu0 0.0
    %3205 = vmatpush1.msra.mxu0 0.0
    %3206 = vmatprep.subr.mxu0 0.0
    %3207 = vmatpush1.msra.mxu0 0.0
    %3208 = vmatprep.subr.mxu0 0.0
    %3209 = vmatpush1.msra.mxu0 0.0
    %3210 = vmatprep.subr.mxu0 0.0
    %3211 = vmatpush1.msra.mxu0 0.0
    %3212 = vmatprep.subr.mxu0 0.0
    %3213 = vmatpush1.msra.mxu0 0.0
    %3214 = vmatprep.subr.mxu0 0.0
    %3215 = vmatpush1.msra.mxu0 0.0
    %3216 = vmatprep.subr.mxu0 0.0
    %3217 = vmatpush1.msra.mxu0 0.0
    %3218 = vmatprep.subr.mxu0 0.0
    %3219 = vmatpush1.msra.mxu0 0.0
    %3220 = vmatprep.subr.mxu0 0.0
    %3221 = vmatpush1.msra.mxu0 0.0
    %3222 = vmatprep.subr.mxu0 0.0
    %3223 = vmatpush1.msra.mxu0 0.0
    %3224 = vmatprep.subr.mxu0 0.0
    %3225 = vmatpush1.msra.mxu0 0.0
    %3226 = vmatprep.subr.mxu0 0.0
    %3227 = vmatpush1.msra.mxu0 0.0
    %3228 = vmatprep.subr.mxu0 0.0
    %3229 = vmatpush1.msra.mxu0 0.0
    %3230 = vmatprep.subr.mxu0 0.0
    %3231 = vmatpush1.msra.mxu0 0.0
    %3232 = vmatprep.subr.mxu0 0.0
    %3233 = vmatpush1.msra.mxu0 0.0
    %3234 = vmatprep.subr.mxu0 0.0
    %3235 = vmatpush1.msra.mxu0 0.0
    %3236 = vmatprep.subr.mxu0 0.0
    %3237 = vmatpush1.msra.mxu0 0.0
    %3238 = vmatprep.subr.mxu0 0.0
    %3239 = vmatpush1.msra.mxu0 0.0
    %3240 = vmatprep.subr.mxu0 0.0
    %3241 = vmatpush1.msra.mxu0 0.0
    %3242 = vmatprep.subr.mxu0 0.0
    %3243 = vmatpush1.msra.mxu0 0.0
    %3244 = vmatprep.subr.mxu0 0.0
    %3245 = vmatpush1.msra.mxu0 0.0
    %3246 = vmatprep.subr.mxu0 0.0
    %3247 = vmatpush1.msra.mxu0 0.0
    %3248 = vmatprep.subr.mxu0 0.0
    %3249 = vmatpush1.msra.mxu0 0.0
    %3250 = vmatprep.subr.mxu0 0.0
    %3251 = vmatpush1.msra.mxu0 0.0
    %3252 = vmatprep.subr.mxu0 0.0
    %3253 = vmatpush1.msra.mxu0 0.0
    %3254 = vmatprep.subr.mxu0 0.0
    %3255 = vmatpush1.msra.mxu0 0.0
    %3256 = vmatprep.subr.mxu0 0.0
    %3257 = vmatpush1.msra.mxu0 0.0
    %3258 = vmatprep.mubr.f32.mxu0 0.0
    %3259 = vmatmul.mubr.f32.gmra.mrb[0].mxu0 %v3192
    %v3260 = vpop.f32.mrb[0].mxu0
    %v3261 = vadd.f32 0.0, %v3260
    %v3262 = vpop.f32.mrb[0].mxu0
    %3263 = vdwg.mxu0
    %v3264 = vadd.f32 %v3190, %v3261
    %v3265 = vld [vmem:[%s624] sm:$0xf]
    %3266 = vmatprep.subr.mxu0 0.0
    %3267 = vmatpush1.msra.mxu0 %v997
    %3268 = vmatprep.subr.mxu0 0.0
    %3269 = vmatpush1.msra.mxu0 %v998
    %3270 = vmatprep.subr.mxu0 0.0
    %3271 = vmatpush1.msra.mxu0 %v999
    %3272 = vmatprep.subr.mxu0 0.0
    %3273 = vmatpush1.msra.mxu0 %v1000
    %3274 = vmatprep.subr.mxu0 0.0
    %3275 = vmatpush1.msra.mxu0 0.0
    %3276 = vmatprep.subr.mxu0 0.0
    %3277 = vmatpush1.msra.mxu0 0.0
    %3278 = vmatprep.subr.mxu0 0.0
    %3279 = vmatpush1.msra.mxu0 0.0
    %3280 = vmatprep.subr.mxu0 0.0
    %3281 = vmatpush1.msra.mxu0 0.0
    %3282 = vmatprep.subr.mxu0 0.0
    %3283 = vmatpush1.msra.mxu0 0.0
    %3284 = vmatprep.subr.mxu0 0.0
    %3285 = vmatpush1.msra.mxu0 0.0
    %3286 = vmatprep.subr.mxu0 0.0
    %3287 = vmatpush1.msra.mxu0 0.0
    %3288 = vmatprep.subr.mxu0 0.0
    %3289 = vmatpush1.msra.mxu0 0.0
    %3290 = vmatprep.subr.mxu0 0.0
    %3291 = vmatpush1.msra.mxu0 0.0
    %3292 = vmatprep.subr.mxu0 0.0
    %3293 = vmatpush1.msra.mxu0 0.0
    %3294 = vmatprep.subr.mxu0 0.0
    %3295 = vmatpush1.msra.mxu0 0.0
    %3296 = vmatprep.subr.mxu0 0.0
    %3297 = vmatpush1.msra.mxu0 0.0
    %3298 = vmatprep.subr.mxu0 0.0
    %3299 = vmatpush1.msra.mxu0 0.0
    %3300 = vmatprep.subr.mxu0 0.0
    %3301 = vmatpush1.msra.mxu0 0.0
    %3302 = vmatprep.subr.mxu0 0.0
    %3303 = vmatpush1.msra.mxu0 0.0
    %3304 = vmatprep.subr.mxu0 0.0
    %3305 = vmatpush1.msra.mxu0 0.0
    %3306 = vmatprep.subr.mxu0 0.0
    %3307 = vmatpush1.msra.mxu0 0.0
    %3308 = vmatprep.subr.mxu0 0.0
    %3309 = vmatpush1.msra.mxu0 0.0
    %3310 = vmatprep.subr.mxu0 0.0
    %3311 = vmatpush1.msra.mxu0 0.0
    %3312 = vmatprep.subr.mxu0 0.0
    %3313 = vmatpush1.msra.mxu0 0.0
    %3314 = vmatprep.subr.mxu0 0.0
    %3315 = vmatpush1.msra.mxu0 0.0
    %3316 = vmatprep.subr.mxu0 0.0
    %3317 = vmatpush1.msra.mxu0 0.0
    %3318 = vmatprep.subr.mxu0 0.0
    %3319 = vmatpush1.msra.mxu0 0.0
    %3320 = vmatprep.subr.mxu0 0.0
    %3321 = vmatpush1.msra.mxu0 0.0
    %3322 = vmatprep.subr.mxu0 0.0
    %3323 = vmatpush1.msra.mxu0 0.0
    %3324 = vmatprep.subr.mxu0 0.0
    %3325 = vmatpush1.msra.mxu0 0.0
    %3326 = vmatprep.subr.mxu0 0.0
    %3327 = vmatpush1.msra.mxu0 0.0
    %3328 = vmatprep.subr.mxu0 0.0
    %3329 = vmatpush1.msra.mxu0 0.0
    %3330 = vmatprep.mubr.f32.mxu0 0.0
    %3331 = vmatmul.mubr.f32.gmra.mrb[0].mxu0 %v3192
    %v3332 = vpop.f32.mrb[0].mxu0
    %v3333 = vadd.f32 0.0, %v3332
    %v3334 = vpop.f32.mrb[0].mxu0
    %3335 = vdwg.mxu0
    %v3336 = vadd.f32 %v3265, %v3333
    %v3337 = vld [vmem:[%s629] sm:$0xf]
    %3338 = vmatprep.subr.mxu0 0.0
    %3339 = vmatpush1.msra.mxu0 %v1002
    %3340 = vmatprep.subr.mxu0 0.0
    %3341 = vmatpush1.msra.mxu0 %v1003
    %3342 = vmatprep.subr.mxu0 0.0
    %3343 = vmatpush1.msra.mxu0 %v1004
    %3344 = vmatprep.subr.mxu0 0.0
    %3345 = vmatpush1.msra.mxu0 %v1005
    %3346 = vmatprep.subr.mxu0 0.0
    %3347 = vmatpush1.msra.mxu0 0.0
    %3348 = vmatprep.subr.mxu0 0.0
    %3349 = vmatpush1.msra.mxu0 0.0
    %3350 = vmatprep.subr.mxu0 0.0
    %3351 = vmatpush1.msra.mxu0 0.0
    %3352 = vmatprep.subr.mxu0 0.0
    %3353 = vmatpush1.msra.mxu0 0.0
    %3354 = vmatprep.subr.mxu0 0.0
    %3355 = vmatpush1.msra.mxu0 0.0
    %3356 = vmatprep.subr.mxu0 0.0
    %3357 = vmatpush1.msra.mxu0 0.0
    %3358 = vmatprep.subr.mxu0 0.0
    %3359 = vmatpush1.msra.mxu0 0.0
    %3360 = vmatprep.subr.mxu0 0.0
    %3361 = vmatpush1.msra.mxu0 0.0
    %3362 = vmatprep.subr.mxu0 0.0
    %3363 = vmatpush1.msra.mxu0 0.0
    %3364 = vmatprep.subr.mxu0 0.0
    %3365 = vmatpush1.msra.mxu0 0.0
    %3366 = vmatprep.subr.mxu0 0.0
    %3367 = vmatpush1.msra.mxu0 0.0
    %3368 = vmatprep.subr.mxu0 0.0
    %3369 = vmatpush1.msra.mxu0 0.0
    %3370 = vmatprep.subr.mxu0 0.0
    %3371 = vmatpush1.msra.mxu0 0.0
    %3372 = vmatprep.subr.mxu0 0.0
    %3373 = vmatpush1.msra.mxu0 0.0
    %3374 = vmatprep.subr.mxu0 0.0
    %3375 = vmatpush1.msra.mxu0 0.0
    %3376 = vmatprep.subr.mxu0 0.0
    %3377 = vmatpush1.msra.mxu0 0.0
    %3378 = vmatprep.subr.mxu0 0.0
    %3379 = vmatpush1.msra.mxu0 0.0
    %3380 = vmatprep.subr.mxu0 0.0
    %3381 = vmatpush1.msra.mxu0 0.0
    %3382 = vmatprep.subr.mxu0 0.0
    %3383 = vmatpush1.msra.mxu0 0.0
    %3384 = vmatprep.subr.mxu0 0.0
    %3385 = vmatpush1.msra.mxu0 0.0
    %3386 = vmatprep.subr.mxu0 0.0
    %3387 = vmatpush1.msra.mxu0 0.0
    %3388 = vmatprep.subr.mxu0 0.0
    %3389 = vmatpush1.msra.mxu0 0.0
    %3390 = vmatprep.subr.mxu0 0.0
    %3391 = vmatpush1.msra.mxu0 0.0
    %3392 = vmatprep.subr.mxu0 0.0
    %3393 = vmatpush1.msra.mxu0 0.0
    %3394 = vmatprep.subr.mxu0 0.0
    %3395 = vmatpush1.msra.mxu0 0.0
    %3396 = vmatprep.subr.mxu0 0.0
    %3397 = vmatpush1.msra.mxu0 0.0
    %3398 = vmatprep.subr.mxu0 0.0
    %3399 = vmatpush1.msra.mxu0 0.0
    %3400 = vmatprep.subr.mxu0 0.0
    %3401 = vmatpush1.msra.mxu0 0.0
    %3402 = vmatprep.mubr.f32.mxu0 0.0
    %3403 = vmatmul.mubr.f32.gmra.mrb[0].mxu0 %v3192
    %v3404 = vpop.f32.mrb[0].mxu0
    %v3405 = vadd.f32 0.0, %v3404
    %v3406 = vpop.f32.mrb[0].mxu0
    %3407 = vdwg.mxu0
    %v3408 = vadd.f32 %v3337, %v3405
    %v3409 = vld [vmem:[%s634] sm:$0xf]
    %3410 = vmatprep.subr.mxu0 0.0
    %3411 = vmatpush1.msra.mxu0 %v1007
    %3412 = vmatprep.subr.mxu0 0.0
    %3413 = vmatpush1.msra.mxu0 %v1008
    %3414 = vmatprep.subr.mxu0 0.0
    %3415 = vmatpush1.msra.mxu0 %v1009
    %3416 = vmatprep.subr.mxu0 0.0
    %3417 = vmatpush1.msra.mxu0 %v1010
    %3418 = vmatprep.subr.mxu0 0.0
    %3419 = vmatpush1.msra.mxu0 0.0
    %3420 = vmatprep.subr.mxu0 0.0
    %3421 = vmatpush1.msra.mxu0 0.0
    %3422 = vmatprep.subr.mxu0 0.0
    %3423 = vmatpush1.msra.mxu0 0.0
    %3424 = vmatprep.subr.mxu0 0.0
    %3425 = vmatpush1.msra.mxu0 0.0
    %3426 = vmatprep.subr.mxu0 0.0
    %3427 = vmatpush1.msra.mxu0 0.0
    %3428 = vmatprep.subr.mxu0 0.0
    %3429 = vmatpush1.msra.mxu0 0.0
    %3430 = vmatprep.subr.mxu0 0.0
    %3431 = vmatpush1.msra.mxu0 0.0
    %3432 = vmatprep.subr.mxu0 0.0
    %3433 = vmatpush1.msra.mxu0 0.0
    %3434 = vmatprep.subr.mxu0 0.0
    %3435 = vmatpush1.msra.mxu0 0.0
    %3436 = vmatprep.subr.mxu0 0.0
    %3437 = vmatpush1.msra.mxu0 0.0
    %3438 = vmatprep.subr.mxu0 0.0
    %3439 = vmatpush1.msra.mxu0 0.0
    %3440 = vmatprep.subr.mxu0 0.0
    %3441 = vmatpush1.msra.mxu0 0.0
    %3442 = vmatprep.subr.mxu0 0.0
    %3443 = vmatpush1.msra.mxu0 0.0
    %3444 = vmatprep.subr.mxu0 0.0
    %3445 = vmatpush1.msra.mxu0 0.0
    %3446 = vmatprep.subr.mxu0 0.0
    %3447 = vmatpush1.msra.mxu0 0.0
    %3448 = vmatprep.subr.mxu0 0.0
    %3449 = vmatpush1.msra.mxu0 0.0
    %3450 = vmatprep.subr.mxu0 0.0
    %3451 = vmatpush1.msra.mxu0 0.0
    %3452 = vmatprep.subr.mxu0 0.0
    %3453 = vmatpush1.msra.mxu0 0.0
    %3454 = vmatprep.subr.mxu0 0.0
    %3455 = vmatpush1.msra.mxu0 0.0
    %3456 = vmatprep.subr.mxu0 0.0
    %3457 = vmatpush1.msra.mxu0 0.0
    %3458 = vmatprep.subr.mxu0 0.0
    %3459 = vmatpush1.msra.mxu0 0.0
    %3460 = vmatprep.subr.mxu0 0.0
    %3461 = vmatpush1.msra.mxu0 0.0
    %3462 = vmatprep.subr.mxu0 0.0
    %3463 = vmatpush1.msra.mxu0 0.0
    %3464 = vmatprep.subr.mxu0 0.0
    %3465 = vmatpush1.msra.mxu0 0.0
    %3466 = vmatprep.subr.mxu0 0.0
    %3467 = vmatpush1.msra.mxu0 0.0
    %3468 = vmatprep.subr.mxu0 0.0
    %3469 = vmatpush1.msra.mxu0 0.0
    %3470 = vmatprep.subr.mxu0 0.0
    %3471 = vmatpush1.msra.mxu0 0.0
    %3472 = vmatprep.subr.mxu0 0.0
    %3473 = vmatpush1.msra.mxu0 0.0
    %3474 = vmatprep.mubr.f32.mxu0 0.0
    %3475 = vmatmul.mubr.f32.gmra.mrb[0].mxu0 %v3192
    %v3476 = vpop.f32.mrb[0].mxu0
    %v3477 = vadd.f32 0.0, %v3476
    %v3478 = vpop.f32.mrb[0].mxu0
    %3479 = vdwg.mxu0
    %v3480 = vadd.f32 %v3409, %v3477
    %v3481 = vxor.u32 %v3045, 2147483648
    %v3482 = vmul.f32 %v3481, 1.442695
    %v3483 = vpow.pop %v3482
    %v3484 = vadd.f32 %v3483, 1.0
    %v3485 = vrcp.pop %v3484
    %v3486 = vmul.f32 1.0, %v3485
    %v3487 = vmul.f32 %v3486, %v2866
    %v3488 = vxor.u32 %v2973, 2147483648
    %v3489 = vmul.f32 %v3488, 1.442695
    %v3490 = vpow.pop %v3489
    %v3491 = vadd.f32 %v3490, 1.0
    %v3492 = vrcp.pop %v3491
    %v3493 = vmul.f32 1.0, %v3492
    %v3494 = vtanh.pop %v3117
    %v3495 = vmul.f32 %v3493, %v3494
    %v3496 = vadd.f32 %v3487, %v3495
    %v3497 = vxor.u32 %v3189, 2147483648
    %v3498 = vmul.f32 %v3497, 1.442695
    %v3499 = vpow.pop %v3498
    %v3500 = vadd.f32 %v3499, 1.0
    %v3501 = vrcp.pop %v3500
    %v3502 = vmul.f32 1.0, %v3501
    %v3503 = vtanh.pop %v3496
    %v3504 = vmul.f32 %v3502, %v3503
    %v3505 = vxor.u32 %v3336, 2147483648
    %v3506 = vmul.f32 %v3505, 1.442695
    %v3507 = vpow.pop %v3506
    %v3508 = vadd.f32 %v3507, 1.0
    %v3509 = vrcp.pop %v3508
    %v3510 = vmul.f32 1.0, %v3509
    %v3511 = vmul.f32 %v3510, %v2890
    %v3512 = vxor.u32 %v3264, 2147483648
    %v3513 = vmul.f32 %v3512, 1.442695
    %v3514 = vpow.pop %v3513
    %v3515 = vadd.f32 %v3514, 1.0
    %v3516 = vrcp.pop %v3515
    %v3517 = vmul.f32 1.0, %v3516
    %v3518 = vtanh.pop %v3408
    %v3519 = vmul.f32 %v3517, %v3518
    %v3520 = vadd.f32 %v3511, %v3519
    %v3521 = vxor.u32 %v3480, 2147483648
    %v3522 = vmul.f32 %v3521, 1.442695
    %v3523 = vpow.pop %v3522
    %v3524 = vadd.f32 %v3523, 1.0
    %v3525 = vrcp.pop %v3524
    %v3526 = vmul.f32 1.0, %v3525
    %v3527 = vtanh.pop %v3520
    %v3528 = vmul.f32 %v3526, %v3527
    %v3529 = vld [vmem:[%s600] sm:$0xf]
    %v3531 = vsel %vm1012, %v3504, 0
    %3533 = vmatprep.subr.mxu0 0.0
    %3534 = vmatpush1.msra.mxu0 %v972
    %3535 = vmatprep.subr.mxu0 0.0
    %3536 = vmatpush1.msra.mxu0 %v973
    %3537 = vmatprep.subr.mxu0 0.0
    %3538 = vmatpush1.msra.mxu0 %v974
    %3539 = vmatprep.subr.mxu0 0.0
    %3540 = vmatpush1.msra.mxu0 %v975
    %3541 = vmatprep.subr.mxu0 0.0
    %3542 = vmatpush1.msra.mxu0 0.0
    %3543 = vmatprep.subr.mxu0 0.0
    %3544 = vmatpush1.msra.mxu0 0.0
    %3545 = vmatprep.subr.mxu0 0.0
    %3546 = vmatpush1.msra.mxu0 0.0
    %3547 = vmatprep.subr.mxu0 0.0
    %3548 = vmatpush1.msra.mxu0 0.0
    %3549 = vmatprep.subr.mxu0 0.0
    %3550 = vmatpush1.msra.mxu0 0.0
    %3551 = vmatprep.subr.mxu0 0.0
    %3552 = vmatpush1.msra.mxu0 0.0
    %3553 = vmatprep.subr.mxu0 0.0
    %3554 = vmatpush1.msra.mxu0 0.0
    %3555 = vmatprep.subr.mxu0 0.0
    %3556 = vmatpush1.msra.mxu0 0.0
    %3557 = vmatprep.subr.mxu0 0.0
    %3558 = vmatpush1.msra.mxu0 0.0
    %3559 = vmatprep.subr.mxu0 0.0
    %3560 = vmatpush1.msra.mxu0 0.0
    %3561 = vmatprep.subr.mxu0 0.0
    %3562 = vmatpush1.msra.mxu0 0.0
    %3563 = vmatprep.subr.mxu0 0.0
    %3564 = vmatpush1.msra.mxu0 0.0
    %3565 = vmatprep.subr.mxu0 0.0
    %3566 = vmatpush1.msra.mxu0 0.0
    %3567 = vmatprep.subr.mxu0 0.0
    %3568 = vmatpush1.msra.mxu0 0.0
    %3569 = vmatprep.subr.mxu0 0.0
    %3570 = vmatpush1.msra.mxu0 0.0
    %3571 = vmatprep.subr.mxu0 0.0
    %3572 = vmatpush1.msra.mxu0 0.0
    %3573 = vmatprep.subr.mxu0 0.0
    %3574 = vmatpush1.msra.mxu0 0.0
    %3575 = vmatprep.subr.mxu0 0.0
    %3576 = vmatpush1.msra.mxu0 0.0
    %3577 = vmatprep.subr.mxu0 0.0
    %3578 = vmatpush1.msra.mxu0 0.0
    %3579 = vmatprep.subr.mxu0 0.0
    %3580 = vmatpush1.msra.mxu0 0.0
    %3581 = vmatprep.subr.mxu0 0.0
    %3582 = vmatpush1.msra.mxu0 0.0
    %3583 = vmatprep.subr.mxu0 0.0
    %3584 = vmatpush1.msra.mxu0 0.0
    %3585 = vmatprep.subr.mxu0 0.0
    %3586 = vmatpush1.msra.mxu0 0.0
    %3587 = vmatprep.subr.mxu0 0.0
    %3588 = vmatpush1.msra.mxu0 0.0
    %3589 = vmatprep.subr.mxu0 0.0
    %3590 = vmatpush1.msra.mxu0 0.0
    %3591 = vmatprep.subr.mxu0 0.0
    %3592 = vmatpush1.msra.mxu0 0.0
    %3593 = vmatprep.subr.mxu0 0.0
    %3594 = vmatpush1.msra.mxu0 0.0
    %3595 = vmatprep.subr.mxu0 0.0
    %3596 = vmatpush1.msra.mxu0 0.0
    %3597 = vmatprep.mubr.f32.mxu0 0.0
    %3598 = vmatmul.mubr.f32.gmra.mrb[0].mxu0 %v3531
    %v3599 = vpop.f32.mrb[0].mxu0
    %v3600 = vadd.f32 0.0, %v3599
    %v3601 = vpop.f32.mrb[0].mxu0
    %3602 = vdwg.mxu0
    %v3603 = vadd.f32 %v3529, %v3600
    %v3604 = vld [vmem:[%s606] sm:$0xf]
    %3605 = vmatprep.subr.mxu0 0.0
    %3606 = vmatpush1.msra.mxu0 %v977
    %3607 = vmatprep.subr.mxu0 0.0
    %3608 = vmatpush1.msra.mxu0 %v978
    %3609 = vmatprep.subr.mxu0 0.0
    %3610 = vmatpush1.msra.mxu0 %v979
    %3611 = vmatprep.subr.mxu0 0.0
    %3612 = vmatpush1.msra.mxu0 %v980
    %3613 = vmatprep.subr.mxu0 0.0
    %3614 = vmatpush1.msra.mxu0 0.0
    %3615 = vmatprep.subr.mxu0 0.0
    %3616 = vmatpush1.msra.mxu0 0.0
    %3617 = vmatprep.subr.mxu0 0.0
    %3618 = vmatpush1.msra.mxu0 0.0
    %3619 = vmatprep.subr.mxu0 0.0
    %3620 = vmatpush1.msra.mxu0 0.0
    %3621 = vmatprep.subr.mxu0 0.0
    %3622 = vmatpush1.msra.mxu0 0.0
    %3623 = vmatprep.subr.mxu0 0.0
    %3624 = vmatpush1.msra.mxu0 0.0
    %3625 = vmatprep.subr.mxu0 0.0
    %3626 = vmatpush1.msra.mxu0 0.0
    %3627 = vmatprep.subr.mxu0 0.0
    %3628 = vmatpush1.msra.mxu0 0.0
    %3629 = vmatprep.subr.mxu0 0.0
    %3630 = vmatpush1.msra.mxu0 0.0
    %3631 = vmatprep.subr.mxu0 0.0
    %3632 = vmatpush1.msra.mxu0 0.0
    %3633 = vmatprep.subr.mxu0 0.0
    %3634 = vmatpush1.msra.mxu0 0.0
    %3635 = vmatprep.subr.mxu0 0.0
    %3636 = vmatpush1.msra.mxu0 0.0
    %3637 = vmatprep.subr.mxu0 0.0
    %3638 = vmatpush1.msra.mxu0 0.0
    %3639 = vmatprep.subr.mxu0 0.0
    %3640 = vmatpush1.msra.mxu0 0.0
    %3641 = vmatprep.subr.mxu0 0.0
    %3642 = vmatpush1.msra.mxu0 0.0
    %3643 = vmatprep.subr.mxu0 0.0
    %3644 = vmatpush1.msra.mxu0 0.0
    %3645 = vmatprep.subr.mxu0 0.0
    %3646 = vmatpush1.msra.mxu0 0.0
    %3647 = vmatprep.subr.mxu0 0.0
    %3648 = vmatpush1.msra.mxu0 0.0
    %3649 = vmatprep.subr.mxu0 0.0
    %3650 = vmatpush1.msra.mxu0 0.0
    %3651 = vmatprep.subr.mxu0 0.0
    %3652 = vmatpush1.msra.mxu0 0.0
    %3653 = vmatprep.subr.mxu0 0.0
    %3654 = vmatpush1.msra.mxu0 0.0
    %3655 = vmatprep.subr.mxu0 0.0
    %3656 = vmatpush1.msra.mxu0 0.0
    %3657 = vmatprep.subr.mxu0 0.0
    %3658 = vmatpush1.msra.mxu0 0.0
    %3659 = vmatprep.subr.mxu0 0.0
    %3660 = vmatpush1.msra.mxu0 0.0
    %3661 = vmatprep.subr.mxu0 0.0
    %3662 = vmatpush1.msra.mxu0 0.0
    %3663 = vmatprep.subr.mxu0 0.0
    %3664 = vmatpush1.msra.mxu0 0.0
    %3665 = vmatprep.subr.mxu0 0.0
    %3666 = vmatpush1.msra.mxu0 0.0
    %3667 = vmatprep.subr.mxu0 0.0
    %3668 = vmatpush1.msra.mxu0 0.0
    %3669 = vmatprep.mubr.f32.mxu0 0.0
    %3670 = vmatmul.mubr.f32.gmra.mrb[0].mxu0 %v3531
    %v3671 = vpop.f32.mrb[0].mxu0
    %v3672 = vadd.f32 0.0, %v3671
    %v3673 = vpop.f32.mrb[0].mxu0
    %3674 = vdwg.mxu0
    %v3675 = vadd.f32 %v3604, %v3672
    %v3676 = vld [vmem:[%s611] sm:$0xf]
    %3677 = vmatprep.subr.mxu0 0.0
    %3678 = vmatpush1.msra.mxu0 %v982
    %3679 = vmatprep.subr.mxu0 0.0
    %3680 = vmatpush1.msra.mxu0 %v983
    %3681 = vmatprep.subr.mxu0 0.0
    %3682 = vmatpush1.msra.mxu0 %v984
    %3683 = vmatprep.subr.mxu0 0.0
    %3684 = vmatpush1.msra.mxu0 %v985
    %3685 = vmatprep.subr.mxu0 0.0
    %3686 = vmatpush1.msra.mxu0 0.0
    %3687 = vmatprep.subr.mxu0 0.0
    %3688 = vmatpush1.msra.mxu0 0.0
    %3689 = vmatprep.subr.mxu0 0.0
    %3690 = vmatpush1.msra.mxu0 0.0
    %3691 = vmatprep.subr.mxu0 0.0
    %3692 = vmatpush1.msra.mxu0 0.0
    %3693 = vmatprep.subr.mxu0 0.0
    %3694 = vmatpush1.msra.mxu0 0.0
    %3695 = vmatprep.subr.mxu0 0.0
    %3696 = vmatpush1.msra.mxu0 0.0
    %3697 = vmatprep.subr.mxu0 0.0
    %3698 = vmatpush1.msra.mxu0 0.0
    %3699 = vmatprep.subr.mxu0 0.0
    %3700 = vmatpush1.msra.mxu0 0.0
    %3701 = vmatprep.subr.mxu0 0.0
    %3702 = vmatpush1.msra.mxu0 0.0
    %3703 = vmatprep.subr.mxu0 0.0
    %3704 = vmatpush1.msra.mxu0 0.0
    %3705 = vmatprep.subr.mxu0 0.0
    %3706 = vmatpush1.msra.mxu0 0.0
    %3707 = vmatprep.subr.mxu0 0.0
    %3708 = vmatpush1.msra.mxu0 0.0
    %3709 = vmatprep.subr.mxu0 0.0
    %3710 = vmatpush1.msra.mxu0 0.0
    %3711 = vmatprep.subr.mxu0 0.0
    %3712 = vmatpush1.msra.mxu0 0.0
    %3713 = vmatprep.subr.mxu0 0.0
    %3714 = vmatpush1.msra.mxu0 0.0
    %3715 = vmatprep.subr.mxu0 0.0
    %3716 = vmatpush1.msra.mxu0 0.0
    %3717 = vmatprep.subr.mxu0 0.0
    %3718 = vmatpush1.msra.mxu0 0.0
    %3719 = vmatprep.subr.mxu0 0.0
    %3720 = vmatpush1.msra.mxu0 0.0
    %3721 = vmatprep.subr.mxu0 0.0
    %3722 = vmatpush1.msra.mxu0 0.0
    %3723 = vmatprep.subr.mxu0 0.0
    %3724 = vmatpush1.msra.mxu0 0.0
    %3725 = vmatprep.subr.mxu0 0.0
    %3726 = vmatpush1.msra.mxu0 0.0
    %3727 = vmatprep.subr.mxu0 0.0
    %3728 = vmatpush1.msra.mxu0 0.0
    %3729 = vmatprep.subr.mxu0 0.0
    %3730 = vmatpush1.msra.mxu0 0.0
    %3731 = vmatprep.subr.mxu0 0.0
    %3732 = vmatpush1.msra.mxu0 0.0
    %3733 = vmatprep.subr.mxu0 0.0
    %3734 = vmatpush1.msra.mxu0 0.0
    %3735 = vmatprep.subr.mxu0 0.0
    %3736 = vmatpush1.msra.mxu0 0.0
    %3737 = vmatprep.subr.mxu0 0.0
    %3738 = vmatpush1.msra.mxu0 0.0
    %3739 = vmatprep.subr.mxu0 0.0
    %3740 = vmatpush1.msra.mxu0 0.0
    %3741 = vmatprep.mubr.f32.mxu0 0.0
    %3742 = vmatmul.mubr.f32.gmra.mrb[0].mxu0 %v3531
    %v3743 = vpop.f32.mrb[0].mxu0
    %v3744 = vadd.f32 0.0, %v3743
    %v3745 = vpop.f32.mrb[0].mxu0
    %3746 = vdwg.mxu0
    %v3747 = vadd.f32 %v3676, %v3744
    %v3748 = vld [vmem:[%s616] sm:$0xf]
    %3749 = vmatprep.subr.mxu0 0.0
    %3750 = vmatpush1.msra.mxu0 %v987
    %3751 = vmatprep.subr.mxu0 0.0
    %3752 = vmatpush1.msra.mxu0 %v988
    %3753 = vmatprep.subr.mxu0 0.0
    %3754 = vmatpush1.msra.mxu0 %v989
    %3755 = vmatprep.subr.mxu0 0.0
    %3756 = vmatpush1.msra.mxu0 %v990
    %3757 = vmatprep.subr.mxu0 0.0
    %3758 = vmatpush1.msra.mxu0 0.0
    %3759 = vmatprep.subr.mxu0 0.0
    %3760 = vmatpush1.msra.mxu0 0.0
    %3761 = vmatprep.subr.mxu0 0.0
    %3762 = vmatpush1.msra.mxu0 0.0
    %3763 = vmatprep.subr.mxu0 0.0
    %3764 = vmatpush1.msra.mxu0 0.0
    %3765 = vmatprep.subr.mxu0 0.0
    %3766 = vmatpush1.msra.mxu0 0.0
    %3767 = vmatprep.subr.mxu0 0.0
    %3768 = vmatpush1.msra.mxu0 0.0
    %3769 = vmatprep.subr.mxu0 0.0
    %3770 = vmatpush1.msra.mxu0 0.0
    %3771 = vmatprep.subr.mxu0 0.0
    %3772 = vmatpush1.msra.mxu0 0.0
    %3773 = vmatprep.subr.mxu0 0.0
    %3774 = vmatpush1.msra.mxu0 0.0
    %3775 = vmatprep.subr.mxu0 0.0
    %3776 = vmatpush1.msra.mxu0 0.0
    %3777 = vmatprep.subr.mxu0 0.0
    %3778 = vmatpush1.msra.mxu0 0.0
    %3779 = vmatprep.subr.mxu0 0.0
    %3780 = vmatpush1.msra.mxu0 0.0
    %3781 = vmatprep.subr.mxu0 0.0
    %3782 = vmatpush1.msra.mxu0 0.0
    %3783 = vmatprep.subr.mxu0 0.0
    %3784 = vmatpush1.msra.mxu0 0.0
    %3785 = vmatprep.subr.mxu0 0.0
    %3786 = vmatpush1.msra.mxu0 0.0
    %3787 = vmatprep.subr.mxu0 0.0
    %3788 = vmatpush1.msra.mxu0 0.0
    %3789 = vmatprep.subr.mxu0 0.0
    %3790 = vmatpush1.msra.mxu0 0.0
    %3791 = vmatprep.subr.mxu0 0.0
    %3792 = vmatpush1.msra.mxu0 0.0
    %3793 = vmatprep.subr.mxu0 0.0
    %3794 = vmatpush1.msra.mxu0 0.0
    %3795 = vmatprep.subr.mxu0 0.0
    %3796 = vmatpush1.msra.mxu0 0.0
    %3797 = vmatprep.subr.mxu0 0.0
    %3798 = vmatpush1.msra.mxu0 0.0
    %3799 = vmatprep.subr.mxu0 0.0
    %3800 = vmatpush1.msra.mxu0 0.0
    %3801 = vmatprep.subr.mxu0 0.0
    %3802 = vmatpush1.msra.mxu0 0.0
    %3803 = vmatprep.subr.mxu0 0.0
    %3804 = vmatpush1.msra.mxu0 0.0
    %3805 = vmatprep.subr.mxu0 0.0
    %3806 = vmatpush1.msra.mxu0 0.0
    %3807 = vmatprep.subr.mxu0 0.0
    %3808 = vmatpush1.msra.mxu0 0.0
    %3809 = vmatprep.subr.mxu0 0.0
    %3810 = vmatpush1.msra.mxu0 0.0
    %3811 = vmatprep.subr.mxu0 0.0
    %3812 = vmatpush1.msra.mxu0 0.0
    %3813 = vmatprep.mubr.f32.mxu0 0.0
    %3814 = vmatmul.mubr.f32.gmra.mrb[0].mxu0 %v3531
    %v3815 = vpop.f32.mrb[0].mxu0
    %v3816 = vadd.f32 0.0, %v3815
    %v3817 = vpop.f32.mrb[0].mxu0
    %3818 = vdwg.mxu0
    %v3819 = vadd.f32 %v3748, %v3816
    %v3820 = vld [vmem:[%s506] sm:$0xf]
    %v3822 = vsel %vm1012, %v3528, 0
    %3824 = vmatprep.subr.mxu0 0.0
    %3825 = vmatpush1.msra.mxu0 %v992
    %3826 = vmatprep.subr.mxu0 0.0
    %3827 = vmatpush1.msra.mxu0 %v993
    %3828 = vmatprep.subr.mxu0 0.0
    %3829 = vmatpush1.msra.mxu0 %v994
    %3830 = vmatprep.subr.mxu0 0.0
    %3831 = vmatpush1.msra.mxu0 %v995
    %3832 = vmatprep.subr.mxu0 0.0
    %3833 = vmatpush1.msra.mxu0 0.0
    %3834 = vmatprep.subr.mxu0 0.0
    %3835 = vmatpush1.msra.mxu0 0.0
    %3836 = vmatprep.subr.mxu0 0.0
    %3837 = vmatpush1.msra.mxu0 0.0
    %3838 = vmatprep.subr.mxu0 0.0
    %3839 = vmatpush1.msra.mxu0 0.0
    %3840 = vmatprep.subr.mxu0 0.0
    %3841 = vmatpush1.msra.mxu0 0.0
    %3842 = vmatprep.subr.mxu0 0.0
    %3843 = vmatpush1.msra.mxu0 0.0
    %3844 = vmatprep.subr.mxu0 0.0
    %3845 = vmatpush1.msra.mxu0 0.0
    %3846 = vmatprep.subr.mxu0 0.0
    %3847 = vmatpush1.msra.mxu0 0.0
    %3848 = vmatprep.subr.mxu0 0.0
    %3849 = vmatpush1.msra.mxu0 0.0
    %3850 = vmatprep.subr.mxu0 0.0
    %3851 = vmatpush1.msra.mxu0 0.0
    %3852 = vmatprep.subr.mxu0 0.0
    %3853 = vmatpush1.msra.mxu0 0.0
    %3854 = vmatprep.subr.mxu0 0.0
    %3855 = vmatpush1.msra.mxu0 0.0
    %3856 = vmatprep.subr.mxu0 0.0
    %3857 = vmatpush1.msra.mxu0 0.0
    %3858 = vmatprep.subr.mxu0 0.0
    %3859 = vmatpush1.msra.mxu0 0.0
    %3860 = vmatprep.subr.mxu0 0.0
    %3861 = vmatpush1.msra.mxu0 0.0
    %3862 = vmatprep.subr.mxu0 0.0
    %3863 = vmatpush1.msra.mxu0 0.0
    %3864 = vmatprep.subr.mxu0 0.0
    %3865 = vmatpush1.msra.mxu0 0.0
    %3866 = vmatprep.subr.mxu0 0.0
    %3867 = vmatpush1.msra.mxu0 0.0
    %3868 = vmatprep.subr.mxu0 0.0
    %3869 = vmatpush1.msra.mxu0 0.0
    %3870 = vmatprep.subr.mxu0 0.0
    %3871 = vmatpush1.msra.mxu0 0.0
    %3872 = vmatprep.subr.mxu0 0.0
    %3873 = vmatpush1.msra.mxu0 0.0
    %3874 = vmatprep.subr.mxu0 0.0
    %3875 = vmatpush1.msra.mxu0 0.0
    %3876 = vmatprep.subr.mxu0 0.0
    %3877 = vmatpush1.msra.mxu0 0.0
    %3878 = vmatprep.subr.mxu0 0.0
    %3879 = vmatpush1.msra.mxu0 0.0
    %3880 = vmatprep.subr.mxu0 0.0
    %3881 = vmatpush1.msra.mxu0 0.0
    %3882 = vmatprep.subr.mxu0 0.0
    %3883 = vmatpush1.msra.mxu0 0.0
    %3884 = vmatprep.subr.mxu0 0.0
    %3885 = vmatpush1.msra.mxu0 0.0
    %3886 = vmatprep.subr.mxu0 0.0
    %3887 = vmatpush1.msra.mxu0 0.0
    %3888 = vmatprep.mubr.f32.mxu0 0.0
    %3889 = vmatmul.mubr.f32.gmra.mrb[0].mxu0 %v3822
    %v3890 = vpop.f32.mrb[0].mxu0
    %v3891 = vadd.f32 0.0, %v3890
    %v3892 = vpop.f32.mrb[0].mxu0
    %3893 = vdwg.mxu0
    %v3894 = vadd.f32 %v3820, %v3891
    %v3895 = vld [vmem:[%s512] sm:$0xf]
    %3896 = vmatprep.subr.mxu0 0.0
    %3897 = vmatpush1.msra.mxu0 %v997
    %3898 = vmatprep.subr.mxu0 0.0
    %3899 = vmatpush1.msra.mxu0 %v998
    %3900 = vmatprep.subr.mxu0 0.0
    %3901 = vmatpush1.msra.mxu0 %v999
    %3902 = vmatprep.subr.mxu0 0.0
    %3903 = vmatpush1.msra.mxu0 %v1000
    %3904 = vmatprep.subr.mxu0 0.0
    %3905 = vmatpush1.msra.mxu0 0.0
    %3906 = vmatprep.subr.mxu0 0.0
    %3907 = vmatpush1.msra.mxu0 0.0
    %3908 = vmatprep.subr.mxu0 0.0
    %3909 = vmatpush1.msra.mxu0 0.0
    %3910 = vmatprep.subr.mxu0 0.0
    %3911 = vmatpush1.msra.mxu0 0.0
    %3912 = vmatprep.subr.mxu0 0.0
    %3913 = vmatpush1.msra.mxu0 0.0
    %3914 = vmatprep.subr.mxu0 0.0
    %3915 = vmatpush1.msra.mxu0 0.0
    %3916 = vmatprep.subr.mxu0 0.0
    %3917 = vmatpush1.msra.mxu0 0.0
    %3918 = vmatprep.subr.mxu0 0.0
    %3919 = vmatpush1.msra.mxu0 0.0
    %3920 = vmatprep.subr.mxu0 0.0
    %3921 = vmatpush1.msra.mxu0 0.0
    %3922 = vmatprep.subr.mxu0 0.0
    %3923 = vmatpush1.msra.mxu0 0.0
    %3924 = vmatprep.subr.mxu0 0.0
    %3925 = vmatpush1.msra.mxu0 0.0
    %3926 = vmatprep.subr.mxu0 0.0
    %3927 = vmatpush1.msra.mxu0 0.0
    %3928 = vmatprep.subr.mxu0 0.0
    %3929 = vmatpush1.msra.mxu0 0.0
    %3930 = vmatprep.subr.mxu0 0.0
    %3931 = vmatpush1.msra.mxu0 0.0
    %3932 = vmatprep.subr.mxu0 0.0
    %3933 = vmatpush1.msra.mxu0 0.0
    %3934 = vmatprep.subr.mxu0 0.0
    %3935 = vmatpush1.msra.mxu0 0.0
    %3936 = vmatprep.subr.mxu0 0.0
    %3937 = vmatpush1.msra.mxu0 0.0
    %3938 = vmatprep.subr.mxu0 0.0
    %3939 = vmatpush1.msra.mxu0 0.0
    %3940 = vmatprep.subr.mxu0 0.0
    %3941 = vmatpush1.msra.mxu0 0.0
    %3942 = vmatprep.subr.mxu0 0.0
    %3943 = vmatpush1.msra.mxu0 0.0
    %3944 = vmatprep.subr.mxu0 0.0
    %3945 = vmatpush1.msra.mxu0 0.0
    %3946 = vmatprep.subr.mxu0 0.0
    %3947 = vmatpush1.msra.mxu0 0.0
    %3948 = vmatprep.subr.mxu0 0.0
    %3949 = vmatpush1.msra.mxu0 0.0
    %3950 = vmatprep.subr.mxu0 0.0
    %3951 = vmatpush1.msra.mxu0 0.0
    %3952 = vmatprep.subr.mxu0 0.0
    %3953 = vmatpush1.msra.mxu0 0.0
    %3954 = vmatprep.subr.mxu0 0.0
    %3955 = vmatpush1.msra.mxu0 0.0
    %3956 = vmatprep.subr.mxu0 0.0
    %3957 = vmatpush1.msra.mxu0 0.0
    %3958 = vmatprep.subr.mxu0 0.0
    %3959 = vmatpush1.msra.mxu0 0.0
    %3960 = vmatprep.mubr.f32.mxu0 0.0
    %3961 = vmatmul.mubr.f32.gmra.mrb[0].mxu0 %v3822
    %v3962 = vpop.f32.mrb[0].mxu0
    %v3963 = vadd.f32 0.0, %v3962
    %v3964 = vpop.f32.mrb[0].mxu0
    %3965 = vdwg.mxu0
    %v3966 = vadd.f32 %v3895, %v3963
    %v3967 = vld [vmem:[%s517] sm:$0xf]
    %3968 = vmatprep.subr.mxu0 0.0
    %3969 = vmatpush1.msra.mxu0 %v1002
    %3970 = vmatprep.subr.mxu0 0.0
    %3971 = vmatpush1.msra.mxu0 %v1003
    %3972 = vmatprep.subr.mxu0 0.0
    %3973 = vmatpush1.msra.mxu0 %v1004
    %3974 = vmatprep.subr.mxu0 0.0
    %3975 = vmatpush1.msra.mxu0 %v1005
    %3976 = vmatprep.subr.mxu0 0.0
    %3977 = vmatpush1.msra.mxu0 0.0
    %3978 = vmatprep.subr.mxu0 0.0
    %3979 = vmatpush1.msra.mxu0 0.0
    %3980 = vmatprep.subr.mxu0 0.0
    %3981 = vmatpush1.msra.mxu0 0.0
    %3982 = vmatprep.subr.mxu0 0.0
    %3983 = vmatpush1.msra.mxu0 0.0
    %3984 = vmatprep.subr.mxu0 0.0
    %3985 = vmatpush1.msra.mxu0 0.0
    %3986 = vmatprep.subr.mxu0 0.0
    %3987 = vmatpush1.msra.mxu0 0.0
    %3988 = vmatprep.subr.mxu0 0.0
    %3989 = vmatpush1.msra.mxu0 0.0
    %3990 = vmatprep.subr.mxu0 0.0
    %3991 = vmatpush1.msra.mxu0 0.0
    %3992 = vmatprep.subr.mxu0 0.0
    %3993 = vmatpush1.msra.mxu0 0.0
    %3994 = vmatprep.subr.mxu0 0.0
    %3995 = vmatpush1.msra.mxu0 0.0
    %3996 = vmatprep.subr.mxu0 0.0
    %3997 = vmatpush1.msra.mxu0 0.0
    %3998 = vmatprep.subr.mxu0 0.0
    %3999 = vmatpush1.msra.mxu0 0.0
    %4000 = vmatprep.subr.mxu0 0.0
    %4001 = vmatpush1.msra.mxu0 0.0
    %4002 = vmatprep.subr.mxu0 0.0
    %4003 = vmatpush1.msra.mxu0 0.0
    %4004 = vmatprep.subr.mxu0 0.0
    %4005 = vmatpush1.msra.mxu0 0.0
    %4006 = vmatprep.subr.mxu0 0.0
    %4007 = vmatpush1.msra.mxu0 0.0
    %4008 = vmatprep.subr.mxu0 0.0
    %4009 = vmatpush1.msra.mxu0 0.0
    %4010 = vmatprep.subr.mxu0 0.0
    %4011 = vmatpush1.msra.mxu0 0.0
    %4012 = vmatprep.subr.mxu0 0.0
    %4013 = vmatpush1.msra.mxu0 0.0
    %4014 = vmatprep.subr.mxu0 0.0
    %4015 = vmatpush1.msra.mxu0 0.0
    %4016 = vmatprep.subr.mxu0 0.0
    %4017 = vmatpush1.msra.mxu0 0.0
    %4018 = vmatprep.subr.mxu0 0.0
    %4019 = vmatpush1.msra.mxu0 0.0
    %4020 = vmatprep.subr.mxu0 0.0
    %4021 = vmatpush1.msra.mxu0 0.0
    %4022 = vmatprep.subr.mxu0 0.0
    %4023 = vmatpush1.msra.mxu0 0.0
    %4024 = vmatprep.subr.mxu0 0.0
    %4025 = vmatpush1.msra.mxu0 0.0
    %4026 = vmatprep.subr.mxu0 0.0
    %4027 = vmatpush1.msra.mxu0 0.0
    %4028 = vmatprep.subr.mxu0 0.0
    %4029 = vmatpush1.msra.mxu0 0.0
    %4030 = vmatprep.subr.mxu0 0.0
    %4031 = vmatpush1.msra.mxu0 0.0
    %4032 = vmatprep.mubr.f32.mxu0 0.0
    %4033 = vmatmul.mubr.f32.gmra.mrb[0].mxu0 %v3822
    %v4034 = vpop.f32.mrb[0].mxu0
    %v4035 = vadd.f32 0.0, %v4034
    %v4036 = vpop.f32.mrb[0].mxu0
    %4037 = vdwg.mxu0
    %v4038 = vadd.f32 %v3967, %v4035
    %v4039 = vld [vmem:[%s522] sm:$0xf]
    %4040 = vmatprep.subr.mxu0 0.0
    %4041 = vmatpush1.msra.mxu0 %v1007
    %4042 = vmatprep.subr.mxu0 0.0
    %4043 = vmatpush1.msra.mxu0 %v1008
    %4044 = vmatprep.subr.mxu0 0.0
    %4045 = vmatpush1.msra.mxu0 %v1009
    %4046 = vmatprep.subr.mxu0 0.0
    %4047 = vmatpush1.msra.mxu0 %v1010
    %4048 = vmatprep.subr.mxu0 0.0
    %4049 = vmatpush1.msra.mxu0 0.0
    %4050 = vmatprep.subr.mxu0 0.0
    %4051 = vmatpush1.msra.mxu0 0.0
    %4052 = vmatprep.subr.mxu0 0.0
    %4053 = vmatpush1.msra.mxu0 0.0
    %4054 = vmatprep.subr.mxu0 0.0
    %4055 = vmatpush1.msra.mxu0 0.0
    %4056 = vmatprep.subr.mxu0 0.0
    %4057 = vmatpush1.msra.mxu0 0.0
    %4058 = vmatprep.subr.mxu0 0.0
    %4059 = vmatpush1.msra.mxu0 0.0
    %4060 = vmatprep.subr.mxu0 0.0
    %4061 = vmatpush1.msra.mxu0 0.0
    %4062 = vmatprep.subr.mxu0 0.0
    %4063 = vmatpush1.msra.mxu0 0.0
    %4064 = vmatprep.subr.mxu0 0.0
    %4065 = vmatpush1.msra.mxu0 0.0
    %4066 = vmatprep.subr.mxu0 0.0
    %4067 = vmatpush1.msra.mxu0 0.0
    %4068 = vmatprep.subr.mxu0 0.0
    %4069 = vmatpush1.msra.mxu0 0.0
    %4070 = vmatprep.subr.mxu0 0.0
    %4071 = vmatpush1.msra.mxu0 0.0
    %4072 = vmatprep.subr.mxu0 0.0
    %4073 = vmatpush1.msra.mxu0 0.0
    %4074 = vmatprep.subr.mxu0 0.0
    %4075 = vmatpush1.msra.mxu0 0.0
    %4076 = vmatprep.subr.mxu0 0.0
    %4077 = vmatpush1.msra.mxu0 0.0
    %4078 = vmatprep.subr.mxu0 0.0
    %4079 = vmatpush1.msra.mxu0 0.0
    %4080 = vmatprep.subr.mxu0 0.0
    %4081 = vmatpush1.msra.mxu0 0.0
    %4082 = vmatprep.subr.mxu0 0.0
    %4083 = vmatpush1.msra.mxu0 0.0
    %4084 = vmatprep.subr.mxu0 0.0
    %4085 = vmatpush1.msra.mxu0 0.0
    %4086 = vmatprep.subr.mxu0 0.0
    %4087 = vmatpush1.msra.mxu0 0.0
    %4088 = vmatprep.subr.mxu0 0.0
    %4089 = vmatpush1.msra.mxu0 0.0
    %4090 = vmatprep.subr.mxu0 0.0
    %4091 = vmatpush1.msra.mxu0 0.0
    %4092 = vmatprep.subr.mxu0 0.0
    %4093 = vmatpush1.msra.mxu0 0.0
    %4094 = vmatprep.subr.mxu0 0.0
    %4095 = vmatpush1.msra.mxu0 0.0
    %4096 = vmatprep.subr.mxu0 0.0
    %4097 = vmatpush1.msra.mxu0 0.0
    %4098 = vmatprep.subr.mxu0 0.0
    %4099 = vmatpush1.msra.mxu0 0.0
    %4100 = vmatprep.subr.mxu0 0.0
    %4101 = vmatpush1.msra.mxu0 0.0
    %4102 = vmatprep.subr.mxu0 0.0
    %4103 = vmatpush1.msra.mxu0 0.0
    %4104 = vmatprep.mubr.f32.mxu0 0.0
    %4105 = vmatmul.mubr.f32.gmra.mrb[0].mxu0 %v3822
    %v4106 = vpop.f32.mrb[0].mxu0
    %v4107 = vadd.f32 0.0, %v4106
    %v4108 = vpop.f32.mrb[0].mxu0
    %4109 = vdwg.mxu0
    %v4110 = vadd.f32 %v4039, %v4107
    %v4111 = vxor.u32 %v3675, 2147483648
    %v4112 = vmul.f32 %v4111, 1.442695
    %v4113 = vpow.pop %v4112
    %v4114 = vadd.f32 %v4113, 1.0
    %v4115 = vrcp.pop %v4114
    %v4116 = vmul.f32 1.0, %v4115
    %v4117 = vmul.f32 %v4116, %v3496
    %v4118 = vxor.u32 %v3603, 2147483648
    %v4119 = vmul.f32 %v4118, 1.442695
    %v4120 = vpow.pop %v4119
    %v4121 = vadd.f32 %v4120, 1.0
    %v4122 = vrcp.pop %v4121
    %v4123 = vmul.f32 1.0, %v4122
    %v4124 = vtanh.pop %v3747
    %v4125 = vmul.f32 %v4123, %v4124
    %v4126 = vadd.f32 %v4117, %v4125
    %v4127 = vxor.u32 %v3819, 2147483648
    %v4128 = vmul.f32 %v4127, 1.442695
    %v4129 = vpow.pop %v4128
    %v4130 = vadd.f32 %v4129, 1.0
    %v4131 = vrcp.pop %v4130
    %v4132 = vmul.f32 1.0, %v4131
    %v4133 = vtanh.pop %v4126
    %v4134 = vmul.f32 %v4132, %v4133
    %v4135 = vxor.u32 %v3966, 2147483648
    %v4136 = vmul.f32 %v4135, 1.442695
    %v4137 = vpow.pop %v4136
    %v4138 = vadd.f32 %v4137, 1.0
    %v4139 = vrcp.pop %v4138
    %v4140 = vmul.f32 1.0, %v4139
    %v4141 = vmul.f32 %v4140, %v3520
    %v4142 = vxor.u32 %v3894, 2147483648
    %v4143 = vmul.f32 %v4142, 1.442695
    %v4144 = vpow.pop %v4143
    %v4145 = vadd.f32 %v4144, 1.0
    %v4146 = vrcp.pop %v4145
    %v4147 = vmul.f32 1.0, %v4146
    %v4148 = vtanh.pop %v4038
    %v4149 = vmul.f32 %v4147, %v4148
    %v4150 = vadd.f32 %v4141, %v4149
    %v4151 = vxor.u32 %v4110, 2147483648
    %v4152 = vmul.f32 %v4151, 1.442695
    %v4153 = vpow.pop %v4152
    %v4154 = vadd.f32 %v4153, 1.0
    %v4155 = vrcp.pop %v4154
    %v4156 = vmul.f32 1.0, %v4155
    %v4157 = vtanh.pop %v4150
    %v4158 = vmul.f32 %v4156, %v4157
    %v4159 = vld [vmem:[%s712] sm:$0xf]
    %v4161 = vsel %vm1012, %v4134, 0
    %4163 = vmatprep.subr.mxu0 0.0
    %4164 = vmatpush1.msra.mxu0 %v972
    %4165 = vmatprep.subr.mxu0 0.0
    %4166 = vmatpush1.msra.mxu0 %v973
    %4167 = vmatprep.subr.mxu0 0.0
    %4168 = vmatpush1.msra.mxu0 %v974
    %4169 = vmatprep.subr.mxu0 0.0
    %4170 = vmatpush1.msra.mxu0 %v975
    %4171 = vmatprep.subr.mxu0 0.0
    %4172 = vmatpush1.msra.mxu0 0.0
    %4173 = vmatprep.subr.mxu0 0.0
    %4174 = vmatpush1.msra.mxu0 0.0
    %4175 = vmatprep.subr.mxu0 0.0
    %4176 = vmatpush1.msra.mxu0 0.0
    %4177 = vmatprep.subr.mxu0 0.0
    %4178 = vmatpush1.msra.mxu0 0.0
    %4179 = vmatprep.subr.mxu0 0.0
    %4180 = vmatpush1.msra.mxu0 0.0
    %4181 = vmatprep.subr.mxu0 0.0
    %4182 = vmatpush1.msra.mxu0 0.0
    %4183 = vmatprep.subr.mxu0 0.0
    %4184 = vmatpush1.msra.mxu0 0.0
    %4185 = vmatprep.subr.mxu0 0.0
    %4186 = vmatpush1.msra.mxu0 0.0
    %4187 = vmatprep.subr.mxu0 0.0
    %4188 = vmatpush1.msra.mxu0 0.0
    %4189 = vmatprep.subr.mxu0 0.0
    %4190 = vmatpush1.msra.mxu0 0.0
    %4191 = vmatprep.subr.mxu0 0.0
    %4192 = vmatpush1.msra.mxu0 0.0
    %4193 = vmatprep.subr.mxu0 0.0
    %4194 = vmatpush1.msra.mxu0 0.0
    %4195 = vmatprep.subr.mxu0 0.0
    %4196 = vmatpush1.msra.mxu0 0.0
    %4197 = vmatprep.subr.mxu0 0.0
    %4198 = vmatpush1.msra.mxu0 0.0
    %4199 = vmatprep.subr.mxu0 0.0
    %4200 = vmatpush1.msra.mxu0 0.0
    %4201 = vmatprep.subr.mxu0 0.0
    %4202 = vmatpush1.msra.mxu0 0.0
    %4203 = vmatprep.subr.mxu0 0.0
    %4204 = vmatpush1.msra.mxu0 0.0
    %4205 = vmatprep.subr.mxu0 0.0
    %4206 = vmatpush1.msra.mxu0 0.0
    %4207 = vmatprep.subr.mxu0 0.0
    %4208 = vmatpush1.msra.mxu0 0.0
    %4209 = vmatprep.subr.mxu0 0.0
    %4210 = vmatpush1.msra.mxu0 0.0
    %4211 = vmatprep.subr.mxu0 0.0
    %4212 = vmatpush1.msra.mxu0 0.0
    %4213 = vmatprep.subr.mxu0 0.0
    %4214 = vmatpush1.msra.mxu0 0.0
    %4215 = vmatprep.subr.mxu0 0.0
    %4216 = vmatpush1.msra.mxu0 0.0
    %4217 = vmatprep.subr.mxu0 0.0
    %4218 = vmatpush1.msra.mxu0 0.0
    %4219 = vmatprep.subr.mxu0 0.0
    %4220 = vmatpush1.msra.mxu0 0.0
    %4221 = vmatprep.subr.mxu0 0.0
    %4222 = vmatpush1.msra.mxu0 0.0
    %4223 = vmatprep.subr.mxu0 0.0
    %4224 = vmatpush1.msra.mxu0 0.0
    %4225 = vmatprep.subr.mxu0 0.0
    %4226 = vmatpush1.msra.mxu0 0.0
    %4227 = vmatprep.mubr.f32.mxu0 0.0
    %4228 = vmatmul.mubr.f32.gmra.mrb[0].mxu0 %v4161
    %v4229 = vpop.f32.mrb[0].mxu0
    %v4230 = vadd.f32 0.0, %v4229
    %v4231 = vpop.f32.mrb[0].mxu0
    %4232 = vdwg.mxu0
    %v4233 = vadd.f32 %v4159, %v4230
    %v4234 = vld [vmem:[%s718] sm:$0xf]
    %4235 = vmatprep.subr.mxu0 0.0
    %4236 = vmatpush1.msra.mxu0 %v977
    %4237 = vmatprep.subr.mxu0 0.0
    %4238 = vmatpush1.msra.mxu0 %v978
    %4239 = vmatprep.subr.mxu0 0.0
    %4240 = vmatpush1.msra.mxu0 %v979
    %4241 = vmatprep.subr.mxu0 0.0
    %4242 = vmatpush1.msra.mxu0 %v980
    %4243 = vmatprep.subr.mxu0 0.0
    %4244 = vmatpush1.msra.mxu0 0.0
    %4245 = vmatprep.subr.mxu0 0.0
    %4246 = vmatpush1.msra.mxu0 0.0
    %4247 = vmatprep.subr.mxu0 0.0
    %4248 = vmatpush1.msra.mxu0 0.0
    %4249 = vmatprep.subr.mxu0 0.0
    %4250 = vmatpush1.msra.mxu0 0.0
    %4251 = vmatprep.subr.mxu0 0.0
    %4252 = vmatpush1.msra.mxu0 0.0
    %4253 = vmatprep.subr.mxu0 0.0
    %4254 = vmatpush1.msra.mxu0 0.0
    %4255 = vmatprep.subr.mxu0 0.0
    %4256 = vmatpush1.msra.mxu0 0.0
    %4257 = vmatprep.subr.mxu0 0.0
    %4258 = vmatpush1.msra.mxu0 0.0
    %4259 = vmatprep.subr.mxu0 0.0
    %4260 = vmatpush1.msra.mxu0 0.0
    %4261 = vmatprep.subr.mxu0 0.0
    %4262 = vmatpush1.msra.mxu0 0.0
    %4263 = vmatprep.subr.mxu0 0.0
    %4264 = vmatpush1.msra.mxu0 0.0
    %4265 = vmatprep.subr.mxu0 0.0
    %4266 = vmatpush1.msra.mxu0 0.0
    %4267 = vmatprep.subr.mxu0 0.0
    %4268 = vmatpush1.msra.mxu0 0.0
    %4269 = vmatprep.subr.mxu0 0.0
    %4270 = vmatpush1.msra.mxu0 0.0
    %4271 = vmatprep.subr.mxu0 0.0
    %4272 = vmatpush1.msra.mxu0 0.0
    %4273 = vmatprep.subr.mxu0 0.0
    %4274 = vmatpush1.msra.mxu0 0.0
    %4275 = vmatprep.subr.mxu0 0.0
    %4276 = vmatpush1.msra.mxu0 0.0
    %4277 = vmatprep.subr.mxu0 0.0
    %4278 = vmatpush1.msra.mxu0 0.0
    %4279 = vmatprep.subr.mxu0 0.0
    %4280 = vmatpush1.msra.mxu0 0.0
    %4281 = vmatprep.subr.mxu0 0.0
    %4282 = vmatpush1.msra.mxu0 0.0
    %4283 = vmatprep.subr.mxu0 0.0
    %4284 = vmatpush1.msra.mxu0 0.0
    %4285 = vmatprep.subr.mxu0 0.0
    %4286 = vmatpush1.msra.mxu0 0.0
    %4287 = vmatprep.subr.mxu0 0.0
    %4288 = vmatpush1.msra.mxu0 0.0
    %4289 = vmatprep.subr.mxu0 0.0
    %4290 = vmatpush1.msra.mxu0 0.0
    %4291 = vmatprep.subr.mxu0 0.0
    %4292 = vmatpush1.msra.mxu0 0.0
    %4293 = vmatprep.subr.mxu0 0.0
    %4294 = vmatpush1.msra.mxu0 0.0
    %4295 = vmatprep.subr.mxu0 0.0
    %4296 = vmatpush1.msra.mxu0 0.0
    %4297 = vmatprep.subr.mxu0 0.0
    %4298 = vmatpush1.msra.mxu0 0.0
    %4299 = vmatprep.mubr.f32.mxu0 0.0
    %4300 = vmatmul.mubr.f32.gmra.mrb[0].mxu0 %v4161
    %v4301 = vpop.f32.mrb[0].mxu0
    %v4302 = vadd.f32 0.0, %v4301
    %v4303 = vpop.f32.mrb[0].mxu0
    %4304 = vdwg.mxu0
    %v4305 = vadd.f32 %v4234, %v4302
    %v4306 = vld [vmem:[%s723] sm:$0xf]
    %4307 = vmatprep.subr.mxu0 0.0
    %4308 = vmatpush1.msra.mxu0 %v982
    %4309 = vmatprep.subr.mxu0 0.0
    %4310 = vmatpush1.msra.mxu0 %v983
    %4311 = vmatprep.subr.mxu0 0.0
    %4312 = vmatpush1.msra.mxu0 %v984
    %4313 = vmatprep.subr.mxu0 0.0
    %4314 = vmatpush1.msra.mxu0 %v985
    %4315 = vmatprep.subr.mxu0 0.0
    %4316 = vmatpush1.msra.mxu0 0.0
    %4317 = vmatprep.subr.mxu0 0.0
    %4318 = vmatpush1.msra.mxu0 0.0
    %4319 = vmatprep.subr.mxu0 0.0
    %4320 = vmatpush1.msra.mxu0 0.0
    %4321 = vmatprep.subr.mxu0 0.0
    %4322 = vmatpush1.msra.mxu0 0.0
    %4323 = vmatprep.subr.mxu0 0.0
    %4324 = vmatpush1.msra.mxu0 0.0
    %4325 = vmatprep.subr.mxu0 0.0
    %4326 = vmatpush1.msra.mxu0 0.0
    %4327 = vmatprep.subr.mxu0 0.0
    %4328 = vmatpush1.msra.mxu0 0.0
    %4329 = vmatprep.subr.mxu0 0.0
    %4330 = vmatpush1.msra.mxu0 0.0
    %4331 = vmatprep.subr.mxu0 0.0
    %4332 = vmatpush1.msra.mxu0 0.0
    %4333 = vmatprep.subr.mxu0 0.0
    %4334 = vmatpush1.msra.mxu0 0.0
    %4335 = vmatprep.subr.mxu0 0.0
    %4336 = vmatpush1.msra.mxu0 0.0
    %4337 = vmatprep.subr.mxu0 0.0
    %4338 = vmatpush1.msra.mxu0 0.0
    %4339 = vmatprep.subr.mxu0 0.0
    %4340 = vmatpush1.msra.mxu0 0.0
    %4341 = vmatprep.subr.mxu0 0.0
    %4342 = vmatpush1.msra.mxu0 0.0
    %4343 = vmatprep.subr.mxu0 0.0
    %4344 = vmatpush1.msra.mxu0 0.0
    %4345 = vmatprep.subr.mxu0 0.0
    %4346 = vmatpush1.msra.mxu0 0.0
    %4347 = vmatprep.subr.mxu0 0.0
    %4348 = vmatpush1.msra.mxu0 0.0
    %4349 = vmatprep.subr.mxu0 0.0
    %4350 = vmatpush1.msra.mxu0 0.0
    %4351 = vmatprep.subr.mxu0 0.0
    %4352 = vmatpush1.msra.mxu0 0.0
    %4353 = vmatprep.subr.mxu0 0.0
    %4354 = vmatpush1.msra.mxu0 0.0
    %4355 = vmatprep.subr.mxu0 0.0
    %4356 = vmatpush1.msra.mxu0 0.0
    %4357 = vmatprep.subr.mxu0 0.0
    %4358 = vmatpush1.msra.mxu0 0.0
    %4359 = vmatprep.subr.mxu0 0.0
    %4360 = vmatpush1.msra.mxu0 0.0
    %4361 = vmatprep.subr.mxu0 0.0
    %4362 = vmatpush1.msra.mxu0 0.0
    %4363 = vmatprep.subr.mxu0 0.0
    %4364 = vmatpush1.msra.mxu0 0.0
    %4365 = vmatprep.subr.mxu0 0.0
    %4366 = vmatpush1.msra.mxu0 0.0
    %4367 = vmatprep.subr.mxu0 0.0
    %4368 = vmatpush1.msra.mxu0 0.0
    %4369 = vmatprep.subr.mxu0 0.0
    %4370 = vmatpush1.msra.mxu0 0.0
    %4371 = vmatprep.mubr.f32.mxu0 0.0
    %4372 = vmatmul.mubr.f32.gmra.mrb[0].mxu0 %v4161
    %v4373 = vpop.f32.mrb[0].mxu0
    %v4374 = vadd.f32 0.0, %v4373
    %v4375 = vpop.f32.mrb[0].mxu0
    %4376 = vdwg.mxu0
    %v4377 = vadd.f32 %v4306, %v4374
    %v4378 = vld [vmem:[%s728] sm:$0xf]
    %4379 = vmatprep.subr.mxu0 0.0
    %4380 = vmatpush1.msra.mxu0 %v987
    %4381 = vmatprep.subr.mxu0 0.0
    %4382 = vmatpush1.msra.mxu0 %v988
    %4383 = vmatprep.subr.mxu0 0.0
    %4384 = vmatpush1.msra.mxu0 %v989
    %4385 = vmatprep.subr.mxu0 0.0
    %4386 = vmatpush1.msra.mxu0 %v990
    %4387 = vmatprep.subr.mxu0 0.0
    %4388 = vmatpush1.msra.mxu0 0.0
    %4389 = vmatprep.subr.mxu0 0.0
    %4390 = vmatpush1.msra.mxu0 0.0
    %4391 = vmatprep.subr.mxu0 0.0
    %4392 = vmatpush1.msra.mxu0 0.0
    %4393 = vmatprep.subr.mxu0 0.0
    %4394 = vmatpush1.msra.mxu0 0.0
    %4395 = vmatprep.subr.mxu0 0.0
    %4396 = vmatpush1.msra.mxu0 0.0
    %4397 = vmatprep.subr.mxu0 0.0
    %4398 = vmatpush1.msra.mxu0 0.0
    %4399 = vmatprep.subr.mxu0 0.0
    %4400 = vmatpush1.msra.mxu0 0.0
    %4401 = vmatprep.subr.mxu0 0.0
    %4402 = vmatpush1.msra.mxu0 0.0
    %4403 = vmatprep.subr.mxu0 0.0
    %4404 = vmatpush1.msra.mxu0 0.0
    %4405 = vmatprep.subr.mxu0 0.0
    %4406 = vmatpush1.msra.mxu0 0.0
    %4407 = vmatprep.subr.mxu0 0.0
    %4408 = vmatpush1.msra.mxu0 0.0
    %4409 = vmatprep.subr.mxu0 0.0
    %4410 = vmatpush1.msra.mxu0 0.0
    %4411 = vmatprep.subr.mxu0 0.0
    %4412 = vmatpush1.msra.mxu0 0.0
    %4413 = vmatprep.subr.mxu0 0.0
    %4414 = vmatpush1.msra.mxu0 0.0
    %4415 = vmatprep.subr.mxu0 0.0
    %4416 = vmatpush1.msra.mxu0 0.0
    %4417 = vmatprep.subr.mxu0 0.0
    %4418 = vmatpush1.msra.mxu0 0.0
    %4419 = vmatprep.subr.mxu0 0.0
    %4420 = vmatpush1.msra.mxu0 0.0
    %4421 = vmatprep.subr.mxu0 0.0
    %4422 = vmatpush1.msra.mxu0 0.0
    %4423 = vmatprep.subr.mxu0 0.0
    %4424 = vmatpush1.msra.mxu0 0.0
    %4425 = vmatprep.subr.mxu0 0.0
    %4426 = vmatpush1.msra.mxu0 0.0
    %4427 = vmatprep.subr.mxu0 0.0
    %4428 = vmatpush1.msra.mxu0 0.0
    %4429 = vmatprep.subr.mxu0 0.0
    %4430 = vmatpush1.msra.mxu0 0.0
    %4431 = vmatprep.subr.mxu0 0.0
    %4432 = vmatpush1.msra.mxu0 0.0
    %4433 = vmatprep.subr.mxu0 0.0
    %4434 = vmatpush1.msra.mxu0 0.0
    %4435 = vmatprep.subr.mxu0 0.0
    %4436 = vmatpush1.msra.mxu0 0.0
    %4437 = vmatprep.subr.mxu0 0.0
    %4438 = vmatpush1.msra.mxu0 0.0
    %4439 = vmatprep.subr.mxu0 0.0
    %4440 = vmatpush1.msra.mxu0 0.0
    %4441 = vmatprep.subr.mxu0 0.0
    %4442 = vmatpush1.msra.mxu0 0.0
    %4443 = vmatprep.mubr.f32.mxu0 0.0
    %4444 = vmatmul.mubr.f32.gmra.mrb[0].mxu0 %v4161
    %v4445 = vpop.f32.mrb[0].mxu0
    %v4446 = vadd.f32 0.0, %v4445
    %v4447 = vpop.f32.mrb[0].mxu0
    %4448 = vdwg.mxu0
    %v4449 = vadd.f32 %v4378, %v4446
    %v4450 = vld [vmem:[%s394] sm:$0xf]
    %v4452 = vsel %vm1012, %v4158, 0
    %4454 = vmatprep.subr.mxu0 0.0
    %4455 = vmatpush1.msra.mxu0 %v992
    %4456 = vmatprep.subr.mxu0 0.0
    %4457 = vmatpush1.msra.mxu0 %v993
    %4458 = vmatprep.subr.mxu0 0.0
    %4459 = vmatpush1.msra.mxu0 %v994
    %4460 = vmatprep.subr.mxu0 0.0
    %4461 = vmatpush1.msra.mxu0 %v995
    %4462 = vmatprep.subr.mxu0 0.0
    %4463 = vmatpush1.msra.mxu0 0.0
    %4464 = vmatprep.subr.mxu0 0.0
    %4465 = vmatpush1.msra.mxu0 0.0
    %4466 = vmatprep.subr.mxu0 0.0
    %4467 = vmatpush1.msra.mxu0 0.0
    %4468 = vmatprep.subr.mxu0 0.0
    %4469 = vmatpush1.msra.mxu0 0.0
    %4470 = vmatprep.subr.mxu0 0.0
    %4471 = vmatpush1.msra.mxu0 0.0
    %4472 = vmatprep.subr.mxu0 0.0
    %4473 = vmatpush1.msra.mxu0 0.0
    %4474 = vmatprep.subr.mxu0 0.0
    %4475 = vmatpush1.msra.mxu0 0.0
    %4476 = vmatprep.subr.mxu0 0.0
    %4477 = vmatpush1.msra.mxu0 0.0
    %4478 = vmatprep.subr.mxu0 0.0
    %4479 = vmatpush1.msra.mxu0 0.0
    %4480 = vmatprep.subr.mxu0 0.0
    %4481 = vmatpush1.msra.mxu0 0.0
    %4482 = vmatprep.subr.mxu0 0.0
    %4483 = vmatpush1.msra.mxu0 0.0
    %4484 = vmatprep.subr.mxu0 0.0
    %4485 = vmatpush1.msra.mxu0 0.0
    %4486 = vmatprep.subr.mxu0 0.0
    %4487 = vmatpush1.msra.mxu0 0.0
    %4488 = vmatprep.subr.mxu0 0.0
    %4489 = vmatpush1.msra.mxu0 0.0
    %4490 = vmatprep.subr.mxu0 0.0
    %4491 = vmatpush1.msra.mxu0 0.0
    %4492 = vmatprep.subr.mxu0 0.0
    %4493 = vmatpush1.msra.mxu0 0.0
    %4494 = vmatprep.subr.mxu0 0.0
    %4495 = vmatpush1.msra.mxu0 0.0
    %4496 = vmatprep.subr.mxu0 0.0
    %4497 = vmatpush1.msra.mxu0 0.0
    %4498 = vmatprep.subr.mxu0 0.0
    %4499 = vmatpush1.msra.mxu0 0.0
    %4500 = vmatprep.subr.mxu0 0.0
    %4501 = vmatpush1.msra.mxu0 0.0
    %4502 = vmatprep.subr.mxu0 0.0
    %4503 = vmatpush1.msra.mxu0 0.0
    %4504 = vmatprep.subr.mxu0 0.0
    %4505 = vmatpush1.msra.mxu0 0.0
    %4506 = vmatprep.subr.mxu0 0.0
    %4507 = vmatpush1.msra.mxu0 0.0
    %4508 = vmatprep.subr.mxu0 0.0
    %4509 = vmatpush1.msra.mxu0 0.0
    %4510 = vmatprep.subr.mxu0 0.0
    %4511 = vmatpush1.msra.mxu0 0.0
    %4512 = vmatprep.subr.mxu0 0.0
    %4513 = vmatpush1.msra.mxu0 0.0
    %4514 = vmatprep.subr.mxu0 0.0
    %4515 = vmatpush1.msra.mxu0 0.0
    %4516 = vmatprep.subr.mxu0 0.0
    %4517 = vmatpush1.msra.mxu0 0.0
    %4518 = vmatprep.mubr.f32.mxu0 0.0
    %4519 = vmatmul.mubr.f32.gmra.mrb[0].mxu0 %v4452
    %v4520 = vpop.f32.mrb[0].mxu0
    %v4521 = vadd.f32 0.0, %v4520
    %v4522 = vpop.f32.mrb[0].mxu0
    %4523 = vdwg.mxu0
    %v4524 = vadd.f32 %v4450, %v4521
    %v4525 = vld [vmem:[%s400] sm:$0xf]
    %4526 = vmatprep.subr.mxu0 0.0
    %4527 = vmatpush1.msra.mxu0 %v997
    %4528 = vmatprep.subr.mxu0 0.0
    %4529 = vmatpush1.msra.mxu0 %v998
    %4530 = vmatprep.subr.mxu0 0.0
    %4531 = vmatpush1.msra.mxu0 %v999
    %4532 = vmatprep.subr.mxu0 0.0
    %4533 = vmatpush1.msra.mxu0 %v1000
    %4534 = vmatprep.subr.mxu0 0.0
    %4535 = vmatpush1.msra.mxu0 0.0
    %4536 = vmatprep.subr.mxu0 0.0
    %4537 = vmatpush1.msra.mxu0 0.0
    %4538 = vmatprep.subr.mxu0 0.0
    %4539 = vmatpush1.msra.mxu0 0.0
    %4540 = vmatprep.subr.mxu0 0.0
    %4541 = vmatpush1.msra.mxu0 0.0
    %4542 = vmatprep.subr.mxu0 0.0
    %4543 = vmatpush1.msra.mxu0 0.0
    %4544 = vmatprep.subr.mxu0 0.0
    %4545 = vmatpush1.msra.mxu0 0.0
    %4546 = vmatprep.subr.mxu0 0.0
    %4547 = vmatpush1.msra.mxu0 0.0
    %4548 = vmatprep.subr.mxu0 0.0
    %4549 = vmatpush1.msra.mxu0 0.0
    %4550 = vmatprep.subr.mxu0 0.0
    %4551 = vmatpush1.msra.mxu0 0.0
    %4552 = vmatprep.subr.mxu0 0.0
    %4553 = vmatpush1.msra.mxu0 0.0
    %4554 = vmatprep.subr.mxu0 0.0
    %4555 = vmatpush1.msra.mxu0 0.0
    %4556 = vmatprep.subr.mxu0 0.0
    %4557 = vmatpush1.msra.mxu0 0.0
    %4558 = vmatprep.subr.mxu0 0.0
    %4559 = vmatpush1.msra.mxu0 0.0
    %4560 = vmatprep.subr.mxu0 0.0
    %4561 = vmatpush1.msra.mxu0 0.0
    %4562 = vmatprep.subr.mxu0 0.0
    %4563 = vmatpush1.msra.mxu0 0.0
    %4564 = vmatprep.subr.mxu0 0.0
    %4565 = vmatpush1.msra.mxu0 0.0
    %4566 = vmatprep.subr.mxu0 0.0
    %4567 = vmatpush1.msra.mxu0 0.0
    %4568 = vmatprep.subr.mxu0 0.0
    %4569 = vmatpush1.msra.mxu0 0.0
    %4570 = vmatprep.subr.mxu0 0.0
    %4571 = vmatpush1.msra.mxu0 0.0
    %4572 = vmatprep.subr.mxu0 0.0
    %4573 = vmatpush1.msra.mxu0 0.0
    %4574 = vmatprep.subr.mxu0 0.0
    %4575 = vmatpush1.msra.mxu0 0.0
    %4576 = vmatprep.subr.mxu0 0.0
    %4577 = vmatpush1.msra.mxu0 0.0
    %4578 = vmatprep.subr.mxu0 0.0
    %4579 = vmatpush1.msra.mxu0 0.0
    %4580 = vmatprep.subr.mxu0 0.0
    %4581 = vmatpush1.msra.mxu0 0.0
    %4582 = vmatprep.subr.mxu0 0.0
    %4583 = vmatpush1.msra.mxu0 0.0
    %4584 = vmatprep.subr.mxu0 0.0
    %4585 = vmatpush1.msra.mxu0 0.0
    %4586 = vmatprep.subr.mxu0 0.0
    %4587 = vmatpush1.msra.mxu0 0.0
    %4588 = vmatprep.subr.mxu0 0.0
    %4589 = vmatpush1.msra.mxu0 0.0
    %4590 = vmatprep.mubr.f32.mxu0 0.0
    %4591 = vmatmul.mubr.f32.gmra.mrb[0].mxu0 %v4452
    %v4592 = vpop.f32.mrb[0].mxu0
    %v4593 = vadd.f32 0.0, %v4592
    %v4594 = vpop.f32.mrb[0].mxu0
    %4595 = vdwg.mxu0
    %v4596 = vadd.f32 %v4525, %v4593
    %v4597 = vld [vmem:[%s405] sm:$0xf]
    %4598 = vmatprep.subr.mxu0 0.0
    %4599 = vmatpush1.msra.mxu0 %v1002
    %4600 = vmatprep.subr.mxu0 0.0
    %4601 = vmatpush1.msra.mxu0 %v1003
    %4602 = vmatprep.subr.mxu0 0.0
    %4603 = vmatpush1.msra.mxu0 %v1004
    %4604 = vmatprep.subr.mxu0 0.0
    %4605 = vmatpush1.msra.mxu0 %v1005
    %4606 = vmatprep.subr.mxu0 0.0
    %4607 = vmatpush1.msra.mxu0 0.0
    %4608 = vmatprep.subr.mxu0 0.0
    %4609 = vmatpush1.msra.mxu0 0.0
    %4610 = vmatprep.subr.mxu0 0.0
    %4611 = vmatpush1.msra.mxu0 0.0
    %4612 = vmatprep.subr.mxu0 0.0
    %4613 = vmatpush1.msra.mxu0 0.0
    %4614 = vmatprep.subr.mxu0 0.0
    %4615 = vmatpush1.msra.mxu0 0.0
    %4616 = vmatprep.subr.mxu0 0.0
    %4617 = vmatpush1.msra.mxu0 0.0
    %4618 = vmatprep.subr.mxu0 0.0
    %4619 = vmatpush1.msra.mxu0 0.0
    %4620 = vmatprep.subr.mxu0 0.0
    %4621 = vmatpush1.msra.mxu0 0.0
    %4622 = vmatprep.subr.mxu0 0.0
    %4623 = vmatpush1.msra.mxu0 0.0
    %4624 = vmatprep.subr.mxu0 0.0
    %4625 = vmatpush1.msra.mxu0 0.0
    %4626 = vmatprep.subr.mxu0 0.0
    %4627 = vmatpush1.msra.mxu0 0.0
    %4628 = vmatprep.subr.mxu0 0.0
    %4629 = vmatpush1.msra.mxu0 0.0
    %4630 = vmatprep.subr.mxu0 0.0
    %4631 = vmatpush1.msra.mxu0 0.0
    %4632 = vmatprep.subr.mxu0 0.0
    %4633 = vmatpush1.msra.mxu0 0.0
    %4634 = vmatprep.subr.mxu0 0.0
    %4635 = vmatpush1.msra.mxu0 0.0
    %4636 = vmatprep.subr.mxu0 0.0
    %4637 = vmatpush1.msra.mxu0 0.0
    %4638 = vmatprep.subr.mxu0 0.0
    %4639 = vmatpush1.msra.mxu0 0.0
    %4640 = vmatprep.subr.mxu0 0.0
    %4641 = vmatpush1.msra.mxu0 0.0
    %4642 = vmatprep.subr.mxu0 0.0
    %4643 = vmatpush1.msra.mxu0 0.0
    %4644 = vmatprep.subr.mxu0 0.0
    %4645 = vmatpush1.msra.mxu0 0.0
    %4646 = vmatprep.subr.mxu0 0.0
    %4647 = vmatpush1.msra.mxu0 0.0
    %4648 = vmatprep.subr.mxu0 0.0
    %4649 = vmatpush1.msra.mxu0 0.0
    %4650 = vmatprep.subr.mxu0 0.0
    %4651 = vmatpush1.msra.mxu0 0.0
    %4652 = vmatprep.subr.mxu0 0.0
    %4653 = vmatpush1.msra.mxu0 0.0
    %4654 = vmatprep.subr.mxu0 0.0
    %4655 = vmatpush1.msra.mxu0 0.0
    %4656 = vmatprep.subr.mxu0 0.0
    %4657 = vmatpush1.msra.mxu0 0.0
    %4658 = vmatprep.subr.mxu0 0.0
    %4659 = vmatpush1.msra.mxu0 0.0
    %4660 = vmatprep.subr.mxu0 0.0
    %4661 = vmatpush1.msra.mxu0 0.0
    %4662 = vmatprep.mubr.f32.mxu0 0.0
    %4663 = vmatmul.mubr.f32.gmra.mrb[0].mxu0 %v4452
    %v4664 = vpop.f32.mrb[0].mxu0
    %v4665 = vadd.f32 0.0, %v4664
    %v4666 = vpop.f32.mrb[0].mxu0
    %4667 = vdwg.mxu0
    %v4668 = vadd.f32 %v4597, %v4665
    %v4669 = vld [vmem:[%s410] sm:$0xf]
    %4670 = vmatprep.subr.mxu0 0.0
    %4671 = vmatpush1.msra.mxu0 %v1007
    %4672 = vmatprep.subr.mxu0 0.0
    %4673 = vmatpush1.msra.mxu0 %v1008
    %4674 = vmatprep.subr.mxu0 0.0
    %4675 = vmatpush1.msra.mxu0 %v1009
    %4676 = vmatprep.subr.mxu0 0.0
    %4677 = vmatpush1.msra.mxu0 %v1010
    %4678 = vmatprep.subr.mxu0 0.0
    %4679 = vmatpush1.msra.mxu0 0.0
    %4680 = vmatprep.subr.mxu0 0.0
    %4681 = vmatpush1.msra.mxu0 0.0
    %4682 = vmatprep.subr.mxu0 0.0
    %4683 = vmatpush1.msra.mxu0 0.0
    %4684 = vmatprep.subr.mxu0 0.0
    %4685 = vmatpush1.msra.mxu0 0.0
    %4686 = vmatprep.subr.mxu0 0.0
    %4687 = vmatpush1.msra.mxu0 0.0
    %4688 = vmatprep.subr.mxu0 0.0
    %4689 = vmatpush1.msra.mxu0 0.0
    %4690 = vmatprep.subr.mxu0 0.0
    %4691 = vmatpush1.msra.mxu0 0.0
    %4692 = vmatprep.subr.mxu0 0.0
    %4693 = vmatpush1.msra.mxu0 0.0
    %4694 = vmatprep.subr.mxu0 0.0
    %4695 = vmatpush1.msra.mxu0 0.0
    %4696 = vmatprep.subr.mxu0 0.0
    %4697 = vmatpush1.msra.mxu0 0.0
    %4698 = vmatprep.subr.mxu0 0.0
    %4699 = vmatpush1.msra.mxu0 0.0
    %4700 = vmatprep.subr.mxu0 0.0
    %4701 = vmatpush1.msra.mxu0 0.0
    %4702 = vmatprep.subr.mxu0 0.0
    %4703 = vmatpush1.msra.mxu0 0.0
    %4704 = vmatprep.subr.mxu0 0.0
    %4705 = vmatpush1.msra.mxu0 0.0
    %4706 = vmatprep.subr.mxu0 0.0
    %4707 = vmatpush1.msra.mxu0 0.0
    %4708 = vmatprep.subr.mxu0 0.0
    %4709 = vmatpush1.msra.mxu0 0.0
    %4710 = vmatprep.subr.mxu0 0.0
    %4711 = vmatpush1.msra.mxu0 0.0
    %4712 = vmatprep.subr.mxu0 0.0
    %4713 = vmatpush1.msra.mxu0 0.0
    %4714 = vmatprep.subr.mxu0 0.0
    %4715 = vmatpush1.msra.mxu0 0.0
    %4716 = vmatprep.subr.mxu0 0.0
    %4717 = vmatpush1.msra.mxu0 0.0
    %4718 = vmatprep.subr.mxu0 0.0
    %4719 = vmatpush1.msra.mxu0 0.0
    %4720 = vmatprep.subr.mxu0 0.0
    %4721 = vmatpush1.msra.mxu0 0.0
    %4722 = vmatprep.subr.mxu0 0.0
    %4723 = vmatpush1.msra.mxu0 0.0
    %4724 = vmatprep.subr.mxu0 0.0
    %4725 = vmatpush1.msra.mxu0 0.0
    %4726 = vmatprep.subr.mxu0 0.0
    %4727 = vmatpush1.msra.mxu0 0.0
    %4728 = vmatprep.subr.mxu0 0.0
    %4729 = vmatpush1.msra.mxu0 0.0
    %4730 = vmatprep.subr.mxu0 0.0
    %4731 = vmatpush1.msra.mxu0 0.0
    %4732 = vmatprep.subr.mxu0 0.0
    %4733 = vmatpush1.msra.mxu0 0.0
    %4734 = vmatprep.mubr.f32.mxu0 0.0
    %4735 = vmatmul.mubr.f32.gmra.mrb[0].mxu0 %v4452
    %v4736 = vpop.f32.mrb[0].mxu0
    %v4737 = vadd.f32 0.0, %v4736
    %v4738 = vpop.f32.mrb[0].mxu0
    %4739 = vdwg.mxu0
    %v4740 = vadd.f32 %v4669, %v4737
    %v4741 = vxor.u32 %v4305, 2147483648
    %v4742 = vmul.f32 %v4741, 1.442695
    %v4743 = vpow.pop %v4742
    %v4744 = vadd.f32 %v4743, 1.0
    %v4745 = vrcp.pop %v4744
    %v4746 = vmul.f32 1.0, %v4745
    %v4747 = vmul.f32 %v4746, %v4126
    %v4748 = vxor.u32 %v4233, 2147483648
    %v4749 = vmul.f32 %v4748, 1.442695
    %v4750 = vpow.pop %v4749
    %v4751 = vadd.f32 %v4750, 1.0
    %v4752 = vrcp.pop %v4751
    %v4753 = vmul.f32 1.0, %v4752
    %v4754 = vtanh.pop %v4377
    %v4755 = vmul.f32 %v4753, %v4754
    %v4756 = vadd.f32 %v4747, %v4755
    %v4757 = vxor.u32 %v4449, 2147483648
    %v4758 = vmul.f32 %v4757, 1.442695
    %v4759 = vpow.pop %v4758
    %v4760 = vadd.f32 %v4759, 1.0
    %v4761 = vrcp.pop %v4760
    %v4762 = vmul.f32 1.0, %v4761
    %v4763 = vtanh.pop %v4756
    %v4764 = vmul.f32 %v4762, %v4763
    %v4765 = vxor.u32 %v4596, 2147483648
    %v4766 = vmul.f32 %v4765, 1.442695
    %v4767 = vpow.pop %v4766
    %v4768 = vadd.f32 %v4767, 1.0
    %v4769 = vrcp.pop %v4768
    %v4770 = vmul.f32 1.0, %v4769
    %v4771 = vmul.f32 %v4770, %v4150
    %v4772 = vxor.u32 %v4524, 2147483648
    %v4773 = vmul.f32 %v4772, 1.442695
    %v4774 = vpow.pop %v4773
    %v4775 = vadd.f32 %v4774, 1.0
    %v4776 = vrcp.pop %v4775
    %v4777 = vmul.f32 1.0, %v4776
    %v4778 = vtanh.pop %v4668
    %v4779 = vmul.f32 %v4777, %v4778
    %v4780 = vadd.f32 %v4771, %v4779
    %v4781 = vxor.u32 %v4740, 2147483648
    %v4782 = vmul.f32 %v4781, 1.442695
    %v4783 = vpow.pop %v4782
    %v4784 = vadd.f32 %v4783, 1.0
    %v4785 = vrcp.pop %v4784
    %v4786 = vmul.f32 1.0, %v4785
    %v4787 = vtanh.pop %v4780
    %v4788 = vmul.f32 %v4786, %v4787
    %v4789 = vld [vmem:[%s824] sm:$0xf]
    %v4791 = vsel %vm1012, %v4764, 0
    %4793 = vmatprep.subr.mxu0 0.0
    %4794 = vmatpush1.msra.mxu0 %v972
    %4795 = vmatprep.subr.mxu0 0.0
    %4796 = vmatpush1.msra.mxu0 %v973
    %4797 = vmatprep.subr.mxu0 0.0
    %4798 = vmatpush1.msra.mxu0 %v974
    %4799 = vmatprep.subr.mxu0 0.0
    %4800 = vmatpush1.msra.mxu0 %v975
    %4801 = vmatprep.subr.mxu0 0.0
    %4802 = vmatpush1.msra.mxu0 0.0
    %4803 = vmatprep.subr.mxu0 0.0
    %4804 = vmatpush1.msra.mxu0 0.0
    %4805 = vmatprep.subr.mxu0 0.0
    %4806 = vmatpush1.msra.mxu0 0.0
    %4807 = vmatprep.subr.mxu0 0.0
    %4808 = vmatpush1.msra.mxu0 0.0
    %4809 = vmatprep.subr.mxu0 0.0
    %4810 = vmatpush1.msra.mxu0 0.0
    %4811 = vmatprep.subr.mxu0 0.0
    %4812 = vmatpush1.msra.mxu0 0.0
    %4813 = vmatprep.subr.mxu0 0.0
    %4814 = vmatpush1.msra.mxu0 0.0
    %4815 = vmatprep.subr.mxu0 0.0
    %4816 = vmatpush1.msra.mxu0 0.0
    %4817 = vmatprep.subr.mxu0 0.0
    %4818 = vmatpush1.msra.mxu0 0.0
    %4819 = vmatprep.subr.mxu0 0.0
    %4820 = vmatpush1.msra.mxu0 0.0
    %4821 = vmatprep.subr.mxu0 0.0
    %4822 = vmatpush1.msra.mxu0 0.0
    %4823 = vmatprep.subr.mxu0 0.0
    %4824 = vmatpush1.msra.mxu0 0.0
    %4825 = vmatprep.subr.mxu0 0.0
    %4826 = vmatpush1.msra.mxu0 0.0
    %4827 = vmatprep.subr.mxu0 0.0
    %4828 = vmatpush1.msra.mxu0 0.0
    %4829 = vmatprep.subr.mxu0 0.0
    %4830 = vmatpush1.msra.mxu0 0.0
    %4831 = vmatprep.subr.mxu0 0.0
    %4832 = vmatpush1.msra.mxu0 0.0
    %4833 = vmatprep.subr.mxu0 0.0
    %4834 = vmatpush1.msra.mxu0 0.0
    %4835 = vmatprep.subr.mxu0 0.0
    %4836 = vmatpush1.msra.mxu0 0.0
    %4837 = vmatprep.subr.mxu0 0.0
    %4838 = vmatpush1.msra.mxu0 0.0
    %4839 = vmatprep.subr.mxu0 0.0
    %4840 = vmatpush1.msra.mxu0 0.0
    %4841 = vmatprep.subr.mxu0 0.0
    %4842 = vmatpush1.msra.mxu0 0.0
    %4843 = vmatprep.subr.mxu0 0.0
    %4844 = vmatpush1.msra.mxu0 0.0
    %4845 = vmatprep.subr.mxu0 0.0
    %4846 = vmatpush1.msra.mxu0 0.0
    %4847 = vmatprep.subr.mxu0 0.0
    %4848 = vmatpush1.msra.mxu0 0.0
    %4849 = vmatprep.subr.mxu0 0.0
    %4850 = vmatpush1.msra.mxu0 0.0
    %4851 = vmatprep.subr.mxu0 0.0
    %4852 = vmatpush1.msra.mxu0 0.0
    %4853 = vmatprep.subr.mxu0 0.0
    %4854 = vmatpush1.msra.mxu0 0.0
    %4855 = vmatprep.subr.mxu0 0.0
    %4856 = vmatpush1.msra.mxu0 0.0
    %4857 = vmatprep.mubr.f32.mxu0 0.0
    %4858 = vmatmul.mubr.f32.gmra.mrb[0].mxu0 %v4791
    %v4859 = vpop.f32.mrb[0].mxu0
    %v4860 = vadd.f32 0.0, %v4859
    %v4861 = vpop.f32.mrb[0].mxu0
    %4862 = vdwg.mxu0
    %v4863 = vadd.f32 %v4789, %v4860
    %v4864 = vld [vmem:[%s830] sm:$0xf]
    %4865 = vmatprep.subr.mxu0 0.0
    %4866 = vmatpush1.msra.mxu0 %v977
    %4867 = vmatprep.subr.mxu0 0.0
    %4868 = vmatpush1.msra.mxu0 %v978
    %4869 = vmatprep.subr.mxu0 0.0
    %4870 = vmatpush1.msra.mxu0 %v979
    %4871 = vmatprep.subr.mxu0 0.0
    %4872 = vmatpush1.msra.mxu0 %v980
    %4873 = vmatprep.subr.mxu0 0.0
    %4874 = vmatpush1.msra.mxu0 0.0
    %4875 = vmatprep.subr.mxu0 0.0
    %4876 = vmatpush1.msra.mxu0 0.0
    %4877 = vmatprep.subr.mxu0 0.0
    %4878 = vmatpush1.msra.mxu0 0.0
    %4879 = vmatprep.subr.mxu0 0.0
    %4880 = vmatpush1.msra.mxu0 0.0
    %4881 = vmatprep.subr.mxu0 0.0
    %4882 = vmatpush1.msra.mxu0 0.0
    %4883 = vmatprep.subr.mxu0 0.0
    %4884 = vmatpush1.msra.mxu0 0.0
    %4885 = vmatprep.subr.mxu0 0.0
    %4886 = vmatpush1.msra.mxu0 0.0
    %4887 = vmatprep.subr.mxu0 0.0
    %4888 = vmatpush1.msra.mxu0 0.0
    %4889 = vmatprep.subr.mxu0 0.0
    %4890 = vmatpush1.msra.mxu0 0.0
    %4891 = vmatprep.subr.mxu0 0.0
    %4892 = vmatpush1.msra.mxu0 0.0
    %4893 = vmatprep.subr.mxu0 0.0
    %4894 = vmatpush1.msra.mxu0 0.0
    %4895 = vmatprep.subr.mxu0 0.0
    %4896 = vmatpush1.msra.mxu0 0.0
    %4897 = vmatprep.subr.mxu0 0.0
    %4898 = vmatpush1.msra.mxu0 0.0
    %4899 = vmatprep.subr.mxu0 0.0
    %4900 = vmatpush1.msra.mxu0 0.0
    %4901 = vmatprep.subr.mxu0 0.0
    %4902 = vmatpush1.msra.mxu0 0.0
    %4903 = vmatprep.subr.mxu0 0.0
    %4904 = vmatpush1.msra.mxu0 0.0
    %4905 = vmatprep.subr.mxu0 0.0
    %4906 = vmatpush1.msra.mxu0 0.0
    %4907 = vmatprep.subr.mxu0 0.0
    %4908 = vmatpush1.msra.mxu0 0.0
    %4909 = vmatprep.subr.mxu0 0.0
    %4910 = vmatpush1.msra.mxu0 0.0
    %4911 = vmatprep.subr.mxu0 0.0
    %4912 = vmatpush1.msra.mxu0 0.0
    %4913 = vmatprep.subr.mxu0 0.0
    %4914 = vmatpush1.msra.mxu0 0.0
    %4915 = vmatprep.subr.mxu0 0.0
    %4916 = vmatpush1.msra.mxu0 0.0
    %4917 = vmatprep.subr.mxu0 0.0
    %4918 = vmatpush1.msra.mxu0 0.0
    %4919 = vmatprep.subr.mxu0 0.0
    %4920 = vmatpush1.msra.mxu0 0.0
    %4921 = vmatprep.subr.mxu0 0.0
    %4922 = vmatpush1.msra.mxu0 0.0
    %4923 = vmatprep.subr.mxu0 0.0
    %4924 = vmatpush1.msra.mxu0 0.0
    %4925 = vmatprep.subr.mxu0 0.0
    %4926 = vmatpush1.msra.mxu0 0.0
    %4927 = vmatprep.subr.mxu0 0.0
    %4928 = vmatpush1.msra.mxu0 0.0
    %4929 = vmatprep.mubr.f32.mxu0 0.0
    %4930 = vmatmul.mubr.f32.gmra.mrb[0].mxu0 %v4791
    %v4931 = vpop.f32.mrb[0].mxu0
    %v4932 = vadd.f32 0.0, %v4931
    %v4933 = vpop.f32.mrb[0].mxu0
    %4934 = vdwg.mxu0
    %v4935 = vadd.f32 %v4864, %v4932
    %v4936 = vld [vmem:[%s835] sm:$0xf]
    %4937 = vmatprep.subr.mxu0 0.0
    %4938 = vmatpush1.msra.mxu0 %v982
    %4939 = vmatprep.subr.mxu0 0.0
    %4940 = vmatpush1.msra.mxu0 %v983
    %4941 = vmatprep.subr.mxu0 0.0
    %4942 = vmatpush1.msra.mxu0 %v984
    %4943 = vmatprep.subr.mxu0 0.0
    %4944 = vmatpush1.msra.mxu0 %v985
    %4945 = vmatprep.subr.mxu0 0.0
    %4946 = vmatpush1.msra.mxu0 0.0
    %4947 = vmatprep.subr.mxu0 0.0
    %4948 = vmatpush1.msra.mxu0 0.0
    %4949 = vmatprep.subr.mxu0 0.0
    %4950 = vmatpush1.msra.mxu0 0.0
    %4951 = vmatprep.subr.mxu0 0.0
    %4952 = vmatpush1.msra.mxu0 0.0
    %4953 = vmatprep.subr.mxu0 0.0
    %4954 = vmatpush1.msra.mxu0 0.0
    %4955 = vmatprep.subr.mxu0 0.0
    %4956 = vmatpush1.msra.mxu0 0.0
    %4957 = vmatprep.subr.mxu0 0.0
    %4958 = vmatpush1.msra.mxu0 0.0
    %4959 = vmatprep.subr.mxu0 0.0
    %4960 = vmatpush1.msra.mxu0 0.0
    %4961 = vmatprep.subr.mxu0 0.0
    %4962 = vmatpush1.msra.mxu0 0.0
    %4963 = vmatprep.subr.mxu0 0.0
    %4964 = vmatpush1.msra.mxu0 0.0
    %4965 = vmatprep.subr.mxu0 0.0
    %4966 = vmatpush1.msra.mxu0 0.0
    %4967 = vmatprep.subr.mxu0 0.0
    %4968 = vmatpush1.msra.mxu0 0.0
    %4969 = vmatprep.subr.mxu0 0.0
    %4970 = vmatpush1.msra.mxu0 0.0
    %4971 = vmatprep.subr.mxu0 0.0
    %4972 = vmatpush1.msra.mxu0 0.0
    %4973 = vmatprep.subr.mxu0 0.0
    %4974 = vmatpush1.msra.mxu0 0.0
    %4975 = vmatprep.subr.mxu0 0.0
    %4976 = vmatpush1.msra.mxu0 0.0
    %4977 = vmatprep.subr.mxu0 0.0
    %4978 = vmatpush1.msra.mxu0 0.0
    %4979 = vmatprep.subr.mxu0 0.0
    %4980 = vmatpush1.msra.mxu0 0.0
    %4981 = vmatprep.subr.mxu0 0.0
    %4982 = vmatpush1.msra.mxu0 0.0
    %4983 = vmatprep.subr.mxu0 0.0
    %4984 = vmatpush1.msra.mxu0 0.0
    %4985 = vmatprep.subr.mxu0 0.0
    %4986 = vmatpush1.msra.mxu0 0.0
    %4987 = vmatprep.subr.mxu0 0.0
    %4988 = vmatpush1.msra.mxu0 0.0
    %4989 = vmatprep.subr.mxu0 0.0
    %4990 = vmatpush1.msra.mxu0 0.0
    %4991 = vmatprep.subr.mxu0 0.0
    %4992 = vmatpush1.msra.mxu0 0.0
    %4993 = vmatprep.subr.mxu0 0.0
    %4994 = vmatpush1.msra.mxu0 0.0
    %4995 = vmatprep.subr.mxu0 0.0
    %4996 = vmatpush1.msra.mxu0 0.0
    %4997 = vmatprep.subr.mxu0 0.0
    %4998 = vmatpush1.msra.mxu0 0.0
    %4999 = vmatprep.subr.mxu0 0.0
    %5000 = vmatpush1.msra.mxu0 0.0
    %5001 = vmatprep.mubr.f32.mxu0 0.0
    %5002 = vmatmul.mubr.f32.gmra.mrb[0].mxu0 %v4791
    %v5003 = vpop.f32.mrb[0].mxu0
    %v5004 = vadd.f32 0.0, %v5003
    %v5005 = vpop.f32.mrb[0].mxu0
    %5006 = vdwg.mxu0
    %v5007 = vadd.f32 %v4936, %v5004
    %v5008 = vld [vmem:[%s840] sm:$0xf]
    %5009 = vmatprep.subr.mxu0 0.0
    %5010 = vmatpush1.msra.mxu0 %v987
    %5011 = vmatprep.subr.mxu0 0.0
    %5012 = vmatpush1.msra.mxu0 %v988
    %5013 = vmatprep.subr.mxu0 0.0
    %5014 = vmatpush1.msra.mxu0 %v989
    %5015 = vmatprep.subr.mxu0 0.0
    %5016 = vmatpush1.msra.mxu0 %v990
    %5017 = vmatprep.subr.mxu0 0.0
    %5018 = vmatpush1.msra.mxu0 0.0
    %5019 = vmatprep.subr.mxu0 0.0
    %5020 = vmatpush1.msra.mxu0 0.0
    %5021 = vmatprep.subr.mxu0 0.0
    %5022 = vmatpush1.msra.mxu0 0.0
    %5023 = vmatprep.subr.mxu0 0.0
    %5024 = vmatpush1.msra.mxu0 0.0
    %5025 = vmatprep.subr.mxu0 0.0
    %5026 = vmatpush1.msra.mxu0 0.0
    %5027 = vmatprep.subr.mxu0 0.0
    %5028 = vmatpush1.msra.mxu0 0.0
    %5029 = vmatprep.subr.mxu0 0.0
    %5030 = vmatpush1.msra.mxu0 0.0
    %5031 = vmatprep.subr.mxu0 0.0
    %5032 = vmatpush1.msra.mxu0 0.0
    %5033 = vmatprep.subr.mxu0 0.0
    %5034 = vmatpush1.msra.mxu0 0.0
    %5035 = vmatprep.subr.mxu0 0.0
    %5036 = vmatpush1.msra.mxu0 0.0
    %5037 = vmatprep.subr.mxu0 0.0
    %5038 = vmatpush1.msra.mxu0 0.0
    %5039 = vmatprep.subr.mxu0 0.0
    %5040 = vmatpush1.msra.mxu0 0.0
    %5041 = vmatprep.subr.mxu0 0.0
    %5042 = vmatpush1.msra.mxu0 0.0
    %5043 = vmatprep.subr.mxu0 0.0
    %5044 = vmatpush1.msra.mxu0 0.0
    %5045 = vmatprep.subr.mxu0 0.0
    %5046 = vmatpush1.msra.mxu0 0.0
    %5047 = vmatprep.subr.mxu0 0.0
    %5048 = vmatpush1.msra.mxu0 0.0
    %5049 = vmatprep.subr.mxu0 0.0
    %5050 = vmatpush1.msra.mxu0 0.0
    %5051 = vmatprep.subr.mxu0 0.0
    %5052 = vmatpush1.msra.mxu0 0.0
    %5053 = vmatprep.subr.mxu0 0.0
    %5054 = vmatpush1.msra.mxu0 0.0
    %5055 = vmatprep.subr.mxu0 0.0
    %5056 = vmatpush1.msra.mxu0 0.0
    %5057 = vmatprep.subr.mxu0 0.0
    %5058 = vmatpush1.msra.mxu0 0.0
    %5059 = vmatprep.subr.mxu0 0.0
    %5060 = vmatpush1.msra.mxu0 0.0
    %5061 = vmatprep.subr.mxu0 0.0
    %5062 = vmatpush1.msra.mxu0 0.0
    %5063 = vmatprep.subr.mxu0 0.0
    %5064 = vmatpush1.msra.mxu0 0.0
    %5065 = vmatprep.subr.mxu0 0.0
    %5066 = vmatpush1.msra.mxu0 0.0
    %5067 = vmatprep.subr.mxu0 0.0
    %5068 = vmatpush1.msra.mxu0 0.0
    %5069 = vmatprep.subr.mxu0 0.0
    %5070 = vmatpush1.msra.mxu0 0.0
    %5071 = vmatprep.subr.mxu0 0.0
    %5072 = vmatpush1.msra.mxu0 0.0
    %5073 = vmatprep.mubr.f32.mxu0 0.0
    %5074 = vmatmul.mubr.f32.gmra.mrb[0].mxu0 %v4791
    %v5075 = vpop.f32.mrb[0].mxu0
    %v5076 = vadd.f32 0.0, %v5075
    %v5077 = vpop.f32.mrb[0].mxu0
    %5078 = vdwg.mxu0
    %v5079 = vadd.f32 %v5008, %v5076
    %v5080 = vld [vmem:[%s282] sm:$0xf]
    %v5082 = vsel %vm1012, %v4788, 0
    %5084 = vmatprep.subr.mxu0 0.0
    %5085 = vmatpush1.msra.mxu0 %v992
    %5086 = vmatprep.subr.mxu0 0.0
    %5087 = vmatpush1.msra.mxu0 %v993
    %5088 = vmatprep.subr.mxu0 0.0
    %5089 = vmatpush1.msra.mxu0 %v994
    %5090 = vmatprep.subr.mxu0 0.0
    %5091 = vmatpush1.msra.mxu0 %v995
    %5092 = vmatprep.subr.mxu0 0.0
    %5093 = vmatpush1.msra.mxu0 0.0
    %5094 = vmatprep.subr.mxu0 0.0
    %5095 = vmatpush1.msra.mxu0 0.0
    %5096 = vmatprep.subr.mxu0 0.0
    %5097 = vmatpush1.msra.mxu0 0.0
    %5098 = vmatprep.subr.mxu0 0.0
    %5099 = vmatpush1.msra.mxu0 0.0
    %5100 = vmatprep.subr.mxu0 0.0
    %5101 = vmatpush1.msra.mxu0 0.0
    %5102 = vmatprep.subr.mxu0 0.0
    %5103 = vmatpush1.msra.mxu0 0.0
    %5104 = vmatprep.subr.mxu0 0.0
    %5105 = vmatpush1.msra.mxu0 0.0
    %5106 = vmatprep.subr.mxu0 0.0
    %5107 = vmatpush1.msra.mxu0 0.0
    %5108 = vmatprep.subr.mxu0 0.0
    %5109 = vmatpush1.msra.mxu0 0.0
    %5110 = vmatprep.subr.mxu0 0.0
    %5111 = vmatpush1.msra.mxu0 0.0
    %5112 = vmatprep.subr.mxu0 0.0
    %5113 = vmatpush1.msra.mxu0 0.0
    %5114 = vmatprep.subr.mxu0 0.0
    %5115 = vmatpush1.msra.mxu0 0.0
    %5116 = vmatprep.subr.mxu0 0.0
    %5117 = vmatpush1.msra.mxu0 0.0
    %5118 = vmatprep.subr.mxu0 0.0
    %5119 = vmatpush1.msra.mxu0 0.0
    %5120 = vmatprep.subr.mxu0 0.0
    %5121 = vmatpush1.msra.mxu0 0.0
    %5122 = vmatprep.subr.mxu0 0.0
    %5123 = vmatpush1.msra.mxu0 0.0
    %5124 = vmatprep.subr.mxu0 0.0
    %5125 = vmatpush1.msra.mxu0 0.0
    %5126 = vmatprep.subr.mxu0 0.0
    %5127 = vmatpush1.msra.mxu0 0.0
    %5128 = vmatprep.subr.mxu0 0.0
    %5129 = vmatpush1.msra.mxu0 0.0
    %5130 = vmatprep.subr.mxu0 0.0
    %5131 = vmatpush1.msra.mxu0 0.0
    %5132 = vmatprep.subr.mxu0 0.0
    %5133 = vmatpush1.msra.mxu0 0.0
    %5134 = vmatprep.subr.mxu0 0.0
    %5135 = vmatpush1.msra.mxu0 0.0
    %5136 = vmatprep.subr.mxu0 0.0
    %5137 = vmatpush1.msra.mxu0 0.0
    %5138 = vmatprep.subr.mxu0 0.0
    %5139 = vmatpush1.msra.mxu0 0.0
    %5140 = vmatprep.subr.mxu0 0.0
    %5141 = vmatpush1.msra.mxu0 0.0
    %5142 = vmatprep.subr.mxu0 0.0
    %5143 = vmatpush1.msra.mxu0 0.0
    %5144 = vmatprep.subr.mxu0 0.0
    %5145 = vmatpush1.msra.mxu0 0.0
    %5146 = vmatprep.subr.mxu0 0.0
    %5147 = vmatpush1.msra.mxu0 0.0
    %5148 = vmatprep.mubr.f32.mxu0 0.0
    %5149 = vmatmul.mubr.f32.gmra.mrb[0].mxu0 %v5082
    %v5150 = vpop.f32.mrb[0].mxu0
    %v5151 = vadd.f32 0.0, %v5150
    %v5152 = vpop.f32.mrb[0].mxu0
    %5153 = vdwg.mxu0
    %v5154 = vadd.f32 %v5080, %v5151
    %v5155 = vld [vmem:[%s288] sm:$0xf]
    %5156 = vmatprep.subr.mxu0 0.0
    %5157 = vmatpush1.msra.mxu0 %v997
    %5158 = vmatprep.subr.mxu0 0.0
    %5159 = vmatpush1.msra.mxu0 %v998
    %5160 = vmatprep.subr.mxu0 0.0
    %5161 = vmatpush1.msra.mxu0 %v999
    %5162 = vmatprep.subr.mxu0 0.0
    %5163 = vmatpush1.msra.mxu0 %v1000
    %5164 = vmatprep.subr.mxu0 0.0
    %5165 = vmatpush1.msra.mxu0 0.0
    %5166 = vmatprep.subr.mxu0 0.0
    %5167 = vmatpush1.msra.mxu0 0.0
    %5168 = vmatprep.subr.mxu0 0.0
    %5169 = vmatpush1.msra.mxu0 0.0
    %5170 = vmatprep.subr.mxu0 0.0
    %5171 = vmatpush1.msra.mxu0 0.0
    %5172 = vmatprep.subr.mxu0 0.0
    %5173 = vmatpush1.msra.mxu0 0.0
    %5174 = vmatprep.subr.mxu0 0.0
    %5175 = vmatpush1.msra.mxu0 0.0
    %5176 = vmatprep.subr.mxu0 0.0
    %5177 = vmatpush1.msra.mxu0 0.0
    %5178 = vmatprep.subr.mxu0 0.0
    %5179 = vmatpush1.msra.mxu0 0.0
    %5180 = vmatprep.subr.mxu0 0.0
    %5181 = vmatpush1.msra.mxu0 0.0
    %5182 = vmatprep.subr.mxu0 0.0
    %5183 = vmatpush1.msra.mxu0 0.0
    %5184 = vmatprep.subr.mxu0 0.0
    %5185 = vmatpush1.msra.mxu0 0.0
    %5186 = vmatprep.subr.mxu0 0.0
    %5187 = vmatpush1.msra.mxu0 0.0
    %5188 = vmatprep.subr.mxu0 0.0
    %5189 = vmatpush1.msra.mxu0 0.0
    %5190 = vmatprep.subr.mxu0 0.0
    %5191 = vmatpush1.msra.mxu0 0.0
    %5192 = vmatprep.subr.mxu0 0.0
    %5193 = vmatpush1.msra.mxu0 0.0
    %5194 = vmatprep.subr.mxu0 0.0
    %5195 = vmatpush1.msra.mxu0 0.0
    %5196 = vmatprep.subr.mxu0 0.0
    %5197 = vmatpush1.msra.mxu0 0.0
    %5198 = vmatprep.subr.mxu0 0.0
    %5199 = vmatpush1.msra.mxu0 0.0
    %5200 = vmatprep.subr.mxu0 0.0
    %5201 = vmatpush1.msra.mxu0 0.0
    %5202 = vmatprep.subr.mxu0 0.0
    %5203 = vmatpush1.msra.mxu0 0.0
    %5204 = vmatprep.subr.mxu0 0.0
    %5205 = vmatpush1.msra.mxu0 0.0
    %5206 = vmatprep.subr.mxu0 0.0
    %5207 = vmatpush1.msra.mxu0 0.0
    %5208 = vmatprep.subr.mxu0 0.0
    %5209 = vmatpush1.msra.mxu0 0.0
    %5210 = vmatprep.subr.mxu0 0.0
    %5211 = vmatpush1.msra.mxu0 0.0
    %5212 = vmatprep.subr.mxu0 0.0
    %5213 = vmatpush1.msra.mxu0 0.0
    %5214 = vmatprep.subr.mxu0 0.0
    %5215 = vmatpush1.msra.mxu0 0.0
    %5216 = vmatprep.subr.mxu0 0.0
    %5217 = vmatpush1.msra.mxu0 0.0
    %5218 = vmatprep.subr.mxu0 0.0
    %5219 = vmatpush1.msra.mxu0 0.0
    %5220 = vmatprep.mubr.f32.mxu0 0.0
    %5221 = vmatmul.mubr.f32.gmra.mrb[0].mxu0 %v5082
    %v5222 = vpop.f32.mrb[0].mxu0
    %v5223 = vadd.f32 0.0, %v5222
    %v5224 = vpop.f32.mrb[0].mxu0
    %5225 = vdwg.mxu0
    %v5226 = vadd.f32 %v5155, %v5223
    %v5227 = vld [vmem:[%s293] sm:$0xf]
    %5228 = vmatprep.subr.mxu0 0.0
    %5229 = vmatpush1.msra.mxu0 %v1002
    %5230 = vmatprep.subr.mxu0 0.0
    %5231 = vmatpush1.msra.mxu0 %v1003
    %5232 = vmatprep.subr.mxu0 0.0
    %5233 = vmatpush1.msra.mxu0 %v1004
    %5234 = vmatprep.subr.mxu0 0.0
    %5235 = vmatpush1.msra.mxu0 %v1005
    %5236 = vmatprep.subr.mxu0 0.0
    %5237 = vmatpush1.msra.mxu0 0.0
    %5238 = vmatprep.subr.mxu0 0.0
    %5239 = vmatpush1.msra.mxu0 0.0
    %5240 = vmatprep.subr.mxu0 0.0
    %5241 = vmatpush1.msra.mxu0 0.0
    %5242 = vmatprep.subr.mxu0 0.0
    %5243 = vmatpush1.msra.mxu0 0.0
    %5244 = vmatprep.subr.mxu0 0.0
    %5245 = vmatpush1.msra.mxu0 0.0
    %5246 = vmatprep.subr.mxu0 0.0
    %5247 = vmatpush1.msra.mxu0 0.0
    %5248 = vmatprep.subr.mxu0 0.0
    %5249 = vmatpush1.msra.mxu0 0.0
    %5250 = vmatprep.subr.mxu0 0.0
    %5251 = vmatpush1.msra.mxu0 0.0
    %5252 = vmatprep.subr.mxu0 0.0
    %5253 = vmatpush1.msra.mxu0 0.0
    %5254 = vmatprep.subr.mxu0 0.0
    %5255 = vmatpush1.msra.mxu0 0.0
    %5256 = vmatprep.subr.mxu0 0.0
    %5257 = vmatpush1.msra.mxu0 0.0
    %5258 = vmatprep.subr.mxu0 0.0
    %5259 = vmatpush1.msra.mxu0 0.0
    %5260 = vmatprep.subr.mxu0 0.0
    %5261 = vmatpush1.msra.mxu0 0.0
    %5262 = vmatprep.subr.mxu0 0.0
    %5263 = vmatpush1.msra.mxu0 0.0
    %5264 = vmatprep.subr.mxu0 0.0
    %5265 = vmatpush1.msra.mxu0 0.0
    %5266 = vmatprep.subr.mxu0 0.0
    %5267 = vmatpush1.msra.mxu0 0.0
    %5268 = vmatprep.subr.mxu0 0.0
    %5269 = vmatpush1.msra.mxu0 0.0
    %5270 = vmatprep.subr.mxu0 0.0
    %5271 = vmatpush1.msra.mxu0 0.0
    %5272 = vmatprep.subr.mxu0 0.0
    %5273 = vmatpush1.msra.mxu0 0.0
    %5274 = vmatprep.subr.mxu0 0.0
    %5275 = vmatpush1.msra.mxu0 0.0
    %5276 = vmatprep.subr.mxu0 0.0
    %5277 = vmatpush1.msra.mxu0 0.0
    %5278 = vmatprep.subr.mxu0 0.0
    %5279 = vmatpush1.msra.mxu0 0.0
    %5280 = vmatprep.subr.mxu0 0.0
    %5281 = vmatpush1.msra.mxu0 0.0
    %5282 = vmatprep.subr.mxu0 0.0
    %5283 = vmatpush1.msra.mxu0 0.0
    %5284 = vmatprep.subr.mxu0 0.0
    %5285 = vmatpush1.msra.mxu0 0.0
    %5286 = vmatprep.subr.mxu0 0.0
    %5287 = vmatpush1.msra.mxu0 0.0
    %5288 = vmatprep.subr.mxu0 0.0
    %5289 = vmatpush1.msra.mxu0 0.0
    %5290 = vmatprep.subr.mxu0 0.0
    %5291 = vmatpush1.msra.mxu0 0.0
    %5292 = vmatprep.mubr.f32.mxu0 0.0
    %5293 = vmatmul.mubr.f32.gmra.mrb[0].mxu0 %v5082
    %v5294 = vpop.f32.mrb[0].mxu0
    %v5295 = vadd.f32 0.0, %v5294
    %v5296 = vpop.f32.mrb[0].mxu0
    %5297 = vdwg.mxu0
    %v5298 = vadd.f32 %v5227, %v5295
    %v5299 = vld [vmem:[%s298] sm:$0xf]
    %5300 = vmatprep.subr.mxu0 0.0
    %5301 = vmatpush1.msra.mxu0 %v1007
    %5302 = vmatprep.subr.mxu0 0.0
    %5303 = vmatpush1.msra.mxu0 %v1008
    %5304 = vmatprep.subr.mxu0 0.0
    %5305 = vmatpush1.msra.mxu0 %v1009
    %5306 = vmatprep.subr.mxu0 0.0
    %5307 = vmatpush1.msra.mxu0 %v1010
    %5308 = vmatprep.subr.mxu0 0.0
    %5309 = vmatpush1.msra.mxu0 0.0
    %5310 = vmatprep.subr.mxu0 0.0
    %5311 = vmatpush1.msra.mxu0 0.0
    %5312 = vmatprep.subr.mxu0 0.0
    %5313 = vmatpush1.msra.mxu0 0.0
    %5314 = vmatprep.subr.mxu0 0.0
    %5315 = vmatpush1.msra.mxu0 0.0
    %5316 = vmatprep.subr.mxu0 0.0
    %5317 = vmatpush1.msra.mxu0 0.0
    %5318 = vmatprep.subr.mxu0 0.0
    %5319 = vmatpush1.msra.mxu0 0.0
    %5320 = vmatprep.subr.mxu0 0.0
    %5321 = vmatpush1.msra.mxu0 0.0
    %5322 = vmatprep.subr.mxu0 0.0
    %5323 = vmatpush1.msra.mxu0 0.0
    %5324 = vmatprep.subr.mxu0 0.0
    %5325 = vmatpush1.msra.mxu0 0.0
    %5326 = vmatprep.subr.mxu0 0.0
    %5327 = vmatpush1.msra.mxu0 0.0
    %5328 = vmatprep.subr.mxu0 0.0
    %5329 = vmatpush1.msra.mxu0 0.0
    %5330 = vmatprep.subr.mxu0 0.0
    %5331 = vmatpush1.msra.mxu0 0.0
    %5332 = vmatprep.subr.mxu0 0.0
    %5333 = vmatpush1.msra.mxu0 0.0
    %5334 = vmatprep.subr.mxu0 0.0
    %5335 = vmatpush1.msra.mxu0 0.0
    %5336 = vmatprep.subr.mxu0 0.0
    %5337 = vmatpush1.msra.mxu0 0.0
    %5338 = vmatprep.subr.mxu0 0.0
    %5339 = vmatpush1.msra.mxu0 0.0
    %5340 = vmatprep.subr.mxu0 0.0
    %5341 = vmatpush1.msra.mxu0 0.0
    %5342 = vmatprep.subr.mxu0 0.0
    %5343 = vmatpush1.msra.mxu0 0.0
    %5344 = vmatprep.subr.mxu0 0.0
    %5345 = vmatpush1.msra.mxu0 0.0
    %5346 = vmatprep.subr.mxu0 0.0
    %5347 = vmatpush1.msra.mxu0 0.0
    %5348 = vmatprep.subr.mxu0 0.0
    %5349 = vmatpush1.msra.mxu0 0.0
    %5350 = vmatprep.subr.mxu0 0.0
    %5351 = vmatpush1.msra.mxu0 0.0
    %5352 = vmatprep.subr.mxu0 0.0
    %5353 = vmatpush1.msra.mxu0 0.0
    %5354 = vmatprep.subr.mxu0 0.0
    %5355 = vmatpush1.msra.mxu0 0.0
    %5356 = vmatprep.subr.mxu0 0.0
    %5357 = vmatpush1.msra.mxu0 0.0
    %5358 = vmatprep.subr.mxu0 0.0
    %5359 = vmatpush1.msra.mxu0 0.0
    %5360 = vmatprep.subr.mxu0 0.0
    %5361 = vmatpush1.msra.mxu0 0.0
    %5362 = vmatprep.subr.mxu0 0.0
    %5363 = vmatpush1.msra.mxu0 0.0
    %5364 = vmatprep.mubr.f32.mxu0 0.0
    %5365 = vmatmul.mubr.f32.gmra.mrb[0].mxu0 %v5082
    %v5366 = vpop.f32.mrb[0].mxu0
    %v5367 = vadd.f32 0.0, %v5366
    %v5368 = vpop.f32.mrb[0].mxu0
    %5369 = vdwg.mxu0
    %v5370 = vadd.f32 %v5299, %v5367
    %v5371 = vxor.u32 %v4935, 2147483648
    %v5372 = vmul.f32 %v5371, 1.442695
    %v5373 = vpow.pop %v5372
    %v5374 = vadd.f32 %v5373, 1.0
    %v5375 = vrcp.pop %v5374
    %v5376 = vmul.f32 1.0, %v5375
    %v5377 = vmul.f32 %v5376, %v4756
    %v5378 = vxor.u32 %v4863, 2147483648
    %v5379 = vmul.f32 %v5378, 1.442695
    %v5380 = vpow.pop %v5379
    %v5381 = vadd.f32 %v5380, 1.0
    %v5382 = vrcp.pop %v5381
    %v5383 = vmul.f32 1.0, %v5382
    %v5384 = vtanh.pop %v5007
    %v5385 = vmul.f32 %v5383, %v5384
    %v5386 = vadd.f32 %v5377, %v5385
    %v5387 = vxor.u32 %v5079, 2147483648
    %v5388 = vmul.f32 %v5387, 1.442695
    %v5389 = vpow.pop %v5388
    %v5390 = vadd.f32 %v5389, 1.0
    %v5391 = vrcp.pop %v5390
    %v5392 = vmul.f32 1.0, %v5391
    %v5393 = vtanh.pop %v5386
    %v5394 = vmul.f32 %v5392, %v5393
    %v5395 = vxor.u32 %v5226, 2147483648
    %v5396 = vmul.f32 %v5395, 1.442695
    %v5397 = vpow.pop %v5396
    %v5398 = vadd.f32 %v5397, 1.0
    %v5399 = vrcp.pop %v5398
    %v5400 = vmul.f32 1.0, %v5399
    %v5401 = vmul.f32 %v5400, %v4780
    %v5402 = vxor.u32 %v5154, 2147483648
    %v5403 = vmul.f32 %v5402, 1.442695
    %v5404 = vpow.pop %v5403
    %v5405 = vadd.f32 %v5404, 1.0
    %v5406 = vrcp.pop %v5405
    %v5407 = vmul.f32 1.0, %v5406
    %v5408 = vtanh.pop %v5298
    %v5409 = vmul.f32 %v5407, %v5408
    %v5410 = vadd.f32 %v5401, %v5409
    %v5411 = vxor.u32 %v5370, 2147483648
    %v5412 = vmul.f32 %v5411, 1.442695
    %v5413 = vpow.pop %v5412
    %v5414 = vadd.f32 %v5413, 1.0
    %v5415 = vrcp.pop %v5414
    %v5416 = vmul.f32 1.0, %v5415
    %v5417 = vtanh.pop %v5410
    %v5418 = vmul.f32 %v5416, %v5417
    %v5419 = vld [vmem:[%s936] sm:$0xf]
    %v5421 = vsel %vm1012, %v5394, 0
    %5423 = vmatprep.subr.mxu0 0.0
    %5424 = vmatpush1.msra.mxu0 %v972
    %5425 = vmatprep.subr.mxu0 0.0
    %5426 = vmatpush1.msra.mxu0 %v973
    %5427 = vmatprep.subr.mxu0 0.0
    %5428 = vmatpush1.msra.mxu0 %v974
    %5429 = vmatprep.subr.mxu0 0.0
    %5430 = vmatpush1.msra.mxu0 %v975
    %5431 = vmatprep.subr.mxu0 0.0
    %5432 = vmatpush1.msra.mxu0 0.0
    %5433 = vmatprep.subr.mxu0 0.0
    %5434 = vmatpush1.msra.mxu0 0.0
    %5435 = vmatprep.subr.mxu0 0.0
    %5436 = vmatpush1.msra.mxu0 0.0
    %5437 = vmatprep.subr.mxu0 0.0
    %5438 = vmatpush1.msra.mxu0 0.0
    %5439 = vmatprep.subr.mxu0 0.0
    %5440 = vmatpush1.msra.mxu0 0.0
    %5441 = vmatprep.subr.mxu0 0.0
    %5442 = vmatpush1.msra.mxu0 0.0
    %5443 = vmatprep.subr.mxu0 0.0
    %5444 = vmatpush1.msra.mxu0 0.0
    %5445 = vmatprep.subr.mxu0 0.0
    %5446 = vmatpush1.msra.mxu0 0.0
    %5447 = vmatprep.subr.mxu0 0.0
    %5448 = vmatpush1.msra.mxu0 0.0
    %5449 = vmatprep.subr.mxu0 0.0
    %5450 = vmatpush1.msra.mxu0 0.0
    %5451 = vmatprep.subr.mxu0 0.0
    %5452 = vmatpush1.msra.mxu0 0.0
    %5453 = vmatprep.subr.mxu0 0.0
    %5454 = vmatpush1.msra.mxu0 0.0
    %5455 = vmatprep.subr.mxu0 0.0
    %5456 = vmatpush1.msra.mxu0 0.0
    %5457 = vmatprep.subr.mxu0 0.0
    %5458 = vmatpush1.msra.mxu0 0.0
    %5459 = vmatprep.subr.mxu0 0.0
    %5460 = vmatpush1.msra.mxu0 0.0
    %5461 = vmatprep.subr.mxu0 0.0
    %5462 = vmatpush1.msra.mxu0 0.0
    %5463 = vmatprep.subr.mxu0 0.0
    %5464 = vmatpush1.msra.mxu0 0.0
    %5465 = vmatprep.subr.mxu0 0.0
    %5466 = vmatpush1.msra.mxu0 0.0
    %5467 = vmatprep.subr.mxu0 0.0
    %5468 = vmatpush1.msra.mxu0 0.0
    %5469 = vmatprep.subr.mxu0 0.0
    %5470 = vmatpush1.msra.mxu0 0.0
    %5471 = vmatprep.subr.mxu0 0.0
    %5472 = vmatpush1.msra.mxu0 0.0
    %5473 = vmatprep.subr.mxu0 0.0
    %5474 = vmatpush1.msra.mxu0 0.0
    %5475 = vmatprep.subr.mxu0 0.0
    %5476 = vmatpush1.msra.mxu0 0.0
    %5477 = vmatprep.subr.mxu0 0.0
    %5478 = vmatpush1.msra.mxu0 0.0
    %5479 = vmatprep.subr.mxu0 0.0
    %5480 = vmatpush1.msra.mxu0 0.0
    %5481 = vmatprep.subr.mxu0 0.0
    %5482 = vmatpush1.msra.mxu0 0.0
    %5483 = vmatprep.subr.mxu0 0.0
    %5484 = vmatpush1.msra.mxu0 0.0
    %5485 = vmatprep.subr.mxu0 0.0
    %5486 = vmatpush1.msra.mxu0 0.0
    %5487 = vmatprep.mubr.f32.mxu0 0.0
    %5488 = vmatmul.mubr.f32.gmra.mrb[0].mxu0 %v5421
    %v5489 = vpop.f32.mrb[0].mxu0
    %v5490 = vadd.f32 0.0, %v5489
    %v5491 = vpop.f32.mrb[0].mxu0
    %5492 = vdwg.mxu0
    %v5493 = vadd.f32 %v5419, %v5490
    %v5494 = vld [vmem:[%s942] sm:$0xf]
    %5495 = vmatprep.subr.mxu0 0.0
    %5496 = vmatpush1.msra.mxu0 %v977
    %5497 = vmatprep.subr.mxu0 0.0
    %5498 = vmatpush1.msra.mxu0 %v978
    %5499 = vmatprep.subr.mxu0 0.0
    %5500 = vmatpush1.msra.mxu0 %v979
    %5501 = vmatprep.subr.mxu0 0.0
    %5502 = vmatpush1.msra.mxu0 %v980
    %5503 = vmatprep.subr.mxu0 0.0
    %5504 = vmatpush1.msra.mxu0 0.0
    %5505 = vmatprep.subr.mxu0 0.0
    %5506 = vmatpush1.msra.mxu0 0.0
    %5507 = vmatprep.subr.mxu0 0.0
    %5508 = vmatpush1.msra.mxu0 0.0
    %5509 = vmatprep.subr.mxu0 0.0
    %5510 = vmatpush1.msra.mxu0 0.0
    %5511 = vmatprep.subr.mxu0 0.0
    %5512 = vmatpush1.msra.mxu0 0.0
    %5513 = vmatprep.subr.mxu0 0.0
    %5514 = vmatpush1.msra.mxu0 0.0
    %5515 = vmatprep.subr.mxu0 0.0
    %5516 = vmatpush1.msra.mxu0 0.0
    %5517 = vmatprep.subr.mxu0 0.0
    %5518 = vmatpush1.msra.mxu0 0.0
    %5519 = vmatprep.subr.mxu0 0.0
    %5520 = vmatpush1.msra.mxu0 0.0
    %5521 = vmatprep.subr.mxu0 0.0
    %5522 = vmatpush1.msra.mxu0 0.0
    %5523 = vmatprep.subr.mxu0 0.0
    %5524 = vmatpush1.msra.mxu0 0.0
    %5525 = vmatprep.subr.mxu0 0.0
    %5526 = vmatpush1.msra.mxu0 0.0
    %5527 = vmatprep.subr.mxu0 0.0
    %5528 = vmatpush1.msra.mxu0 0.0
    %5529 = vmatprep.subr.mxu0 0.0
    %5530 = vmatpush1.msra.mxu0 0.0
    %5531 = vmatprep.subr.mxu0 0.0
    %5532 = vmatpush1.msra.mxu0 0.0
    %5533 = vmatprep.subr.mxu0 0.0
    %5534 = vmatpush1.msra.mxu0 0.0
    %5535 = vmatprep.subr.mxu0 0.0
    %5536 = vmatpush1.msra.mxu0 0.0
    %5537 = vmatprep.subr.mxu0 0.0
    %5538 = vmatpush1.msra.mxu0 0.0
    %5539 = vmatprep.subr.mxu0 0.0
    %5540 = vmatpush1.msra.mxu0 0.0
    %5541 = vmatprep.subr.mxu0 0.0
    %5542 = vmatpush1.msra.mxu0 0.0
    %5543 = vmatprep.subr.mxu0 0.0
    %5544 = vmatpush1.msra.mxu0 0.0
    %5545 = vmatprep.subr.mxu0 0.0
    %5546 = vmatpush1.msra.mxu0 0.0
    %5547 = vmatprep.subr.mxu0 0.0
    %5548 = vmatpush1.msra.mxu0 0.0
    %5549 = vmatprep.subr.mxu0 0.0
    %5550 = vmatpush1.msra.mxu0 0.0
    %5551 = vmatprep.subr.mxu0 0.0
    %5552 = vmatpush1.msra.mxu0 0.0
    %5553 = vmatprep.subr.mxu0 0.0
    %5554 = vmatpush1.msra.mxu0 0.0
    %5555 = vmatprep.subr.mxu0 0.0
    %5556 = vmatpush1.msra.mxu0 0.0
    %5557 = vmatprep.subr.mxu0 0.0
    %5558 = vmatpush1.msra.mxu0 0.0
    %5559 = vmatprep.mubr.f32.mxu0 0.0
    %5560 = vmatmul.mubr.f32.gmra.mrb[0].mxu0 %v5421
    %v5561 = vpop.f32.mrb[0].mxu0
    %v5562 = vadd.f32 0.0, %v5561
    %v5563 = vpop.f32.mrb[0].mxu0
    %5564 = vdwg.mxu0
    %v5565 = vadd.f32 %v5494, %v5562
    %v5566 = vld [vmem:[%s947] sm:$0xf]
    %5567 = vmatprep.subr.mxu0 0.0
    %5568 = vmatpush1.msra.mxu0 %v982
    %5569 = vmatprep.subr.mxu0 0.0
    %5570 = vmatpush1.msra.mxu0 %v983
    %5571 = vmatprep.subr.mxu0 0.0
    %5572 = vmatpush1.msra.mxu0 %v984
    %5573 = vmatprep.subr.mxu0 0.0
    %5574 = vmatpush1.msra.mxu0 %v985
    %5575 = vmatprep.subr.mxu0 0.0
    %5576 = vmatpush1.msra.mxu0 0.0
    %5577 = vmatprep.subr.mxu0 0.0
    %5578 = vmatpush1.msra.mxu0 0.0
    %5579 = vmatprep.subr.mxu0 0.0
    %5580 = vmatpush1.msra.mxu0 0.0
    %5581 = vmatprep.subr.mxu0 0.0
    %5582 = vmatpush1.msra.mxu0 0.0
    %5583 = vmatprep.subr.mxu0 0.0
    %5584 = vmatpush1.msra.mxu0 0.0
    %5585 = vmatprep.subr.mxu0 0.0
    %5586 = vmatpush1.msra.mxu0 0.0
    %5587 = vmatprep.subr.mxu0 0.0
    %5588 = vmatpush1.msra.mxu0 0.0
    %5589 = vmatprep.subr.mxu0 0.0
    %5590 = vmatpush1.msra.mxu0 0.0
    %5591 = vmatprep.subr.mxu0 0.0
    %5592 = vmatpush1.msra.mxu0 0.0
    %5593 = vmatprep.subr.mxu0 0.0
    %5594 = vmatpush1.msra.mxu0 0.0
    %5595 = vmatprep.subr.mxu0 0.0
    %5596 = vmatpush1.msra.mxu0 0.0
    %5597 = vmatprep.subr.mxu0 0.0
    %5598 = vmatpush1.msra.mxu0 0.0
    %5599 = vmatprep.subr.mxu0 0.0
    %5600 = vmatpush1.msra.mxu0 0.0
    %5601 = vmatprep.subr.mxu0 0.0
    %5602 = vmatpush1.msra.mxu0 0.0
    %5603 = vmatprep.subr.mxu0 0.0
    %5604 = vmatpush1.msra.mxu0 0.0
    %5605 = vmatprep.subr.mxu0 0.0
    %5606 = vmatpush1.msra.mxu0 0.0
    %5607 = vmatprep.subr.mxu0 0.0
    %5608 = vmatpush1.msra.mxu0 0.0
    %5609 = vmatprep.subr.mxu0 0.0
    %5610 = vmatpush1.msra.mxu0 0.0
    %5611 = vmatprep.subr.mxu0 0.0
    %5612 = vmatpush1.msra.mxu0 0.0
    %5613 = vmatprep.subr.mxu0 0.0
    %5614 = vmatpush1.msra.mxu0 0.0
    %5615 = vmatprep.subr.mxu0 0.0
    %5616 = vmatpush1.msra.mxu0 0.0
    %5617 = vmatprep.subr.mxu0 0.0
    %5618 = vmatpush1.msra.mxu0 0.0
    %5619 = vmatprep.subr.mxu0 0.0
    %5620 = vmatpush1.msra.mxu0 0.0
    %5621 = vmatprep.subr.mxu0 0.0
    %5622 = vmatpush1.msra.mxu0 0.0
    %5623 = vmatprep.subr.mxu0 0.0
    %5624 = vmatpush1.msra.mxu0 0.0
    %5625 = vmatprep.subr.mxu0 0.0
    %5626 = vmatpush1.msra.mxu0 0.0
    %5627 = vmatprep.subr.mxu0 0.0
    %5628 = vmatpush1.msra.mxu0 0.0
    %5629 = vmatprep.subr.mxu0 0.0
    %5630 = vmatpush1.msra.mxu0 0.0
    %5631 = vmatprep.mubr.f32.mxu0 0.0
    %5632 = vmatmul.mubr.f32.gmra.mrb[0].mxu0 %v5421
    %v5633 = vpop.f32.mrb[0].mxu0
    %v5634 = vadd.f32 0.0, %v5633
    %v5635 = vpop.f32.mrb[0].mxu0
    %5636 = vdwg.mxu0
    %v5637 = vadd.f32 %v5566, %v5634
    %v5638 = vld [vmem:[%s952] sm:$0xf]
    %5639 = vmatprep.subr.mxu0 0.0
    %5640 = vmatpush1.msra.mxu0 %v987
    %5641 = vmatprep.subr.mxu0 0.0
    %5642 = vmatpush1.msra.mxu0 %v988
    %5643 = vmatprep.subr.mxu0 0.0
    %5644 = vmatpush1.msra.mxu0 %v989
    %5645 = vmatprep.subr.mxu0 0.0
    %5646 = vmatpush1.msra.mxu0 %v990
    %5647 = vmatprep.subr.mxu0 0.0
    %5648 = vmatpush1.msra.mxu0 0.0
    %5649 = vmatprep.subr.mxu0 0.0
    %5650 = vmatpush1.msra.mxu0 0.0
    %5651 = vmatprep.subr.mxu0 0.0
    %5652 = vmatpush1.msra.mxu0 0.0
    %5653 = vmatprep.subr.mxu0 0.0
    %5654 = vmatpush1.msra.mxu0 0.0
    %5655 = vmatprep.subr.mxu0 0.0
    %5656 = vmatpush1.msra.mxu0 0.0
    %5657 = vmatprep.subr.mxu0 0.0
    %5658 = vmatpush1.msra.mxu0 0.0
    %5659 = vmatprep.subr.mxu0 0.0
    %5660 = vmatpush1.msra.mxu0 0.0
    %5661 = vmatprep.subr.mxu0 0.0
    %5662 = vmatpush1.msra.mxu0 0.0
    %5663 = vmatprep.subr.mxu0 0.0
    %5664 = vmatpush1.msra.mxu0 0.0
    %5665 = vmatprep.subr.mxu0 0.0
    %5666 = vmatpush1.msra.mxu0 0.0
    %5667 = vmatprep.subr.mxu0 0.0
    %5668 = vmatpush1.msra.mxu0 0.0
    %5669 = vmatprep.subr.mxu0 0.0
    %5670 = vmatpush1.msra.mxu0 0.0
    %5671 = vmatprep.subr.mxu0 0.0
    %5672 = vmatpush1.msra.mxu0 0.0
    %5673 = vmatprep.subr.mxu0 0.0
    %5674 = vmatpush1.msra.mxu0 0.0
    %5675 = vmatprep.subr.mxu0 0.0
    %5676 = vmatpush1.msra.mxu0 0.0
    %5677 = vmatprep.subr.mxu0 0.0
    %5678 = vmatpush1.msra.mxu0 0.0
    %5679 = vmatprep.subr.mxu0 0.0
    %5680 = vmatpush1.msra.mxu0 0.0
    %5681 = vmatprep.subr.mxu0 0.0
    %5682 = vmatpush1.msra.mxu0 0.0
    %5683 = vmatprep.subr.mxu0 0.0
    %5684 = vmatpush1.msra.mxu0 0.0
    %5685 = vmatprep.subr.mxu0 0.0
    %5686 = vmatpush1.msra.mxu0 0.0
    %5687 = vmatprep.subr.mxu0 0.0
    %5688 = vmatpush1.msra.mxu0 0.0
    %5689 = vmatprep.subr.mxu0 0.0
    %5690 = vmatpush1.msra.mxu0 0.0
    %5691 = vmatprep.subr.mxu0 0.0
    %5692 = vmatpush1.msra.mxu0 0.0
    %5693 = vmatprep.subr.mxu0 0.0
    %5694 = vmatpush1.msra.mxu0 0.0
    %5695 = vmatprep.subr.mxu0 0.0
    %5696 = vmatpush1.msra.mxu0 0.0
    %5697 = vmatprep.subr.mxu0 0.0
    %5698 = vmatpush1.msra.mxu0 0.0
    %5699 = vmatprep.subr.mxu0 0.0
    %5700 = vmatpush1.msra.mxu0 0.0
    %5701 = vmatprep.subr.mxu0 0.0
    %5702 = vmatpush1.msra.mxu0 0.0
    %5703 = vmatprep.mubr.f32.mxu0 0.0
    %5704 = vmatmul.mubr.f32.gmra.mrb[0].mxu0 %v5421
    %v5705 = vpop.f32.mrb[0].mxu0
    %v5706 = vadd.f32 0.0, %v5705
    %v5707 = vpop.f32.mrb[0].mxu0
    %5708 = vdwg.mxu0
    %v5709 = vadd.f32 %v5638, %v5706
    %v5710 = vld [vmem:[%s170] sm:$0xf]
    %v5712 = vsel %vm1012, %v5418, 0
    %5714 = vmatprep.subr.mxu0 0.0
    %5715 = vmatpush1.msra.mxu0 %v992
    %5716 = vmatprep.subr.mxu0 0.0
    %5717 = vmatpush1.msra.mxu0 %v993
    %5718 = vmatprep.subr.mxu0 0.0
    %5719 = vmatpush1.msra.mxu0 %v994
    %5720 = vmatprep.subr.mxu0 0.0
    %5721 = vmatpush1.msra.mxu0 %v995
    %5722 = vmatprep.subr.mxu0 0.0
    %5723 = vmatpush1.msra.mxu0 0.0
    %5724 = vmatprep.subr.mxu0 0.0
    %5725 = vmatpush1.msra.mxu0 0.0
    %5726 = vmatprep.subr.mxu0 0.0
    %5727 = vmatpush1.msra.mxu0 0.0
    %5728 = vmatprep.subr.mxu0 0.0
    %5729 = vmatpush1.msra.mxu0 0.0
    %5730 = vmatprep.subr.mxu0 0.0
    %5731 = vmatpush1.msra.mxu0 0.0
    %5732 = vmatprep.subr.mxu0 0.0
    %5733 = vmatpush1.msra.mxu0 0.0
    %5734 = vmatprep.subr.mxu0 0.0
    %5735 = vmatpush1.msra.mxu0 0.0
    %5736 = vmatprep.subr.mxu0 0.0
    %5737 = vmatpush1.msra.mxu0 0.0
    %5738 = vmatprep.subr.mxu0 0.0
    %5739 = vmatpush1.msra.mxu0 0.0
    %5740 = vmatprep.subr.mxu0 0.0
    %5741 = vmatpush1.msra.mxu0 0.0
    %5742 = vmatprep.subr.mxu0 0.0
    %5743 = vmatpush1.msra.mxu0 0.0
    %5744 = vmatprep.subr.mxu0 0.0
    %5745 = vmatpush1.msra.mxu0 0.0
    %5746 = vmatprep.subr.mxu0 0.0
    %5747 = vmatpush1.msra.mxu0 0.0
    %5748 = vmatprep.subr.mxu0 0.0
    %5749 = vmatpush1.msra.mxu0 0.0
    %5750 = vmatprep.subr.mxu0 0.0
    %5751 = vmatpush1.msra.mxu0 0.0
    %5752 = vmatprep.subr.mxu0 0.0
    %5753 = vmatpush1.msra.mxu0 0.0
    %5754 = vmatprep.subr.mxu0 0.0
    %5755 = vmatpush1.msra.mxu0 0.0
    %5756 = vmatprep.subr.mxu0 0.0
    %5757 = vmatpush1.msra.mxu0 0.0
    %5758 = vmatprep.subr.mxu0 0.0
    %5759 = vmatpush1.msra.mxu0 0.0
    %5760 = vmatprep.subr.mxu0 0.0
    %5761 = vmatpush1.msra.mxu0 0.0
    %5762 = vmatprep.subr.mxu0 0.0
    %5763 = vmatpush1.msra.mxu0 0.0
    %5764 = vmatprep.subr.mxu0 0.0
    %5765 = vmatpush1.msra.mxu0 0.0
    %5766 = vmatprep.subr.mxu0 0.0
    %5767 = vmatpush1.msra.mxu0 0.0
    %5768 = vmatprep.subr.mxu0 0.0
    %5769 = vmatpush1.msra.mxu0 0.0
    %5770 = vmatprep.subr.mxu0 0.0
    %5771 = vmatpush1.msra.mxu0 0.0
    %5772 = vmatprep.subr.mxu0 0.0
    %5773 = vmatpush1.msra.mxu0 0.0
    %5774 = vmatprep.subr.mxu0 0.0
    %5775 = vmatpush1.msra.mxu0 0.0
    %5776 = vmatprep.subr.mxu0 0.0
    %5777 = vmatpush1.msra.mxu0 0.0
    %5778 = vmatprep.mubr.f32.mxu0 0.0
    %5779 = vmatmul.mubr.f32.gmra.mrb[0].mxu0 %v5712
    %v5780 = vpop.f32.mrb[0].mxu0
    %v5781 = vadd.f32 0.0, %v5780
    %v5782 = vpop.f32.mrb[0].mxu0
    %5783 = vdwg.mxu0
    %v5784 = vadd.f32 %v5710, %v5781
    %v5785 = vld [vmem:[%s176] sm:$0xf]
    %5786 = vmatprep.subr.mxu0 0.0
    %5787 = vmatpush1.msra.mxu0 %v997
    %5788 = vmatprep.subr.mxu0 0.0
    %5789 = vmatpush1.msra.mxu0 %v998
    %5790 = vmatprep.subr.mxu0 0.0
    %5791 = vmatpush1.msra.mxu0 %v999
    %5792 = vmatprep.subr.mxu0 0.0
    %5793 = vmatpush1.msra.mxu0 %v1000
    %5794 = vmatprep.subr.mxu0 0.0
    %5795 = vmatpush1.msra.mxu0 0.0
    %5796 = vmatprep.subr.mxu0 0.0
    %5797 = vmatpush1.msra.mxu0 0.0
    %5798 = vmatprep.subr.mxu0 0.0
    %5799 = vmatpush1.msra.mxu0 0.0
    %5800 = vmatprep.subr.mxu0 0.0
    %5801 = vmatpush1.msra.mxu0 0.0
    %5802 = vmatprep.subr.mxu0 0.0
    %5803 = vmatpush1.msra.mxu0 0.0
    %5804 = vmatprep.subr.mxu0 0.0
    %5805 = vmatpush1.msra.mxu0 0.0
    %5806 = vmatprep.subr.mxu0 0.0
    %5807 = vmatpush1.msra.mxu0 0.0
    %5808 = vmatprep.subr.mxu0 0.0
    %5809 = vmatpush1.msra.mxu0 0.0
    %5810 = vmatprep.subr.mxu0 0.0
    %5811 = vmatpush1.msra.mxu0 0.0
    %5812 = vmatprep.subr.mxu0 0.0
    %5813 = vmatpush1.msra.mxu0 0.0
    %5814 = vmatprep.subr.mxu0 0.0
    %5815 = vmatpush1.msra.mxu0 0.0
    %5816 = vmatprep.subr.mxu0 0.0
    %5817 = vmatpush1.msra.mxu0 0.0
    %5818 = vmatprep.subr.mxu0 0.0
    %5819 = vmatpush1.msra.mxu0 0.0
    %5820 = vmatprep.subr.mxu0 0.0
    %5821 = vmatpush1.msra.mxu0 0.0
    %5822 = vmatprep.subr.mxu0 0.0
    %5823 = vmatpush1.msra.mxu0 0.0
    %5824 = vmatprep.subr.mxu0 0.0
    %5825 = vmatpush1.msra.mxu0 0.0
    %5826 = vmatprep.subr.mxu0 0.0
    %5827 = vmatpush1.msra.mxu0 0.0
    %5828 = vmatprep.subr.mxu0 0.0
    %5829 = vmatpush1.msra.mxu0 0.0
    %5830 = vmatprep.subr.mxu0 0.0
    %5831 = vmatpush1.msra.mxu0 0.0
    %5832 = vmatprep.subr.mxu0 0.0
    %5833 = vmatpush1.msra.mxu0 0.0
    %5834 = vmatprep.subr.mxu0 0.0
    %5835 = vmatpush1.msra.mxu0 0.0
    %5836 = vmatprep.subr.mxu0 0.0
    %5837 = vmatpush1.msra.mxu0 0.0
    %5838 = vmatprep.subr.mxu0 0.0
    %5839 = vmatpush1.msra.mxu0 0.0
    %5840 = vmatprep.subr.mxu0 0.0
    %5841 = vmatpush1.msra.mxu0 0.0
    %5842 = vmatprep.subr.mxu0 0.0
    %5843 = vmatpush1.msra.mxu0 0.0
    %5844 = vmatprep.subr.mxu0 0.0
    %5845 = vmatpush1.msra.mxu0 0.0
    %5846 = vmatprep.subr.mxu0 0.0
    %5847 = vmatpush1.msra.mxu0 0.0
    %5848 = vmatprep.subr.mxu0 0.0
    %5849 = vmatpush1.msra.mxu0 0.0
    %5850 = vmatprep.mubr.f32.mxu0 0.0
    %5851 = vmatmul.mubr.f32.gmra.mrb[0].mxu0 %v5712
    %v5852 = vpop.f32.mrb[0].mxu0
    %v5853 = vadd.f32 0.0, %v5852
    %v5854 = vpop.f32.mrb[0].mxu0
    %5855 = vdwg.mxu0
    %v5856 = vadd.f32 %v5785, %v5853
    %v5857 = vld [vmem:[%s181] sm:$0xf]
    %5858 = vmatprep.subr.mxu0 0.0
    %5859 = vmatpush1.msra.mxu0 %v1002
    %5860 = vmatprep.subr.mxu0 0.0
    %5861 = vmatpush1.msra.mxu0 %v1003
    %5862 = vmatprep.subr.mxu0 0.0
    %5863 = vmatpush1.msra.mxu0 %v1004
    %5864 = vmatprep.subr.mxu0 0.0
    %5865 = vmatpush1.msra.mxu0 %v1005
    %5866 = vmatprep.subr.mxu0 0.0
    %5867 = vmatpush1.msra.mxu0 0.0
    %5868 = vmatprep.subr.mxu0 0.0
    %5869 = vmatpush1.msra.mxu0 0.0
    %5870 = vmatprep.subr.mxu0 0.0
    %5871 = vmatpush1.msra.mxu0 0.0
    %5872 = vmatprep.subr.mxu0 0.0
    %5873 = vmatpush1.msra.mxu0 0.0
    %5874 = vmatprep.subr.mxu0 0.0
    %5875 = vmatpush1.msra.mxu0 0.0
    %5876 = vmatprep.subr.mxu0 0.0
    %5877 = vmatpush1.msra.mxu0 0.0
    %5878 = vmatprep.subr.mxu0 0.0
    %5879 = vmatpush1.msra.mxu0 0.0
    %5880 = vmatprep.subr.mxu0 0.0
    %5881 = vmatpush1.msra.mxu0 0.0
    %5882 = vmatprep.subr.mxu0 0.0
    %5883 = vmatpush1.msra.mxu0 0.0
    %5884 = vmatprep.subr.mxu0 0.0
    %5885 = vmatpush1.msra.mxu0 0.0
    %5886 = vmatprep.subr.mxu0 0.0
    %5887 = vmatpush1.msra.mxu0 0.0
    %5888 = vmatprep.subr.mxu0 0.0
    %5889 = vmatpush1.msra.mxu0 0.0
    %5890 = vmatprep.subr.mxu0 0.0
    %5891 = vmatpush1.msra.mxu0 0.0
    %5892 = vmatprep.subr.mxu0 0.0
    %5893 = vmatpush1.msra.mxu0 0.0
    %5894 = vmatprep.subr.mxu0 0.0
    %5895 = vmatpush1.msra.mxu0 0.0
    %5896 = vmatprep.subr.mxu0 0.0
    %5897 = vmatpush1.msra.mxu0 0.0
    %5898 = vmatprep.subr.mxu0 0.0
    %5899 = vmatpush1.msra.mxu0 0.0
    %5900 = vmatprep.subr.mxu0 0.0
    %5901 = vmatpush1.msra.mxu0 0.0
    %5902 = vmatprep.subr.mxu0 0.0
    %5903 = vmatpush1.msra.mxu0 0.0
    %5904 = vmatprep.subr.mxu0 0.0
    %5905 = vmatpush1.msra.mxu0 0.0
    %5906 = vmatprep.subr.mxu0 0.0
    %5907 = vmatpush1.msra.mxu0 0.0
    %5908 = vmatprep.subr.mxu0 0.0
    %5909 = vmatpush1.msra.mxu0 0.0
    %5910 = vmatprep.subr.mxu0 0.0
    %5911 = vmatpush1.msra.mxu0 0.0
    %5912 = vmatprep.subr.mxu0 0.0
    %5913 = vmatpush1.msra.mxu0 0.0
    %5914 = vmatprep.subr.mxu0 0.0
    %5915 = vmatpush1.msra.mxu0 0.0
    %5916 = vmatprep.subr.mxu0 0.0
    %5917 = vmatpush1.msra.mxu0 0.0
    %5918 = vmatprep.subr.mxu0 0.0
    %5919 = vmatpush1.msra.mxu0 0.0
    %5920 = vmatprep.subr.mxu0 0.0
    %5921 = vmatpush1.msra.mxu0 0.0
    %5922 = vmatprep.mubr.f32.mxu0 0.0
    %5923 = vmatmul.mubr.f32.gmra.mrb[0].mxu0 %v5712
    %v5924 = vpop.f32.mrb[0].mxu0
    %v5925 = vadd.f32 0.0, %v5924
    %v5926 = vpop.f32.mrb[0].mxu0
    %5927 = vdwg.mxu0
    %v5928 = vadd.f32 %v5857, %v5925
    %v5929 = vld [vmem:[%s186] sm:$0xf]
    %5930 = vmatprep.subr.mxu0 0.0
    %5931 = vmatpush1.msra.mxu0 %v1007
    %5932 = vmatprep.subr.mxu0 0.0
    %5933 = vmatpush1.msra.mxu0 %v1008
    %5934 = vmatprep.subr.mxu0 0.0
    %5935 = vmatpush1.msra.mxu0 %v1009
    %5936 = vmatprep.subr.mxu0 0.0
    %5937 = vmatpush1.msra.mxu0 %v1010
    %5938 = vmatprep.subr.mxu0 0.0
    %5939 = vmatpush1.msra.mxu0 0.0
    %5940 = vmatprep.subr.mxu0 0.0
    %5941 = vmatpush1.msra.mxu0 0.0
    %5942 = vmatprep.subr.mxu0 0.0
    %5943 = vmatpush1.msra.mxu0 0.0
    %5944 = vmatprep.subr.mxu0 0.0
    %5945 = vmatpush1.msra.mxu0 0.0
    %5946 = vmatprep.subr.mxu0 0.0
    %5947 = vmatpush1.msra.mxu0 0.0
    %5948 = vmatprep.subr.mxu0 0.0
    %5949 = vmatpush1.msra.mxu0 0.0
    %5950 = vmatprep.subr.mxu0 0.0
    %5951 = vmatpush1.msra.mxu0 0.0
    %5952 = vmatprep.subr.mxu0 0.0
    %5953 = vmatpush1.msra.mxu0 0.0
    %5954 = vmatprep.subr.mxu0 0.0
    %5955 = vmatpush1.msra.mxu0 0.0
    %5956 = vmatprep.subr.mxu0 0.0
    %5957 = vmatpush1.msra.mxu0 0.0
    %5958 = vmatprep.subr.mxu0 0.0
    %5959 = vmatpush1.msra.mxu0 0.0
    %5960 = vmatprep.subr.mxu0 0.0
    %5961 = vmatpush1.msra.mxu0 0.0
    %5962 = vmatprep.subr.mxu0 0.0
    %5963 = vmatpush1.msra.mxu0 0.0
    %5964 = vmatprep.subr.mxu0 0.0
    %5965 = vmatpush1.msra.mxu0 0.0
    %5966 = vmatprep.subr.mxu0 0.0
    %5967 = vmatpush1.msra.mxu0 0.0
    %5968 = vmatprep.subr.mxu0 0.0
    %5969 = vmatpush1.msra.mxu0 0.0
    %5970 = vmatprep.subr.mxu0 0.0
    %5971 = vmatpush1.msra.mxu0 0.0
    %5972 = vmatprep.subr.mxu0 0.0
    %5973 = vmatpush1.msra.mxu0 0.0
    %5974 = vmatprep.subr.mxu0 0.0
    %5975 = vmatpush1.msra.mxu0 0.0
    %5976 = vmatprep.subr.mxu0 0.0
    %5977 = vmatpush1.msra.mxu0 0.0
    %5978 = vmatprep.subr.mxu0 0.0
    %5979 = vmatpush1.msra.mxu0 0.0
    %5980 = vmatprep.subr.mxu0 0.0
    %5981 = vmatpush1.msra.mxu0 0.0
    %5982 = vmatprep.subr.mxu0 0.0
    %5983 = vmatpush1.msra.mxu0 0.0
    %5984 = vmatprep.subr.mxu0 0.0
    %5985 = vmatpush1.msra.mxu0 0.0
    %5986 = vmatprep.subr.mxu0 0.0
    %5987 = vmatpush1.msra.mxu0 0.0
    %5988 = vmatprep.subr.mxu0 0.0
    %5989 = vmatpush1.msra.mxu0 0.0
    %5990 = vmatprep.subr.mxu0 0.0
    %5991 = vmatpush1.msra.mxu0 0.0
    %5992 = vmatprep.subr.mxu0 0.0
    %5993 = vmatpush1.msra.mxu0 0.0
    %5994 = vmatprep.mubr.f32.mxu0 0.0
    %5995 = vmatmul.mubr.f32.gmra.mrb[0].mxu0 %v5712
    %v5996 = vpop.f32.mrb[0].mxu0
    %v5997 = vadd.f32 0.0, %v5996
    %v5998 = vpop.f32.mrb[0].mxu0
    %5999 = vdwg.mxu0
    %v6000 = vadd.f32 %v5929, %v5997
    %v6001 = vxor.u32 %v5565, 2147483648
    %v6002 = vmul.f32 %v6001, 1.442695
    %v6003 = vpow.pop %v6002
    %v6004 = vadd.f32 %v6003, 1.0
    %v6005 = vrcp.pop %v6004
    %v6006 = vmul.f32 1.0, %v6005
    %v6007 = vmul.f32 %v6006, %v5386
    %v6008 = vxor.u32 %v5493, 2147483648
    %v6009 = vmul.f32 %v6008, 1.442695
    %v6010 = vpow.pop %v6009
    %v6011 = vadd.f32 %v6010, 1.0
    %v6012 = vrcp.pop %v6011
    %v6013 = vmul.f32 1.0, %v6012
    %v6014 = vtanh.pop %v5637
    %v6015 = vmul.f32 %v6013, %v6014
    %v6016 = vadd.f32 %v6007, %v6015
    %v6017 = vxor.u32 %v5709, 2147483648
    %v6018 = vmul.f32 %v6017, 1.442695
    %v6019 = vpow.pop %v6018
    %v6020 = vadd.f32 %v6019, 1.0
    %v6021 = vrcp.pop %v6020
    %v6022 = vmul.f32 1.0, %v6021
    %v6023 = vtanh.pop %v6016
    %v6024 = vmul.f32 %v6022, %v6023
    %v6025 = vxor.u32 %v5856, 2147483648
    %v6026 = vmul.f32 %v6025, 1.442695
    %v6027 = vpow.pop %v6026
    %v6028 = vadd.f32 %v6027, 1.0
    %v6029 = vrcp.pop %v6028
    %v6030 = vmul.f32 1.0, %v6029
    %v6031 = vmul.f32 %v6030, %v5410
    %v6032 = vxor.u32 %v5784, 2147483648
    %v6033 = vmul.f32 %v6032, 1.442695
    %v6034 = vpow.pop %v6033
    %v6035 = vadd.f32 %v6034, 1.0
    %v6036 = vrcp.pop %v6035
    %v6037 = vmul.f32 1.0, %v6036
    %v6038 = vtanh.pop %v5928
    %v6039 = vmul.f32 %v6037, %v6038
    %v6040 = vadd.f32 %v6031, %v6039
    %v6041 = vxor.u32 %v6000, 2147483648
    %v6042 = vmul.f32 %v6041, 1.442695
    %v6043 = vpow.pop %v6042
    %v6044 = vadd.f32 %v6043, 1.0
    %v6045 = vrcp.pop %v6044
    %v6046 = vmul.f32 1.0, %v6045
    %v6047 = vtanh.pop %v6040
    %v6048 = vmul.f32 %v6046, %v6047
    %v6049 = vld [vmem:[%s5] sm:$0xff]
    %v6050 = vld [vmem:[%s5 + $0x8] sm:$0xff]
    %v6051 = vld [vmem:[%s5 + $0x10] sm:$0xff]
    %v6052 = vld [vmem:[%s5 + $0x18] sm:$0xff]
    %s6053 = scalar_lea.vmem %s5, 32
    %v6054 = vld [vmem:[%s6053] sm:$0xff]
    %v6055 = vld [vmem:[%s6053 + $0x8] sm:$0xff]
    %v6056 = vld [vmem:[%s6053 + $0x10] sm:$0xff]
    %v6057 = vld [vmem:[%s6053 + $0x18] sm:$0xff]
    %v6059 = vsel %vm1012, %v6048, 0
    %6061 = vmatprep.subr.mxu0 0.0
    %6062 = vmatpush1.msra.mxu0 %v6054
    %6063 = vmatprep.subr.mxu0 0.0
    %6064 = vmatpush1.msra.mxu0 %v6055
    %6065 = vmatprep.subr.mxu0 0.0
    %6066 = vmatpush1.msra.mxu0 %v6056
    %6067 = vmatprep.subr.mxu0 0.0
    %6068 = vmatpush1.msra.mxu0 %v6057
    %6069 = vmatprep.subr.mxu0 0.0
    %6070 = vmatpush1.msra.mxu0 0.0
    %6071 = vmatprep.subr.mxu0 0.0
    %6072 = vmatpush1.msra.mxu0 0.0
    %6073 = vmatprep.subr.mxu0 0.0
    %6074 = vmatpush1.msra.mxu0 0.0
    %6075 = vmatprep.subr.mxu0 0.0
    %6076 = vmatpush1.msra.mxu0 0.0
    %6077 = vmatprep.subr.mxu0 0.0
    %6078 = vmatpush1.msra.mxu0 0.0
    %6079 = vmatprep.subr.mxu0 0.0
    %6080 = vmatpush1.msra.mxu0 0.0
    %6081 = vmatprep.subr.mxu0 0.0
    %6082 = vmatpush1.msra.mxu0 0.0
    %6083 = vmatprep.subr.mxu0 0.0
    %6084 = vmatpush1.msra.mxu0 0.0
    %6085 = vmatprep.subr.mxu0 0.0
    %6086 = vmatpush1.msra.mxu0 0.0
    %6087 = vmatprep.subr.mxu0 0.0
    %6088 = vmatpush1.msra.mxu0 0.0
    %6089 = vmatprep.subr.mxu0 0.0
    %6090 = vmatpush1.msra.mxu0 0.0
    %6091 = vmatprep.subr.mxu0 0.0
    %6092 = vmatpush1.msra.mxu0 0.0
    %6093 = vmatprep.subr.mxu0 0.0
    %6094 = vmatpush1.msra.mxu0 0.0
    %6095 = vmatprep.subr.mxu0 0.0
    %6096 = vmatpush1.msra.mxu0 0.0
    %6097 = vmatprep.subr.mxu0 0.0
    %6098 = vmatpush1.msra.mxu0 0.0
    %6099 = vmatprep.subr.mxu0 0.0
    %6100 = vmatpush1.msra.mxu0 0.0
    %6101 = vmatprep.subr.mxu0 0.0
    %6102 = vmatpush1.msra.mxu0 0.0
    %6103 = vmatprep.subr.mxu0 0.0
    %6104 = vmatpush1.msra.mxu0 0.0
    %6105 = vmatprep.subr.mxu0 0.0
    %6106 = vmatpush1.msra.mxu0 0.0
    %6107 = vmatprep.subr.mxu0 0.0
    %6108 = vmatpush1.msra.mxu0 0.0
    %6109 = vmatprep.subr.mxu0 0.0
    %6110 = vmatpush1.msra.mxu0 0.0
    %6111 = vmatprep.subr.mxu0 0.0
    %6112 = vmatpush1.msra.mxu0 0.0
    %6113 = vmatprep.subr.mxu0 0.0
    %6114 = vmatpush1.msra.mxu0 0.0
    %6115 = vmatprep.subr.mxu0 0.0
    %6116 = vmatpush1.msra.mxu0 0.0
    %6117 = vmatprep.subr.mxu0 0.0
    %6118 = vmatpush1.msra.mxu0 0.0
    %6119 = vmatprep.subr.mxu0 0.0
    %6120 = vmatpush1.msra.mxu0 0.0
    %6121 = vmatprep.subr.mxu0 0.0
    %6122 = vmatpush1.msra.mxu0 0.0
    %6123 = vmatprep.subr.mxu0 0.0
    %6124 = vmatpush1.msra.mxu0 0.0
    %6125 = vmatprep.mubr.f32.mxu0 0.0
    %6126 = vmatmul.mubr.f32.gmra.mrb[0].mxu0 %v6059
    %v6127 = vpop.f32.mrb[0].mxu0
    %v6128 = vadd.f32 0.0, %v6127
    %v6129 = vpop.f32.mrb[0].mxu0
    %6130 = vdwg.mxu0
    %v6132 = vsel %vm1012, %v6024, 0
    %6134 = vmatprep.subr.mxu0 0.0
    %6135 = vmatpush1.msra.mxu0 %v6049
    %6136 = vmatprep.subr.mxu0 0.0
    %6137 = vmatpush1.msra.mxu0 %v6050
    %6138 = vmatprep.subr.mxu0 0.0
    %6139 = vmatpush1.msra.mxu0 %v6051
    %6140 = vmatprep.subr.mxu0 0.0
    %6141 = vmatpush1.msra.mxu0 %v6052
    %6142 = vmatprep.subr.mxu0 0.0
    %6143 = vmatpush1.msra.mxu0 0.0
    %6144 = vmatprep.subr.mxu0 0.0
    %6145 = vmatpush1.msra.mxu0 0.0
    %6146 = vmatprep.subr.mxu0 0.0
    %6147 = vmatpush1.msra.mxu0 0.0
    %6148 = vmatprep.subr.mxu0 0.0
    %6149 = vmatpush1.msra.mxu0 0.0
    %6150 = vmatprep.subr.mxu0 0.0
    %6151 = vmatpush1.msra.mxu0 0.0
    %6152 = vmatprep.subr.mxu0 0.0
    %6153 = vmatpush1.msra.mxu0 0.0
    %6154 = vmatprep.subr.mxu0 0.0
    %6155 = vmatpush1.msra.mxu0 0.0
    %6156 = vmatprep.subr.mxu0 0.0
    %6157 = vmatpush1.msra.mxu0 0.0
    %6158 = vmatprep.subr.mxu0 0.0
    %6159 = vmatpush1.msra.mxu0 0.0
    %6160 = vmatprep.subr.mxu0 0.0
    %6161 = vmatpush1.msra.mxu0 0.0
    %6162 = vmatprep.subr.mxu0 0.0
    %6163 = vmatpush1.msra.mxu0 0.0
    %6164 = vmatprep.subr.mxu0 0.0
    %6165 = vmatpush1.msra.mxu0 0.0
    %6166 = vmatprep.subr.mxu0 0.0
    %6167 = vmatpush1.msra.mxu0 0.0
    %6168 = vmatprep.subr.mxu0 0.0
    %6169 = vmatpush1.msra.mxu0 0.0
    %6170 = vmatprep.subr.mxu0 0.0
    %6171 = vmatpush1.msra.mxu0 0.0
    %6172 = vmatprep.subr.mxu0 0.0
    %6173 = vmatpush1.msra.mxu0 0.0
    %6174 = vmatprep.subr.mxu0 0.0
    %6175 = vmatpush1.msra.mxu0 0.0
    %6176 = vmatprep.subr.mxu0 0.0
    %6177 = vmatpush1.msra.mxu0 0.0
    %6178 = vmatprep.subr.mxu0 0.0
    %6179 = vmatpush1.msra.mxu0 0.0
    %6180 = vmatprep.subr.mxu0 0.0
    %6181 = vmatpush1.msra.mxu0 0.0
    %6182 = vmatprep.subr.mxu0 0.0
    %6183 = vmatpush1.msra.mxu0 0.0
    %6184 = vmatprep.subr.mxu0 0.0
    %6185 = vmatpush1.msra.mxu0 0.0
    %6186 = vmatprep.subr.mxu0 0.0
    %6187 = vmatpush1.msra.mxu0 0.0
    %6188 = vmatprep.subr.mxu0 0.0
    %6189 = vmatpush1.msra.mxu0 0.0
    %6190 = vmatprep.subr.mxu0 0.0
    %6191 = vmatpush1.msra.mxu0 0.0
    %6192 = vmatprep.subr.mxu0 0.0
    %6193 = vmatpush1.msra.mxu0 0.0
    %6194 = vmatprep.subr.mxu0 0.0
    %6195 = vmatpush1.msra.mxu0 0.0
    %6196 = vmatprep.subr.mxu0 0.0
    %6197 = vmatpush1.msra.mxu0 0.0
    %6198 = vmatprep.mubr.f32.mxu0 0.0
    %6199 = vmatmul.mubr.f32.gmra.mrb[0].mxu0 %v6132
    %v6200 = vpop.f32.mrb[0].mxu0
    %v6201 = vadd.f32 %v6128, %v6200
    %v6202 = vpop.f32.mrb[0].mxu0
    %6203 = vdwg.mxu0
    %v6204 = vld [vmem:[%s6] sm:$0x1]
    %v6206 = vlaneseq
    %v6207 = vshrl.u32 %v6206, 7
    %v6208 = vsub.s32 0, %v6207
    %v6209 = vrot.slane %v6204, %v6208
    %v6211 = vadd.f32 %v6201, %v6209
    %v6212 = vld [vmem:[%s7] sm:$0xff]
    %v6213 = vld [vmem:[%s7 + $0x8] sm:$0xff]
    %v6214 = vld [vmem:[%s7 + $0x10] sm:$0xff]
    %v6215 = vld [vmem:[%s7 + $0x18] sm:$0xff]
    %s6216 = scalar_lea.vmem %s7, 32
    %v6217 = vld [vmem:[%s6216] sm:$0xff]
    %v6218 = vld [vmem:[%s6216 + $0x8] sm:$0xff]
    %v6219 = vld [vmem:[%s6216 + $0x10] sm:$0xff]
    %v6220 = vld [vmem:[%s6216 + $0x18] sm:$0xff]
    %6221 = vmatprep.subr.mxu0 0.0
    %6222 = vmatpush1.msra.mxu0 %v6217
    %6223 = vmatprep.subr.mxu0 0.0
    %6224 = vmatpush1.msra.mxu0 %v6218
    %6225 = vmatprep.subr.mxu0 0.0
    %6226 = vmatpush1.msra.mxu0 %v6219
    %6227 = vmatprep.subr.mxu0 0.0
    %6228 = vmatpush1.msra.mxu0 %v6220
    %6229 = vmatprep.subr.mxu0 0.0
    %6230 = vmatpush1.msra.mxu0 0.0
    %6231 = vmatprep.subr.mxu0 0.0
    %6232 = vmatpush1.msra.mxu0 0.0
    %6233 = vmatprep.subr.mxu0 0.0
    %6234 = vmatpush1.msra.mxu0 0.0
    %6235 = vmatprep.subr.mxu0 0.0
    %6236 = vmatpush1.msra.mxu0 0.0
    %6237 = vmatprep.subr.mxu0 0.0
    %6238 = vmatpush1.msra.mxu0 0.0
    %6239 = vmatprep.subr.mxu0 0.0
    %6240 = vmatpush1.msra.mxu0 0.0
    %6241 = vmatprep.subr.mxu0 0.0
    %6242 = vmatpush1.msra.mxu0 0.0
    %6243 = vmatprep.subr.mxu0 0.0
    %6244 = vmatpush1.msra.mxu0 0.0
    %6245 = vmatprep.subr.mxu0 0.0
    %6246 = vmatpush1.msra.mxu0 0.0
    %6247 = vmatprep.subr.mxu0 0.0
    %6248 = vmatpush1.msra.mxu0 0.0
    %6249 = vmatprep.subr.mxu0 0.0
    %6250 = vmatpush1.msra.mxu0 0.0
    %6251 = vmatprep.subr.mxu0 0.0
    %6252 = vmatpush1.msra.mxu0 0.0
    %6253 = vmatprep.subr.mxu0 0.0
    %6254 = vmatpush1.msra.mxu0 0.0
    %6255 = vmatprep.subr.mxu0 0.0
    %6256 = vmatpush1.msra.mxu0 0.0
    %6257 = vmatprep.subr.mxu0 0.0
    %6258 = vmatpush1.msra.mxu0 0.0
    %6259 = vmatprep.subr.mxu0 0.0
    %6260 = vmatpush1.msra.mxu0 0.0
    %6261 = vmatprep.subr.mxu0 0.0
    %6262 = vmatpush1.msra.mxu0 0.0
    %6263 = vmatprep.subr.mxu0 0.0
    %6264 = vmatpush1.msra.mxu0 0.0
    %6265 = vmatprep.subr.mxu0 0.0
    %6266 = vmatpush1.msra.mxu0 0.0
    %6267 = vmatprep.subr.mxu0 0.0
    %6268 = vmatpush1.msra.mxu0 0.0
    %6269 = vmatprep.subr.mxu0 0.0
    %6270 = vmatpush1.msra.mxu0 0.0
    %6271 = vmatprep.subr.mxu0 0.0
    %6272 = vmatpush1.msra.mxu0 0.0
    %6273 = vmatprep.subr.mxu0 0.0
    %6274 = vmatpush1.msra.mxu0 0.0
    %6275 = vmatprep.subr.mxu0 0.0
    %6276 = vmatpush1.msra.mxu0 0.0
    %6277 = vmatprep.subr.mxu0 0.0
    %6278 = vmatpush1.msra.mxu0 0.0
    %6279 = vmatprep.subr.mxu0 0.0
    %6280 = vmatpush1.msra.mxu0 0.0
    %6281 = vmatprep.subr.mxu0 0.0
    %6282 = vmatpush1.msra.mxu0 0.0
    %6283 = vmatprep.subr.mxu0 0.0
    %6284 = vmatpush1.msra.mxu0 0.0
    %6285 = vmatprep.mubr.f32.mxu0 0.0
    %6286 = vmatmul.mubr.f32.gmra.mrb[0].mxu0 %v6059
    %v6287 = vpop.f32.mrb[0].mxu0
    %v6288 = vadd.f32 0.0, %v6287
    %v6289 = vpop.f32.mrb[0].mxu0
    %6290 = vdwg.mxu0
    %6291 = vmatprep.subr.mxu0 0.0
    %6292 = vmatpush1.msra.mxu0 %v6212
    %6293 = vmatprep.subr.mxu0 0.0
    %6294 = vmatpush1.msra.mxu0 %v6213
    %6295 = vmatprep.subr.mxu0 0.0
    %6296 = vmatpush1.msra.mxu0 %v6214
    %6297 = vmatprep.subr.mxu0 0.0
    %6298 = vmatpush1.msra.mxu0 %v6215
    %6299 = vmatprep.subr.mxu0 0.0
    %6300 = vmatpush1.msra.mxu0 0.0
    %6301 = vmatprep.subr.mxu0 0.0
    %6302 = vmatpush1.msra.mxu0 0.0
    %6303 = vmatprep.subr.mxu0 0.0
    %6304 = vmatpush1.msra.mxu0 0.0
    %6305 = vmatprep.subr.mxu0 0.0
    %6306 = vmatpush1.msra.mxu0 0.0
    %6307 = vmatprep.subr.mxu0 0.0
    %6308 = vmatpush1.msra.mxu0 0.0
    %6309 = vmatprep.subr.mxu0 0.0
    %6310 = vmatpush1.msra.mxu0 0.0
    %6311 = vmatprep.subr.mxu0 0.0
    %6312 = vmatpush1.msra.mxu0 0.0
    %6313 = vmatprep.subr.mxu0 0.0
    %6314 = vmatpush1.msra.mxu0 0.0
    %6315 = vmatprep.subr.mxu0 0.0
    %6316 = vmatpush1.msra.mxu0 0.0
    %6317 = vmatprep.subr.mxu0 0.0
    %6318 = vmatpush1.msra.mxu0 0.0
    %6319 = vmatprep.subr.mxu0 0.0
    %6320 = vmatpush1.msra.mxu0 0.0
    %6321 = vmatprep.subr.mxu0 0.0
    %6322 = vmatpush1.msra.mxu0 0.0
    %6323 = vmatprep.subr.mxu0 0.0
    %6324 = vmatpush1.msra.mxu0 0.0
    %6325 = vmatprep.subr.mxu0 0.0
    %6326 = vmatpush1.msra.mxu0 0.0
    %6327 = vmatprep.subr.mxu0 0.0
    %6328 = vmatpush1.msra.mxu0 0.0
    %6329 = vmatprep.subr.mxu0 0.0
    %6330 = vmatpush1.msra.mxu0 0.0
    %6331 = vmatprep.subr.mxu0 0.0
    %6332 = vmatpush1.msra.mxu0 0.0
    %6333 = vmatprep.subr.mxu0 0.0
    %6334 = vmatpush1.msra.mxu0 0.0
    %6335 = vmatprep.subr.mxu0 0.0
    %6336 = vmatpush1.msra.mxu0 0.0
    %6337 = vmatprep.subr.mxu0 0.0
    %6338 = vmatpush1.msra.mxu0 0.0
    %6339 = vmatprep.subr.mxu0 0.0
    %6340 = vmatpush1.msra.mxu0 0.0
    %6341 = vmatprep.subr.mxu0 0.0
    %6342 = vmatpush1.msra.mxu0 0.0
    %6343 = vmatprep.subr.mxu0 0.0
    %6344 = vmatpush1.msra.mxu0 0.0
    %6345 = vmatprep.subr.mxu0 0.0
    %6346 = vmatpush1.msra.mxu0 0.0
    %6347 = vmatprep.subr.mxu0 0.0
    %6348 = vmatpush1.msra.mxu0 0.0
    %6349 = vmatprep.subr.mxu0 0.0
    %6350 = vmatpush1.msra.mxu0 0.0
    %6351 = vmatprep.subr.mxu0 0.0
    %6352 = vmatpush1.msra.mxu0 0.0
    %6353 = vmatprep.subr.mxu0 0.0
    %6354 = vmatpush1.msra.mxu0 0.0
    %6355 = vmatprep.mubr.f32.mxu0 0.0
    %6356 = vmatmul.mubr.f32.gmra.mrb[0].mxu0 %v6132
    %v6357 = vpop.f32.mrb[0].mxu0
    %v6358 = vadd.f32 %v6288, %v6357
    %v6359 = vpop.f32.mrb[0].mxu0
    %6360 = vdwg.mxu0
    %v6361 = vld [vmem:[%s8] sm:$0x1]
    %v6363 = vlaneseq
    %v6364 = vshrl.u32 %v6363, 7
    %v6365 = vsub.s32 0, %v6364
    %v6366 = vrot.slane %v6361, %v6365
    %v6368 = vadd.f32 %v6358, %v6366
    %s6369 = sld [smem:[#allocation3]]
    %vm6370 = vcmask 60416
    %v6371 = vsel %vm6370, %v6211, 0.0
    %v6372 = vrot.slane %v6371, 4
    %v6373 = vadd.f32 %v6371, %v6372
    %v6374 = vrot.slane %v6373, 2
    %v6375 = vadd.f32 %v6373, %v6374
    %v6376 = vrot.slane %v6375, 1
    %v6377 = vadd.f32 %v6375, %v6376
    %v6378 = vrcp.pop 4.0
    %v6379 = vmul.f32 %v6377, %v6378
    %v6380 = vsub.f32 %v6211, %v6379
    %v6381 = vmul.f32 %v6380, %v6380
    %v6382 = vsel %vm6370, %v6381, 0.0
    %v6383 = vrot.slane %v6382, 4
    %v6384 = vadd.f32 %v6382, %v6383
    %v6385 = vrot.slane %v6384, 2
    %v6386 = vadd.f32 %v6384, %v6385
    %v6387 = vrot.slane %v6386, 1
    %v6388 = vadd.f32 %v6386, %v6387
    %v6389 = vmul.f32 %v6388, %v6378
    %v6390 = vadd.f32 %v6389, 1e-05
    %v6391 = vrsqrt.pop %v6390
    %v6392 = vmul.f32 %v6380, %v6391
    %v6393 = vstv %s6369
    %v6394 = vmul.f32 %v6393, %v6392
    %6395 = vst.msk [vmem:[#allocation8] sm:$0xf] %vm6370, %v6394
    %s6396 = sld [smem:[#allocation3 + $0x1]]
    %v6397 = vsel %vm6370, %v6368, 0.0
    %v6398 = vrot.slane %v6397, 4
    %v6399 = vadd.f32 %v6397, %v6398
    %v6400 = vrot.slane %v6399, 2
    %v6401 = vadd.f32 %v6399, %v6400
    %v6402 = vrot.slane %v6401, 1
    %v6403 = vadd.f32 %v6401, %v6402
    %v6404 = vmul.f32 %v6403, %v6378
    %v6405 = vsub.f32 %v6368, %v6404
    %v6406 = vmul.f32 %v6405, %v6405
    %v6407 = vsel %vm6370, %v6406, 0.0
    %v6408 = vrot.slane %v6407, 4
    %v6409 = vadd.f32 %v6407, %v6408
    %v6410 = vrot.slane %v6409, 2
    %v6411 = vadd.f32 %v6409, %v6410
    %v6412 = vrot.slane %v6411, 1
    %v6413 = vadd.f32 %v6411, %v6412
    %v6414 = vmul.f32 %v6413, %v6378
    %v6415 = vadd.f32 %v6414, 1e-05
    %v6416 = vrsqrt.pop %v6415
    %v6417 = vmul.f32 %v6405, %v6416
    %v6418 = vstv %s6396
    %v6419 = vmul.f32 %v6418, %v6417
    %v6420 = vmul.f32 %v6419, 1.442695
    %v6421 = vpow.pop %v6420
    %s6422 = scalar_lea.vmem [#allocation8], 4
    %6423 = vst.msk [vmem:[%s6422] sm:$0xf] %vm6370, %v6421
    // Predicated region
    $region46: #{tpu_custom_call.1} parent=1 // pred_check
      _
    $region47: #{tpu_custom_call.1} parent=1 // pred_check_branch
      %6425 = sbr.rel (0) target = $region49
    $region48: #{tpu_custom_call.1} parent=1 // pred_region
      %s6427 = ssub.s32 128, 128
      %6428 = vsyncadd [#allocation5], %s6427
      %s6429 = sshll.u32 [#allocation8], 4
      %s6430 = int_to_ptr.vmem [resolvable:$true] %s6429
      %6435 = dma.vmem_to_hbm [thread:$0]  %s6430, 128, %s9, [#allocation5], 64, 64, 4
    $region49: #{tpu_custom_call.1} parent=1 // pred_fallthru
      _
    // Predicated region
    $region50: #{tpu_custom_call.1} parent=1 // pred_check
      _
    $region51: #{tpu_custom_call.1} parent=1 // pred_check_branch
      %6437 = sbr.rel (0) target = $region53
    $region52: #{tpu_custom_call.1} parent=1 // pred_region
      %6438 = dma.done [#allocation5], 128
    $region53: #{tpu_custom_call.1} parent=1 // pred_fallthru
      _
    %6439 = vsyncpa [#allocation4], 1
    %6440 = vsyncpa [#allocation5], 1
    %6441 = vsyncpa [#allocation6], 1

</llo_original>
